<compile_context>
chip_gen: v7x
topology: tpu7x:2x2x1
jax: 0.10.0
libtpu: 0.0.40
codegen_flags: <defaults>
</compile_context>

<pallas_src>
import math
import numpy as np
import jax
import jax.numpy as jnp
from jax.experimental import pallas as pl
from jax.experimental.pallas import tpu as pltpu

LN_EPS = 1e-5
_HIGHEST = jax.lax.Precision.HIGHEST


def make_positional_encoding(embed_dim, max_len=100):
    """Reproduces PositionalEncoding.__init__ buffer exactly (rows >= 36 stay zero)."""
    pe = np.zeros((max_len, embed_dim), dtype=np.float32)
    position = np.arange(0, max_len, dtype=np.float32)[:, None]
    div_term = np.exp(
        np.arange(0, embed_dim, 2, dtype=np.float32) * -(math.log(10000.0) / embed_dim)
    )
    offsets = [2016, 288, 12]
    for i in range(3):
        sl = slice(i * 12, (i + 1) * 12)
        pe[sl, 0::2] = np.sin((position[sl] + offsets[i]) * div_term)
        pe[sl, 1::2] = np.cos((position[sl] + offsets[i]) * div_term)
    return jnp.asarray(pe)


def _choose_bn_tile(bn, c, t, e, target_vmem_bytes=12 << 20):
    """Pick the per-step tile over the flattened (B*N) axis.

    * tile divides B*N exactly and is a multiple of 8 (sublane alignment) or == B*N,
    * NO forced multi-step grid: a single step is best on 1-TC chips (v5e/v6e) and
      fine for small inputs on v7x,
    * VMEM budget covers BOTH double-buffered blocks (input C*T cols + output T*E cols)
      plus the resident constant operands, staying under the 16 MiB v5e scoped default.
    """
    row_bytes = 2 * (t * e + c * t) * 4  # double-buffered input + output, f32
    # Resident constants (rough, padded): W_big + Gmean(lane-padded) + GT stack + params.
    const_bytes = 4 * (c * t * t * e + t * e * 128 + 2 * 16 * t * e + 8 * t * e)
    budget = max(row_bytes * 8, target_vmem_bytes - const_bytes)
    cap = max(8, budget // row_bytes)
    if bn <= cap:
        return bn                      # one grid step, zero extra pipeline overhead
    fitting = [d for d in range(8, bn, 8) if bn % d == 0 and d <= cap]
    if fitting:
        return max(fitting)            # biggest tile that fits (>=512 rows when possible)
    any8 = [d for d in range(8, bn, 8) if bn % d == 0]
    # TODO(synk): pad B*N to a multiple of 8 instead of falling back to a full-array tile.
    return max(any8) if any8 else bn


def data_embedding_kernel(x_ref, wbig_ref, gmean_ref, gts_ref, params_ref, o_ref):
    # x_ref     : (M, C*T)    native-layout input rows, column index = c*T + t
    # wbig_ref  : (C*T, T*E)  block-expanded Linear weight: W_big[c*T+t, t*E+e] = W[c, e]
    # gmean_ref : (T*E, T)    segment-mean matrix (entries 1/E on matching t blocks)
    # gts_ref   : (2, T, T*E) [0] plain broadcast-back, [1] gamma-scaled broadcast-back
    # params_ref: (2, T*E)    [0] token_embed bias tiled per t, [1] beta + PE[:T] flattened
    # o_ref     : (M, T*E)    lane-dense output rows, column index = t*E + e
    f32 = jnp.float32
    x = x_ref[...].astype(f32)
    bias_row = params_ref[0:1, :]                                   # (1, T*E)
    pb_row = params_ref[1:2, :]                                     # (1, T*E)

    # Token embedding (Linear) as one lane-dense MXU matmul:
    #   h[m, t*E+e] = sum_c x[m, c*T+t] * W[c, e] + b[e]
    h = jnp.dot(x, wbig_ref[...], precision=_HIGHEST,
                preferred_element_type=f32) + bias_row              # (M, T*E)

    # LayerNorm over E, kept lane-dense: per-t mean/var via segment-sum matmuls (MXU),
    # broadcast back with the transposed segment matrix (two-pass variance form).
    gmean = gmean_ref[...]
    mean_seg = jnp.dot(h, gmean, precision=_HIGHEST,
                       preferred_element_type=f32)                  # (M, T)
    mean_full = jnp.dot(mean_seg, gts_ref[0], precision=_HIGHEST,
                        preferred_element_type=f32)                 # (M, T*E)
    d = h - mean_full
    var_seg = jnp.dot(d * d, gmean, precision=_HIGHEST,
                      preferred_element_type=f32)                   # (M, T)
    inv_seg = jax.lax.rsqrt(var_seg + LN_EPS)                       # (M, T)
    # invstd * gamma broadcast to (M, T*E) in one matmul (gamma folded into gts[1]).
    scale_full = jnp.dot(inv_seg, gts_ref[1], precision=_HIGHEST,
                         preferred_element_type=f32)                # (M, T*E)

    # Epilogue: gamma * LN(h) + (beta + PE[t]); single full-width unmasked store.
    o_ref[...] = (d * scale_full + pb_row).astype(o_ref.dtype)


def data_embedding(X, W, b, gamma, beta, pe_full, bn_tile=None, out_dtype=None):
    """DataEmbedding forward: X (B, N, C, T) -> (B, N, T, E). Eval-mode dropout.

    out_dtype: optionally emit bf16 to halve HBM writeback (compute stays f32)."""
    B, N, C, T = X.shape
    E = W.shape[1]
    BN = B * N
    TE = T * E
    f32 = jnp.float32
    if out_dtype is None:
        out_dtype = X.dtype

    x_flat = X.reshape(BN, C * T)                       # free reshape, native layout

    # ---- wrapper-side constant folding / block expansion (once per call) ----
    eye_t = jnp.eye(T, dtype=f32)
    # W_big[c*T + t, t*E + e] = W[c, e]
    w_big = jnp.einsum("ce,tu->ctue", W.astype(f32), eye_t).reshape(C * T, TE)
    # Segment-mean matrix: Gmean[t*E + e, t] = 1/E
    g_mean = jnp.repeat(eye_t, E, axis=0) / E
    # Broadcast-back matrices: plain (ones) and gamma-scaled.
    gt_plain = jnp.repeat(eye_t, E, axis=1)                              # (T, T*E)
    gt_gamma = gt_plain * jnp.tile(gamma.astype(f32), T)[None, :]        # (T, T*E)
    gts = jnp.stack([gt_plain, gt_gamma], axis=0)                        # (2, T, T*E)
    # Row 0: Linear bias tiled per t; row 1: beta folded into PE, flattened (t*E + e).
    bias_big = jnp.tile(b.astype(f32), T)
    pb_big = (pe_full[:T, :].astype(f32) + beta.astype(f32)[None, :]).reshape(TE)
    params = jnp.stack([bias_big, pb_big], axis=0)                       # (2, T*E)

    if bn_tile is None:
        bn_tile = _choose_bn_tile(BN, C, T, E)
    assert BN % bn_tile == 0 and (bn_tile == BN or bn_tile % 8 == 0), (BN, bn_tile)
    grid = BN // bn_tile

    out_flat = pl.pallas_call(
        data_embedding_kernel,
        out_shape=jax.ShapeDtypeStruct((BN, TE), out_dtype),
        grid_spec=pltpu.PrefetchScalarGridSpec(
            num_scalar_prefetch=0,
            grid=(grid,),
            in_specs=[
                pl.BlockSpec((bn_tile, C * T), lambda i: (i, 0)),
                # Constant index maps: resident across grid steps (no per-step re-DMA).
                pl.BlockSpec((C * T, TE), lambda i: (0, 0)),
                pl.BlockSpec((TE, T), lambda i: (0, 0)),
                pl.BlockSpec((2, T, TE), lambda i: (0, 0, 0)),
                pl.BlockSpec((2, TE), lambda i: (0, 0)),
            ],
            out_specs=pl.BlockSpec((bn_tile, TE), lambda i: (i, 0)),
        ),
        compiler_params=pltpu.CompilerParams(
            dimension_semantics=("arbitrary",),
        ),
    )(x_flat, w_big, g_mean, gts, params)

    return out_flat.reshape(B, N, T, E)


def reference(X, W, b, gamma, beta, pe_full):
    """Pure-JAX reference mirroring the PyTorch forward (eval-mode dropout)."""
    B, N, C, T = X.shape
    x = jnp.transpose(X, (0, 1, 3, 2))                                  # (B, N, T, C)
    h = jnp.einsum("bntc,ce->bnte", x, W, precision=_HIGHEST) + b       # Linear
    mean = jnp.mean(h, axis=-1, keepdims=True)
    var = jnp.mean((h - mean) ** 2, axis=-1, keepdims=True)
    h = (h - mean) / jnp.sqrt(var + LN_EPS) * gamma + beta
    h = h + pe_full[:T][None, None, :, :]                               # PE over B, N
    return h                                                            # (B, N, T, E)


if __name__ == "__main__":
    B, N, C, T, E = 2, 16, 4, 12, 32

    key = jax.random.PRNGKey(0)
    kx, kw, kb, kg, kbeta = jax.random.split(key, 5)

    X = jax.random.normal(kx, (B, N, C, T), dtype=jnp.float32)

    # nn.Linear(C, E): weight uniform(-1/sqrt(C), 1/sqrt(C)); stored here as (in, out).
    bound = 1.0 / math.sqrt(C)
    W = jax.random.uniform(kw, (C, E), minval=-bound, maxval=bound, dtype=jnp.float32)
    b = jax.random.uniform(kb, (E,), minval=-bound, maxval=bound, dtype=jnp.float32)
    # LayerNorm params: non-trivial values to exercise the gamma/beta folding.
    gamma = 1.0 + 0.1 * jax.random.normal(kg, (E,), dtype=jnp.float32)
    beta = 0.1 * jax.random.normal(kbeta, (E,), dtype=jnp.float32)

    pe_full = make_positional_encoding(E, max_len=100)

    out = jax.block_until_ready(data_embedding(X, W, b, gamma, beta, pe_full))

    ref = reference(X, W, b, gamma, beta, pe_full)
    assert out.shape == (B, N, T, E)
    np.testing.assert_allclose(np.asarray(out), np.asarray(ref), rtol=1e-5, atol=1e-5)

    print("KERNEL_OK")
</pallas_src>

<mosaic_0001>
module attributes {stable_mosaic.version = 11 : i64} {
  func.func @data_embedding_kernel(%arg0: i32, %arg1: memref<32x48xf32, #tpu.memory_space<vmem>>, %arg2: memref<48x384xf32, #tpu.memory_space<vmem>>, %arg3: memref<384x12xf32, #tpu.memory_space<vmem>>, %arg4: memref<2x12x384xf32, #tpu.memory_space<vmem>>, %arg5: memref<2x384xf32, #tpu.memory_space<vmem>>, %arg6: memref<32x384xf32, #tpu.memory_space<vmem>>) attributes {dimension_semantics = [#tpu.dimension_semantics<arbitrary>], iteration_bounds = array<i64: 1>, scalar_prefetch = 0 : i64, scratch_operands = 0 : i64, tpu.core_type = #tpu.core_type<tc>, window_params = [{transform_indices = @transform_0, window_bounds = array<i64: 32, 48>}, {pipeline_mode = #tpu.pipeline_mode<synchronous>, transform_indices = @transform_1, window_bounds = array<i64: 48, 384>}, {pipeline_mode = #tpu.pipeline_mode<synchronous>, transform_indices = @transform_2, window_bounds = array<i64: 384, 12>}, {pipeline_mode = #tpu.pipeline_mode<synchronous>, transform_indices = @transform_3, window_bounds = array<i64: 2, 12, 384>}, {pipeline_mode = #tpu.pipeline_mode<synchronous>, transform_indices = @transform_4, window_bounds = array<i64: 2, 384>}, {transform_indices = @transform_5, window_bounds = array<i64: 32, 384>}]} {
    %c0 = arith.constant 0 : index
    %c0_0 = arith.constant 0 : index
    %0 = vector.load %arg1[%c0, %c0_0] : memref<32x48xf32, #tpu.memory_space<vmem>>, vector<32x48xf32>
    %c0_1 = arith.constant 0 : index
    %c0_2 = arith.constant 0 : index
    %1 = vector.load %arg5[%c0_1, %c0_2] : memref<2x384xf32, #tpu.memory_space<vmem>>, vector<1x384xf32>
    %c1 = arith.constant 1 : index
    %c0_3 = arith.constant 0 : index
    %2 = vector.load %arg5[%c1, %c0_3] : memref<2x384xf32, #tpu.memory_space<vmem>>, vector<1x384xf32>
    %c0_4 = arith.constant 0 : index
    %c0_5 = arith.constant 0 : index
    %3 = vector.load %arg2[%c0_4, %c0_5] : memref<48x384xf32, #tpu.memory_space<vmem>>, vector<48x384xf32>
    %cst = arith.constant dense<0.000000e+00> : vector<32x384xf32>
    %4 = tpu.matmul %0, %3, %cst {dimension_numbers = #tpu.dot_dimension_numbers<[1], [0], [0], [1], [0, 0, 1, 1], [], []>, precision = #tpu.contract_precision<fp32>} : vector<32x48xf32>, vector<48x384xf32>, vector<32x384xf32> -> vector<32x384xf32>
    %5 = vector.broadcast %1 : vector<1x384xf32> to vector<32x384xf32>
    %6 = arith.addf %4, %5 : vector<32x384xf32>
    %c0_6 = arith.constant 0 : index
    %c0_7 = arith.constant 0 : index
    %7 = vector.load %arg3[%c0_6, %c0_7] : memref<384x12xf32, #tpu.memory_space<vmem>>, vector<384x12xf32>
    %cst_8 = arith.constant dense<0.000000e+00> : vector<32x12xf32>
    %8 = tpu.matmul %6, %7, %cst_8 {dimension_numbers = #tpu.dot_dimension_numbers<[1], [0], [0], [1], [0, 0, 1, 1], [], []>, precision = #tpu.contract_precision<fp32>} : vector<32x384xf32>, vector<384x12xf32>, vector<32x12xf32> -> vector<32x12xf32>
    %c0_9 = arith.constant 0 : index
    %c0_10 = arith.constant 0 : index
    %c0_11 = arith.constant 0 : index
    %9 = vector.load %arg4[%c0_9, %c0_10, %c0_11] : memref<2x12x384xf32, #tpu.memory_space<vmem>>, vector<1x12x384xf32>
    %10 = vector.shape_cast %9 : vector<1x12x384xf32> to vector<12x384xf32>
    %cst_12 = arith.constant dense<0.000000e+00> : vector<32x384xf32>
    %11 = tpu.matmul %8, %10, %cst_12 {dimension_numbers = #tpu.dot_dimension_numbers<[1], [0], [0], [1], [0, 0, 1, 1], [], []>, precision = #tpu.contract_precision<fp32>} : vector<32x12xf32>, vector<12x384xf32>, vector<32x384xf32> -> vector<32x384xf32>
    %12 = arith.subf %6, %11 : vector<32x384xf32>
    %13 = arith.mulf %12, %12 : vector<32x384xf32>
    %cst_13 = arith.constant dense<0.000000e+00> : vector<32x12xf32>
    %14 = tpu.matmul %13, %7, %cst_13 {dimension_numbers = #tpu.dot_dimension_numbers<[1], [0], [0], [1], [0, 0, 1, 1], [], []>, precision = #tpu.contract_precision<fp32>} : vector<32x384xf32>, vector<384x12xf32>, vector<32x12xf32> -> vector<32x12xf32>
    %cst_14 = arith.constant 9.99999974E-6 : f32
    %15 = vector.broadcast %cst_14 : f32 to vector<32x12xf32>
    %16 = arith.addf %14, %15 : vector<32x12xf32>
    %17 = math.rsqrt %16 : vector<32x12xf32>
    %c1_15 = arith.constant 1 : index
    %c0_16 = arith.constant 0 : index
    %c0_17 = arith.constant 0 : index
    %18 = vector.load %arg4[%c1_15, %c0_16, %c0_17] : memref<2x12x384xf32, #tpu.memory_space<vmem>>, vector<1x12x384xf32>
    %19 = vector.shape_cast %18 : vector<1x12x384xf32> to vector<12x384xf32>
    %cst_18 = arith.constant dense<0.000000e+00> : vector<32x384xf32>
    %20 = tpu.matmul %17, %19, %cst_18 {dimension_numbers = #tpu.dot_dimension_numbers<[1], [0], [0], [1], [0, 0, 1, 1], [], []>, precision = #tpu.contract_precision<fp32>} : vector<32x12xf32>, vector<12x384xf32>, vector<32x384xf32> -> vector<32x384xf32>
    %21 = arith.mulf %12, %20 : vector<32x384xf32>
    %22 = vector.broadcast %2 : vector<1x384xf32> to vector<32x384xf32>
    %23 = arith.addf %21, %22 : vector<32x384xf32>
    %c0_19 = arith.constant 0 : index
    %c0_20 = arith.constant 0 : index
    %24 = vector.load %arg6[%c0_19, %c0_20] : memref<32x384xf32, #tpu.memory_space<vmem>>, vector<32x384xf32>
    tpu.vector_store %arg6[%c0_19, %c0_20], %23 {strides = array<i32>} : memref<32x384xf32, #tpu.memory_space<vmem>>, vector<32x384xf32>,
    return
  }
  func.func @transform_0(%arg0: i32) -> (i32, i32) {
    %c0_i32 = arith.constant 0 : i32
    %c0_i32_0 = arith.constant 0 : i32
    return %arg0, %c0_i32 : i32, i32
  }
  func.func @transform_1(%arg0: i32) -> (i32, i32) {
    %c0_i32 = arith.constant 0 : i32
    %c0_i32_0 = arith.constant 0 : i32
    %c0_i32_1 = arith.constant 0 : i32
    return %c0_i32, %c0_i32_0 : i32, i32
  }
  func.func @transform_2(%arg0: i32) -> (i32, i32) {
    %c0_i32 = arith.constant 0 : i32
    %c0_i32_0 = arith.constant 0 : i32
    %c0_i32_1 = arith.constant 0 : i32
    return %c0_i32, %c0_i32_0 : i32, i32
  }
  func.func @transform_3(%arg0: i32) -> (i32, i32, i32) {
    %c0_i32 = arith.constant 0 : i32
    %c0_i32_0 = arith.constant 0 : i32
    %c0_i32_1 = arith.constant 0 : i32
    %c0_i32_2 = arith.constant 0 : i32
    return %c0_i32, %c0_i32_0, %c0_i32_1 : i32, i32, i32
  }
  func.func @transform_4(%arg0: i32) -> (i32, i32) {
    %c0_i32 = arith.constant 0 : i32
    %c0_i32_0 = arith.constant 0 : i32
    %c0_i32_1 = arith.constant 0 : i32
    return %c0_i32, %c0_i32_0 : i32, i32
  }
  func.func @transform_5(%arg0: i32) -> (i32, i32) {
    %c0_i32 = arith.constant 0 : i32
    %c0_i32_0 = arith.constant 0 : i32
    return %arg0, %c0_i32 : i32, i32
  }
}

</mosaic_0001>

<llo_original>
// kernel: tpu_custom_call.1
$region0: #{tpu_custom_call.1}
  #allocation0 [shape = 'u32[]', space=smem, size = 0x4, offset = 0x4, fixed_abs, tag = 'smem constant byte address 0x4 - core index']
  #allocation1 [shape = 'u32[144,128]{1,0:T(1,128)}', space=vmem, size = 0x12000, scoped, tag = 'internal scratch']
  %s0 = inlined_call_operand.vmem [shape: f32[32,48], index: 0, kind: input, shape index: {}]
  %s1 = inlined_call_operand.vmem [shape: f32[48,384], index: 1, kind: input, shape index: {}]
  %s2 = inlined_call_operand.vmem [shape: f32[384,12], index: 2, kind: input, shape index: {}]
  %s3 = inlined_call_operand.vmem [shape: f32[2,12,384], index: 3, kind: input, shape index: {}]
  %s4 = inlined_call_operand.vmem [shape: f32[2,384], index: 4, kind: input, shape index: {}]
  %s5 = inlined_call_operand.hbm [shape: f32[32,384], index: 5, kind: output, shape index: {}]
  %s6 = sld [smem:[#allocation0]]
  $region30: #{tpu_custom_call.1} parent=0
    _
  %s8 = ssub.s32 1, %s6
  %s9 = scalar_select 0, %s8, %s6
  $region1: #{tpu_custom_call.1} parent=0
    #allocation2 [shape = 'u8[49152]{0}', space=vmem, size = 0xc000, scoped, tag = 'output window, operand 0, single buffered']
    #allocation3 [shape = 's32[1]{0}', space=sflag, size = 0x4, scoped, tag = 'scoped memory for tpu_custom_call.1']
    %10 = vsyncpa [#allocation3], 0
    // Predicated region
    $region2: #{tpu_custom_call.1} parent=1 // pred_check
      _
    $region3: #{tpu_custom_call.1} parent=1 // pred_check_branch
      %12 = sbr.rel (0) target = $region5
    $region4: #{tpu_custom_call.1} parent=1 // pred_region
      _
    $region5: #{tpu_custom_call.1} parent=1 // pred_fallthru
      _
    // Predicated region
    $region6: #{tpu_custom_call.1} parent=1 // pred_check
      _
    $region7: #{tpu_custom_call.1} parent=1 // pred_check_branch
      %14 = sbr.rel (0) target = $region9
    $region8: #{tpu_custom_call.1} parent=1 // pred_region
      _
    $region9: #{tpu_custom_call.1} parent=1 // pred_fallthru
      _
    // Predicated region
    $region10: #{tpu_custom_call.1} parent=1 // pred_check
      _
    $region11: #{tpu_custom_call.1} parent=1 // pred_check_branch
      %16 = sbr.rel (0) target = $region13
    $region12: #{tpu_custom_call.1} parent=1 // pred_region
      _
    $region13: #{tpu_custom_call.1} parent=1 // pred_fallthru
      _
    // Predicated region
    $region14: #{tpu_custom_call.1} parent=1 // pred_check
      _
    $region15: #{tpu_custom_call.1} parent=1 // pred_check_branch
      %18 = sbr.rel (0) target = $region17
    $region16: #{tpu_custom_call.1} parent=1 // pred_region
      _
    $region17: #{tpu_custom_call.1} parent=1 // pred_fallthru
      _
    // Predicated region
    $region18: #{tpu_custom_call.1} parent=1 // pred_check
      _
    $region19: #{tpu_custom_call.1} parent=1 // pred_check_branch
      %20 = sbr.rel (0) target = $region21
    $region20: #{tpu_custom_call.1} parent=1 // pred_region
      _
    $region21: #{tpu_custom_call.1} parent=1 // pred_fallthru
      _
    %v21 = vld [vmem:[%s0] sm:$0xff]
    %v22 = vld [vmem:[%s0 + $0x8] sm:$0xff]
    %v23 = vld [vmem:[%s0 + $0x10] sm:$0xff]
    %v24 = vld [vmem:[%s0 + $0x18] sm:$0xff]
    %v25 = vld [vmem:[%s4] ss:$2 sm:$0x7]
    %s26 = scalar_lea.vmem %s4, 1
    %v27 = vld [vmem:[%s26] ss:$2 sm:$0x7]
    %v28 = vld [vmem:[%s1] sm:$0xff]
    %v29 = vld [vmem:[%s1 + $0x8] sm:$0xff]
    %v30 = vld [vmem:[%s1 + $0x10] sm:$0xff]
    %v31 = vld [vmem:[%s1 + $0x18] sm:$0xff]
    %v32 = vld [vmem:[%s1 + $0x20] sm:$0xff]
    %v33 = vld [vmem:[%s1 + $0x28] sm:$0xff]
    %v34 = vld [vmem:[%s1 + $0x30] sm:$0xff]
    %v35 = vld [vmem:[%s1 + $0x38] sm:$0xff]
    %v36 = vld [vmem:[%s1 + $0x40] sm:$0xff]
    %v37 = vld [vmem:[%s1 + $0x48] sm:$0xff]
    %v38 = vld [vmem:[%s1 + $0x50] sm:$0xff]
    %v39 = vld [vmem:[%s1 + $0x58] sm:$0xff]
    %v40 = vld [vmem:[%s1 + $0x60] sm:$0xff]
    %v41 = vld [vmem:[%s1 + $0x68] sm:$0xff]
    %v42 = vld [vmem:[%s1 + $0x70] sm:$0xff]
    %v43 = vld [vmem:[%s1 + $0x78] sm:$0xff]
    %v44 = vld [vmem:[%s1 + $0x80] sm:$0xff]
    %v45 = vld [vmem:[%s1 + $0x88] sm:$0xff]
    %v47 = vlaneseq
    %v48 = vshrl.u32 %v47, 7
    %v49 = vsub.s32 0, %v48
    %v50 = vrot.slane %v25, %v49
    %v51 = vlaneseq
    %v52 = vshrl.u32 %v51, 7
    %v53 = vsub.s32 1, %v52
    %v54 = vrot.slane %v25, %v53
    %v55 = vlaneseq
    %v56 = vshrl.u32 %v55, 7
    %v57 = vsub.s32 2, %v56
    %v58 = vrot.slane %v25, %v57
    %vm62 = vcmask 392192
    %v64 = vsel %vm62, %v21, 0
    %v67 = vsel %vm62, %v22, 0
    %v70 = vsel %vm62, %v23, 0
    %v73 = vsel %vm62, %v24, 0
    %v75 = vand.u32 %v29, 4294901760
    %76 = vmatprep.subr.mxu0 %v75
    %v77 = vand.u32 %v28, 4294901760
    %78 = vmatpush1.msra.mxu0 %v77
    %v79 = vand.u32 %v32, 4294901760
    %80 = vmatprep.subr.mxu0 %v79
    %v81 = vand.u32 %v31, 4294901760
    %82 = vmatpush1.msra.mxu0 %v81
    %v83 = vand.u32 %v35, 4294901760
    %84 = vmatprep.subr.mxu0 %v83
    %v85 = vand.u32 %v34, 4294901760
    %86 = vmatpush1.msra.mxu0 %v85
    %v87 = vand.u32 %v38, 4294901760
    %88 = vmatprep.subr.mxu0 %v87
    %v89 = vand.u32 %v37, 4294901760
    %90 = vmatpush1.msra.mxu0 %v89
    %v91 = vand.u32 %v41, 4294901760
    %92 = vmatprep.subr.mxu0 %v91
    %v93 = vand.u32 %v40, 4294901760
    %94 = vmatpush1.msra.mxu0 %v93
    %v95 = vand.u32 %v44, 4294901760
    %96 = vmatprep.subr.mxu0 %v95
    %v97 = vand.u32 %v43, 4294901760
    %98 = vmatpush1.msra.mxu0 %v97
    %99 = vmatprep.subr.mxu0 0.0
    %100 = vmatpush1.msra.mxu0 0.0
    %101 = vmatprep.subr.mxu0 0.0
    %102 = vmatpush1.msra.mxu0 0.0
    %103 = vmatprep.subr.mxu0 0.0
    %104 = vmatpush1.msra.mxu0 0.0
    %105 = vmatprep.subr.mxu0 0.0
    %106 = vmatpush1.msra.mxu0 0.0
    %107 = vmatprep.subr.mxu0 0.0
    %108 = vmatpush1.msra.mxu0 0.0
    %109 = vmatprep.subr.mxu0 0.0
    %110 = vmatpush1.msra.mxu0 0.0
    %111 = vmatprep.subr.mxu0 0.0
    %112 = vmatpush1.msra.mxu0 0.0
    %113 = vmatprep.subr.mxu0 0.0
    %114 = vmatpush1.msra.mxu0 0.0
    %115 = vmatprep.subr.mxu0 0.0
    %116 = vmatpush1.msra.mxu0 0.0
    %117 = vmatprep.subr.mxu0 0.0
    %118 = vmatpush1.msra.mxu0 0.0
    %119 = vmatprep.subr.mxu0 0.0
    %120 = vmatpush1.msra.mxu0 0.0
    %121 = vmatprep.subr.mxu0 0.0
    %122 = vmatpush1.msra.mxu0 0.0
    %123 = vmatprep.subr.mxu0 0.0
    %124 = vmatpush1.msra.mxu0 0.0
    %125 = vmatprep.subr.mxu0 0.0
    %126 = vmatpush1.msra.mxu0 0.0
    %127 = vmatprep.subr.mxu0 0.0
    %128 = vmatpush1.msra.mxu0 0.0
    %129 = vmatprep.subr.mxu0 0.0
    %130 = vmatpush1.msra.mxu0 0.0
    %131 = vmatprep.subr.mxu0 0.0
    %132 = vmatpush1.msra.mxu0 0.0
    %133 = vmatprep.subr.mxu0 0.0
    %134 = vmatpush1.msra.mxu0 0.0
    %135 = vmatprep.subr.mxu0 0.0
    %136 = vmatpush1.msra.mxu0 0.0
    %137 = vmatprep.subr.mxu0 0.0
    %138 = vmatpush1.msra.mxu0 0.0
    %139 = vmatprep.subr.mxu0 0.0
    %140 = vmatpush1.msra.mxu0 0.0
    %141 = vmatprep.subr.mxu0 0.0
    %142 = vmatpush1.msra.mxu0 0.0
    %143 = vmatprep.subr.mxu0 0.0
    %144 = vmatpush1.msra.mxu0 0.0
    %145 = vmatprep.subr.mxu0 0.0
    %146 = vmatpush1.msra.mxu0 0.0
    %147 = vmatprep.subr.mxu0 0.0
    %148 = vmatpush1.msra.mxu0 0.0
    %149 = vmatprep.subr.mxu0 0.0
    %150 = vmatpush1.msra.mxu0 0.0
    %151 = vmatprep.mubr.f32.mxu0 0.0
    %v152 = vand.u32 %v64, 4294901760
    %v153 = vsub.f32 %v64, %v152
    %v154 = vand.u32 %v153, 4294901760
    %v155 = vsub.f32 %v153, %v154
    %v156 = vand.u32 %v155, 4294901760
    %157 = vmatmul.mubr.f32.gmra.mrb[0].mxu0 %v156
    %v158 = vpop.f32.mrb[0].mxu0
    %v159 = vadd.f32 %v50, %v158
    %v160 = vpop.f32.mrb[0].mxu0
    %v161 = vadd.f32 %v54, %v160
    %162 = vmatprep.mubr.f32.mxu0 0.0
    %v163 = vand.u32 %v67, 4294901760
    %v164 = vsub.f32 %v67, %v163
    %v165 = vand.u32 %v164, 4294901760
    %v166 = vsub.f32 %v164, %v165
    %v167 = vand.u32 %v166, 4294901760
    %168 = vmatmul.mubr.f32.gmra.mrb[0].mxu0 %v167
    %v169 = vpop.f32.mrb[0].mxu0
    %v170 = vadd.f32 %v50, %v169
    %v171 = vpop.f32.mrb[0].mxu0
    %v172 = vadd.f32 %v54, %v171
    %173 = vmatprep.mubr.f32.mxu0 0.0
    %v174 = vand.u32 %v70, 4294901760
    %v175 = vsub.f32 %v70, %v174
    %v176 = vand.u32 %v175, 4294901760
    %v177 = vsub.f32 %v175, %v176
    %v178 = vand.u32 %v177, 4294901760
    %179 = vmatmul.mubr.f32.gmra.mrb[0].mxu0 %v178
    %v180 = vpop.f32.mrb[0].mxu0
    %v181 = vadd.f32 %v50, %v180
    %v182 = vpop.f32.mrb[0].mxu0
    %v183 = vadd.f32 %v54, %v182
    %184 = vmatprep.mubr.f32.mxu0 0.0
    %v185 = vand.u32 %v73, 4294901760
    %v186 = vsub.f32 %v73, %v185
    %v187 = vand.u32 %v186, 4294901760
    %v188 = vsub.f32 %v186, %v187
    %v189 = vand.u32 %v188, 4294901760
    %190 = vmatmul.mubr.f32.gmra.mrb[0].mxu0 %v189
    %v191 = vpop.f32.mrb[0].mxu0
    %v192 = vadd.f32 %v50, %v191
    %v193 = vpop.f32.mrb[0].mxu0
    %v194 = vadd.f32 %v54, %v193
    %195 = vdwg.mxu0
    %v196 = vand.u32 %v29, 4294901760
    %v197 = vsub.f32 %v29, %v196
    %v198 = vand.u32 %v197, 4294901760
    %v199 = vsub.f32 %v197, %v198
    %v200 = vand.u32 %v199, 4294901760
    %201 = vmatprep.subr.mxu0 %v200
    %v202 = vand.u32 %v28, 4294901760
    %v203 = vsub.f32 %v28, %v202
    %v204 = vand.u32 %v203, 4294901760
    %v205 = vsub.f32 %v203, %v204
    %v206 = vand.u32 %v205, 4294901760
    %207 = vmatpush1.msra.mxu0 %v206
    %v208 = vand.u32 %v32, 4294901760
    %v209 = vsub.f32 %v32, %v208
    %v210 = vand.u32 %v209, 4294901760
    %v211 = vsub.f32 %v209, %v210
    %v212 = vand.u32 %v211, 4294901760
    %213 = vmatprep.subr.mxu0 %v212
    %v214 = vand.u32 %v31, 4294901760
    %v215 = vsub.f32 %v31, %v214
    %v216 = vand.u32 %v215, 4294901760
    %v217 = vsub.f32 %v215, %v216
    %v218 = vand.u32 %v217, 4294901760
    %219 = vmatpush1.msra.mxu0 %v218
    %v220 = vand.u32 %v35, 4294901760
    %v221 = vsub.f32 %v35, %v220
    %v222 = vand.u32 %v221, 4294901760
    %v223 = vsub.f32 %v221, %v222
    %v224 = vand.u32 %v223, 4294901760
    %225 = vmatprep.subr.mxu0 %v224
    %v226 = vand.u32 %v34, 4294901760
    %v227 = vsub.f32 %v34, %v226
    %v228 = vand.u32 %v227, 4294901760
    %v229 = vsub.f32 %v227, %v228
    %v230 = vand.u32 %v229, 4294901760
    %231 = vmatpush1.msra.mxu0 %v230
    %v232 = vand.u32 %v38, 4294901760
    %v233 = vsub.f32 %v38, %v232
    %v234 = vand.u32 %v233, 4294901760
    %v235 = vsub.f32 %v233, %v234
    %v236 = vand.u32 %v235, 4294901760
    %237 = vmatprep.subr.mxu0 %v236
    %v238 = vand.u32 %v37, 4294901760
    %v239 = vsub.f32 %v37, %v238
    %v240 = vand.u32 %v239, 4294901760
    %v241 = vsub.f32 %v239, %v240
    %v242 = vand.u32 %v241, 4294901760
    %243 = vmatpush1.msra.mxu0 %v242
    %v244 = vand.u32 %v41, 4294901760
    %v245 = vsub.f32 %v41, %v244
    %v246 = vand.u32 %v245, 4294901760
    %v247 = vsub.f32 %v245, %v246
    %v248 = vand.u32 %v247, 4294901760
    %249 = vmatprep.subr.mxu0 %v248
    %v250 = vand.u32 %v40, 4294901760
    %v251 = vsub.f32 %v40, %v250
    %v252 = vand.u32 %v251, 4294901760
    %v253 = vsub.f32 %v251, %v252
    %v254 = vand.u32 %v253, 4294901760
    %255 = vmatpush1.msra.mxu0 %v254
    %v256 = vand.u32 %v44, 4294901760
    %v257 = vsub.f32 %v44, %v256
    %v258 = vand.u32 %v257, 4294901760
    %v259 = vsub.f32 %v257, %v258
    %v260 = vand.u32 %v259, 4294901760
    %261 = vmatprep.subr.mxu0 %v260
    %v262 = vand.u32 %v43, 4294901760
    %v263 = vsub.f32 %v43, %v262
    %v264 = vand.u32 %v263, 4294901760
    %v265 = vsub.f32 %v263, %v264
    %v266 = vand.u32 %v265, 4294901760
    %267 = vmatpush1.msra.mxu0 %v266
    %268 = vmatprep.subr.mxu0 0.0
    %269 = vmatpush1.msra.mxu0 0.0
    %270 = vmatprep.subr.mxu0 0.0
    %271 = vmatpush1.msra.mxu0 0.0
    %272 = vmatprep.subr.mxu0 0.0
    %273 = vmatpush1.msra.mxu0 0.0
    %274 = vmatprep.subr.mxu0 0.0
    %275 = vmatpush1.msra.mxu0 0.0
    %276 = vmatprep.subr.mxu0 0.0
    %277 = vmatpush1.msra.mxu0 0.0
    %278 = vmatprep.subr.mxu0 0.0
    %279 = vmatpush1.msra.mxu0 0.0
    %280 = vmatprep.subr.mxu0 0.0
    %281 = vmatpush1.msra.mxu0 0.0
    %282 = vmatprep.subr.mxu0 0.0
    %283 = vmatpush1.msra.mxu0 0.0
    %284 = vmatprep.subr.mxu0 0.0
    %285 = vmatpush1.msra.mxu0 0.0
    %286 = vmatprep.subr.mxu0 0.0
    %287 = vmatpush1.msra.mxu0 0.0
    %288 = vmatprep.subr.mxu0 0.0
    %289 = vmatpush1.msra.mxu0 0.0
    %290 = vmatprep.subr.mxu0 0.0
    %291 = vmatpush1.msra.mxu0 0.0
    %292 = vmatprep.subr.mxu0 0.0
    %293 = vmatpush1.msra.mxu0 0.0
    %294 = vmatprep.subr.mxu0 0.0
    %295 = vmatpush1.msra.mxu0 0.0
    %296 = vmatprep.subr.mxu0 0.0
    %297 = vmatpush1.msra.mxu0 0.0
    %298 = vmatprep.subr.mxu0 0.0
    %299 = vmatpush1.msra.mxu0 0.0
    %300 = vmatprep.subr.mxu0 0.0
    %301 = vmatpush1.msra.mxu0 0.0
    %302 = vmatprep.subr.mxu0 0.0
    %303 = vmatpush1.msra.mxu0 0.0
    %304 = vmatprep.subr.mxu0 0.0
    %305 = vmatpush1.msra.mxu0 0.0
    %306 = vmatprep.subr.mxu0 0.0
    %307 = vmatpush1.msra.mxu0 0.0
    %308 = vmatprep.subr.mxu0 0.0
    %309 = vmatpush1.msra.mxu0 0.0
    %310 = vmatprep.subr.mxu0 0.0
    %311 = vmatpush1.msra.mxu0 0.0
    %312 = vmatprep.subr.mxu0 0.0
    %313 = vmatpush1.msra.mxu0 0.0
    %314 = vmatprep.subr.mxu0 0.0
    %315 = vmatpush1.msra.mxu0 0.0
    %316 = vmatprep.subr.mxu0 0.0
    %317 = vmatpush1.msra.mxu0 0.0
    %318 = vmatprep.subr.mxu0 0.0
    %319 = vmatpush1.msra.mxu0 0.0
    %320 = vmatprep.mubr.f32.mxu0 0.0
    %v321 = vand.u32 %v64, 4294901760
    %322 = vmatmul.mubr.f32.gmra.mrb[0].mxu0 %v321
    %v323 = vpop.f32.mrb[0].mxu0
    %v324 = vadd.f32 %v159, %v323
    %v325 = vpop.f32.mrb[0].mxu0
    %v326 = vadd.f32 %v161, %v325
    %327 = vmatprep.mubr.f32.mxu0 0.0
    %v328 = vand.u32 %v67, 4294901760
    %329 = vmatmul.mubr.f32.gmra.mrb[0].mxu0 %v328
    %v330 = vpop.f32.mrb[0].mxu0
    %v331 = vadd.f32 %v170, %v330
    %v332 = vpop.f32.mrb[0].mxu0
    %v333 = vadd.f32 %v172, %v332
    %334 = vmatprep.mubr.f32.mxu0 0.0
    %v335 = vand.u32 %v70, 4294901760
    %336 = vmatmul.mubr.f32.gmra.mrb[0].mxu0 %v335
    %v337 = vpop.f32.mrb[0].mxu0
    %v338 = vadd.f32 %v181, %v337
    %v339 = vpop.f32.mrb[0].mxu0
    %v340 = vadd.f32 %v183, %v339
    %341 = vmatprep.mubr.f32.mxu0 0.0
    %v342 = vand.u32 %v73, 4294901760
    %343 = vmatmul.mubr.f32.gmra.mrb[0].mxu0 %v342
    %v344 = vpop.f32.mrb[0].mxu0
    %v345 = vadd.f32 %v192, %v344
    %v346 = vpop.f32.mrb[0].mxu0
    %v347 = vadd.f32 %v194, %v346
    %348 = vdwg.mxu0
    %v349 = vand.u32 %v29, 4294901760
    %v350 = vsub.f32 %v29, %v349
    %351 = vmatprep.subr.mxu0 %v350
    %v352 = vand.u32 %v28, 4294901760
    %v353 = vsub.f32 %v28, %v352
    %354 = vmatpush1.msra.mxu0 %v353
    %v355 = vand.u32 %v32, 4294901760
    %v356 = vsub.f32 %v32, %v355
    %357 = vmatprep.subr.mxu0 %v356
    %v358 = vand.u32 %v31, 4294901760
    %v359 = vsub.f32 %v31, %v358
    %360 = vmatpush1.msra.mxu0 %v359
    %v361 = vand.u32 %v35, 4294901760
    %v362 = vsub.f32 %v35, %v361
    %363 = vmatprep.subr.mxu0 %v362
    %v364 = vand.u32 %v34, 4294901760
    %v365 = vsub.f32 %v34, %v364
    %366 = vmatpush1.msra.mxu0 %v365
    %v367 = vand.u32 %v38, 4294901760
    %v368 = vsub.f32 %v38, %v367
    %369 = vmatprep.subr.mxu0 %v368
    %v370 = vand.u32 %v37, 4294901760
    %v371 = vsub.f32 %v37, %v370
    %372 = vmatpush1.msra.mxu0 %v371
    %v373 = vand.u32 %v41, 4294901760
    %v374 = vsub.f32 %v41, %v373
    %375 = vmatprep.subr.mxu0 %v374
    %v376 = vand.u32 %v40, 4294901760
    %v377 = vsub.f32 %v40, %v376
    %378 = vmatpush1.msra.mxu0 %v377
    %v379 = vand.u32 %v44, 4294901760
    %v380 = vsub.f32 %v44, %v379
    %381 = vmatprep.subr.mxu0 %v380
    %v382 = vand.u32 %v43, 4294901760
    %v383 = vsub.f32 %v43, %v382
    %384 = vmatpush1.msra.mxu0 %v383
    %385 = vmatprep.subr.mxu0 0.0
    %386 = vmatpush1.msra.mxu0 0.0
    %387 = vmatprep.subr.mxu0 0.0
    %388 = vmatpush1.msra.mxu0 0.0
    %389 = vmatprep.subr.mxu0 0.0
    %390 = vmatpush1.msra.mxu0 0.0
    %391 = vmatprep.subr.mxu0 0.0
    %392 = vmatpush1.msra.mxu0 0.0
    %393 = vmatprep.subr.mxu0 0.0
    %394 = vmatpush1.msra.mxu0 0.0
    %395 = vmatprep.subr.mxu0 0.0
    %396 = vmatpush1.msra.mxu0 0.0
    %397 = vmatprep.subr.mxu0 0.0
    %398 = vmatpush1.msra.mxu0 0.0
    %399 = vmatprep.subr.mxu0 0.0
    %400 = vmatpush1.msra.mxu0 0.0
    %401 = vmatprep.subr.mxu0 0.0
    %402 = vmatpush1.msra.mxu0 0.0
    %403 = vmatprep.subr.mxu0 0.0
    %404 = vmatpush1.msra.mxu0 0.0
    %405 = vmatprep.subr.mxu0 0.0
    %406 = vmatpush1.msra.mxu0 0.0
    %407 = vmatprep.subr.mxu0 0.0
    %408 = vmatpush1.msra.mxu0 0.0
    %409 = vmatprep.subr.mxu0 0.0
    %410 = vmatpush1.msra.mxu0 0.0
    %411 = vmatprep.subr.mxu0 0.0
    %412 = vmatpush1.msra.mxu0 0.0
    %413 = vmatprep.subr.mxu0 0.0
    %414 = vmatpush1.msra.mxu0 0.0
    %415 = vmatprep.subr.mxu0 0.0
    %416 = vmatpush1.msra.mxu0 0.0
    %417 = vmatprep.subr.mxu0 0.0
    %418 = vmatpush1.msra.mxu0 0.0
    %419 = vmatprep.subr.mxu0 0.0
    %420 = vmatpush1.msra.mxu0 0.0
    %421 = vmatprep.subr.mxu0 0.0
    %422 = vmatpush1.msra.mxu0 0.0
    %423 = vmatprep.subr.mxu0 0.0
    %424 = vmatpush1.msra.mxu0 0.0
    %425 = vmatprep.subr.mxu0 0.0
    %426 = vmatpush1.msra.mxu0 0.0
    %427 = vmatprep.subr.mxu0 0.0
    %428 = vmatpush1.msra.mxu0 0.0
    %429 = vmatprep.subr.mxu0 0.0
    %430 = vmatpush1.msra.mxu0 0.0
    %431 = vmatprep.subr.mxu0 0.0
    %432 = vmatpush1.msra.mxu0 0.0
    %433 = vmatprep.subr.mxu0 0.0
    %434 = vmatpush1.msra.mxu0 0.0
    %435 = vmatprep.subr.mxu0 0.0
    %436 = vmatpush1.msra.mxu0 0.0
    %437 = vmatprep.mubr.f32.mxu0 0.0
    %v438 = vand.u32 %v64, 4294901760
    %v439 = vsub.f32 %v64, %v438
    %440 = vmatmul.mubr.f32.gmra.mrb[0].mxu0 %v439
    %v441 = vpop.f32.mrb[0].mxu0
    %v442 = vadd.f32 %v324, %v441
    %v443 = vpop.f32.mrb[0].mxu0
    %v444 = vadd.f32 %v326, %v443
    %445 = vmatprep.mubr.f32.mxu0 0.0
    %v446 = vand.u32 %v67, 4294901760
    %v447 = vsub.f32 %v67, %v446
    %448 = vmatmul.mubr.f32.gmra.mrb[0].mxu0 %v447
    %v449 = vpop.f32.mrb[0].mxu0
    %v450 = vadd.f32 %v331, %v449
    %v451 = vpop.f32.mrb[0].mxu0
    %v452 = vadd.f32 %v333, %v451
    %453 = vmatprep.mubr.f32.mxu0 0.0
    %v454 = vand.u32 %v70, 4294901760
    %v455 = vsub.f32 %v70, %v454
    %456 = vmatmul.mubr.f32.gmra.mrb[0].mxu0 %v455
    %v457 = vpop.f32.mrb[0].mxu0
    %v458 = vadd.f32 %v338, %v457
    %v459 = vpop.f32.mrb[0].mxu0
    %v460 = vadd.f32 %v340, %v459
    %461 = vmatprep.mubr.f32.mxu0 0.0
    %v462 = vand.u32 %v73, 4294901760
    %v463 = vsub.f32 %v73, %v462
    %464 = vmatmul.mubr.f32.gmra.mrb[0].mxu0 %v463
    %v465 = vpop.f32.mrb[0].mxu0
    %v466 = vadd.f32 %v345, %v465
    %v467 = vpop.f32.mrb[0].mxu0
    %v468 = vadd.f32 %v347, %v467
    %469 = vdwg.mxu0
    %v470 = vand.u32 %v29, 4294901760
    %471 = vmatprep.subr.mxu0 %v470
    %v472 = vand.u32 %v28, 4294901760
    %473 = vmatpush1.msra.mxu0 %v472
    %v474 = vand.u32 %v32, 4294901760
    %475 = vmatprep.subr.mxu0 %v474
    %v476 = vand.u32 %v31, 4294901760
    %477 = vmatpush1.msra.mxu0 %v476
    %v478 = vand.u32 %v35, 4294901760
    %479 = vmatprep.subr.mxu0 %v478
    %v480 = vand.u32 %v34, 4294901760
    %481 = vmatpush1.msra.mxu0 %v480
    %v482 = vand.u32 %v38, 4294901760
    %483 = vmatprep.subr.mxu0 %v482
    %v484 = vand.u32 %v37, 4294901760
    %485 = vmatpush1.msra.mxu0 %v484
    %v486 = vand.u32 %v41, 4294901760
    %487 = vmatprep.subr.mxu0 %v486
    %v488 = vand.u32 %v40, 4294901760
    %489 = vmatpush1.msra.mxu0 %v488
    %v490 = vand.u32 %v44, 4294901760
    %491 = vmatprep.subr.mxu0 %v490
    %v492 = vand.u32 %v43, 4294901760
    %493 = vmatpush1.msra.mxu0 %v492
    %494 = vmatprep.subr.mxu0 0.0
    %495 = vmatpush1.msra.mxu0 0.0
    %496 = vmatprep.subr.mxu0 0.0
    %497 = vmatpush1.msra.mxu0 0.0
    %498 = vmatprep.subr.mxu0 0.0
    %499 = vmatpush1.msra.mxu0 0.0
    %500 = vmatprep.subr.mxu0 0.0
    %501 = vmatpush1.msra.mxu0 0.0
    %502 = vmatprep.subr.mxu0 0.0
    %503 = vmatpush1.msra.mxu0 0.0
    %504 = vmatprep.subr.mxu0 0.0
    %505 = vmatpush1.msra.mxu0 0.0
    %506 = vmatprep.subr.mxu0 0.0
    %507 = vmatpush1.msra.mxu0 0.0
    %508 = vmatprep.subr.mxu0 0.0
    %509 = vmatpush1.msra.mxu0 0.0
    %510 = vmatprep.subr.mxu0 0.0
    %511 = vmatpush1.msra.mxu0 0.0
    %512 = vmatprep.subr.mxu0 0.0
    %513 = vmatpush1.msra.mxu0 0.0
    %514 = vmatprep.subr.mxu0 0.0
    %515 = vmatpush1.msra.mxu0 0.0
    %516 = vmatprep.subr.mxu0 0.0
    %517 = vmatpush1.msra.mxu0 0.0
    %518 = vmatprep.subr.mxu0 0.0
    %519 = vmatpush1.msra.mxu0 0.0
    %520 = vmatprep.subr.mxu0 0.0
    %521 = vmatpush1.msra.mxu0 0.0
    %522 = vmatprep.subr.mxu0 0.0
    %523 = vmatpush1.msra.mxu0 0.0
    %524 = vmatprep.subr.mxu0 0.0
    %525 = vmatpush1.msra.mxu0 0.0
    %526 = vmatprep.subr.mxu0 0.0
    %527 = vmatpush1.msra.mxu0 0.0
    %528 = vmatprep.subr.mxu0 0.0
    %529 = vmatpush1.msra.mxu0 0.0
    %530 = vmatprep.subr.mxu0 0.0
    %531 = vmatpush1.msra.mxu0 0.0
    %532 = vmatprep.subr.mxu0 0.0
    %533 = vmatpush1.msra.mxu0 0.0
    %534 = vmatprep.subr.mxu0 0.0
    %535 = vmatpush1.msra.mxu0 0.0
    %536 = vmatprep.subr.mxu0 0.0
    %537 = vmatpush1.msra.mxu0 0.0
    %538 = vmatprep.subr.mxu0 0.0
    %539 = vmatpush1.msra.mxu0 0.0
    %540 = vmatprep.subr.mxu0 0.0
    %541 = vmatpush1.msra.mxu0 0.0
    %542 = vmatprep.subr.mxu0 0.0
    %543 = vmatpush1.msra.mxu0 0.0
    %544 = vmatprep.subr.mxu0 0.0
    %545 = vmatpush1.msra.mxu0 0.0
    %546 = vmatprep.mubr.f32.mxu0 0.0
    %v547 = vand.u32 %v64, 4294901760
    %v548 = vsub.f32 %v64, %v547
    %v549 = vand.u32 %v548, 4294901760
    %550 = vmatmul.mubr.f32.gmra.mrb[0].mxu0 %v549
    %v551 = vpop.f32.mrb[0].mxu0
    %v552 = vadd.f32 %v442, %v551
    %v553 = vpop.f32.mrb[0].mxu0
    %v554 = vadd.f32 %v444, %v553
    %555 = vmatprep.mubr.f32.mxu0 0.0
    %v556 = vand.u32 %v67, 4294901760
    %v557 = vsub.f32 %v67, %v556
    %v558 = vand.u32 %v557, 4294901760
    %559 = vmatmul.mubr.f32.gmra.mrb[0].mxu0 %v558
    %v560 = vpop.f32.mrb[0].mxu0
    %v561 = vadd.f32 %v450, %v560
    %v562 = vpop.f32.mrb[0].mxu0
    %v563 = vadd.f32 %v452, %v562
    %564 = vmatprep.mubr.f32.mxu0 0.0
    %v565 = vand.u32 %v70, 4294901760
    %v566 = vsub.f32 %v70, %v565
    %v567 = vand.u32 %v566, 4294901760
    %568 = vmatmul.mubr.f32.gmra.mrb[0].mxu0 %v567
    %v569 = vpop.f32.mrb[0].mxu0
    %v570 = vadd.f32 %v458, %v569
    %v571 = vpop.f32.mrb[0].mxu0
    %v572 = vadd.f32 %v460, %v571
    %573 = vmatprep.mubr.f32.mxu0 0.0
    %v574 = vand.u32 %v73, 4294901760
    %v575 = vsub.f32 %v73, %v574
    %v576 = vand.u32 %v575, 4294901760
    %577 = vmatmul.mubr.f32.gmra.mrb[0].mxu0 %v576
    %v578 = vpop.f32.mrb[0].mxu0
    %v579 = vadd.f32 %v466, %v578
    %v580 = vpop.f32.mrb[0].mxu0
    %v581 = vadd.f32 %v468, %v580
    %582 = vdwg.mxu0
    %v583 = vand.u32 %v29, 4294901760
    %v584 = vsub.f32 %v29, %v583
    %v585 = vand.u32 %v584, 4294901760
    %586 = vmatprep.subr.mxu0 %v585
    %v587 = vand.u32 %v28, 4294901760
    %v588 = vsub.f32 %v28, %v587
    %v589 = vand.u32 %v588, 4294901760
    %590 = vmatpush1.msra.mxu0 %v589
    %v591 = vand.u32 %v32, 4294901760
    %v592 = vsub.f32 %v32, %v591
    %v593 = vand.u32 %v592, 4294901760
    %594 = vmatprep.subr.mxu0 %v593
    %v595 = vand.u32 %v31, 4294901760
    %v596 = vsub.f32 %v31, %v595
    %v597 = vand.u32 %v596, 4294901760
    %598 = vmatpush1.msra.mxu0 %v597
    %v599 = vand.u32 %v35, 4294901760
    %v600 = vsub.f32 %v35, %v599
    %v601 = vand.u32 %v600, 4294901760
    %602 = vmatprep.subr.mxu0 %v601
    %v603 = vand.u32 %v34, 4294901760
    %v604 = vsub.f32 %v34, %v603
    %v605 = vand.u32 %v604, 4294901760
    %606 = vmatpush1.msra.mxu0 %v605
    %v607 = vand.u32 %v38, 4294901760
    %v608 = vsub.f32 %v38, %v607
    %v609 = vand.u32 %v608, 4294901760
    %610 = vmatprep.subr.mxu0 %v609
    %v611 = vand.u32 %v37, 4294901760
    %v612 = vsub.f32 %v37, %v611
    %v613 = vand.u32 %v612, 4294901760
    %614 = vmatpush1.msra.mxu0 %v613
    %v615 = vand.u32 %v41, 4294901760
    %v616 = vsub.f32 %v41, %v615
    %v617 = vand.u32 %v616, 4294901760
    %618 = vmatprep.subr.mxu0 %v617
    %v619 = vand.u32 %v40, 4294901760
    %v620 = vsub.f32 %v40, %v619
    %v621 = vand.u32 %v620, 4294901760
    %622 = vmatpush1.msra.mxu0 %v621
    %v623 = vand.u32 %v44, 4294901760
    %v624 = vsub.f32 %v44, %v623
    %v625 = vand.u32 %v624, 4294901760
    %626 = vmatprep.subr.mxu0 %v625
    %v627 = vand.u32 %v43, 4294901760
    %v628 = vsub.f32 %v43, %v627
    %v629 = vand.u32 %v628, 4294901760
    %630 = vmatpush1.msra.mxu0 %v629
    %631 = vmatprep.subr.mxu0 0.0
    %632 = vmatpush1.msra.mxu0 0.0
    %633 = vmatprep.subr.mxu0 0.0
    %634 = vmatpush1.msra.mxu0 0.0
    %635 = vmatprep.subr.mxu0 0.0
    %636 = vmatpush1.msra.mxu0 0.0
    %637 = vmatprep.subr.mxu0 0.0
    %638 = vmatpush1.msra.mxu0 0.0
    %639 = vmatprep.subr.mxu0 0.0
    %640 = vmatpush1.msra.mxu0 0.0
    %641 = vmatprep.subr.mxu0 0.0
    %642 = vmatpush1.msra.mxu0 0.0
    %643 = vmatprep.subr.mxu0 0.0
    %644 = vmatpush1.msra.mxu0 0.0
    %645 = vmatprep.subr.mxu0 0.0
    %646 = vmatpush1.msra.mxu0 0.0
    %647 = vmatprep.subr.mxu0 0.0
    %648 = vmatpush1.msra.mxu0 0.0
    %649 = vmatprep.subr.mxu0 0.0
    %650 = vmatpush1.msra.mxu0 0.0
    %651 = vmatprep.subr.mxu0 0.0
    %652 = vmatpush1.msra.mxu0 0.0
    %653 = vmatprep.subr.mxu0 0.0
    %654 = vmatpush1.msra.mxu0 0.0
    %655 = vmatprep.subr.mxu0 0.0
    %656 = vmatpush1.msra.mxu0 0.0
    %657 = vmatprep.subr.mxu0 0.0
    %658 = vmatpush1.msra.mxu0 0.0
    %659 = vmatprep.subr.mxu0 0.0
    %660 = vmatpush1.msra.mxu0 0.0
    %661 = vmatprep.subr.mxu0 0.0
    %662 = vmatpush1.msra.mxu0 0.0
    %663 = vmatprep.subr.mxu0 0.0
    %664 = vmatpush1.msra.mxu0 0.0
    %665 = vmatprep.subr.mxu0 0.0
    %666 = vmatpush1.msra.mxu0 0.0
    %667 = vmatprep.subr.mxu0 0.0
    %668 = vmatpush1.msra.mxu0 0.0
    %669 = vmatprep.subr.mxu0 0.0
    %670 = vmatpush1.msra.mxu0 0.0
    %671 = vmatprep.subr.mxu0 0.0
    %672 = vmatpush1.msra.mxu0 0.0
    %673 = vmatprep.subr.mxu0 0.0
    %674 = vmatpush1.msra.mxu0 0.0
    %675 = vmatprep.subr.mxu0 0.0
    %676 = vmatpush1.msra.mxu0 0.0
    %677 = vmatprep.subr.mxu0 0.0
    %678 = vmatpush1.msra.mxu0 0.0
    %679 = vmatprep.subr.mxu0 0.0
    %680 = vmatpush1.msra.mxu0 0.0
    %681 = vmatprep.subr.mxu0 0.0
    %682 = vmatpush1.msra.mxu0 0.0
    %683 = vmatprep.mubr.f32.mxu0 0.0
    %v684 = vand.u32 %v64, 4294901760
    %685 = vmatmul.mubr.f32.gmra.mrb[0].mxu0 %v684
    %v686 = vpop.f32.mrb[0].mxu0
    %v687 = vadd.f32 %v552, %v686
    %v688 = vpop.f32.mrb[0].mxu0
    %v689 = vadd.f32 %v554, %v688
    %690 = vmatprep.mubr.f32.mxu0 0.0
    %v691 = vand.u32 %v67, 4294901760
    %692 = vmatmul.mubr.f32.gmra.mrb[0].mxu0 %v691
    %v693 = vpop.f32.mrb[0].mxu0
    %v694 = vadd.f32 %v561, %v693
    %v695 = vpop.f32.mrb[0].mxu0
    %v696 = vadd.f32 %v563, %v695
    %697 = vmatprep.mubr.f32.mxu0 0.0
    %v698 = vand.u32 %v70, 4294901760
    %699 = vmatmul.mubr.f32.gmra.mrb[0].mxu0 %v698
    %v700 = vpop.f32.mrb[0].mxu0
    %v701 = vadd.f32 %v570, %v700
    %v702 = vpop.f32.mrb[0].mxu0
    %v703 = vadd.f32 %v572, %v702
    %704 = vmatprep.mubr.f32.mxu0 0.0
    %v705 = vand.u32 %v73, 4294901760
    %706 = vmatmul.mubr.f32.gmra.mrb[0].mxu0 %v705
    %v707 = vpop.f32.mrb[0].mxu0
    %v708 = vadd.f32 %v579, %v707
    %v709 = vpop.f32.mrb[0].mxu0
    %v710 = vadd.f32 %v581, %v709
    %711 = vdwg.mxu0
    %v712 = vand.u32 %v29, 4294901760
    %713 = vmatprep.subr.mxu0 %v712
    %v714 = vand.u32 %v28, 4294901760
    %715 = vmatpush1.msra.mxu0 %v714
    %v716 = vand.u32 %v32, 4294901760
    %717 = vmatprep.subr.mxu0 %v716
    %v718 = vand.u32 %v31, 4294901760
    %719 = vmatpush1.msra.mxu0 %v718
    %v720 = vand.u32 %v35, 4294901760
    %721 = vmatprep.subr.mxu0 %v720
    %v722 = vand.u32 %v34, 4294901760
    %723 = vmatpush1.msra.mxu0 %v722
    %v724 = vand.u32 %v38, 4294901760
    %725 = vmatprep.subr.mxu0 %v724
    %v726 = vand.u32 %v37, 4294901760
    %727 = vmatpush1.msra.mxu0 %v726
    %v728 = vand.u32 %v41, 4294901760
    %729 = vmatprep.subr.mxu0 %v728
    %v730 = vand.u32 %v40, 4294901760
    %731 = vmatpush1.msra.mxu0 %v730
    %v732 = vand.u32 %v44, 4294901760
    %733 = vmatprep.subr.mxu0 %v732
    %v734 = vand.u32 %v43, 4294901760
    %735 = vmatpush1.msra.mxu0 %v734
    %736 = vmatprep.subr.mxu0 0.0
    %737 = vmatpush1.msra.mxu0 0.0
    %738 = vmatprep.subr.mxu0 0.0
    %739 = vmatpush1.msra.mxu0 0.0
    %740 = vmatprep.subr.mxu0 0.0
    %741 = vmatpush1.msra.mxu0 0.0
    %742 = vmatprep.subr.mxu0 0.0
    %743 = vmatpush1.msra.mxu0 0.0
    %744 = vmatprep.subr.mxu0 0.0
    %745 = vmatpush1.msra.mxu0 0.0
    %746 = vmatprep.subr.mxu0 0.0
    %747 = vmatpush1.msra.mxu0 0.0
    %748 = vmatprep.subr.mxu0 0.0
    %749 = vmatpush1.msra.mxu0 0.0
    %750 = vmatprep.subr.mxu0 0.0
    %751 = vmatpush1.msra.mxu0 0.0
    %752 = vmatprep.subr.mxu0 0.0
    %753 = vmatpush1.msra.mxu0 0.0
    %754 = vmatprep.subr.mxu0 0.0
    %755 = vmatpush1.msra.mxu0 0.0
    %756 = vmatprep.subr.mxu0 0.0
    %757 = vmatpush1.msra.mxu0 0.0
    %758 = vmatprep.subr.mxu0 0.0
    %759 = vmatpush1.msra.mxu0 0.0
    %760 = vmatprep.subr.mxu0 0.0
    %761 = vmatpush1.msra.mxu0 0.0
    %762 = vmatprep.subr.mxu0 0.0
    %763 = vmatpush1.msra.mxu0 0.0
    %764 = vmatprep.subr.mxu0 0.0
    %765 = vmatpush1.msra.mxu0 0.0
    %766 = vmatprep.subr.mxu0 0.0
    %767 = vmatpush1.msra.mxu0 0.0
    %768 = vmatprep.subr.mxu0 0.0
    %769 = vmatpush1.msra.mxu0 0.0
    %770 = vmatprep.subr.mxu0 0.0
    %771 = vmatpush1.msra.mxu0 0.0
    %772 = vmatprep.subr.mxu0 0.0
    %773 = vmatpush1.msra.mxu0 0.0
    %774 = vmatprep.subr.mxu0 0.0
    %775 = vmatpush1.msra.mxu0 0.0
    %776 = vmatprep.subr.mxu0 0.0
    %777 = vmatpush1.msra.mxu0 0.0
    %778 = vmatprep.subr.mxu0 0.0
    %779 = vmatpush1.msra.mxu0 0.0
    %780 = vmatprep.subr.mxu0 0.0
    %781 = vmatpush1.msra.mxu0 0.0
    %782 = vmatprep.subr.mxu0 0.0
    %783 = vmatpush1.msra.mxu0 0.0
    %784 = vmatprep.subr.mxu0 0.0
    %785 = vmatpush1.msra.mxu0 0.0
    %786 = vmatprep.subr.mxu0 0.0
    %787 = vmatpush1.msra.mxu0 0.0
    %788 = vmatprep.mubr.f32.mxu0 0.0
    %v789 = vand.u32 %v64, 4294901760
    %790 = vmatmul.mubr.f32.gmra.mrb[0].mxu0 %v789
    %v791 = vpop.f32.mrb[0].mxu0
    %v792 = vadd.f32 %v687, %v791
    %v793 = vpop.f32.mrb[0].mxu0
    %v794 = vadd.f32 %v689, %v793
    %795 = vmatprep.mubr.f32.mxu0 0.0
    %v796 = vand.u32 %v67, 4294901760
    %797 = vmatmul.mubr.f32.gmra.mrb[0].mxu0 %v796
    %v798 = vpop.f32.mrb[0].mxu0
    %v799 = vadd.f32 %v694, %v798
    %v800 = vpop.f32.mrb[0].mxu0
    %v801 = vadd.f32 %v696, %v800
    %802 = vmatprep.mubr.f32.mxu0 0.0
    %v803 = vand.u32 %v70, 4294901760
    %804 = vmatmul.mubr.f32.gmra.mrb[0].mxu0 %v803
    %v805 = vpop.f32.mrb[0].mxu0
    %v806 = vadd.f32 %v701, %v805
    %v807 = vpop.f32.mrb[0].mxu0
    %v808 = vadd.f32 %v703, %v807
    %809 = vmatprep.mubr.f32.mxu0 0.0
    %v810 = vand.u32 %v73, 4294901760
    %811 = vmatmul.mubr.f32.gmra.mrb[0].mxu0 %v810
    %v812 = vpop.f32.mrb[0].mxu0
    %v813 = vadd.f32 %v708, %v812
    %v814 = vpop.f32.mrb[0].mxu0
    %v815 = vadd.f32 %v710, %v814
    %816 = vdwg.mxu0
    %817 = vmatprep.subr.mxu0 0.0
    %v818 = vand.u32 %v30, 4294901760
    %819 = vmatpush1.msra.mxu0 %v818
    %820 = vmatprep.subr.mxu0 0.0
    %v821 = vand.u32 %v33, 4294901760
    %822 = vmatpush1.msra.mxu0 %v821
    %823 = vmatprep.subr.mxu0 0.0
    %v824 = vand.u32 %v36, 4294901760
    %825 = vmatpush1.msra.mxu0 %v824
    %826 = vmatprep.subr.mxu0 0.0
    %v827 = vand.u32 %v39, 4294901760
    %828 = vmatpush1.msra.mxu0 %v827
    %829 = vmatprep.subr.mxu0 0.0
    %v830 = vand.u32 %v42, 4294901760
    %831 = vmatpush1.msra.mxu0 %v830
    %832 = vmatprep.subr.mxu0 0.0
    %v833 = vand.u32 %v45, 4294901760
    %834 = vmatpush1.msra.mxu0 %v833
    %835 = vmatprep.subr.mxu0 0.0
    %836 = vmatpush1.msra.mxu0 0.0
    %837 = vmatprep.subr.mxu0 0.0
    %838 = vmatpush1.msra.mxu0 0.0
    %839 = vmatprep.subr.mxu0 0.0
    %840 = vmatpush1.msra.mxu0 0.0
    %841 = vmatprep.subr.mxu0 0.0
    %842 = vmatpush1.msra.mxu0 0.0
    %843 = vmatprep.subr.mxu0 0.0
    %844 = vmatpush1.msra.mxu0 0.0
    %845 = vmatprep.subr.mxu0 0.0
    %846 = vmatpush1.msra.mxu0 0.0
    %847 = vmatprep.subr.mxu0 0.0
    %848 = vmatpush1.msra.mxu0 0.0
    %849 = vmatprep.subr.mxu0 0.0
    %850 = vmatpush1.msra.mxu0 0.0
    %851 = vmatprep.subr.mxu0 0.0
    %852 = vmatpush1.msra.mxu0 0.0
    %853 = vmatprep.subr.mxu0 0.0
    %854 = vmatpush1.msra.mxu0 0.0
    %855 = vmatprep.subr.mxu0 0.0
    %856 = vmatpush1.msra.mxu0 0.0
    %857 = vmatprep.subr.mxu0 0.0
    %858 = vmatpush1.msra.mxu0 0.0
    %859 = vmatprep.subr.mxu0 0.0
    %860 = vmatpush1.msra.mxu0 0.0
    %861 = vmatprep.subr.mxu0 0.0
    %862 = vmatpush1.msra.mxu0 0.0
    %863 = vmatprep.subr.mxu0 0.0
    %864 = vmatpush1.msra.mxu0 0.0
    %865 = vmatprep.subr.mxu0 0.0
    %866 = vmatpush1.msra.mxu0 0.0
    %867 = vmatprep.subr.mxu0 0.0
    %868 = vmatpush1.msra.mxu0 0.0
    %869 = vmatprep.subr.mxu0 0.0
    %870 = vmatpush1.msra.mxu0 0.0
    %871 = vmatprep.subr.mxu0 0.0
    %872 = vmatpush1.msra.mxu0 0.0
    %873 = vmatprep.subr.mxu0 0.0
    %874 = vmatpush1.msra.mxu0 0.0
    %875 = vmatprep.subr.mxu0 0.0
    %876 = vmatpush1.msra.mxu0 0.0
    %877 = vmatprep.subr.mxu0 0.0
    %878 = vmatpush1.msra.mxu0 0.0
    %879 = vmatprep.subr.mxu0 0.0
    %880 = vmatpush1.msra.mxu0 0.0
    %881 = vmatprep.subr.mxu0 0.0
    %882 = vmatpush1.msra.mxu0 0.0
    %883 = vmatprep.subr.mxu0 0.0
    %884 = vmatpush1.msra.mxu0 0.0
    %885 = vmatprep.subr.mxu0 0.0
    %886 = vmatpush1.msra.mxu0 0.0
    %887 = vmatprep.mubr.f32.mxu0 0.0
    %v888 = vand.u32 %v64, 4294901760
    %v889 = vsub.f32 %v64, %v888
    %v890 = vand.u32 %v889, 4294901760
    %v891 = vsub.f32 %v889, %v890
    %v892 = vand.u32 %v891, 4294901760
    %893 = vmatmul.mubr.f32.gmra.mrb[0].mxu0 %v892
    %v894 = vpop.f32.mrb[0].mxu0
    %v895 = vadd.f32 %v58, %v894
    %v896 = vpop.f32.mrb[0].mxu0
    %897 = vmatprep.mubr.f32.mxu0 0.0
    %v898 = vand.u32 %v67, 4294901760
    %v899 = vsub.f32 %v67, %v898
    %v900 = vand.u32 %v899, 4294901760
    %v901 = vsub.f32 %v899, %v900
    %v902 = vand.u32 %v901, 4294901760
    %903 = vmatmul.mubr.f32.gmra.mrb[0].mxu0 %v902
    %v904 = vpop.f32.mrb[0].mxu0
    %v905 = vadd.f32 %v58, %v904
    %v906 = vpop.f32.mrb[0].mxu0
    %907 = vmatprep.mubr.f32.mxu0 0.0
    %v908 = vand.u32 %v70, 4294901760
    %v909 = vsub.f32 %v70, %v908
    %v910 = vand.u32 %v909, 4294901760
    %v911 = vsub.f32 %v909, %v910
    %v912 = vand.u32 %v911, 4294901760
    %913 = vmatmul.mubr.f32.gmra.mrb[0].mxu0 %v912
    %v914 = vpop.f32.mrb[0].mxu0
    %v915 = vadd.f32 %v58, %v914
    %v916 = vpop.f32.mrb[0].mxu0
    %917 = vmatprep.mubr.f32.mxu0 0.0
    %v918 = vand.u32 %v73, 4294901760
    %v919 = vsub.f32 %v73, %v918
    %v920 = vand.u32 %v919, 4294901760
    %v921 = vsub.f32 %v919, %v920
    %v922 = vand.u32 %v921, 4294901760
    %923 = vmatmul.mubr.f32.gmra.mrb[0].mxu0 %v922
    %v924 = vpop.f32.mrb[0].mxu0
    %v925 = vadd.f32 %v58, %v924
    %v926 = vpop.f32.mrb[0].mxu0
    %927 = vdwg.mxu0
    %928 = vmatprep.subr.mxu0 0.0
    %v929 = vand.u32 %v30, 4294901760
    %v930 = vsub.f32 %v30, %v929
    %v931 = vand.u32 %v930, 4294901760
    %v932 = vsub.f32 %v930, %v931
    %v933 = vand.u32 %v932, 4294901760
    %934 = vmatpush1.msra.mxu0 %v933
    %935 = vmatprep.subr.mxu0 0.0
    %v936 = vand.u32 %v33, 4294901760
    %v937 = vsub.f32 %v33, %v936
    %v938 = vand.u32 %v937, 4294901760
    %v939 = vsub.f32 %v937, %v938
    %v940 = vand.u32 %v939, 4294901760
    %941 = vmatpush1.msra.mxu0 %v940
    %942 = vmatprep.subr.mxu0 0.0
    %v943 = vand.u32 %v36, 4294901760
    %v944 = vsub.f32 %v36, %v943
    %v945 = vand.u32 %v944, 4294901760
    %v946 = vsub.f32 %v944, %v945
    %v947 = vand.u32 %v946, 4294901760
    %948 = vmatpush1.msra.mxu0 %v947
    %949 = vmatprep.subr.mxu0 0.0
    %v950 = vand.u32 %v39, 4294901760
    %v951 = vsub.f32 %v39, %v950
    %v952 = vand.u32 %v951, 4294901760
    %v953 = vsub.f32 %v951, %v952
    %v954 = vand.u32 %v953, 4294901760
    %955 = vmatpush1.msra.mxu0 %v954
    %956 = vmatprep.subr.mxu0 0.0
    %v957 = vand.u32 %v42, 4294901760
    %v958 = vsub.f32 %v42, %v957
    %v959 = vand.u32 %v958, 4294901760
    %v960 = vsub.f32 %v958, %v959
    %v961 = vand.u32 %v960, 4294901760
    %962 = vmatpush1.msra.mxu0 %v961
    %963 = vmatprep.subr.mxu0 0.0
    %v964 = vand.u32 %v45, 4294901760
    %v965 = vsub.f32 %v45, %v964
    %v966 = vand.u32 %v965, 4294901760
    %v967 = vsub.f32 %v965, %v966
    %v968 = vand.u32 %v967, 4294901760
    %969 = vmatpush1.msra.mxu0 %v968
    %970 = vmatprep.subr.mxu0 0.0
    %971 = vmatpush1.msra.mxu0 0.0
    %972 = vmatprep.subr.mxu0 0.0
    %973 = vmatpush1.msra.mxu0 0.0
    %974 = vmatprep.subr.mxu0 0.0
    %975 = vmatpush1.msra.mxu0 0.0
    %976 = vmatprep.subr.mxu0 0.0
    %977 = vmatpush1.msra.mxu0 0.0
    %978 = vmatprep.subr.mxu0 0.0
    %979 = vmatpush1.msra.mxu0 0.0
    %980 = vmatprep.subr.mxu0 0.0
    %981 = vmatpush1.msra.mxu0 0.0
    %982 = vmatprep.subr.mxu0 0.0
    %983 = vmatpush1.msra.mxu0 0.0
    %984 = vmatprep.subr.mxu0 0.0
    %985 = vmatpush1.msra.mxu0 0.0
    %986 = vmatprep.subr.mxu0 0.0
    %987 = vmatpush1.msra.mxu0 0.0
    %988 = vmatprep.subr.mxu0 0.0
    %989 = vmatpush1.msra.mxu0 0.0
    %990 = vmatprep.subr.mxu0 0.0
    %991 = vmatpush1.msra.mxu0 0.0
    %992 = vmatprep.subr.mxu0 0.0
    %993 = vmatpush1.msra.mxu0 0.0
    %994 = vmatprep.subr.mxu0 0.0
    %995 = vmatpush1.msra.mxu0 0.0
    %996 = vmatprep.subr.mxu0 0.0
    %997 = vmatpush1.msra.mxu0 0.0
    %998 = vmatprep.subr.mxu0 0.0
    %999 = vmatpush1.msra.mxu0 0.0
    %1000 = vmatprep.subr.mxu0 0.0
    %1001 = vmatpush1.msra.mxu0 0.0
    %1002 = vmatprep.subr.mxu0 0.0
    %1003 = vmatpush1.msra.mxu0 0.0
    %1004 = vmatprep.subr.mxu0 0.0
    %1005 = vmatpush1.msra.mxu0 0.0
    %1006 = vmatprep.subr.mxu0 0.0
    %1007 = vmatpush1.msra.mxu0 0.0
    %1008 = vmatprep.subr.mxu0 0.0
    %1009 = vmatpush1.msra.mxu0 0.0
    %1010 = vmatprep.subr.mxu0 0.0
    %1011 = vmatpush1.msra.mxu0 0.0
    %1012 = vmatprep.subr.mxu0 0.0
    %1013 = vmatpush1.msra.mxu0 0.0
    %1014 = vmatprep.subr.mxu0 0.0
    %1015 = vmatpush1.msra.mxu0 0.0
    %1016 = vmatprep.subr.mxu0 0.0
    %1017 = vmatpush1.msra.mxu0 0.0
    %1018 = vmatprep.subr.mxu0 0.0
    %1019 = vmatpush1.msra.mxu0 0.0
    %1020 = vmatprep.subr.mxu0 0.0
    %1021 = vmatpush1.msra.mxu0 0.0
    %1022 = vmatprep.mubr.f32.mxu0 0.0
    %v1023 = vand.u32 %v64, 4294901760
    %1024 = vmatmul.mubr.f32.gmra.mrb[0].mxu0 %v1023
    %v1025 = vpop.f32.mrb[0].mxu0
    %v1026 = vadd.f32 %v895, %v1025
    %v1027 = vpop.f32.mrb[0].mxu0
    %1028 = vmatprep.mubr.f32.mxu0 0.0
    %v1029 = vand.u32 %v67, 4294901760
    %1030 = vmatmul.mubr.f32.gmra.mrb[0].mxu0 %v1029
    %v1031 = vpop.f32.mrb[0].mxu0
    %v1032 = vadd.f32 %v905, %v1031
    %v1033 = vpop.f32.mrb[0].mxu0
    %1034 = vmatprep.mubr.f32.mxu0 0.0
    %v1035 = vand.u32 %v70, 4294901760
    %1036 = vmatmul.mubr.f32.gmra.mrb[0].mxu0 %v1035
    %v1037 = vpop.f32.mrb[0].mxu0
    %v1038 = vadd.f32 %v915, %v1037
    %v1039 = vpop.f32.mrb[0].mxu0
    %1040 = vmatprep.mubr.f32.mxu0 0.0
    %v1041 = vand.u32 %v73, 4294901760
    %1042 = vmatmul.mubr.f32.gmra.mrb[0].mxu0 %v1041
    %v1043 = vpop.f32.mrb[0].mxu0
    %v1044 = vadd.f32 %v925, %v1043
    %v1045 = vpop.f32.mrb[0].mxu0
    %1046 = vdwg.mxu0
    %1047 = vmatprep.subr.mxu0 0.0
    %v1048 = vand.u32 %v30, 4294901760
    %v1049 = vsub.f32 %v30, %v1048
    %1050 = vmatpush1.msra.mxu0 %v1049
    %1051 = vmatprep.subr.mxu0 0.0
    %v1052 = vand.u32 %v33, 4294901760
    %v1053 = vsub.f32 %v33, %v1052
    %1054 = vmatpush1.msra.mxu0 %v1053
    %1055 = vmatprep.subr.mxu0 0.0
    %v1056 = vand.u32 %v36, 4294901760
    %v1057 = vsub.f32 %v36, %v1056
    %1058 = vmatpush1.msra.mxu0 %v1057
    %1059 = vmatprep.subr.mxu0 0.0
    %v1060 = vand.u32 %v39, 4294901760
    %v1061 = vsub.f32 %v39, %v1060
    %1062 = vmatpush1.msra.mxu0 %v1061
    %1063 = vmatprep.subr.mxu0 0.0
    %v1064 = vand.u32 %v42, 4294901760
    %v1065 = vsub.f32 %v42, %v1064
    %1066 = vmatpush1.msra.mxu0 %v1065
    %1067 = vmatprep.subr.mxu0 0.0
    %v1068 = vand.u32 %v45, 4294901760
    %v1069 = vsub.f32 %v45, %v1068
    %1070 = vmatpush1.msra.mxu0 %v1069
    %1071 = vmatprep.subr.mxu0 0.0
    %1072 = vmatpush1.msra.mxu0 0.0
    %1073 = vmatprep.subr.mxu0 0.0
    %1074 = vmatpush1.msra.mxu0 0.0
    %1075 = vmatprep.subr.mxu0 0.0
    %1076 = vmatpush1.msra.mxu0 0.0
    %1077 = vmatprep.subr.mxu0 0.0
    %1078 = vmatpush1.msra.mxu0 0.0
    %1079 = vmatprep.subr.mxu0 0.0
    %1080 = vmatpush1.msra.mxu0 0.0
    %1081 = vmatprep.subr.mxu0 0.0
    %1082 = vmatpush1.msra.mxu0 0.0
    %1083 = vmatprep.subr.mxu0 0.0
    %1084 = vmatpush1.msra.mxu0 0.0
    %1085 = vmatprep.subr.mxu0 0.0
    %1086 = vmatpush1.msra.mxu0 0.0
    %1087 = vmatprep.subr.mxu0 0.0
    %1088 = vmatpush1.msra.mxu0 0.0
    %1089 = vmatprep.subr.mxu0 0.0
    %1090 = vmatpush1.msra.mxu0 0.0
    %1091 = vmatprep.subr.mxu0 0.0
    %1092 = vmatpush1.msra.mxu0 0.0
    %1093 = vmatprep.subr.mxu0 0.0
    %1094 = vmatpush1.msra.mxu0 0.0
    %1095 = vmatprep.subr.mxu0 0.0
    %1096 = vmatpush1.msra.mxu0 0.0
    %1097 = vmatprep.subr.mxu0 0.0
    %1098 = vmatpush1.msra.mxu0 0.0
    %1099 = vmatprep.subr.mxu0 0.0
    %1100 = vmatpush1.msra.mxu0 0.0
    %1101 = vmatprep.subr.mxu0 0.0
    %1102 = vmatpush1.msra.mxu0 0.0
    %1103 = vmatprep.subr.mxu0 0.0
    %1104 = vmatpush1.msra.mxu0 0.0
    %1105 = vmatprep.subr.mxu0 0.0
    %1106 = vmatpush1.msra.mxu0 0.0
    %1107 = vmatprep.subr.mxu0 0.0
    %1108 = vmatpush1.msra.mxu0 0.0
    %1109 = vmatprep.subr.mxu0 0.0
    %1110 = vmatpush1.msra.mxu0 0.0
    %1111 = vmatprep.subr.mxu0 0.0
    %1112 = vmatpush1.msra.mxu0 0.0
    %1113 = vmatprep.subr.mxu0 0.0
    %1114 = vmatpush1.msra.mxu0 0.0
    %1115 = vmatprep.subr.mxu0 0.0
    %1116 = vmatpush1.msra.mxu0 0.0
    %1117 = vmatprep.subr.mxu0 0.0
    %1118 = vmatpush1.msra.mxu0 0.0
    %1119 = vmatprep.subr.mxu0 0.0
    %1120 = vmatpush1.msra.mxu0 0.0
    %1121 = vmatprep.subr.mxu0 0.0
    %1122 = vmatpush1.msra.mxu0 0.0
    %1123 = vmatprep.mubr.f32.mxu0 0.0
    %v1124 = vand.u32 %v64, 4294901760
    %v1125 = vsub.f32 %v64, %v1124
    %1126 = vmatmul.mubr.f32.gmra.mrb[0].mxu0 %v1125
    %v1127 = vpop.f32.mrb[0].mxu0
    %v1128 = vadd.f32 %v1026, %v1127
    %v1129 = vpop.f32.mrb[0].mxu0
    %1130 = vmatprep.mubr.f32.mxu0 0.0
    %v1131 = vand.u32 %v67, 4294901760
    %v1132 = vsub.f32 %v67, %v1131
    %1133 = vmatmul.mubr.f32.gmra.mrb[0].mxu0 %v1132
    %v1134 = vpop.f32.mrb[0].mxu0
    %v1135 = vadd.f32 %v1032, %v1134
    %v1136 = vpop.f32.mrb[0].mxu0
    %1137 = vmatprep.mubr.f32.mxu0 0.0
    %v1138 = vand.u32 %v70, 4294901760
    %v1139 = vsub.f32 %v70, %v1138
    %1140 = vmatmul.mubr.f32.gmra.mrb[0].mxu0 %v1139
    %v1141 = vpop.f32.mrb[0].mxu0
    %v1142 = vadd.f32 %v1038, %v1141
    %v1143 = vpop.f32.mrb[0].mxu0
    %1144 = vmatprep.mubr.f32.mxu0 0.0
    %v1145 = vand.u32 %v73, 4294901760
    %v1146 = vsub.f32 %v73, %v1145
    %1147 = vmatmul.mubr.f32.gmra.mrb[0].mxu0 %v1146
    %v1148 = vpop.f32.mrb[0].mxu0
    %v1149 = vadd.f32 %v1044, %v1148
    %v1150 = vpop.f32.mrb[0].mxu0
    %1151 = vdwg.mxu0
    %1152 = vmatprep.subr.mxu0 0.0
    %v1153 = vand.u32 %v30, 4294901760
    %1154 = vmatpush1.msra.mxu0 %v1153
    %1155 = vmatprep.subr.mxu0 0.0
    %v1156 = vand.u32 %v33, 4294901760
    %1157 = vmatpush1.msra.mxu0 %v1156
    %1158 = vmatprep.subr.mxu0 0.0
    %v1159 = vand.u32 %v36, 4294901760
    %1160 = vmatpush1.msra.mxu0 %v1159
    %1161 = vmatprep.subr.mxu0 0.0
    %v1162 = vand.u32 %v39, 4294901760
    %1163 = vmatpush1.msra.mxu0 %v1162
    %1164 = vmatprep.subr.mxu0 0.0
    %v1165 = vand.u32 %v42, 4294901760
    %1166 = vmatpush1.msra.mxu0 %v1165
    %1167 = vmatprep.subr.mxu0 0.0
    %v1168 = vand.u32 %v45, 4294901760
    %1169 = vmatpush1.msra.mxu0 %v1168
    %1170 = vmatprep.subr.mxu0 0.0
    %1171 = vmatpush1.msra.mxu0 0.0
    %1172 = vmatprep.subr.mxu0 0.0
    %1173 = vmatpush1.msra.mxu0 0.0
    %1174 = vmatprep.subr.mxu0 0.0
    %1175 = vmatpush1.msra.mxu0 0.0
    %1176 = vmatprep.subr.mxu0 0.0
    %1177 = vmatpush1.msra.mxu0 0.0
    %1178 = vmatprep.subr.mxu0 0.0
    %1179 = vmatpush1.msra.mxu0 0.0
    %1180 = vmatprep.subr.mxu0 0.0
    %1181 = vmatpush1.msra.mxu0 0.0
    %1182 = vmatprep.subr.mxu0 0.0
    %1183 = vmatpush1.msra.mxu0 0.0
    %1184 = vmatprep.subr.mxu0 0.0
    %1185 = vmatpush1.msra.mxu0 0.0
    %1186 = vmatprep.subr.mxu0 0.0
    %1187 = vmatpush1.msra.mxu0 0.0
    %1188 = vmatprep.subr.mxu0 0.0
    %1189 = vmatpush1.msra.mxu0 0.0
    %1190 = vmatprep.subr.mxu0 0.0
    %1191 = vmatpush1.msra.mxu0 0.0
    %1192 = vmatprep.subr.mxu0 0.0
    %1193 = vmatpush1.msra.mxu0 0.0
    %1194 = vmatprep.subr.mxu0 0.0
    %1195 = vmatpush1.msra.mxu0 0.0
    %1196 = vmatprep.subr.mxu0 0.0
    %1197 = vmatpush1.msra.mxu0 0.0
    %1198 = vmatprep.subr.mxu0 0.0
    %1199 = vmatpush1.msra.mxu0 0.0
    %1200 = vmatprep.subr.mxu0 0.0
    %1201 = vmatpush1.msra.mxu0 0.0
    %1202 = vmatprep.subr.mxu0 0.0
    %1203 = vmatpush1.msra.mxu0 0.0
    %1204 = vmatprep.subr.mxu0 0.0
    %1205 = vmatpush1.msra.mxu0 0.0
    %1206 = vmatprep.subr.mxu0 0.0
    %1207 = vmatpush1.msra.mxu0 0.0
    %1208 = vmatprep.subr.mxu0 0.0
    %1209 = vmatpush1.msra.mxu0 0.0
    %1210 = vmatprep.subr.mxu0 0.0
    %1211 = vmatpush1.msra.mxu0 0.0
    %1212 = vmatprep.subr.mxu0 0.0
    %1213 = vmatpush1.msra.mxu0 0.0
    %1214 = vmatprep.subr.mxu0 0.0
    %1215 = vmatpush1.msra.mxu0 0.0
    %1216 = vmatprep.subr.mxu0 0.0
    %1217 = vmatpush1.msra.mxu0 0.0
    %1218 = vmatprep.subr.mxu0 0.0
    %1219 = vmatpush1.msra.mxu0 0.0
    %1220 = vmatprep.subr.mxu0 0.0
    %1221 = vmatpush1.msra.mxu0 0.0
    %1222 = vmatprep.mubr.f32.mxu0 0.0
    %v1223 = vand.u32 %v64, 4294901760
    %v1224 = vsub.f32 %v64, %v1223
    %v1225 = vand.u32 %v1224, 4294901760
    %1226 = vmatmul.mubr.f32.gmra.mrb[0].mxu0 %v1225
    %v1227 = vpop.f32.mrb[0].mxu0
    %v1228 = vadd.f32 %v1128, %v1227
    %v1229 = vpop.f32.mrb[0].mxu0
    %1230 = vmatprep.mubr.f32.mxu0 0.0
    %v1231 = vand.u32 %v67, 4294901760
    %v1232 = vsub.f32 %v67, %v1231
    %v1233 = vand.u32 %v1232, 4294901760
    %1234 = vmatmul.mubr.f32.gmra.mrb[0].mxu0 %v1233
    %v1235 = vpop.f32.mrb[0].mxu0
    %v1236 = vadd.f32 %v1135, %v1235
    %v1237 = vpop.f32.mrb[0].mxu0
    %1238 = vmatprep.mubr.f32.mxu0 0.0
    %v1239 = vand.u32 %v70, 4294901760
    %v1240 = vsub.f32 %v70, %v1239
    %v1241 = vand.u32 %v1240, 4294901760
    %1242 = vmatmul.mubr.f32.gmra.mrb[0].mxu0 %v1241
    %v1243 = vpop.f32.mrb[0].mxu0
    %v1244 = vadd.f32 %v1142, %v1243
    %v1245 = vpop.f32.mrb[0].mxu0
    %1246 = vmatprep.mubr.f32.mxu0 0.0
    %v1247 = vand.u32 %v73, 4294901760
    %v1248 = vsub.f32 %v73, %v1247
    %v1249 = vand.u32 %v1248, 4294901760
    %1250 = vmatmul.mubr.f32.gmra.mrb[0].mxu0 %v1249
    %v1251 = vpop.f32.mrb[0].mxu0
    %v1252 = vadd.f32 %v1149, %v1251
    %v1253 = vpop.f32.mrb[0].mxu0
    %1254 = vdwg.mxu0
    %1255 = vmatprep.subr.mxu0 0.0
    %v1256 = vand.u32 %v30, 4294901760
    %v1257 = vsub.f32 %v30, %v1256
    %v1258 = vand.u32 %v1257, 4294901760
    %1259 = vmatpush1.msra.mxu0 %v1258
    %1260 = vmatprep.subr.mxu0 0.0
    %v1261 = vand.u32 %v33, 4294901760
    %v1262 = vsub.f32 %v33, %v1261
    %v1263 = vand.u32 %v1262, 4294901760
    %1264 = vmatpush1.msra.mxu0 %v1263
    %1265 = vmatprep.subr.mxu0 0.0
    %v1266 = vand.u32 %v36, 4294901760
    %v1267 = vsub.f32 %v36, %v1266
    %v1268 = vand.u32 %v1267, 4294901760
    %1269 = vmatpush1.msra.mxu0 %v1268
    %1270 = vmatprep.subr.mxu0 0.0
    %v1271 = vand.u32 %v39, 4294901760
    %v1272 = vsub.f32 %v39, %v1271
    %v1273 = vand.u32 %v1272, 4294901760
    %1274 = vmatpush1.msra.mxu0 %v1273
    %1275 = vmatprep.subr.mxu0 0.0
    %v1276 = vand.u32 %v42, 4294901760
    %v1277 = vsub.f32 %v42, %v1276
    %v1278 = vand.u32 %v1277, 4294901760
    %1279 = vmatpush1.msra.mxu0 %v1278
    %1280 = vmatprep.subr.mxu0 0.0
    %v1281 = vand.u32 %v45, 4294901760
    %v1282 = vsub.f32 %v45, %v1281
    %v1283 = vand.u32 %v1282, 4294901760
    %1284 = vmatpush1.msra.mxu0 %v1283
    %1285 = vmatprep.subr.mxu0 0.0
    %1286 = vmatpush1.msra.mxu0 0.0
    %1287 = vmatprep.subr.mxu0 0.0
    %1288 = vmatpush1.msra.mxu0 0.0
    %1289 = vmatprep.subr.mxu0 0.0
    %1290 = vmatpush1.msra.mxu0 0.0
    %1291 = vmatprep.subr.mxu0 0.0
    %1292 = vmatpush1.msra.mxu0 0.0
    %1293 = vmatprep.subr.mxu0 0.0
    %1294 = vmatpush1.msra.mxu0 0.0
    %1295 = vmatprep.subr.mxu0 0.0
    %1296 = vmatpush1.msra.mxu0 0.0
    %1297 = vmatprep.subr.mxu0 0.0
    %1298 = vmatpush1.msra.mxu0 0.0
    %1299 = vmatprep.subr.mxu0 0.0
    %1300 = vmatpush1.msra.mxu0 0.0
    %1301 = vmatprep.subr.mxu0 0.0
    %1302 = vmatpush1.msra.mxu0 0.0
    %1303 = vmatprep.subr.mxu0 0.0
    %1304 = vmatpush1.msra.mxu0 0.0
    %1305 = vmatprep.subr.mxu0 0.0
    %1306 = vmatpush1.msra.mxu0 0.0
    %1307 = vmatprep.subr.mxu0 0.0
    %1308 = vmatpush1.msra.mxu0 0.0
    %1309 = vmatprep.subr.mxu0 0.0
    %1310 = vmatpush1.msra.mxu0 0.0
    %1311 = vmatprep.subr.mxu0 0.0
    %1312 = vmatpush1.msra.mxu0 0.0
    %1313 = vmatprep.subr.mxu0 0.0
    %1314 = vmatpush1.msra.mxu0 0.0
    %1315 = vmatprep.subr.mxu0 0.0
    %1316 = vmatpush1.msra.mxu0 0.0
    %1317 = vmatprep.subr.mxu0 0.0
    %1318 = vmatpush1.msra.mxu0 0.0
    %1319 = vmatprep.subr.mxu0 0.0
    %1320 = vmatpush1.msra.mxu0 0.0
    %1321 = vmatprep.subr.mxu0 0.0
    %1322 = vmatpush1.msra.mxu0 0.0
    %1323 = vmatprep.subr.mxu0 0.0
    %1324 = vmatpush1.msra.mxu0 0.0
    %1325 = vmatprep.subr.mxu0 0.0
    %1326 = vmatpush1.msra.mxu0 0.0
    %1327 = vmatprep.subr.mxu0 0.0
    %1328 = vmatpush1.msra.mxu0 0.0
    %1329 = vmatprep.subr.mxu0 0.0
    %1330 = vmatpush1.msra.mxu0 0.0
    %1331 = vmatprep.subr.mxu0 0.0
    %1332 = vmatpush1.msra.mxu0 0.0
    %1333 = vmatprep.subr.mxu0 0.0
    %1334 = vmatpush1.msra.mxu0 0.0
    %1335 = vmatprep.subr.mxu0 0.0
    %1336 = vmatpush1.msra.mxu0 0.0
    %1337 = vmatprep.mubr.f32.mxu0 0.0
    %v1338 = vand.u32 %v64, 4294901760
    %1339 = vmatmul.mubr.f32.gmra.mrb[0].mxu0 %v1338
    %v1340 = vpop.f32.mrb[0].mxu0
    %v1341 = vadd.f32 %v1228, %v1340
    %v1342 = vpop.f32.mrb[0].mxu0
    %1343 = vmatprep.mubr.f32.mxu0 0.0
    %v1344 = vand.u32 %v67, 4294901760
    %1345 = vmatmul.mubr.f32.gmra.mrb[0].mxu0 %v1344
    %v1346 = vpop.f32.mrb[0].mxu0
    %v1347 = vadd.f32 %v1236, %v1346
    %v1348 = vpop.f32.mrb[0].mxu0
    %1349 = vmatprep.mubr.f32.mxu0 0.0
    %v1350 = vand.u32 %v70, 4294901760
    %1351 = vmatmul.mubr.f32.gmra.mrb[0].mxu0 %v1350
    %v1352 = vpop.f32.mrb[0].mxu0
    %v1353 = vadd.f32 %v1244, %v1352
    %v1354 = vpop.f32.mrb[0].mxu0
    %1355 = vmatprep.mubr.f32.mxu0 0.0
    %v1356 = vand.u32 %v73, 4294901760
    %1357 = vmatmul.mubr.f32.gmra.mrb[0].mxu0 %v1356
    %v1358 = vpop.f32.mrb[0].mxu0
    %v1359 = vadd.f32 %v1252, %v1358
    %v1360 = vpop.f32.mrb[0].mxu0
    %1361 = vdwg.mxu0
    %1362 = vmatprep.subr.mxu0 0.0
    %v1363 = vand.u32 %v30, 4294901760
    %1364 = vmatpush1.msra.mxu0 %v1363
    %1365 = vmatprep.subr.mxu0 0.0
    %v1366 = vand.u32 %v33, 4294901760
    %1367 = vmatpush1.msra.mxu0 %v1366
    %1368 = vmatprep.subr.mxu0 0.0
    %v1369 = vand.u32 %v36, 4294901760
    %1370 = vmatpush1.msra.mxu0 %v1369
    %1371 = vmatprep.subr.mxu0 0.0
    %v1372 = vand.u32 %v39, 4294901760
    %1373 = vmatpush1.msra.mxu0 %v1372
    %1374 = vmatprep.subr.mxu0 0.0
    %v1375 = vand.u32 %v42, 4294901760
    %1376 = vmatpush1.msra.mxu0 %v1375
    %1377 = vmatprep.subr.mxu0 0.0
    %v1378 = vand.u32 %v45, 4294901760
    %1379 = vmatpush1.msra.mxu0 %v1378
    %1380 = vmatprep.subr.mxu0 0.0
    %1381 = vmatpush1.msra.mxu0 0.0
    %1382 = vmatprep.subr.mxu0 0.0
    %1383 = vmatpush1.msra.mxu0 0.0
    %1384 = vmatprep.subr.mxu0 0.0
    %1385 = vmatpush1.msra.mxu0 0.0
    %1386 = vmatprep.subr.mxu0 0.0
    %1387 = vmatpush1.msra.mxu0 0.0
    %1388 = vmatprep.subr.mxu0 0.0
    %1389 = vmatpush1.msra.mxu0 0.0
    %1390 = vmatprep.subr.mxu0 0.0
    %1391 = vmatpush1.msra.mxu0 0.0
    %1392 = vmatprep.subr.mxu0 0.0
    %1393 = vmatpush1.msra.mxu0 0.0
    %1394 = vmatprep.subr.mxu0 0.0
    %1395 = vmatpush1.msra.mxu0 0.0
    %1396 = vmatprep.subr.mxu0 0.0
    %1397 = vmatpush1.msra.mxu0 0.0
    %1398 = vmatprep.subr.mxu0 0.0
    %1399 = vmatpush1.msra.mxu0 0.0
    %1400 = vmatprep.subr.mxu0 0.0
    %1401 = vmatpush1.msra.mxu0 0.0
    %1402 = vmatprep.subr.mxu0 0.0
    %1403 = vmatpush1.msra.mxu0 0.0
    %1404 = vmatprep.subr.mxu0 0.0
    %1405 = vmatpush1.msra.mxu0 0.0
    %1406 = vmatprep.subr.mxu0 0.0
    %1407 = vmatpush1.msra.mxu0 0.0
    %1408 = vmatprep.subr.mxu0 0.0
    %1409 = vmatpush1.msra.mxu0 0.0
    %1410 = vmatprep.subr.mxu0 0.0
    %1411 = vmatpush1.msra.mxu0 0.0
    %1412 = vmatprep.subr.mxu0 0.0
    %1413 = vmatpush1.msra.mxu0 0.0
    %1414 = vmatprep.subr.mxu0 0.0
    %1415 = vmatpush1.msra.mxu0 0.0
    %1416 = vmatprep.subr.mxu0 0.0
    %1417 = vmatpush1.msra.mxu0 0.0
    %1418 = vmatprep.subr.mxu0 0.0
    %1419 = vmatpush1.msra.mxu0 0.0
    %1420 = vmatprep.subr.mxu0 0.0
    %1421 = vmatpush1.msra.mxu0 0.0
    %1422 = vmatprep.subr.mxu0 0.0
    %1423 = vmatpush1.msra.mxu0 0.0
    %1424 = vmatprep.subr.mxu0 0.0
    %1425 = vmatpush1.msra.mxu0 0.0
    %1426 = vmatprep.subr.mxu0 0.0
    %1427 = vmatpush1.msra.mxu0 0.0
    %1428 = vmatprep.subr.mxu0 0.0
    %1429 = vmatpush1.msra.mxu0 0.0
    %1430 = vmatprep.subr.mxu0 0.0
    %1431 = vmatpush1.msra.mxu0 0.0
    %1432 = vmatprep.mubr.f32.mxu0 0.0
    %v1433 = vand.u32 %v64, 4294901760
    %1434 = vmatmul.mubr.f32.gmra.mrb[0].mxu0 %v1433
    %v1435 = vpop.f32.mrb[0].mxu0
    %v1436 = vadd.f32 %v1341, %v1435
    %v1437 = vpop.f32.mrb[0].mxu0
    %1438 = vmatprep.mubr.f32.mxu0 0.0
    %v1439 = vand.u32 %v67, 4294901760
    %1440 = vmatmul.mubr.f32.gmra.mrb[0].mxu0 %v1439
    %v1441 = vpop.f32.mrb[0].mxu0
    %v1442 = vadd.f32 %v1347, %v1441
    %v1443 = vpop.f32.mrb[0].mxu0
    %1444 = vmatprep.mubr.f32.mxu0 0.0
    %v1445 = vand.u32 %v70, 4294901760
    %1446 = vmatmul.mubr.f32.gmra.mrb[0].mxu0 %v1445
    %v1447 = vpop.f32.mrb[0].mxu0
    %v1448 = vadd.f32 %v1353, %v1447
    %v1449 = vpop.f32.mrb[0].mxu0
    %1450 = vmatprep.mubr.f32.mxu0 0.0
    %v1451 = vand.u32 %v73, 4294901760
    %1452 = vmatmul.mubr.f32.gmra.mrb[0].mxu0 %v1451
    %v1453 = vpop.f32.mrb[0].mxu0
    %v1454 = vadd.f32 %v1359, %v1453
    %v1455 = vpop.f32.mrb[0].mxu0
    %1456 = vdwg.mxu0
    %v1457 = vld [vmem:[%s2] sm:$0xff]
    %v1458 = vld [vmem:[%s2 + $0x8] sm:$0xff]
    %v1459 = vld [vmem:[%s2 + $0x10] sm:$0xff]
    %v1460 = vld [vmem:[%s2 + $0x18] sm:$0xff]
    %v1461 = vld [vmem:[%s2 + $0x20] sm:$0xff]
    %v1462 = vld [vmem:[%s2 + $0x28] sm:$0xff]
    %v1463 = vld [vmem:[%s2 + $0x30] sm:$0xff]
    %v1464 = vld [vmem:[%s2 + $0x38] sm:$0xff]
    %v1465 = vld [vmem:[%s2 + $0x40] sm:$0xff]
    %v1466 = vld [vmem:[%s2 + $0x48] sm:$0xff]
    %v1467 = vld [vmem:[%s2 + $0x50] sm:$0xff]
    %v1468 = vld [vmem:[%s2 + $0x58] sm:$0xff]
    %v1469 = vld [vmem:[%s2 + $0x60] sm:$0xff]
    %v1470 = vld [vmem:[%s2 + $0x68] sm:$0xff]
    %v1471 = vld [vmem:[%s2 + $0x70] sm:$0xff]
    %v1472 = vld [vmem:[%s2 + $0x78] sm:$0xff]
    %v1473 = vld [vmem:[%s2 + $0x80] sm:$0xff]
    %v1474 = vld [vmem:[%s2 + $0x88] sm:$0xff]
    %v1475 = vld [vmem:[%s2 + $0x90] sm:$0xff]
    %v1476 = vld [vmem:[%s2 + $0x98] sm:$0xff]
    %v1477 = vld [vmem:[%s2 + $0xa0] sm:$0xff]
    %v1478 = vld [vmem:[%s2 + $0xa8] sm:$0xff]
    %v1479 = vld [vmem:[%s2 + $0xb0] sm:$0xff]
    %v1480 = vld [vmem:[%s2 + $0xb8] sm:$0xff]
    %v1481 = vld [vmem:[%s2 + $0xc0] sm:$0xff]
    %v1482 = vld [vmem:[%s2 + $0xc8] sm:$0xff]
    %v1483 = vld [vmem:[%s2 + $0xd0] sm:$0xff]
    %v1484 = vld [vmem:[%s2 + $0xd8] sm:$0xff]
    %v1485 = vld [vmem:[%s2 + $0xe0] sm:$0xff]
    %v1486 = vld [vmem:[%s2 + $0xe8] sm:$0xff]
    %v1487 = vld [vmem:[%s2 + $0xf0] sm:$0xff]
    %v1488 = vld [vmem:[%s2 + $0xf8] sm:$0xff]
    %v1489 = vld [vmem:[%s2 + $0x100] sm:$0xff]
    %v1490 = vld [vmem:[%s2 + $0x108] sm:$0xff]
    %v1491 = vld [vmem:[%s2 + $0x110] sm:$0xff]
    %v1492 = vld [vmem:[%s2 + $0x118] sm:$0xff]
    %v1493 = vld [vmem:[%s2 + $0x120] sm:$0xff]
    %v1494 = vld [vmem:[%s2 + $0x128] sm:$0xff]
    %v1495 = vld [vmem:[%s2 + $0x130] sm:$0xff]
    %v1496 = vld [vmem:[%s2 + $0x138] sm:$0xff]
    %v1497 = vld [vmem:[%s2 + $0x140] sm:$0xff]
    %v1498 = vld [vmem:[%s2 + $0x148] sm:$0xff]
    %v1499 = vld [vmem:[%s2 + $0x150] sm:$0xff]
    %v1500 = vld [vmem:[%s2 + $0x158] sm:$0xff]
    %v1501 = vld [vmem:[%s2 + $0x160] sm:$0xff]
    %v1502 = vld [vmem:[%s2 + $0x168] sm:$0xff]
    %v1503 = vld [vmem:[%s2 + $0x170] sm:$0xff]
    %v1504 = vld [vmem:[%s2 + $0x178] sm:$0xff]
    %1505 = vmatprep.subr.mxu0 0.0
    %v1506 = vand.u32 %v1457, 4294901760
    %1507 = vmatpush1.msra.mxu0 %v1506
    %1508 = vmatprep.subr.mxu0 0.0
    %v1509 = vand.u32 %v1458, 4294901760
    %1510 = vmatpush1.msra.mxu0 %v1509
    %1511 = vmatprep.subr.mxu0 0.0
    %v1512 = vand.u32 %v1459, 4294901760
    %1513 = vmatpush1.msra.mxu0 %v1512
    %1514 = vmatprep.subr.mxu0 0.0
    %v1515 = vand.u32 %v1460, 4294901760
    %1516 = vmatpush1.msra.mxu0 %v1515
    %1517 = vmatprep.subr.mxu0 0.0
    %v1518 = vand.u32 %v1461, 4294901760
    %1519 = vmatpush1.msra.mxu0 %v1518
    %1520 = vmatprep.subr.mxu0 0.0
    %v1521 = vand.u32 %v1462, 4294901760
    %1522 = vmatpush1.msra.mxu0 %v1521
    %1523 = vmatprep.subr.mxu0 0.0
    %v1524 = vand.u32 %v1463, 4294901760
    %1525 = vmatpush1.msra.mxu0 %v1524
    %1526 = vmatprep.subr.mxu0 0.0
    %v1527 = vand.u32 %v1464, 4294901760
    %1528 = vmatpush1.msra.mxu0 %v1527
    %1529 = vmatprep.subr.mxu0 0.0
    %v1530 = vand.u32 %v1465, 4294901760
    %1531 = vmatpush1.msra.mxu0 %v1530
    %1532 = vmatprep.subr.mxu0 0.0
    %v1533 = vand.u32 %v1466, 4294901760
    %1534 = vmatpush1.msra.mxu0 %v1533
    %1535 = vmatprep.subr.mxu0 0.0
    %v1536 = vand.u32 %v1467, 4294901760
    %1537 = vmatpush1.msra.mxu0 %v1536
    %1538 = vmatprep.subr.mxu0 0.0
    %v1539 = vand.u32 %v1468, 4294901760
    %1540 = vmatpush1.msra.mxu0 %v1539
    %1541 = vmatprep.subr.mxu0 0.0
    %v1542 = vand.u32 %v1469, 4294901760
    %1543 = vmatpush1.msra.mxu0 %v1542
    %1544 = vmatprep.subr.mxu0 0.0
    %v1545 = vand.u32 %v1470, 4294901760
    %1546 = vmatpush1.msra.mxu0 %v1545
    %1547 = vmatprep.subr.mxu0 0.0
    %v1548 = vand.u32 %v1471, 4294901760
    %1549 = vmatpush1.msra.mxu0 %v1548
    %1550 = vmatprep.subr.mxu0 0.0
    %v1551 = vand.u32 %v1472, 4294901760
    %1552 = vmatpush1.msra.mxu0 %v1551
    %1553 = vmatprep.subr.mxu0 0.0
    %v1554 = vand.u32 %v1473, 4294901760
    %1555 = vmatpush1.msra.mxu0 %v1554
    %1556 = vmatprep.subr.mxu0 0.0
    %v1557 = vand.u32 %v1474, 4294901760
    %1558 = vmatpush1.msra.mxu0 %v1557
    %1559 = vmatprep.subr.mxu0 0.0
    %v1560 = vand.u32 %v1475, 4294901760
    %1561 = vmatpush1.msra.mxu0 %v1560
    %1562 = vmatprep.subr.mxu0 0.0
    %v1563 = vand.u32 %v1476, 4294901760
    %1564 = vmatpush1.msra.mxu0 %v1563
    %1565 = vmatprep.subr.mxu0 0.0
    %v1566 = vand.u32 %v1477, 4294901760
    %1567 = vmatpush1.msra.mxu0 %v1566
    %1568 = vmatprep.subr.mxu0 0.0
    %v1569 = vand.u32 %v1478, 4294901760
    %1570 = vmatpush1.msra.mxu0 %v1569
    %1571 = vmatprep.subr.mxu0 0.0
    %v1572 = vand.u32 %v1479, 4294901760
    %1573 = vmatpush1.msra.mxu0 %v1572
    %1574 = vmatprep.subr.mxu0 0.0
    %v1575 = vand.u32 %v1480, 4294901760
    %1576 = vmatpush1.msra.mxu0 %v1575
    %1577 = vmatprep.subr.mxu0 0.0
    %v1578 = vand.u32 %v1481, 4294901760
    %1579 = vmatpush1.msra.mxu0 %v1578
    %1580 = vmatprep.subr.mxu0 0.0
    %v1581 = vand.u32 %v1482, 4294901760
    %1582 = vmatpush1.msra.mxu0 %v1581
    %1583 = vmatprep.subr.mxu0 0.0
    %v1584 = vand.u32 %v1483, 4294901760
    %1585 = vmatpush1.msra.mxu0 %v1584
    %1586 = vmatprep.subr.mxu0 0.0
    %v1587 = vand.u32 %v1484, 4294901760
    %1588 = vmatpush1.msra.mxu0 %v1587
    %1589 = vmatprep.subr.mxu0 0.0
    %v1590 = vand.u32 %v1485, 4294901760
    %1591 = vmatpush1.msra.mxu0 %v1590
    %1592 = vmatprep.subr.mxu0 0.0
    %v1593 = vand.u32 %v1486, 4294901760
    %1594 = vmatpush1.msra.mxu0 %v1593
    %1595 = vmatprep.subr.mxu0 0.0
    %v1596 = vand.u32 %v1487, 4294901760
    %1597 = vmatpush1.msra.mxu0 %v1596
    %1598 = vmatprep.subr.mxu0 0.0
    %v1599 = vand.u32 %v1488, 4294901760
    %1600 = vmatpush1.msra.mxu0 %v1599
    %v1601 = vand.u32 %v794, 4294901760
    %v1602 = vsub.f32 %v794, %v1601
    %v1603 = vand.u32 %v1602, 4294901760
    %v1604 = vsub.f32 %v1602, %v1603
    %v1605 = vand.u32 %v1604, 4294901760
    %1606 = vmatprep.mubr.f32.mxu0 %v1605
    %v1607 = vand.u32 %v792, 4294901760
    %v1608 = vsub.f32 %v792, %v1607
    %v1609 = vand.u32 %v1608, 4294901760
    %v1610 = vsub.f32 %v1608, %v1609
    %v1611 = vand.u32 %v1610, 4294901760
    %1612 = vmatmul.mubr.f32.gmra.mrb[0].mxu0 %v1611
    %v1613 = vpop.f32.mrb[0].mxu0
    %v1614 = vadd.f32 0.0, %v1613
    %v1615 = vpop.f32.mrb[0].mxu0
    %v1616 = vand.u32 %v801, 4294901760
    %v1617 = vsub.f32 %v801, %v1616
    %v1618 = vand.u32 %v1617, 4294901760
    %v1619 = vsub.f32 %v1617, %v1618
    %v1620 = vand.u32 %v1619, 4294901760
    %1621 = vmatprep.mubr.f32.mxu0 %v1620
    %v1622 = vand.u32 %v799, 4294901760
    %v1623 = vsub.f32 %v799, %v1622
    %v1624 = vand.u32 %v1623, 4294901760
    %v1625 = vsub.f32 %v1623, %v1624
    %v1626 = vand.u32 %v1625, 4294901760
    %1627 = vmatmul.mubr.f32.gmra.mrb[0].mxu0 %v1626
    %v1628 = vpop.f32.mrb[0].mxu0
    %v1629 = vadd.f32 0.0, %v1628
    %v1630 = vpop.f32.mrb[0].mxu0
    %v1631 = vand.u32 %v808, 4294901760
    %v1632 = vsub.f32 %v808, %v1631
    %v1633 = vand.u32 %v1632, 4294901760
    %v1634 = vsub.f32 %v1632, %v1633
    %v1635 = vand.u32 %v1634, 4294901760
    %1636 = vmatprep.mubr.f32.mxu0 %v1635
    %v1637 = vand.u32 %v806, 4294901760
    %v1638 = vsub.f32 %v806, %v1637
    %v1639 = vand.u32 %v1638, 4294901760
    %v1640 = vsub.f32 %v1638, %v1639
    %v1641 = vand.u32 %v1640, 4294901760
    %1642 = vmatmul.mubr.f32.gmra.mrb[0].mxu0 %v1641
    %v1643 = vpop.f32.mrb[0].mxu0
    %v1644 = vadd.f32 0.0, %v1643
    %v1645 = vpop.f32.mrb[0].mxu0
    %v1646 = vand.u32 %v815, 4294901760
    %v1647 = vsub.f32 %v815, %v1646
    %v1648 = vand.u32 %v1647, 4294901760
    %v1649 = vsub.f32 %v1647, %v1648
    %v1650 = vand.u32 %v1649, 4294901760
    %1651 = vmatprep.mubr.f32.mxu0 %v1650
    %v1652 = vand.u32 %v813, 4294901760
    %v1653 = vsub.f32 %v813, %v1652
    %v1654 = vand.u32 %v1653, 4294901760
    %v1655 = vsub.f32 %v1653, %v1654
    %v1656 = vand.u32 %v1655, 4294901760
    %1657 = vmatmul.mubr.f32.gmra.mrb[0].mxu0 %v1656
    %v1658 = vpop.f32.mrb[0].mxu0
    %v1659 = vadd.f32 0.0, %v1658
    %v1660 = vpop.f32.mrb[0].mxu0
    %1661 = vdwg.mxu0
    %1662 = vmatprep.subr.mxu0 0.0
    %v1663 = vand.u32 %v1457, 4294901760
    %v1664 = vsub.f32 %v1457, %v1663
    %v1665 = vand.u32 %v1664, 4294901760
    %v1666 = vsub.f32 %v1664, %v1665
    %v1667 = vand.u32 %v1666, 4294901760
    %1668 = vmatpush1.msra.mxu0 %v1667
    %1669 = vmatprep.subr.mxu0 0.0
    %v1670 = vand.u32 %v1458, 4294901760
    %v1671 = vsub.f32 %v1458, %v1670
    %v1672 = vand.u32 %v1671, 4294901760
    %v1673 = vsub.f32 %v1671, %v1672
    %v1674 = vand.u32 %v1673, 4294901760
    %1675 = vmatpush1.msra.mxu0 %v1674
    %1676 = vmatprep.subr.mxu0 0.0
    %v1677 = vand.u32 %v1459, 4294901760
    %v1678 = vsub.f32 %v1459, %v1677
    %v1679 = vand.u32 %v1678, 4294901760
    %v1680 = vsub.f32 %v1678, %v1679
    %v1681 = vand.u32 %v1680, 4294901760
    %1682 = vmatpush1.msra.mxu0 %v1681
    %1683 = vmatprep.subr.mxu0 0.0
    %v1684 = vand.u32 %v1460, 4294901760
    %v1685 = vsub.f32 %v1460, %v1684
    %v1686 = vand.u32 %v1685, 4294901760
    %v1687 = vsub.f32 %v1685, %v1686
    %v1688 = vand.u32 %v1687, 4294901760
    %1689 = vmatpush1.msra.mxu0 %v1688
    %1690 = vmatprep.subr.mxu0 0.0
    %v1691 = vand.u32 %v1461, 4294901760
    %v1692 = vsub.f32 %v1461, %v1691
    %v1693 = vand.u32 %v1692, 4294901760
    %v1694 = vsub.f32 %v1692, %v1693
    %v1695 = vand.u32 %v1694, 4294901760
    %1696 = vmatpush1.msra.mxu0 %v1695
    %1697 = vmatprep.subr.mxu0 0.0
    %v1698 = vand.u32 %v1462, 4294901760
    %v1699 = vsub.f32 %v1462, %v1698
    %v1700 = vand.u32 %v1699, 4294901760
    %v1701 = vsub.f32 %v1699, %v1700
    %v1702 = vand.u32 %v1701, 4294901760
    %1703 = vmatpush1.msra.mxu0 %v1702
    %1704 = vmatprep.subr.mxu0 0.0
    %v1705 = vand.u32 %v1463, 4294901760
    %v1706 = vsub.f32 %v1463, %v1705
    %v1707 = vand.u32 %v1706, 4294901760
    %v1708 = vsub.f32 %v1706, %v1707
    %v1709 = vand.u32 %v1708, 4294901760
    %1710 = vmatpush1.msra.mxu0 %v1709
    %1711 = vmatprep.subr.mxu0 0.0
    %v1712 = vand.u32 %v1464, 4294901760
    %v1713 = vsub.f32 %v1464, %v1712
    %v1714 = vand.u32 %v1713, 4294901760
    %v1715 = vsub.f32 %v1713, %v1714
    %v1716 = vand.u32 %v1715, 4294901760
    %1717 = vmatpush1.msra.mxu0 %v1716
    %1718 = vmatprep.subr.mxu0 0.0
    %v1719 = vand.u32 %v1465, 4294901760
    %v1720 = vsub.f32 %v1465, %v1719
    %v1721 = vand.u32 %v1720, 4294901760
    %v1722 = vsub.f32 %v1720, %v1721
    %v1723 = vand.u32 %v1722, 4294901760
    %1724 = vmatpush1.msra.mxu0 %v1723
    %1725 = vmatprep.subr.mxu0 0.0
    %v1726 = vand.u32 %v1466, 4294901760
    %v1727 = vsub.f32 %v1466, %v1726
    %v1728 = vand.u32 %v1727, 4294901760
    %v1729 = vsub.f32 %v1727, %v1728
    %v1730 = vand.u32 %v1729, 4294901760
    %1731 = vmatpush1.msra.mxu0 %v1730
    %1732 = vmatprep.subr.mxu0 0.0
    %v1733 = vand.u32 %v1467, 4294901760
    %v1734 = vsub.f32 %v1467, %v1733
    %v1735 = vand.u32 %v1734, 4294901760
    %v1736 = vsub.f32 %v1734, %v1735
    %v1737 = vand.u32 %v1736, 4294901760
    %1738 = vmatpush1.msra.mxu0 %v1737
    %1739 = vmatprep.subr.mxu0 0.0
    %v1740 = vand.u32 %v1468, 4294901760
    %v1741 = vsub.f32 %v1468, %v1740
    %v1742 = vand.u32 %v1741, 4294901760
    %v1743 = vsub.f32 %v1741, %v1742
    %v1744 = vand.u32 %v1743, 4294901760
    %1745 = vmatpush1.msra.mxu0 %v1744
    %1746 = vmatprep.subr.mxu0 0.0
    %v1747 = vand.u32 %v1469, 4294901760
    %v1748 = vsub.f32 %v1469, %v1747
    %v1749 = vand.u32 %v1748, 4294901760
    %v1750 = vsub.f32 %v1748, %v1749
    %v1751 = vand.u32 %v1750, 4294901760
    %1752 = vmatpush1.msra.mxu0 %v1751
    %1753 = vmatprep.subr.mxu0 0.0
    %v1754 = vand.u32 %v1470, 4294901760
    %v1755 = vsub.f32 %v1470, %v1754
    %v1756 = vand.u32 %v1755, 4294901760
    %v1757 = vsub.f32 %v1755, %v1756
    %v1758 = vand.u32 %v1757, 4294901760
    %1759 = vmatpush1.msra.mxu0 %v1758
    %1760 = vmatprep.subr.mxu0 0.0
    %v1761 = vand.u32 %v1471, 4294901760
    %v1762 = vsub.f32 %v1471, %v1761
    %v1763 = vand.u32 %v1762, 4294901760
    %v1764 = vsub.f32 %v1762, %v1763
    %v1765 = vand.u32 %v1764, 4294901760
    %1766 = vmatpush1.msra.mxu0 %v1765
    %1767 = vmatprep.subr.mxu0 0.0
    %v1768 = vand.u32 %v1472, 4294901760
    %v1769 = vsub.f32 %v1472, %v1768
    %v1770 = vand.u32 %v1769, 4294901760
    %v1771 = vsub.f32 %v1769, %v1770
    %v1772 = vand.u32 %v1771, 4294901760
    %1773 = vmatpush1.msra.mxu0 %v1772
    %1774 = vmatprep.subr.mxu0 0.0
    %v1775 = vand.u32 %v1473, 4294901760
    %v1776 = vsub.f32 %v1473, %v1775
    %v1777 = vand.u32 %v1776, 4294901760
    %v1778 = vsub.f32 %v1776, %v1777
    %v1779 = vand.u32 %v1778, 4294901760
    %1780 = vmatpush1.msra.mxu0 %v1779
    %1781 = vmatprep.subr.mxu0 0.0
    %v1782 = vand.u32 %v1474, 4294901760
    %v1783 = vsub.f32 %v1474, %v1782
    %v1784 = vand.u32 %v1783, 4294901760
    %v1785 = vsub.f32 %v1783, %v1784
    %v1786 = vand.u32 %v1785, 4294901760
    %1787 = vmatpush1.msra.mxu0 %v1786
    %1788 = vmatprep.subr.mxu0 0.0
    %v1789 = vand.u32 %v1475, 4294901760
    %v1790 = vsub.f32 %v1475, %v1789
    %v1791 = vand.u32 %v1790, 4294901760
    %v1792 = vsub.f32 %v1790, %v1791
    %v1793 = vand.u32 %v1792, 4294901760
    %1794 = vmatpush1.msra.mxu0 %v1793
    %1795 = vmatprep.subr.mxu0 0.0
    %v1796 = vand.u32 %v1476, 4294901760
    %v1797 = vsub.f32 %v1476, %v1796
    %v1798 = vand.u32 %v1797, 4294901760
    %v1799 = vsub.f32 %v1797, %v1798
    %v1800 = vand.u32 %v1799, 4294901760
    %1801 = vmatpush1.msra.mxu0 %v1800
    %1802 = vmatprep.subr.mxu0 0.0
    %v1803 = vand.u32 %v1477, 4294901760
    %v1804 = vsub.f32 %v1477, %v1803
    %v1805 = vand.u32 %v1804, 4294901760
    %v1806 = vsub.f32 %v1804, %v1805
    %v1807 = vand.u32 %v1806, 4294901760
    %1808 = vmatpush1.msra.mxu0 %v1807
    %1809 = vmatprep.subr.mxu0 0.0
    %v1810 = vand.u32 %v1478, 4294901760
    %v1811 = vsub.f32 %v1478, %v1810
    %v1812 = vand.u32 %v1811, 4294901760
    %v1813 = vsub.f32 %v1811, %v1812
    %v1814 = vand.u32 %v1813, 4294901760
    %1815 = vmatpush1.msra.mxu0 %v1814
    %1816 = vmatprep.subr.mxu0 0.0
    %v1817 = vand.u32 %v1479, 4294901760
    %v1818 = vsub.f32 %v1479, %v1817
    %v1819 = vand.u32 %v1818, 4294901760
    %v1820 = vsub.f32 %v1818, %v1819
    %v1821 = vand.u32 %v1820, 4294901760
    %1822 = vmatpush1.msra.mxu0 %v1821
    %1823 = vmatprep.subr.mxu0 0.0
    %v1824 = vand.u32 %v1480, 4294901760
    %v1825 = vsub.f32 %v1480, %v1824
    %v1826 = vand.u32 %v1825, 4294901760
    %v1827 = vsub.f32 %v1825, %v1826
    %v1828 = vand.u32 %v1827, 4294901760
    %1829 = vmatpush1.msra.mxu0 %v1828
    %1830 = vmatprep.subr.mxu0 0.0
    %v1831 = vand.u32 %v1481, 4294901760
    %v1832 = vsub.f32 %v1481, %v1831
    %v1833 = vand.u32 %v1832, 4294901760
    %v1834 = vsub.f32 %v1832, %v1833
    %v1835 = vand.u32 %v1834, 4294901760
    %1836 = vmatpush1.msra.mxu0 %v1835
    %1837 = vmatprep.subr.mxu0 0.0
    %v1838 = vand.u32 %v1482, 4294901760
    %v1839 = vsub.f32 %v1482, %v1838
    %v1840 = vand.u32 %v1839, 4294901760
    %v1841 = vsub.f32 %v1839, %v1840
    %v1842 = vand.u32 %v1841, 4294901760
    %1843 = vmatpush1.msra.mxu0 %v1842
    %1844 = vmatprep.subr.mxu0 0.0
    %v1845 = vand.u32 %v1483, 4294901760
    %v1846 = vsub.f32 %v1483, %v1845
    %v1847 = vand.u32 %v1846, 4294901760
    %v1848 = vsub.f32 %v1846, %v1847
    %v1849 = vand.u32 %v1848, 4294901760
    %1850 = vmatpush1.msra.mxu0 %v1849
    %1851 = vmatprep.subr.mxu0 0.0
    %v1852 = vand.u32 %v1484, 4294901760
    %v1853 = vsub.f32 %v1484, %v1852
    %v1854 = vand.u32 %v1853, 4294901760
    %v1855 = vsub.f32 %v1853, %v1854
    %v1856 = vand.u32 %v1855, 4294901760
    %1857 = vmatpush1.msra.mxu0 %v1856
    %1858 = vmatprep.subr.mxu0 0.0
    %v1859 = vand.u32 %v1485, 4294901760
    %v1860 = vsub.f32 %v1485, %v1859
    %v1861 = vand.u32 %v1860, 4294901760
    %v1862 = vsub.f32 %v1860, %v1861
    %v1863 = vand.u32 %v1862, 4294901760
    %1864 = vmatpush1.msra.mxu0 %v1863
    %1865 = vmatprep.subr.mxu0 0.0
    %v1866 = vand.u32 %v1486, 4294901760
    %v1867 = vsub.f32 %v1486, %v1866
    %v1868 = vand.u32 %v1867, 4294901760
    %v1869 = vsub.f32 %v1867, %v1868
    %v1870 = vand.u32 %v1869, 4294901760
    %1871 = vmatpush1.msra.mxu0 %v1870
    %1872 = vmatprep.subr.mxu0 0.0
    %v1873 = vand.u32 %v1487, 4294901760
    %v1874 = vsub.f32 %v1487, %v1873
    %v1875 = vand.u32 %v1874, 4294901760
    %v1876 = vsub.f32 %v1874, %v1875
    %v1877 = vand.u32 %v1876, 4294901760
    %1878 = vmatpush1.msra.mxu0 %v1877
    %1879 = vmatprep.subr.mxu0 0.0
    %v1880 = vand.u32 %v1488, 4294901760
    %v1881 = vsub.f32 %v1488, %v1880
    %v1882 = vand.u32 %v1881, 4294901760
    %v1883 = vsub.f32 %v1881, %v1882
    %v1884 = vand.u32 %v1883, 4294901760
    %1885 = vmatpush1.msra.mxu0 %v1884
    %v1886 = vand.u32 %v794, 4294901760
    %1887 = vmatprep.mubr.f32.mxu0 %v1886
    %v1888 = vand.u32 %v792, 4294901760
    %1889 = vmatmul.mubr.f32.gmra.mrb[0].mxu0 %v1888
    %v1890 = vpop.f32.mrb[0].mxu0
    %v1891 = vadd.f32 %v1614, %v1890
    %v1892 = vpop.f32.mrb[0].mxu0
    %v1893 = vand.u32 %v801, 4294901760
    %1894 = vmatprep.mubr.f32.mxu0 %v1893
    %v1895 = vand.u32 %v799, 4294901760
    %1896 = vmatmul.mubr.f32.gmra.mrb[0].mxu0 %v1895
    %v1897 = vpop.f32.mrb[0].mxu0
    %v1898 = vadd.f32 %v1629, %v1897
    %v1899 = vpop.f32.mrb[0].mxu0
    %v1900 = vand.u32 %v808, 4294901760
    %1901 = vmatprep.mubr.f32.mxu0 %v1900
    %v1902 = vand.u32 %v806, 4294901760
    %1903 = vmatmul.mubr.f32.gmra.mrb[0].mxu0 %v1902
    %v1904 = vpop.f32.mrb[0].mxu0
    %v1905 = vadd.f32 %v1644, %v1904
    %v1906 = vpop.f32.mrb[0].mxu0
    %v1907 = vand.u32 %v815, 4294901760
    %1908 = vmatprep.mubr.f32.mxu0 %v1907
    %v1909 = vand.u32 %v813, 4294901760
    %1910 = vmatmul.mubr.f32.gmra.mrb[0].mxu0 %v1909
    %v1911 = vpop.f32.mrb[0].mxu0
    %v1912 = vadd.f32 %v1659, %v1911
    %v1913 = vpop.f32.mrb[0].mxu0
    %1914 = vdwg.mxu0
    %1915 = vmatprep.subr.mxu0 0.0
    %v1916 = vand.u32 %v1457, 4294901760
    %v1917 = vsub.f32 %v1457, %v1916
    %1918 = vmatpush1.msra.mxu0 %v1917
    %1919 = vmatprep.subr.mxu0 0.0
    %v1920 = vand.u32 %v1458, 4294901760
    %v1921 = vsub.f32 %v1458, %v1920
    %1922 = vmatpush1.msra.mxu0 %v1921
    %1923 = vmatprep.subr.mxu0 0.0
    %v1924 = vand.u32 %v1459, 4294901760
    %v1925 = vsub.f32 %v1459, %v1924
    %1926 = vmatpush1.msra.mxu0 %v1925
    %1927 = vmatprep.subr.mxu0 0.0
    %v1928 = vand.u32 %v1460, 4294901760
    %v1929 = vsub.f32 %v1460, %v1928
    %1930 = vmatpush1.msra.mxu0 %v1929
    %1931 = vmatprep.subr.mxu0 0.0
    %v1932 = vand.u32 %v1461, 4294901760
    %v1933 = vsub.f32 %v1461, %v1932
    %1934 = vmatpush1.msra.mxu0 %v1933
    %1935 = vmatprep.subr.mxu0 0.0
    %v1936 = vand.u32 %v1462, 4294901760
    %v1937 = vsub.f32 %v1462, %v1936
    %1938 = vmatpush1.msra.mxu0 %v1937
    %1939 = vmatprep.subr.mxu0 0.0
    %v1940 = vand.u32 %v1463, 4294901760
    %v1941 = vsub.f32 %v1463, %v1940
    %1942 = vmatpush1.msra.mxu0 %v1941
    %1943 = vmatprep.subr.mxu0 0.0
    %v1944 = vand.u32 %v1464, 4294901760
    %v1945 = vsub.f32 %v1464, %v1944
    %1946 = vmatpush1.msra.mxu0 %v1945
    %1947 = vmatprep.subr.mxu0 0.0
    %v1948 = vand.u32 %v1465, 4294901760
    %v1949 = vsub.f32 %v1465, %v1948
    %1950 = vmatpush1.msra.mxu0 %v1949
    %1951 = vmatprep.subr.mxu0 0.0
    %v1952 = vand.u32 %v1466, 4294901760
    %v1953 = vsub.f32 %v1466, %v1952
    %1954 = vmatpush1.msra.mxu0 %v1953
    %1955 = vmatprep.subr.mxu0 0.0
    %v1956 = vand.u32 %v1467, 4294901760
    %v1957 = vsub.f32 %v1467, %v1956
    %1958 = vmatpush1.msra.mxu0 %v1957
    %1959 = vmatprep.subr.mxu0 0.0
    %v1960 = vand.u32 %v1468, 4294901760
    %v1961 = vsub.f32 %v1468, %v1960
    %1962 = vmatpush1.msra.mxu0 %v1961
    %1963 = vmatprep.subr.mxu0 0.0
    %v1964 = vand.u32 %v1469, 4294901760
    %v1965 = vsub.f32 %v1469, %v1964
    %1966 = vmatpush1.msra.mxu0 %v1965
    %1967 = vmatprep.subr.mxu0 0.0
    %v1968 = vand.u32 %v1470, 4294901760
    %v1969 = vsub.f32 %v1470, %v1968
    %1970 = vmatpush1.msra.mxu0 %v1969
    %1971 = vmatprep.subr.mxu0 0.0
    %v1972 = vand.u32 %v1471, 4294901760
    %v1973 = vsub.f32 %v1471, %v1972
    %1974 = vmatpush1.msra.mxu0 %v1973
    %1975 = vmatprep.subr.mxu0 0.0
    %v1976 = vand.u32 %v1472, 4294901760
    %v1977 = vsub.f32 %v1472, %v1976
    %1978 = vmatpush1.msra.mxu0 %v1977
    %1979 = vmatprep.subr.mxu0 0.0
    %v1980 = vand.u32 %v1473, 4294901760
    %v1981 = vsub.f32 %v1473, %v1980
    %1982 = vmatpush1.msra.mxu0 %v1981
    %1983 = vmatprep.subr.mxu0 0.0
    %v1984 = vand.u32 %v1474, 4294901760
    %v1985 = vsub.f32 %v1474, %v1984
    %1986 = vmatpush1.msra.mxu0 %v1985
    %1987 = vmatprep.subr.mxu0 0.0
    %v1988 = vand.u32 %v1475, 4294901760
    %v1989 = vsub.f32 %v1475, %v1988
    %1990 = vmatpush1.msra.mxu0 %v1989
    %1991 = vmatprep.subr.mxu0 0.0
    %v1992 = vand.u32 %v1476, 4294901760
    %v1993 = vsub.f32 %v1476, %v1992
    %1994 = vmatpush1.msra.mxu0 %v1993
    %1995 = vmatprep.subr.mxu0 0.0
    %v1996 = vand.u32 %v1477, 4294901760
    %v1997 = vsub.f32 %v1477, %v1996
    %1998 = vmatpush1.msra.mxu0 %v1997
    %1999 = vmatprep.subr.mxu0 0.0
    %v2000 = vand.u32 %v1478, 4294901760
    %v2001 = vsub.f32 %v1478, %v2000
    %2002 = vmatpush1.msra.mxu0 %v2001
    %2003 = vmatprep.subr.mxu0 0.0
    %v2004 = vand.u32 %v1479, 4294901760
    %v2005 = vsub.f32 %v1479, %v2004
    %2006 = vmatpush1.msra.mxu0 %v2005
    %2007 = vmatprep.subr.mxu0 0.0
    %v2008 = vand.u32 %v1480, 4294901760
    %v2009 = vsub.f32 %v1480, %v2008
    %2010 = vmatpush1.msra.mxu0 %v2009
    %2011 = vmatprep.subr.mxu0 0.0
    %v2012 = vand.u32 %v1481, 4294901760
    %v2013 = vsub.f32 %v1481, %v2012
    %2014 = vmatpush1.msra.mxu0 %v2013
    %2015 = vmatprep.subr.mxu0 0.0
    %v2016 = vand.u32 %v1482, 4294901760
    %v2017 = vsub.f32 %v1482, %v2016
    %2018 = vmatpush1.msra.mxu0 %v2017
    %2019 = vmatprep.subr.mxu0 0.0
    %v2020 = vand.u32 %v1483, 4294901760
    %v2021 = vsub.f32 %v1483, %v2020
    %2022 = vmatpush1.msra.mxu0 %v2021
    %2023 = vmatprep.subr.mxu0 0.0
    %v2024 = vand.u32 %v1484, 4294901760
    %v2025 = vsub.f32 %v1484, %v2024
    %2026 = vmatpush1.msra.mxu0 %v2025
    %2027 = vmatprep.subr.mxu0 0.0
    %v2028 = vand.u32 %v1485, 4294901760
    %v2029 = vsub.f32 %v1485, %v2028
    %2030 = vmatpush1.msra.mxu0 %v2029
    %2031 = vmatprep.subr.mxu0 0.0
    %v2032 = vand.u32 %v1486, 4294901760
    %v2033 = vsub.f32 %v1486, %v2032
    %2034 = vmatpush1.msra.mxu0 %v2033
    %2035 = vmatprep.subr.mxu0 0.0
    %v2036 = vand.u32 %v1487, 4294901760
    %v2037 = vsub.f32 %v1487, %v2036
    %2038 = vmatpush1.msra.mxu0 %v2037
    %2039 = vmatprep.subr.mxu0 0.0
    %v2040 = vand.u32 %v1488, 4294901760
    %v2041 = vsub.f32 %v1488, %v2040
    %2042 = vmatpush1.msra.mxu0 %v2041
    %v2043 = vand.u32 %v794, 4294901760
    %v2044 = vsub.f32 %v794, %v2043
    %2045 = vmatprep.mubr.f32.mxu0 %v2044
    %v2046 = vand.u32 %v792, 4294901760
    %v2047 = vsub.f32 %v792, %v2046
    %2048 = vmatmul.mubr.f32.gmra.mrb[0].mxu0 %v2047
    %v2049 = vpop.f32.mrb[0].mxu0
    %v2050 = vadd.f32 %v1891, %v2049
    %v2051 = vpop.f32.mrb[0].mxu0
    %v2052 = vand.u32 %v801, 4294901760
    %v2053 = vsub.f32 %v801, %v2052
    %2054 = vmatprep.mubr.f32.mxu0 %v2053
    %v2055 = vand.u32 %v799, 4294901760
    %v2056 = vsub.f32 %v799, %v2055
    %2057 = vmatmul.mubr.f32.gmra.mrb[0].mxu0 %v2056
    %v2058 = vpop.f32.mrb[0].mxu0
    %v2059 = vadd.f32 %v1898, %v2058
    %v2060 = vpop.f32.mrb[0].mxu0
    %v2061 = vand.u32 %v808, 4294901760
    %v2062 = vsub.f32 %v808, %v2061
    %2063 = vmatprep.mubr.f32.mxu0 %v2062
    %v2064 = vand.u32 %v806, 4294901760
    %v2065 = vsub.f32 %v806, %v2064
    %2066 = vmatmul.mubr.f32.gmra.mrb[0].mxu0 %v2065
    %v2067 = vpop.f32.mrb[0].mxu0
    %v2068 = vadd.f32 %v1905, %v2067
    %v2069 = vpop.f32.mrb[0].mxu0
    %v2070 = vand.u32 %v815, 4294901760
    %v2071 = vsub.f32 %v815, %v2070
    %2072 = vmatprep.mubr.f32.mxu0 %v2071
    %v2073 = vand.u32 %v813, 4294901760
    %v2074 = vsub.f32 %v813, %v2073
    %2075 = vmatmul.mubr.f32.gmra.mrb[0].mxu0 %v2074
    %v2076 = vpop.f32.mrb[0].mxu0
    %v2077 = vadd.f32 %v1912, %v2076
    %v2078 = vpop.f32.mrb[0].mxu0
    %2079 = vdwg.mxu0
    %2080 = vmatprep.subr.mxu0 0.0
    %v2081 = vand.u32 %v1457, 4294901760
    %2082 = vmatpush1.msra.mxu0 %v2081
    %2083 = vmatprep.subr.mxu0 0.0
    %v2084 = vand.u32 %v1458, 4294901760
    %2085 = vmatpush1.msra.mxu0 %v2084
    %2086 = vmatprep.subr.mxu0 0.0
    %v2087 = vand.u32 %v1459, 4294901760
    %2088 = vmatpush1.msra.mxu0 %v2087
    %2089 = vmatprep.subr.mxu0 0.0
    %v2090 = vand.u32 %v1460, 4294901760
    %2091 = vmatpush1.msra.mxu0 %v2090
    %2092 = vmatprep.subr.mxu0 0.0
    %v2093 = vand.u32 %v1461, 4294901760
    %2094 = vmatpush1.msra.mxu0 %v2093
    %2095 = vmatprep.subr.mxu0 0.0
    %v2096 = vand.u32 %v1462, 4294901760
    %2097 = vmatpush1.msra.mxu0 %v2096
    %2098 = vmatprep.subr.mxu0 0.0
    %v2099 = vand.u32 %v1463, 4294901760
    %2100 = vmatpush1.msra.mxu0 %v2099
    %2101 = vmatprep.subr.mxu0 0.0
    %v2102 = vand.u32 %v1464, 4294901760
    %2103 = vmatpush1.msra.mxu0 %v2102
    %2104 = vmatprep.subr.mxu0 0.0
    %v2105 = vand.u32 %v1465, 4294901760
    %2106 = vmatpush1.msra.mxu0 %v2105
    %2107 = vmatprep.subr.mxu0 0.0
    %v2108 = vand.u32 %v1466, 4294901760
    %2109 = vmatpush1.msra.mxu0 %v2108
    %2110 = vmatprep.subr.mxu0 0.0
    %v2111 = vand.u32 %v1467, 4294901760
    %2112 = vmatpush1.msra.mxu0 %v2111
    %2113 = vmatprep.subr.mxu0 0.0
    %v2114 = vand.u32 %v1468, 4294901760
    %2115 = vmatpush1.msra.mxu0 %v2114
    %2116 = vmatprep.subr.mxu0 0.0
    %v2117 = vand.u32 %v1469, 4294901760
    %2118 = vmatpush1.msra.mxu0 %v2117
    %2119 = vmatprep.subr.mxu0 0.0
    %v2120 = vand.u32 %v1470, 4294901760
    %2121 = vmatpush1.msra.mxu0 %v2120
    %2122 = vmatprep.subr.mxu0 0.0
    %v2123 = vand.u32 %v1471, 4294901760
    %2124 = vmatpush1.msra.mxu0 %v2123
    %2125 = vmatprep.subr.mxu0 0.0
    %v2126 = vand.u32 %v1472, 4294901760
    %2127 = vmatpush1.msra.mxu0 %v2126
    %2128 = vmatprep.subr.mxu0 0.0
    %v2129 = vand.u32 %v1473, 4294901760
    %2130 = vmatpush1.msra.mxu0 %v2129
    %2131 = vmatprep.subr.mxu0 0.0
    %v2132 = vand.u32 %v1474, 4294901760
    %2133 = vmatpush1.msra.mxu0 %v2132
    %2134 = vmatprep.subr.mxu0 0.0
    %v2135 = vand.u32 %v1475, 4294901760
    %2136 = vmatpush1.msra.mxu0 %v2135
    %2137 = vmatprep.subr.mxu0 0.0
    %v2138 = vand.u32 %v1476, 4294901760
    %2139 = vmatpush1.msra.mxu0 %v2138
    %2140 = vmatprep.subr.mxu0 0.0
    %v2141 = vand.u32 %v1477, 4294901760
    %2142 = vmatpush1.msra.mxu0 %v2141
    %2143 = vmatprep.subr.mxu0 0.0
    %v2144 = vand.u32 %v1478, 4294901760
    %2145 = vmatpush1.msra.mxu0 %v2144
    %2146 = vmatprep.subr.mxu0 0.0
    %v2147 = vand.u32 %v1479, 4294901760
    %2148 = vmatpush1.msra.mxu0 %v2147
    %2149 = vmatprep.subr.mxu0 0.0
    %v2150 = vand.u32 %v1480, 4294901760
    %2151 = vmatpush1.msra.mxu0 %v2150
    %2152 = vmatprep.subr.mxu0 0.0
    %v2153 = vand.u32 %v1481, 4294901760
    %2154 = vmatpush1.msra.mxu0 %v2153
    %2155 = vmatprep.subr.mxu0 0.0
    %v2156 = vand.u32 %v1482, 4294901760
    %2157 = vmatpush1.msra.mxu0 %v2156
    %2158 = vmatprep.subr.mxu0 0.0
    %v2159 = vand.u32 %v1483, 4294901760
    %2160 = vmatpush1.msra.mxu0 %v2159
    %2161 = vmatprep.subr.mxu0 0.0
    %v2162 = vand.u32 %v1484, 4294901760
    %2163 = vmatpush1.msra.mxu0 %v2162
    %2164 = vmatprep.subr.mxu0 0.0
    %v2165 = vand.u32 %v1485, 4294901760
    %2166 = vmatpush1.msra.mxu0 %v2165
    %2167 = vmatprep.subr.mxu0 0.0
    %v2168 = vand.u32 %v1486, 4294901760
    %2169 = vmatpush1.msra.mxu0 %v2168
    %2170 = vmatprep.subr.mxu0 0.0
    %v2171 = vand.u32 %v1487, 4294901760
    %2172 = vmatpush1.msra.mxu0 %v2171
    %2173 = vmatprep.subr.mxu0 0.0
    %v2174 = vand.u32 %v1488, 4294901760
    %2175 = vmatpush1.msra.mxu0 %v2174
    %v2176 = vand.u32 %v794, 4294901760
    %v2177 = vsub.f32 %v794, %v2176
    %v2178 = vand.u32 %v2177, 4294901760
    %2179 = vmatprep.mubr.f32.mxu0 %v2178
    %v2180 = vand.u32 %v792, 4294901760
    %v2181 = vsub.f32 %v792, %v2180
    %v2182 = vand.u32 %v2181, 4294901760
    %2183 = vmatmul.mubr.f32.gmra.mrb[0].mxu0 %v2182
    %v2184 = vpop.f32.mrb[0].mxu0
    %v2185 = vadd.f32 %v2050, %v2184
    %v2186 = vpop.f32.mrb[0].mxu0
    %v2187 = vand.u32 %v801, 4294901760
    %v2188 = vsub.f32 %v801, %v2187
    %v2189 = vand.u32 %v2188, 4294901760
    %2190 = vmatprep.mubr.f32.mxu0 %v2189
    %v2191 = vand.u32 %v799, 4294901760
    %v2192 = vsub.f32 %v799, %v2191
    %v2193 = vand.u32 %v2192, 4294901760
    %2194 = vmatmul.mubr.f32.gmra.mrb[0].mxu0 %v2193
    %v2195 = vpop.f32.mrb[0].mxu0
    %v2196 = vadd.f32 %v2059, %v2195
    %v2197 = vpop.f32.mrb[0].mxu0
    %v2198 = vand.u32 %v808, 4294901760
    %v2199 = vsub.f32 %v808, %v2198
    %v2200 = vand.u32 %v2199, 4294901760
    %2201 = vmatprep.mubr.f32.mxu0 %v2200
    %v2202 = vand.u32 %v806, 4294901760
    %v2203 = vsub.f32 %v806, %v2202
    %v2204 = vand.u32 %v2203, 4294901760
    %2205 = vmatmul.mubr.f32.gmra.mrb[0].mxu0 %v2204
    %v2206 = vpop.f32.mrb[0].mxu0
    %v2207 = vadd.f32 %v2068, %v2206
    %v2208 = vpop.f32.mrb[0].mxu0
    %v2209 = vand.u32 %v815, 4294901760
    %v2210 = vsub.f32 %v815, %v2209
    %v2211 = vand.u32 %v2210, 4294901760
    %2212 = vmatprep.mubr.f32.mxu0 %v2211
    %v2213 = vand.u32 %v813, 4294901760
    %v2214 = vsub.f32 %v813, %v2213
    %v2215 = vand.u32 %v2214, 4294901760
    %2216 = vmatmul.mubr.f32.gmra.mrb[0].mxu0 %v2215
    %v2217 = vpop.f32.mrb[0].mxu0
    %v2218 = vadd.f32 %v2077, %v2217
    %v2219 = vpop.f32.mrb[0].mxu0
    %2220 = vdwg.mxu0
    %2221 = vmatprep.subr.mxu0 0.0
    %v2222 = vand.u32 %v1457, 4294901760
    %v2223 = vsub.f32 %v1457, %v2222
    %v2224 = vand.u32 %v2223, 4294901760
    %2225 = vmatpush1.msra.mxu0 %v2224
    %2226 = vmatprep.subr.mxu0 0.0
    %v2227 = vand.u32 %v1458, 4294901760
    %v2228 = vsub.f32 %v1458, %v2227
    %v2229 = vand.u32 %v2228, 4294901760
    %2230 = vmatpush1.msra.mxu0 %v2229
    %2231 = vmatprep.subr.mxu0 0.0
    %v2232 = vand.u32 %v1459, 4294901760
    %v2233 = vsub.f32 %v1459, %v2232
    %v2234 = vand.u32 %v2233, 4294901760
    %2235 = vmatpush1.msra.mxu0 %v2234
    %2236 = vmatprep.subr.mxu0 0.0
    %v2237 = vand.u32 %v1460, 4294901760
    %v2238 = vsub.f32 %v1460, %v2237
    %v2239 = vand.u32 %v2238, 4294901760
    %2240 = vmatpush1.msra.mxu0 %v2239
    %2241 = vmatprep.subr.mxu0 0.0
    %v2242 = vand.u32 %v1461, 4294901760
    %v2243 = vsub.f32 %v1461, %v2242
    %v2244 = vand.u32 %v2243, 4294901760
    %2245 = vmatpush1.msra.mxu0 %v2244
    %2246 = vmatprep.subr.mxu0 0.0
    %v2247 = vand.u32 %v1462, 4294901760
    %v2248 = vsub.f32 %v1462, %v2247
    %v2249 = vand.u32 %v2248, 4294901760
    %2250 = vmatpush1.msra.mxu0 %v2249
    %2251 = vmatprep.subr.mxu0 0.0
    %v2252 = vand.u32 %v1463, 4294901760
    %v2253 = vsub.f32 %v1463, %v2252
    %v2254 = vand.u32 %v2253, 4294901760
    %2255 = vmatpush1.msra.mxu0 %v2254
    %2256 = vmatprep.subr.mxu0 0.0
    %v2257 = vand.u32 %v1464, 4294901760
    %v2258 = vsub.f32 %v1464, %v2257
    %v2259 = vand.u32 %v2258, 4294901760
    %2260 = vmatpush1.msra.mxu0 %v2259
    %2261 = vmatprep.subr.mxu0 0.0
    %v2262 = vand.u32 %v1465, 4294901760
    %v2263 = vsub.f32 %v1465, %v2262
    %v2264 = vand.u32 %v2263, 4294901760
    %2265 = vmatpush1.msra.mxu0 %v2264
    %2266 = vmatprep.subr.mxu0 0.0
    %v2267 = vand.u32 %v1466, 4294901760
    %v2268 = vsub.f32 %v1466, %v2267
    %v2269 = vand.u32 %v2268, 4294901760
    %2270 = vmatpush1.msra.mxu0 %v2269
    %2271 = vmatprep.subr.mxu0 0.0
    %v2272 = vand.u32 %v1467, 4294901760
    %v2273 = vsub.f32 %v1467, %v2272
    %v2274 = vand.u32 %v2273, 4294901760
    %2275 = vmatpush1.msra.mxu0 %v2274
    %2276 = vmatprep.subr.mxu0 0.0
    %v2277 = vand.u32 %v1468, 4294901760
    %v2278 = vsub.f32 %v1468, %v2277
    %v2279 = vand.u32 %v2278, 4294901760
    %2280 = vmatpush1.msra.mxu0 %v2279
    %2281 = vmatprep.subr.mxu0 0.0
    %v2282 = vand.u32 %v1469, 4294901760
    %v2283 = vsub.f32 %v1469, %v2282
    %v2284 = vand.u32 %v2283, 4294901760
    %2285 = vmatpush1.msra.mxu0 %v2284
    %2286 = vmatprep.subr.mxu0 0.0
    %v2287 = vand.u32 %v1470, 4294901760
    %v2288 = vsub.f32 %v1470, %v2287
    %v2289 = vand.u32 %v2288, 4294901760
    %2290 = vmatpush1.msra.mxu0 %v2289
    %2291 = vmatprep.subr.mxu0 0.0
    %v2292 = vand.u32 %v1471, 4294901760
    %v2293 = vsub.f32 %v1471, %v2292
    %v2294 = vand.u32 %v2293, 4294901760
    %2295 = vmatpush1.msra.mxu0 %v2294
    %2296 = vmatprep.subr.mxu0 0.0
    %v2297 = vand.u32 %v1472, 4294901760
    %v2298 = vsub.f32 %v1472, %v2297
    %v2299 = vand.u32 %v2298, 4294901760
    %2300 = vmatpush1.msra.mxu0 %v2299
    %2301 = vmatprep.subr.mxu0 0.0
    %v2302 = vand.u32 %v1473, 4294901760
    %v2303 = vsub.f32 %v1473, %v2302
    %v2304 = vand.u32 %v2303, 4294901760
    %2305 = vmatpush1.msra.mxu0 %v2304
    %2306 = vmatprep.subr.mxu0 0.0
    %v2307 = vand.u32 %v1474, 4294901760
    %v2308 = vsub.f32 %v1474, %v2307
    %v2309 = vand.u32 %v2308, 4294901760
    %2310 = vmatpush1.msra.mxu0 %v2309
    %2311 = vmatprep.subr.mxu0 0.0
    %v2312 = vand.u32 %v1475, 4294901760
    %v2313 = vsub.f32 %v1475, %v2312
    %v2314 = vand.u32 %v2313, 4294901760
    %2315 = vmatpush1.msra.mxu0 %v2314
    %2316 = vmatprep.subr.mxu0 0.0
    %v2317 = vand.u32 %v1476, 4294901760
    %v2318 = vsub.f32 %v1476, %v2317
    %v2319 = vand.u32 %v2318, 4294901760
    %2320 = vmatpush1.msra.mxu0 %v2319
    %2321 = vmatprep.subr.mxu0 0.0
    %v2322 = vand.u32 %v1477, 4294901760
    %v2323 = vsub.f32 %v1477, %v2322
    %v2324 = vand.u32 %v2323, 4294901760
    %2325 = vmatpush1.msra.mxu0 %v2324
    %2326 = vmatprep.subr.mxu0 0.0
    %v2327 = vand.u32 %v1478, 4294901760
    %v2328 = vsub.f32 %v1478, %v2327
    %v2329 = vand.u32 %v2328, 4294901760
    %2330 = vmatpush1.msra.mxu0 %v2329
    %2331 = vmatprep.subr.mxu0 0.0
    %v2332 = vand.u32 %v1479, 4294901760
    %v2333 = vsub.f32 %v1479, %v2332
    %v2334 = vand.u32 %v2333, 4294901760
    %2335 = vmatpush1.msra.mxu0 %v2334
    %2336 = vmatprep.subr.mxu0 0.0
    %v2337 = vand.u32 %v1480, 4294901760
    %v2338 = vsub.f32 %v1480, %v2337
    %v2339 = vand.u32 %v2338, 4294901760
    %2340 = vmatpush1.msra.mxu0 %v2339
    %2341 = vmatprep.subr.mxu0 0.0
    %v2342 = vand.u32 %v1481, 4294901760
    %v2343 = vsub.f32 %v1481, %v2342
    %v2344 = vand.u32 %v2343, 4294901760
    %2345 = vmatpush1.msra.mxu0 %v2344
    %2346 = vmatprep.subr.mxu0 0.0
    %v2347 = vand.u32 %v1482, 4294901760
    %v2348 = vsub.f32 %v1482, %v2347
    %v2349 = vand.u32 %v2348, 4294901760
    %2350 = vmatpush1.msra.mxu0 %v2349
    %2351 = vmatprep.subr.mxu0 0.0
    %v2352 = vand.u32 %v1483, 4294901760
    %v2353 = vsub.f32 %v1483, %v2352
    %v2354 = vand.u32 %v2353, 4294901760
    %2355 = vmatpush1.msra.mxu0 %v2354
    %2356 = vmatprep.subr.mxu0 0.0
    %v2357 = vand.u32 %v1484, 4294901760
    %v2358 = vsub.f32 %v1484, %v2357
    %v2359 = vand.u32 %v2358, 4294901760
    %2360 = vmatpush1.msra.mxu0 %v2359
    %2361 = vmatprep.subr.mxu0 0.0
    %v2362 = vand.u32 %v1485, 4294901760
    %v2363 = vsub.f32 %v1485, %v2362
    %v2364 = vand.u32 %v2363, 4294901760
    %2365 = vmatpush1.msra.mxu0 %v2364
    %2366 = vmatprep.subr.mxu0 0.0
    %v2367 = vand.u32 %v1486, 4294901760
    %v2368 = vsub.f32 %v1486, %v2367
    %v2369 = vand.u32 %v2368, 4294901760
    %2370 = vmatpush1.msra.mxu0 %v2369
    %2371 = vmatprep.subr.mxu0 0.0
    %v2372 = vand.u32 %v1487, 4294901760
    %v2373 = vsub.f32 %v1487, %v2372
    %v2374 = vand.u32 %v2373, 4294901760
    %2375 = vmatpush1.msra.mxu0 %v2374
    %2376 = vmatprep.subr.mxu0 0.0
    %v2377 = vand.u32 %v1488, 4294901760
    %v2378 = vsub.f32 %v1488, %v2377
    %v2379 = vand.u32 %v2378, 4294901760
    %2380 = vmatpush1.msra.mxu0 %v2379
    %v2381 = vand.u32 %v794, 4294901760
    %2382 = vmatprep.mubr.f32.mxu0 %v2381
    %v2383 = vand.u32 %v792, 4294901760
    %2384 = vmatmul.mubr.f32.gmra.mrb[0].mxu0 %v2383
    %v2385 = vpop.f32.mrb[0].mxu0
    %v2386 = vadd.f32 %v2185, %v2385
    %v2387 = vpop.f32.mrb[0].mxu0
    %v2388 = vand.u32 %v801, 4294901760
    %2389 = vmatprep.mubr.f32.mxu0 %v2388
    %v2390 = vand.u32 %v799, 4294901760
    %2391 = vmatmul.mubr.f32.gmra.mrb[0].mxu0 %v2390
    %v2392 = vpop.f32.mrb[0].mxu0
    %v2393 = vadd.f32 %v2196, %v2392
    %v2394 = vpop.f32.mrb[0].mxu0
    %v2395 = vand.u32 %v808, 4294901760
    %2396 = vmatprep.mubr.f32.mxu0 %v2395
    %v2397 = vand.u32 %v806, 4294901760
    %2398 = vmatmul.mubr.f32.gmra.mrb[0].mxu0 %v2397
    %v2399 = vpop.f32.mrb[0].mxu0
    %v2400 = vadd.f32 %v2207, %v2399
    %v2401 = vpop.f32.mrb[0].mxu0
    %v2402 = vand.u32 %v815, 4294901760
    %2403 = vmatprep.mubr.f32.mxu0 %v2402
    %v2404 = vand.u32 %v813, 4294901760
    %2405 = vmatmul.mubr.f32.gmra.mrb[0].mxu0 %v2404
    %v2406 = vpop.f32.mrb[0].mxu0
    %v2407 = vadd.f32 %v2218, %v2406
    %v2408 = vpop.f32.mrb[0].mxu0
    %2409 = vdwg.mxu0
    %2410 = vmatprep.subr.mxu0 0.0
    %v2411 = vand.u32 %v1457, 4294901760
    %2412 = vmatpush1.msra.mxu0 %v2411
    %2413 = vmatprep.subr.mxu0 0.0
    %v2414 = vand.u32 %v1458, 4294901760
    %2415 = vmatpush1.msra.mxu0 %v2414
    %2416 = vmatprep.subr.mxu0 0.0
    %v2417 = vand.u32 %v1459, 4294901760
    %2418 = vmatpush1.msra.mxu0 %v2417
    %2419 = vmatprep.subr.mxu0 0.0
    %v2420 = vand.u32 %v1460, 4294901760
    %2421 = vmatpush1.msra.mxu0 %v2420
    %2422 = vmatprep.subr.mxu0 0.0
    %v2423 = vand.u32 %v1461, 4294901760
    %2424 = vmatpush1.msra.mxu0 %v2423
    %2425 = vmatprep.subr.mxu0 0.0
    %v2426 = vand.u32 %v1462, 4294901760
    %2427 = vmatpush1.msra.mxu0 %v2426
    %2428 = vmatprep.subr.mxu0 0.0
    %v2429 = vand.u32 %v1463, 4294901760
    %2430 = vmatpush1.msra.mxu0 %v2429
    %2431 = vmatprep.subr.mxu0 0.0
    %v2432 = vand.u32 %v1464, 4294901760
    %2433 = vmatpush1.msra.mxu0 %v2432
    %2434 = vmatprep.subr.mxu0 0.0
    %v2435 = vand.u32 %v1465, 4294901760
    %2436 = vmatpush1.msra.mxu0 %v2435
    %2437 = vmatprep.subr.mxu0 0.0
    %v2438 = vand.u32 %v1466, 4294901760
    %2439 = vmatpush1.msra.mxu0 %v2438
    %2440 = vmatprep.subr.mxu0 0.0
    %v2441 = vand.u32 %v1467, 4294901760
    %2442 = vmatpush1.msra.mxu0 %v2441
    %2443 = vmatprep.subr.mxu0 0.0
    %v2444 = vand.u32 %v1468, 4294901760
    %2445 = vmatpush1.msra.mxu0 %v2444
    %2446 = vmatprep.subr.mxu0 0.0
    %v2447 = vand.u32 %v1469, 4294901760
    %2448 = vmatpush1.msra.mxu0 %v2447
    %2449 = vmatprep.subr.mxu0 0.0
    %v2450 = vand.u32 %v1470, 4294901760
    %2451 = vmatpush1.msra.mxu0 %v2450
    %2452 = vmatprep.subr.mxu0 0.0
    %v2453 = vand.u32 %v1471, 4294901760
    %2454 = vmatpush1.msra.mxu0 %v2453
    %2455 = vmatprep.subr.mxu0 0.0
    %v2456 = vand.u32 %v1472, 4294901760
    %2457 = vmatpush1.msra.mxu0 %v2456
    %2458 = vmatprep.subr.mxu0 0.0
    %v2459 = vand.u32 %v1473, 4294901760
    %2460 = vmatpush1.msra.mxu0 %v2459
    %2461 = vmatprep.subr.mxu0 0.0
    %v2462 = vand.u32 %v1474, 4294901760
    %2463 = vmatpush1.msra.mxu0 %v2462
    %2464 = vmatprep.subr.mxu0 0.0
    %v2465 = vand.u32 %v1475, 4294901760
    %2466 = vmatpush1.msra.mxu0 %v2465
    %2467 = vmatprep.subr.mxu0 0.0
    %v2468 = vand.u32 %v1476, 4294901760
    %2469 = vmatpush1.msra.mxu0 %v2468
    %2470 = vmatprep.subr.mxu0 0.0
    %v2471 = vand.u32 %v1477, 4294901760
    %2472 = vmatpush1.msra.mxu0 %v2471
    %2473 = vmatprep.subr.mxu0 0.0
    %v2474 = vand.u32 %v1478, 4294901760
    %2475 = vmatpush1.msra.mxu0 %v2474
    %2476 = vmatprep.subr.mxu0 0.0
    %v2477 = vand.u32 %v1479, 4294901760
    %2478 = vmatpush1.msra.mxu0 %v2477
    %2479 = vmatprep.subr.mxu0 0.0
    %v2480 = vand.u32 %v1480, 4294901760
    %2481 = vmatpush1.msra.mxu0 %v2480
    %2482 = vmatprep.subr.mxu0 0.0
    %v2483 = vand.u32 %v1481, 4294901760
    %2484 = vmatpush1.msra.mxu0 %v2483
    %2485 = vmatprep.subr.mxu0 0.0
    %v2486 = vand.u32 %v1482, 4294901760
    %2487 = vmatpush1.msra.mxu0 %v2486
    %2488 = vmatprep.subr.mxu0 0.0
    %v2489 = vand.u32 %v1483, 4294901760
    %2490 = vmatpush1.msra.mxu0 %v2489
    %2491 = vmatprep.subr.mxu0 0.0
    %v2492 = vand.u32 %v1484, 4294901760
    %2493 = vmatpush1.msra.mxu0 %v2492
    %2494 = vmatprep.subr.mxu0 0.0
    %v2495 = vand.u32 %v1485, 4294901760
    %2496 = vmatpush1.msra.mxu0 %v2495
    %2497 = vmatprep.subr.mxu0 0.0
    %v2498 = vand.u32 %v1486, 4294901760
    %2499 = vmatpush1.msra.mxu0 %v2498
    %2500 = vmatprep.subr.mxu0 0.0
    %v2501 = vand.u32 %v1487, 4294901760
    %2502 = vmatpush1.msra.mxu0 %v2501
    %2503 = vmatprep.subr.mxu0 0.0
    %v2504 = vand.u32 %v1488, 4294901760
    %2505 = vmatpush1.msra.mxu0 %v2504
    %v2506 = vand.u32 %v794, 4294901760
    %2507 = vmatprep.mubr.f32.mxu0 %v2506
    %v2508 = vand.u32 %v792, 4294901760
    %2509 = vmatmul.mubr.f32.gmra.mrb[0].mxu0 %v2508
    %v2510 = vpop.f32.mrb[0].mxu0
    %v2511 = vadd.f32 %v2386, %v2510
    %v2512 = vpop.f32.mrb[0].mxu0
    %v2513 = vand.u32 %v801, 4294901760
    %2514 = vmatprep.mubr.f32.mxu0 %v2513
    %v2515 = vand.u32 %v799, 4294901760
    %2516 = vmatmul.mubr.f32.gmra.mrb[0].mxu0 %v2515
    %v2517 = vpop.f32.mrb[0].mxu0
    %v2518 = vadd.f32 %v2393, %v2517
    %v2519 = vpop.f32.mrb[0].mxu0
    %v2520 = vand.u32 %v808, 4294901760
    %2521 = vmatprep.mubr.f32.mxu0 %v2520
    %v2522 = vand.u32 %v806, 4294901760
    %2523 = vmatmul.mubr.f32.gmra.mrb[0].mxu0 %v2522
    %v2524 = vpop.f32.mrb[0].mxu0
    %v2525 = vadd.f32 %v2400, %v2524
    %v2526 = vpop.f32.mrb[0].mxu0
    %v2527 = vand.u32 %v815, 4294901760
    %2528 = vmatprep.mubr.f32.mxu0 %v2527
    %v2529 = vand.u32 %v813, 4294901760
    %2530 = vmatmul.mubr.f32.gmra.mrb[0].mxu0 %v2529
    %v2531 = vpop.f32.mrb[0].mxu0
    %v2532 = vadd.f32 %v2407, %v2531
    %v2533 = vpop.f32.mrb[0].mxu0
    %2534 = vdwg.mxu0
    %2535 = vmatprep.subr.mxu0 0.0
    %v2536 = vand.u32 %v1489, 4294901760
    %2537 = vmatpush1.msra.mxu0 %v2536
    %2538 = vmatprep.subr.mxu0 0.0
    %v2539 = vand.u32 %v1490, 4294901760
    %2540 = vmatpush1.msra.mxu0 %v2539
    %2541 = vmatprep.subr.mxu0 0.0
    %v2542 = vand.u32 %v1491, 4294901760
    %2543 = vmatpush1.msra.mxu0 %v2542
    %2544 = vmatprep.subr.mxu0 0.0
    %v2545 = vand.u32 %v1492, 4294901760
    %2546 = vmatpush1.msra.mxu0 %v2545
    %2547 = vmatprep.subr.mxu0 0.0
    %v2548 = vand.u32 %v1493, 4294901760
    %2549 = vmatpush1.msra.mxu0 %v2548
    %2550 = vmatprep.subr.mxu0 0.0
    %v2551 = vand.u32 %v1494, 4294901760
    %2552 = vmatpush1.msra.mxu0 %v2551
    %2553 = vmatprep.subr.mxu0 0.0
    %v2554 = vand.u32 %v1495, 4294901760
    %2555 = vmatpush1.msra.mxu0 %v2554
    %2556 = vmatprep.subr.mxu0 0.0
    %v2557 = vand.u32 %v1496, 4294901760
    %2558 = vmatpush1.msra.mxu0 %v2557
    %2559 = vmatprep.subr.mxu0 0.0
    %v2560 = vand.u32 %v1497, 4294901760
    %2561 = vmatpush1.msra.mxu0 %v2560
    %2562 = vmatprep.subr.mxu0 0.0
    %v2563 = vand.u32 %v1498, 4294901760
    %2564 = vmatpush1.msra.mxu0 %v2563
    %2565 = vmatprep.subr.mxu0 0.0
    %v2566 = vand.u32 %v1499, 4294901760
    %2567 = vmatpush1.msra.mxu0 %v2566
    %2568 = vmatprep.subr.mxu0 0.0
    %v2569 = vand.u32 %v1500, 4294901760
    %2570 = vmatpush1.msra.mxu0 %v2569
    %2571 = vmatprep.subr.mxu0 0.0
    %v2572 = vand.u32 %v1501, 4294901760
    %2573 = vmatpush1.msra.mxu0 %v2572
    %2574 = vmatprep.subr.mxu0 0.0
    %v2575 = vand.u32 %v1502, 4294901760
    %2576 = vmatpush1.msra.mxu0 %v2575
    %2577 = vmatprep.subr.mxu0 0.0
    %v2578 = vand.u32 %v1503, 4294901760
    %2579 = vmatpush1.msra.mxu0 %v2578
    %2580 = vmatprep.subr.mxu0 0.0
    %v2581 = vand.u32 %v1504, 4294901760
    %2582 = vmatpush1.msra.mxu0 %v2581
    %2583 = vmatprep.subr.mxu0 0.0
    %2584 = vmatpush1.msra.mxu0 0.0
    %2585 = vmatprep.subr.mxu0 0.0
    %2586 = vmatpush1.msra.mxu0 0.0
    %2587 = vmatprep.subr.mxu0 0.0
    %2588 = vmatpush1.msra.mxu0 0.0
    %2589 = vmatprep.subr.mxu0 0.0
    %2590 = vmatpush1.msra.mxu0 0.0
    %2591 = vmatprep.subr.mxu0 0.0
    %2592 = vmatpush1.msra.mxu0 0.0
    %2593 = vmatprep.subr.mxu0 0.0
    %2594 = vmatpush1.msra.mxu0 0.0
    %2595 = vmatprep.subr.mxu0 0.0
    %2596 = vmatpush1.msra.mxu0 0.0
    %2597 = vmatprep.subr.mxu0 0.0
    %2598 = vmatpush1.msra.mxu0 0.0
    %2599 = vmatprep.subr.mxu0 0.0
    %2600 = vmatpush1.msra.mxu0 0.0
    %2601 = vmatprep.subr.mxu0 0.0
    %2602 = vmatpush1.msra.mxu0 0.0
    %2603 = vmatprep.subr.mxu0 0.0
    %2604 = vmatpush1.msra.mxu0 0.0
    %2605 = vmatprep.subr.mxu0 0.0
    %2606 = vmatpush1.msra.mxu0 0.0
    %2607 = vmatprep.subr.mxu0 0.0
    %2608 = vmatpush1.msra.mxu0 0.0
    %2609 = vmatprep.subr.mxu0 0.0
    %2610 = vmatpush1.msra.mxu0 0.0
    %2611 = vmatprep.subr.mxu0 0.0
    %2612 = vmatpush1.msra.mxu0 0.0
    %2613 = vmatprep.subr.mxu0 0.0
    %2614 = vmatpush1.msra.mxu0 0.0
    %2615 = vmatprep.mubr.f32.mxu0 0.0
    %v2616 = vand.u32 %v1436, 4294901760
    %v2617 = vsub.f32 %v1436, %v2616
    %v2618 = vand.u32 %v2617, 4294901760
    %v2619 = vsub.f32 %v2617, %v2618
    %v2620 = vand.u32 %v2619, 4294901760
    %2621 = vmatmul.mubr.f32.gmra.mrb[0].mxu0 %v2620
    %v2622 = vpop.f32.mrb[0].mxu0
    %v2623 = vadd.f32 %v2511, %v2622
    %v2624 = vpop.f32.mrb[0].mxu0
    %2625 = vmatprep.mubr.f32.mxu0 0.0
    %v2626 = vand.u32 %v1442, 4294901760
    %v2627 = vsub.f32 %v1442, %v2626
    %v2628 = vand.u32 %v2627, 4294901760
    %v2629 = vsub.f32 %v2627, %v2628
    %v2630 = vand.u32 %v2629, 4294901760
    %2631 = vmatmul.mubr.f32.gmra.mrb[0].mxu0 %v2630
    %v2632 = vpop.f32.mrb[0].mxu0
    %v2633 = vadd.f32 %v2518, %v2632
    %v2634 = vpop.f32.mrb[0].mxu0
    %2635 = vmatprep.mubr.f32.mxu0 0.0
    %v2636 = vand.u32 %v1448, 4294901760
    %v2637 = vsub.f32 %v1448, %v2636
    %v2638 = vand.u32 %v2637, 4294901760
    %v2639 = vsub.f32 %v2637, %v2638
    %v2640 = vand.u32 %v2639, 4294901760
    %2641 = vmatmul.mubr.f32.gmra.mrb[0].mxu0 %v2640
    %v2642 = vpop.f32.mrb[0].mxu0
    %v2643 = vadd.f32 %v2525, %v2642
    %v2644 = vpop.f32.mrb[0].mxu0
    %2645 = vmatprep.mubr.f32.mxu0 0.0
    %v2646 = vand.u32 %v1454, 4294901760
    %v2647 = vsub.f32 %v1454, %v2646
    %v2648 = vand.u32 %v2647, 4294901760
    %v2649 = vsub.f32 %v2647, %v2648
    %v2650 = vand.u32 %v2649, 4294901760
    %2651 = vmatmul.mubr.f32.gmra.mrb[0].mxu0 %v2650
    %v2652 = vpop.f32.mrb[0].mxu0
    %v2653 = vadd.f32 %v2532, %v2652
    %v2654 = vpop.f32.mrb[0].mxu0
    %2655 = vdwg.mxu0
    %2656 = vmatprep.subr.mxu0 0.0
    %v2657 = vand.u32 %v1489, 4294901760
    %v2658 = vsub.f32 %v1489, %v2657
    %v2659 = vand.u32 %v2658, 4294901760
    %v2660 = vsub.f32 %v2658, %v2659
    %v2661 = vand.u32 %v2660, 4294901760
    %2662 = vmatpush1.msra.mxu0 %v2661
    %2663 = vmatprep.subr.mxu0 0.0
    %v2664 = vand.u32 %v1490, 4294901760
    %v2665 = vsub.f32 %v1490, %v2664
    %v2666 = vand.u32 %v2665, 4294901760
    %v2667 = vsub.f32 %v2665, %v2666
    %v2668 = vand.u32 %v2667, 4294901760
    %2669 = vmatpush1.msra.mxu0 %v2668
    %2670 = vmatprep.subr.mxu0 0.0
    %v2671 = vand.u32 %v1491, 4294901760
    %v2672 = vsub.f32 %v1491, %v2671
    %v2673 = vand.u32 %v2672, 4294901760
    %v2674 = vsub.f32 %v2672, %v2673
    %v2675 = vand.u32 %v2674, 4294901760
    %2676 = vmatpush1.msra.mxu0 %v2675
    %2677 = vmatprep.subr.mxu0 0.0
    %v2678 = vand.u32 %v1492, 4294901760
    %v2679 = vsub.f32 %v1492, %v2678
    %v2680 = vand.u32 %v2679, 4294901760
    %v2681 = vsub.f32 %v2679, %v2680
    %v2682 = vand.u32 %v2681, 4294901760
    %2683 = vmatpush1.msra.mxu0 %v2682
    %2684 = vmatprep.subr.mxu0 0.0
    %v2685 = vand.u32 %v1493, 4294901760
    %v2686 = vsub.f32 %v1493, %v2685
    %v2687 = vand.u32 %v2686, 4294901760
    %v2688 = vsub.f32 %v2686, %v2687
    %v2689 = vand.u32 %v2688, 4294901760
    %2690 = vmatpush1.msra.mxu0 %v2689
    %2691 = vmatprep.subr.mxu0 0.0
    %v2692 = vand.u32 %v1494, 4294901760
    %v2693 = vsub.f32 %v1494, %v2692
    %v2694 = vand.u32 %v2693, 4294901760
    %v2695 = vsub.f32 %v2693, %v2694
    %v2696 = vand.u32 %v2695, 4294901760
    %2697 = vmatpush1.msra.mxu0 %v2696
    %2698 = vmatprep.subr.mxu0 0.0
    %v2699 = vand.u32 %v1495, 4294901760
    %v2700 = vsub.f32 %v1495, %v2699
    %v2701 = vand.u32 %v2700, 4294901760
    %v2702 = vsub.f32 %v2700, %v2701
    %v2703 = vand.u32 %v2702, 4294901760
    %2704 = vmatpush1.msra.mxu0 %v2703
    %2705 = vmatprep.subr.mxu0 0.0
    %v2706 = vand.u32 %v1496, 4294901760
    %v2707 = vsub.f32 %v1496, %v2706
    %v2708 = vand.u32 %v2707, 4294901760
    %v2709 = vsub.f32 %v2707, %v2708
    %v2710 = vand.u32 %v2709, 4294901760
    %2711 = vmatpush1.msra.mxu0 %v2710
    %2712 = vmatprep.subr.mxu0 0.0
    %v2713 = vand.u32 %v1497, 4294901760
    %v2714 = vsub.f32 %v1497, %v2713
    %v2715 = vand.u32 %v2714, 4294901760
    %v2716 = vsub.f32 %v2714, %v2715
    %v2717 = vand.u32 %v2716, 4294901760
    %2718 = vmatpush1.msra.mxu0 %v2717
    %2719 = vmatprep.subr.mxu0 0.0
    %v2720 = vand.u32 %v1498, 4294901760
    %v2721 = vsub.f32 %v1498, %v2720
    %v2722 = vand.u32 %v2721, 4294901760
    %v2723 = vsub.f32 %v2721, %v2722
    %v2724 = vand.u32 %v2723, 4294901760
    %2725 = vmatpush1.msra.mxu0 %v2724
    %2726 = vmatprep.subr.mxu0 0.0
    %v2727 = vand.u32 %v1499, 4294901760
    %v2728 = vsub.f32 %v1499, %v2727
    %v2729 = vand.u32 %v2728, 4294901760
    %v2730 = vsub.f32 %v2728, %v2729
    %v2731 = vand.u32 %v2730, 4294901760
    %2732 = vmatpush1.msra.mxu0 %v2731
    %2733 = vmatprep.subr.mxu0 0.0
    %v2734 = vand.u32 %v1500, 4294901760
    %v2735 = vsub.f32 %v1500, %v2734
    %v2736 = vand.u32 %v2735, 4294901760
    %v2737 = vsub.f32 %v2735, %v2736
    %v2738 = vand.u32 %v2737, 4294901760
    %2739 = vmatpush1.msra.mxu0 %v2738
    %2740 = vmatprep.subr.mxu0 0.0
    %v2741 = vand.u32 %v1501, 4294901760
    %v2742 = vsub.f32 %v1501, %v2741
    %v2743 = vand.u32 %v2742, 4294901760
    %v2744 = vsub.f32 %v2742, %v2743
    %v2745 = vand.u32 %v2744, 4294901760
    %2746 = vmatpush1.msra.mxu0 %v2745
    %2747 = vmatprep.subr.mxu0 0.0
    %v2748 = vand.u32 %v1502, 4294901760
    %v2749 = vsub.f32 %v1502, %v2748
    %v2750 = vand.u32 %v2749, 4294901760
    %v2751 = vsub.f32 %v2749, %v2750
    %v2752 = vand.u32 %v2751, 4294901760
    %2753 = vmatpush1.msra.mxu0 %v2752
    %2754 = vmatprep.subr.mxu0 0.0
    %v2755 = vand.u32 %v1503, 4294901760
    %v2756 = vsub.f32 %v1503, %v2755
    %v2757 = vand.u32 %v2756, 4294901760
    %v2758 = vsub.f32 %v2756, %v2757
    %v2759 = vand.u32 %v2758, 4294901760
    %2760 = vmatpush1.msra.mxu0 %v2759
    %2761 = vmatprep.subr.mxu0 0.0
    %v2762 = vand.u32 %v1504, 4294901760
    %v2763 = vsub.f32 %v1504, %v2762
    %v2764 = vand.u32 %v2763, 4294901760
    %v2765 = vsub.f32 %v2763, %v2764
    %v2766 = vand.u32 %v2765, 4294901760
    %2767 = vmatpush1.msra.mxu0 %v2766
    %2768 = vmatprep.subr.mxu0 0.0
    %2769 = vmatpush1.msra.mxu0 0.0
    %2770 = vmatprep.subr.mxu0 0.0
    %2771 = vmatpush1.msra.mxu0 0.0
    %2772 = vmatprep.subr.mxu0 0.0
    %2773 = vmatpush1.msra.mxu0 0.0
    %2774 = vmatprep.subr.mxu0 0.0
    %2775 = vmatpush1.msra.mxu0 0.0
    %2776 = vmatprep.subr.mxu0 0.0
    %2777 = vmatpush1.msra.mxu0 0.0
    %2778 = vmatprep.subr.mxu0 0.0
    %2779 = vmatpush1.msra.mxu0 0.0
    %2780 = vmatprep.subr.mxu0 0.0
    %2781 = vmatpush1.msra.mxu0 0.0
    %2782 = vmatprep.subr.mxu0 0.0
    %2783 = vmatpush1.msra.mxu0 0.0
    %2784 = vmatprep.subr.mxu0 0.0
    %2785 = vmatpush1.msra.mxu0 0.0
    %2786 = vmatprep.subr.mxu0 0.0
    %2787 = vmatpush1.msra.mxu0 0.0
    %2788 = vmatprep.subr.mxu0 0.0
    %2789 = vmatpush1.msra.mxu0 0.0
    %2790 = vmatprep.subr.mxu0 0.0
    %2791 = vmatpush1.msra.mxu0 0.0
    %2792 = vmatprep.subr.mxu0 0.0
    %2793 = vmatpush1.msra.mxu0 0.0
    %2794 = vmatprep.subr.mxu0 0.0
    %2795 = vmatpush1.msra.mxu0 0.0
    %2796 = vmatprep.subr.mxu0 0.0
    %2797 = vmatpush1.msra.mxu0 0.0
    %2798 = vmatprep.subr.mxu0 0.0
    %2799 = vmatpush1.msra.mxu0 0.0
    %2800 = vmatprep.mubr.f32.mxu0 0.0
    %v2801 = vand.u32 %v1436, 4294901760
    %2802 = vmatmul.mubr.f32.gmra.mrb[0].mxu0 %v2801
    %v2803 = vpop.f32.mrb[0].mxu0
    %v2804 = vadd.f32 %v2623, %v2803
    %v2805 = vpop.f32.mrb[0].mxu0
    %2806 = vmatprep.mubr.f32.mxu0 0.0
    %v2807 = vand.u32 %v1442, 4294901760
    %2808 = vmatmul.mubr.f32.gmra.mrb[0].mxu0 %v2807
    %v2809 = vpop.f32.mrb[0].mxu0
    %v2810 = vadd.f32 %v2633, %v2809
    %v2811 = vpop.f32.mrb[0].mxu0
    %2812 = vmatprep.mubr.f32.mxu0 0.0
    %v2813 = vand.u32 %v1448, 4294901760
    %2814 = vmatmul.mubr.f32.gmra.mrb[0].mxu0 %v2813
    %v2815 = vpop.f32.mrb[0].mxu0
    %v2816 = vadd.f32 %v2643, %v2815
    %v2817 = vpop.f32.mrb[0].mxu0
    %2818 = vmatprep.mubr.f32.mxu0 0.0
    %v2819 = vand.u32 %v1454, 4294901760
    %2820 = vmatmul.mubr.f32.gmra.mrb[0].mxu0 %v2819
    %v2821 = vpop.f32.mrb[0].mxu0
    %v2822 = vadd.f32 %v2653, %v2821
    %v2823 = vpop.f32.mrb[0].mxu0
    %2824 = vdwg.mxu0
    %2825 = vmatprep.subr.mxu0 0.0
    %v2826 = vand.u32 %v1489, 4294901760
    %v2827 = vsub.f32 %v1489, %v2826
    %2828 = vmatpush1.msra.mxu0 %v2827
    %2829 = vmatprep.subr.mxu0 0.0
    %v2830 = vand.u32 %v1490, 4294901760
    %v2831 = vsub.f32 %v1490, %v2830
    %2832 = vmatpush1.msra.mxu0 %v2831
    %2833 = vmatprep.subr.mxu0 0.0
    %v2834 = vand.u32 %v1491, 4294901760
    %v2835 = vsub.f32 %v1491, %v2834
    %2836 = vmatpush1.msra.mxu0 %v2835
    %2837 = vmatprep.subr.mxu0 0.0
    %v2838 = vand.u32 %v1492, 4294901760
    %v2839 = vsub.f32 %v1492, %v2838
    %2840 = vmatpush1.msra.mxu0 %v2839
    %2841 = vmatprep.subr.mxu0 0.0
    %v2842 = vand.u32 %v1493, 4294901760
    %v2843 = vsub.f32 %v1493, %v2842
    %2844 = vmatpush1.msra.mxu0 %v2843
    %2845 = vmatprep.subr.mxu0 0.0
    %v2846 = vand.u32 %v1494, 4294901760
    %v2847 = vsub.f32 %v1494, %v2846
    %2848 = vmatpush1.msra.mxu0 %v2847
    %2849 = vmatprep.subr.mxu0 0.0
    %v2850 = vand.u32 %v1495, 4294901760
    %v2851 = vsub.f32 %v1495, %v2850
    %2852 = vmatpush1.msra.mxu0 %v2851
    %2853 = vmatprep.subr.mxu0 0.0
    %v2854 = vand.u32 %v1496, 4294901760
    %v2855 = vsub.f32 %v1496, %v2854
    %2856 = vmatpush1.msra.mxu0 %v2855
    %2857 = vmatprep.subr.mxu0 0.0
    %v2858 = vand.u32 %v1497, 4294901760
    %v2859 = vsub.f32 %v1497, %v2858
    %2860 = vmatpush1.msra.mxu0 %v2859
    %2861 = vmatprep.subr.mxu0 0.0
    %v2862 = vand.u32 %v1498, 4294901760
    %v2863 = vsub.f32 %v1498, %v2862
    %2864 = vmatpush1.msra.mxu0 %v2863
    %2865 = vmatprep.subr.mxu0 0.0
    %v2866 = vand.u32 %v1499, 4294901760
    %v2867 = vsub.f32 %v1499, %v2866
    %2868 = vmatpush1.msra.mxu0 %v2867
    %2869 = vmatprep.subr.mxu0 0.0
    %v2870 = vand.u32 %v1500, 4294901760
    %v2871 = vsub.f32 %v1500, %v2870
    %2872 = vmatpush1.msra.mxu0 %v2871
    %2873 = vmatprep.subr.mxu0 0.0
    %v2874 = vand.u32 %v1501, 4294901760
    %v2875 = vsub.f32 %v1501, %v2874
    %2876 = vmatpush1.msra.mxu0 %v2875
    %2877 = vmatprep.subr.mxu0 0.0
    %v2878 = vand.u32 %v1502, 4294901760
    %v2879 = vsub.f32 %v1502, %v2878
    %2880 = vmatpush1.msra.mxu0 %v2879
    %2881 = vmatprep.subr.mxu0 0.0
    %v2882 = vand.u32 %v1503, 4294901760
    %v2883 = vsub.f32 %v1503, %v2882
    %2884 = vmatpush1.msra.mxu0 %v2883
    %2885 = vmatprep.subr.mxu0 0.0
    %v2886 = vand.u32 %v1504, 4294901760
    %v2887 = vsub.f32 %v1504, %v2886
    %2888 = vmatpush1.msra.mxu0 %v2887
    %2889 = vmatprep.subr.mxu0 0.0
    %2890 = vmatpush1.msra.mxu0 0.0
    %2891 = vmatprep.subr.mxu0 0.0
    %2892 = vmatpush1.msra.mxu0 0.0
    %2893 = vmatprep.subr.mxu0 0.0
    %2894 = vmatpush1.msra.mxu0 0.0
    %2895 = vmatprep.subr.mxu0 0.0
    %2896 = vmatpush1.msra.mxu0 0.0
    %2897 = vmatprep.subr.mxu0 0.0
    %2898 = vmatpush1.msra.mxu0 0.0
    %2899 = vmatprep.subr.mxu0 0.0
    %2900 = vmatpush1.msra.mxu0 0.0
    %2901 = vmatprep.subr.mxu0 0.0
    %2902 = vmatpush1.msra.mxu0 0.0
    %2903 = vmatprep.subr.mxu0 0.0
    %2904 = vmatpush1.msra.mxu0 0.0
    %2905 = vmatprep.subr.mxu0 0.0
    %2906 = vmatpush1.msra.mxu0 0.0
    %2907 = vmatprep.subr.mxu0 0.0
    %2908 = vmatpush1.msra.mxu0 0.0
    %2909 = vmatprep.subr.mxu0 0.0
    %2910 = vmatpush1.msra.mxu0 0.0
    %2911 = vmatprep.subr.mxu0 0.0
    %2912 = vmatpush1.msra.mxu0 0.0
    %2913 = vmatprep.subr.mxu0 0.0
    %2914 = vmatpush1.msra.mxu0 0.0
    %2915 = vmatprep.subr.mxu0 0.0
    %2916 = vmatpush1.msra.mxu0 0.0
    %2917 = vmatprep.subr.mxu0 0.0
    %2918 = vmatpush1.msra.mxu0 0.0
    %2919 = vmatprep.subr.mxu0 0.0
    %2920 = vmatpush1.msra.mxu0 0.0
    %2921 = vmatprep.mubr.f32.mxu0 0.0
    %v2922 = vand.u32 %v1436, 4294901760
    %v2923 = vsub.f32 %v1436, %v2922
    %2924 = vmatmul.mubr.f32.gmra.mrb[0].mxu0 %v2923
    %v2925 = vpop.f32.mrb[0].mxu0
    %v2926 = vadd.f32 %v2804, %v2925
    %v2927 = vpop.f32.mrb[0].mxu0
    %2928 = vmatprep.mubr.f32.mxu0 0.0
    %v2929 = vand.u32 %v1442, 4294901760
    %v2930 = vsub.f32 %v1442, %v2929
    %2931 = vmatmul.mubr.f32.gmra.mrb[0].mxu0 %v2930
    %v2932 = vpop.f32.mrb[0].mxu0
    %v2933 = vadd.f32 %v2810, %v2932
    %v2934 = vpop.f32.mrb[0].mxu0
    %2935 = vmatprep.mubr.f32.mxu0 0.0
    %v2936 = vand.u32 %v1448, 4294901760
    %v2937 = vsub.f32 %v1448, %v2936
    %2938 = vmatmul.mubr.f32.gmra.mrb[0].mxu0 %v2937
    %v2939 = vpop.f32.mrb[0].mxu0
    %v2940 = vadd.f32 %v2816, %v2939
    %v2941 = vpop.f32.mrb[0].mxu0
    %2942 = vmatprep.mubr.f32.mxu0 0.0
    %v2943 = vand.u32 %v1454, 4294901760
    %v2944 = vsub.f32 %v1454, %v2943
    %2945 = vmatmul.mubr.f32.gmra.mrb[0].mxu0 %v2944
    %v2946 = vpop.f32.mrb[0].mxu0
    %v2947 = vadd.f32 %v2822, %v2946
    %v2948 = vpop.f32.mrb[0].mxu0
    %2949 = vdwg.mxu0
    %2950 = vmatprep.subr.mxu0 0.0
    %v2951 = vand.u32 %v1489, 4294901760
    %2952 = vmatpush1.msra.mxu0 %v2951
    %2953 = vmatprep.subr.mxu0 0.0
    %v2954 = vand.u32 %v1490, 4294901760
    %2955 = vmatpush1.msra.mxu0 %v2954
    %2956 = vmatprep.subr.mxu0 0.0
    %v2957 = vand.u32 %v1491, 4294901760
    %2958 = vmatpush1.msra.mxu0 %v2957
    %2959 = vmatprep.subr.mxu0 0.0
    %v2960 = vand.u32 %v1492, 4294901760
    %2961 = vmatpush1.msra.mxu0 %v2960
    %2962 = vmatprep.subr.mxu0 0.0
    %v2963 = vand.u32 %v1493, 4294901760
    %2964 = vmatpush1.msra.mxu0 %v2963
    %2965 = vmatprep.subr.mxu0 0.0
    %v2966 = vand.u32 %v1494, 4294901760
    %2967 = vmatpush1.msra.mxu0 %v2966
    %2968 = vmatprep.subr.mxu0 0.0
    %v2969 = vand.u32 %v1495, 4294901760
    %2970 = vmatpush1.msra.mxu0 %v2969
    %2971 = vmatprep.subr.mxu0 0.0
    %v2972 = vand.u32 %v1496, 4294901760
    %2973 = vmatpush1.msra.mxu0 %v2972
    %2974 = vmatprep.subr.mxu0 0.0
    %v2975 = vand.u32 %v1497, 4294901760
    %2976 = vmatpush1.msra.mxu0 %v2975
    %2977 = vmatprep.subr.mxu0 0.0
    %v2978 = vand.u32 %v1498, 4294901760
    %2979 = vmatpush1.msra.mxu0 %v2978
    %2980 = vmatprep.subr.mxu0 0.0
    %v2981 = vand.u32 %v1499, 4294901760
    %2982 = vmatpush1.msra.mxu0 %v2981
    %2983 = vmatprep.subr.mxu0 0.0
    %v2984 = vand.u32 %v1500, 4294901760
    %2985 = vmatpush1.msra.mxu0 %v2984
    %2986 = vmatprep.subr.mxu0 0.0
    %v2987 = vand.u32 %v1501, 4294901760
    %2988 = vmatpush1.msra.mxu0 %v2987
    %2989 = vmatprep.subr.mxu0 0.0
    %v2990 = vand.u32 %v1502, 4294901760
    %2991 = vmatpush1.msra.mxu0 %v2990
    %2992 = vmatprep.subr.mxu0 0.0
    %v2993 = vand.u32 %v1503, 4294901760
    %2994 = vmatpush1.msra.mxu0 %v2993
    %2995 = vmatprep.subr.mxu0 0.0
    %v2996 = vand.u32 %v1504, 4294901760
    %2997 = vmatpush1.msra.mxu0 %v2996
    %2998 = vmatprep.subr.mxu0 0.0
    %2999 = vmatpush1.msra.mxu0 0.0
    %3000 = vmatprep.subr.mxu0 0.0
    %3001 = vmatpush1.msra.mxu0 0.0
    %3002 = vmatprep.subr.mxu0 0.0
    %3003 = vmatpush1.msra.mxu0 0.0
    %3004 = vmatprep.subr.mxu0 0.0
    %3005 = vmatpush1.msra.mxu0 0.0
    %3006 = vmatprep.subr.mxu0 0.0
    %3007 = vmatpush1.msra.mxu0 0.0
    %3008 = vmatprep.subr.mxu0 0.0
    %3009 = vmatpush1.msra.mxu0 0.0
    %3010 = vmatprep.subr.mxu0 0.0
    %3011 = vmatpush1.msra.mxu0 0.0
    %3012 = vmatprep.subr.mxu0 0.0
    %3013 = vmatpush1.msra.mxu0 0.0
    %3014 = vmatprep.subr.mxu0 0.0
    %3015 = vmatpush1.msra.mxu0 0.0
    %3016 = vmatprep.subr.mxu0 0.0
    %3017 = vmatpush1.msra.mxu0 0.0
    %3018 = vmatprep.subr.mxu0 0.0
    %3019 = vmatpush1.msra.mxu0 0.0
    %3020 = vmatprep.subr.mxu0 0.0
    %3021 = vmatpush1.msra.mxu0 0.0
    %3022 = vmatprep.subr.mxu0 0.0
    %3023 = vmatpush1.msra.mxu0 0.0
    %3024 = vmatprep.subr.mxu0 0.0
    %3025 = vmatpush1.msra.mxu0 0.0
    %3026 = vmatprep.subr.mxu0 0.0
    %3027 = vmatpush1.msra.mxu0 0.0
    %3028 = vmatprep.subr.mxu0 0.0
    %3029 = vmatpush1.msra.mxu0 0.0
    %3030 = vmatprep.mubr.f32.mxu0 0.0
    %v3031 = vand.u32 %v1436, 4294901760
    %v3032 = vsub.f32 %v1436, %v3031
    %v3033 = vand.u32 %v3032, 4294901760
    %3034 = vmatmul.mubr.f32.gmra.mrb[0].mxu0 %v3033
    %v3035 = vpop.f32.mrb[0].mxu0
    %v3036 = vadd.f32 %v2926, %v3035
    %v3037 = vpop.f32.mrb[0].mxu0
    %3038 = vmatprep.mubr.f32.mxu0 0.0
    %v3039 = vand.u32 %v1442, 4294901760
    %v3040 = vsub.f32 %v1442, %v3039
    %v3041 = vand.u32 %v3040, 4294901760
    %3042 = vmatmul.mubr.f32.gmra.mrb[0].mxu0 %v3041
    %v3043 = vpop.f32.mrb[0].mxu0
    %v3044 = vadd.f32 %v2933, %v3043
    %v3045 = vpop.f32.mrb[0].mxu0
    %3046 = vmatprep.mubr.f32.mxu0 0.0
    %v3047 = vand.u32 %v1448, 4294901760
    %v3048 = vsub.f32 %v1448, %v3047
    %v3049 = vand.u32 %v3048, 4294901760
    %3050 = vmatmul.mubr.f32.gmra.mrb[0].mxu0 %v3049
    %v3051 = vpop.f32.mrb[0].mxu0
    %v3052 = vadd.f32 %v2940, %v3051
    %v3053 = vpop.f32.mrb[0].mxu0
    %3054 = vmatprep.mubr.f32.mxu0 0.0
    %v3055 = vand.u32 %v1454, 4294901760
    %v3056 = vsub.f32 %v1454, %v3055
    %v3057 = vand.u32 %v3056, 4294901760
    %3058 = vmatmul.mubr.f32.gmra.mrb[0].mxu0 %v3057
    %v3059 = vpop.f32.mrb[0].mxu0
    %v3060 = vadd.f32 %v2947, %v3059
    %v3061 = vpop.f32.mrb[0].mxu0
    %3062 = vdwg.mxu0
    %3063 = vmatprep.subr.mxu0 0.0
    %v3064 = vand.u32 %v1489, 4294901760
    %v3065 = vsub.f32 %v1489, %v3064
    %v3066 = vand.u32 %v3065, 4294901760
    %3067 = vmatpush1.msra.mxu0 %v3066
    %3068 = vmatprep.subr.mxu0 0.0
    %v3069 = vand.u32 %v1490, 4294901760
    %v3070 = vsub.f32 %v1490, %v3069
    %v3071 = vand.u32 %v3070, 4294901760
    %3072 = vmatpush1.msra.mxu0 %v3071
    %3073 = vmatprep.subr.mxu0 0.0
    %v3074 = vand.u32 %v1491, 4294901760
    %v3075 = vsub.f32 %v1491, %v3074
    %v3076 = vand.u32 %v3075, 4294901760
    %3077 = vmatpush1.msra.mxu0 %v3076
    %3078 = vmatprep.subr.mxu0 0.0
    %v3079 = vand.u32 %v1492, 4294901760
    %v3080 = vsub.f32 %v1492, %v3079
    %v3081 = vand.u32 %v3080, 4294901760
    %3082 = vmatpush1.msra.mxu0 %v3081
    %3083 = vmatprep.subr.mxu0 0.0
    %v3084 = vand.u32 %v1493, 4294901760
    %v3085 = vsub.f32 %v1493, %v3084
    %v3086 = vand.u32 %v3085, 4294901760
    %3087 = vmatpush1.msra.mxu0 %v3086
    %3088 = vmatprep.subr.mxu0 0.0
    %v3089 = vand.u32 %v1494, 4294901760
    %v3090 = vsub.f32 %v1494, %v3089
    %v3091 = vand.u32 %v3090, 4294901760
    %3092 = vmatpush1.msra.mxu0 %v3091
    %3093 = vmatprep.subr.mxu0 0.0
    %v3094 = vand.u32 %v1495, 4294901760
    %v3095 = vsub.f32 %v1495, %v3094
    %v3096 = vand.u32 %v3095, 4294901760
    %3097 = vmatpush1.msra.mxu0 %v3096
    %3098 = vmatprep.subr.mxu0 0.0
    %v3099 = vand.u32 %v1496, 4294901760
    %v3100 = vsub.f32 %v1496, %v3099
    %v3101 = vand.u32 %v3100, 4294901760
    %3102 = vmatpush1.msra.mxu0 %v3101
    %3103 = vmatprep.subr.mxu0 0.0
    %v3104 = vand.u32 %v1497, 4294901760
    %v3105 = vsub.f32 %v1497, %v3104
    %v3106 = vand.u32 %v3105, 4294901760
    %3107 = vmatpush1.msra.mxu0 %v3106
    %3108 = vmatprep.subr.mxu0 0.0
    %v3109 = vand.u32 %v1498, 4294901760
    %v3110 = vsub.f32 %v1498, %v3109
    %v3111 = vand.u32 %v3110, 4294901760
    %3112 = vmatpush1.msra.mxu0 %v3111
    %3113 = vmatprep.subr.mxu0 0.0
    %v3114 = vand.u32 %v1499, 4294901760
    %v3115 = vsub.f32 %v1499, %v3114
    %v3116 = vand.u32 %v3115, 4294901760
    %3117 = vmatpush1.msra.mxu0 %v3116
    %3118 = vmatprep.subr.mxu0 0.0
    %v3119 = vand.u32 %v1500, 4294901760
    %v3120 = vsub.f32 %v1500, %v3119
    %v3121 = vand.u32 %v3120, 4294901760
    %3122 = vmatpush1.msra.mxu0 %v3121
    %3123 = vmatprep.subr.mxu0 0.0
    %v3124 = vand.u32 %v1501, 4294901760
    %v3125 = vsub.f32 %v1501, %v3124
    %v3126 = vand.u32 %v3125, 4294901760
    %3127 = vmatpush1.msra.mxu0 %v3126
    %3128 = vmatprep.subr.mxu0 0.0
    %v3129 = vand.u32 %v1502, 4294901760
    %v3130 = vsub.f32 %v1502, %v3129
    %v3131 = vand.u32 %v3130, 4294901760
    %3132 = vmatpush1.msra.mxu0 %v3131
    %3133 = vmatprep.subr.mxu0 0.0
    %v3134 = vand.u32 %v1503, 4294901760
    %v3135 = vsub.f32 %v1503, %v3134
    %v3136 = vand.u32 %v3135, 4294901760
    %3137 = vmatpush1.msra.mxu0 %v3136
    %3138 = vmatprep.subr.mxu0 0.0
    %v3139 = vand.u32 %v1504, 4294901760
    %v3140 = vsub.f32 %v1504, %v3139
    %v3141 = vand.u32 %v3140, 4294901760
    %3142 = vmatpush1.msra.mxu0 %v3141
    %3143 = vmatprep.subr.mxu0 0.0
    %3144 = vmatpush1.msra.mxu0 0.0
    %3145 = vmatprep.subr.mxu0 0.0
    %3146 = vmatpush1.msra.mxu0 0.0
    %3147 = vmatprep.subr.mxu0 0.0
    %3148 = vmatpush1.msra.mxu0 0.0
    %3149 = vmatprep.subr.mxu0 0.0
    %3150 = vmatpush1.msra.mxu0 0.0
    %3151 = vmatprep.subr.mxu0 0.0
    %3152 = vmatpush1.msra.mxu0 0.0
    %3153 = vmatprep.subr.mxu0 0.0
    %3154 = vmatpush1.msra.mxu0 0.0
    %3155 = vmatprep.subr.mxu0 0.0
    %3156 = vmatpush1.msra.mxu0 0.0
    %3157 = vmatprep.subr.mxu0 0.0
    %3158 = vmatpush1.msra.mxu0 0.0
    %3159 = vmatprep.subr.mxu0 0.0
    %3160 = vmatpush1.msra.mxu0 0.0
    %3161 = vmatprep.subr.mxu0 0.0
    %3162 = vmatpush1.msra.mxu0 0.0
    %3163 = vmatprep.subr.mxu0 0.0
    %3164 = vmatpush1.msra.mxu0 0.0
    %3165 = vmatprep.subr.mxu0 0.0
    %3166 = vmatpush1.msra.mxu0 0.0
    %3167 = vmatprep.subr.mxu0 0.0
    %3168 = vmatpush1.msra.mxu0 0.0
    %3169 = vmatprep.subr.mxu0 0.0
    %3170 = vmatpush1.msra.mxu0 0.0
    %3171 = vmatprep.subr.mxu0 0.0
    %3172 = vmatpush1.msra.mxu0 0.0
    %3173 = vmatprep.subr.mxu0 0.0
    %3174 = vmatpush1.msra.mxu0 0.0
    %3175 = vmatprep.mubr.f32.mxu0 0.0
    %v3176 = vand.u32 %v1436, 4294901760
    %3177 = vmatmul.mubr.f32.gmra.mrb[0].mxu0 %v3176
    %v3178 = vpop.f32.mrb[0].mxu0
    %v3179 = vadd.f32 %v3036, %v3178
    %v3180 = vpop.f32.mrb[0].mxu0
    %3181 = vmatprep.mubr.f32.mxu0 0.0
    %v3182 = vand.u32 %v1442, 4294901760
    %3183 = vmatmul.mubr.f32.gmra.mrb[0].mxu0 %v3182
    %v3184 = vpop.f32.mrb[0].mxu0
    %v3185 = vadd.f32 %v3044, %v3184
    %v3186 = vpop.f32.mrb[0].mxu0
    %3187 = vmatprep.mubr.f32.mxu0 0.0
    %v3188 = vand.u32 %v1448, 4294901760
    %3189 = vmatmul.mubr.f32.gmra.mrb[0].mxu0 %v3188
    %v3190 = vpop.f32.mrb[0].mxu0
    %v3191 = vadd.f32 %v3052, %v3190
    %v3192 = vpop.f32.mrb[0].mxu0
    %3193 = vmatprep.mubr.f32.mxu0 0.0
    %v3194 = vand.u32 %v1454, 4294901760
    %3195 = vmatmul.mubr.f32.gmra.mrb[0].mxu0 %v3194
    %v3196 = vpop.f32.mrb[0].mxu0
    %v3197 = vadd.f32 %v3060, %v3196
    %v3198 = vpop.f32.mrb[0].mxu0
    %3199 = vdwg.mxu0
    %3200 = vmatprep.subr.mxu0 0.0
    %v3201 = vand.u32 %v1489, 4294901760
    %3202 = vmatpush1.msra.mxu0 %v3201
    %3203 = vmatprep.subr.mxu0 0.0
    %v3204 = vand.u32 %v1490, 4294901760
    %3205 = vmatpush1.msra.mxu0 %v3204
    %3206 = vmatprep.subr.mxu0 0.0
    %v3207 = vand.u32 %v1491, 4294901760
    %3208 = vmatpush1.msra.mxu0 %v3207
    %3209 = vmatprep.subr.mxu0 0.0
    %v3210 = vand.u32 %v1492, 4294901760
    %3211 = vmatpush1.msra.mxu0 %v3210
    %3212 = vmatprep.subr.mxu0 0.0
    %v3213 = vand.u32 %v1493, 4294901760
    %3214 = vmatpush1.msra.mxu0 %v3213
    %3215 = vmatprep.subr.mxu0 0.0
    %v3216 = vand.u32 %v1494, 4294901760
    %3217 = vmatpush1.msra.mxu0 %v3216
    %3218 = vmatprep.subr.mxu0 0.0
    %v3219 = vand.u32 %v1495, 4294901760
    %3220 = vmatpush1.msra.mxu0 %v3219
    %3221 = vmatprep.subr.mxu0 0.0
    %v3222 = vand.u32 %v1496, 4294901760
    %3223 = vmatpush1.msra.mxu0 %v3222
    %3224 = vmatprep.subr.mxu0 0.0
    %v3225 = vand.u32 %v1497, 4294901760
    %3226 = vmatpush1.msra.mxu0 %v3225
    %3227 = vmatprep.subr.mxu0 0.0
    %v3228 = vand.u32 %v1498, 4294901760
    %3229 = vmatpush1.msra.mxu0 %v3228
    %3230 = vmatprep.subr.mxu0 0.0
    %v3231 = vand.u32 %v1499, 4294901760
    %3232 = vmatpush1.msra.mxu0 %v3231
    %3233 = vmatprep.subr.mxu0 0.0
    %v3234 = vand.u32 %v1500, 4294901760
    %3235 = vmatpush1.msra.mxu0 %v3234
    %3236 = vmatprep.subr.mxu0 0.0
    %v3237 = vand.u32 %v1501, 4294901760
    %3238 = vmatpush1.msra.mxu0 %v3237
    %3239 = vmatprep.subr.mxu0 0.0
    %v3240 = vand.u32 %v1502, 4294901760
    %3241 = vmatpush1.msra.mxu0 %v3240
    %3242 = vmatprep.subr.mxu0 0.0
    %v3243 = vand.u32 %v1503, 4294901760
    %3244 = vmatpush1.msra.mxu0 %v3243
    %3245 = vmatprep.subr.mxu0 0.0
    %v3246 = vand.u32 %v1504, 4294901760
    %3247 = vmatpush1.msra.mxu0 %v3246
    %3248 = vmatprep.subr.mxu0 0.0
    %3249 = vmatpush1.msra.mxu0 0.0
    %3250 = vmatprep.subr.mxu0 0.0
    %3251 = vmatpush1.msra.mxu0 0.0
    %3252 = vmatprep.subr.mxu0 0.0
    %3253 = vmatpush1.msra.mxu0 0.0
    %3254 = vmatprep.subr.mxu0 0.0
    %3255 = vmatpush1.msra.mxu0 0.0
    %3256 = vmatprep.subr.mxu0 0.0
    %3257 = vmatpush1.msra.mxu0 0.0
    %3258 = vmatprep.subr.mxu0 0.0
    %3259 = vmatpush1.msra.mxu0 0.0
    %3260 = vmatprep.subr.mxu0 0.0
    %3261 = vmatpush1.msra.mxu0 0.0
    %3262 = vmatprep.subr.mxu0 0.0
    %3263 = vmatpush1.msra.mxu0 0.0
    %3264 = vmatprep.subr.mxu0 0.0
    %3265 = vmatpush1.msra.mxu0 0.0
    %3266 = vmatprep.subr.mxu0 0.0
    %3267 = vmatpush1.msra.mxu0 0.0
    %3268 = vmatprep.subr.mxu0 0.0
    %3269 = vmatpush1.msra.mxu0 0.0
    %3270 = vmatprep.subr.mxu0 0.0
    %3271 = vmatpush1.msra.mxu0 0.0
    %3272 = vmatprep.subr.mxu0 0.0
    %3273 = vmatpush1.msra.mxu0 0.0
    %3274 = vmatprep.subr.mxu0 0.0
    %3275 = vmatpush1.msra.mxu0 0.0
    %3276 = vmatprep.subr.mxu0 0.0
    %3277 = vmatpush1.msra.mxu0 0.0
    %3278 = vmatprep.subr.mxu0 0.0
    %3279 = vmatpush1.msra.mxu0 0.0
    %3280 = vmatprep.mubr.f32.mxu0 0.0
    %v3281 = vand.u32 %v1436, 4294901760
    %3282 = vmatmul.mubr.f32.gmra.mrb[0].mxu0 %v3281
    %v3283 = vpop.f32.mrb[0].mxu0
    %v3284 = vadd.f32 %v3179, %v3283
    %v3285 = vpop.f32.mrb[0].mxu0
    %3286 = vmatprep.mubr.f32.mxu0 0.0
    %v3287 = vand.u32 %v1442, 4294901760
    %3288 = vmatmul.mubr.f32.gmra.mrb[0].mxu0 %v3287
    %v3289 = vpop.f32.mrb[0].mxu0
    %v3290 = vadd.f32 %v3185, %v3289
    %v3291 = vpop.f32.mrb[0].mxu0
    %3292 = vmatprep.mubr.f32.mxu0 0.0
    %v3293 = vand.u32 %v1448, 4294901760
    %3294 = vmatmul.mubr.f32.gmra.mrb[0].mxu0 %v3293
    %v3295 = vpop.f32.mrb[0].mxu0
    %v3296 = vadd.f32 %v3191, %v3295
    %v3297 = vpop.f32.mrb[0].mxu0
    %3298 = vmatprep.mubr.f32.mxu0 0.0
    %v3299 = vand.u32 %v1454, 4294901760
    %3300 = vmatmul.mubr.f32.gmra.mrb[0].mxu0 %v3299
    %v3301 = vpop.f32.mrb[0].mxu0
    %v3302 = vadd.f32 %v3197, %v3301
    %v3303 = vpop.f32.mrb[0].mxu0
    %3304 = vdwg.mxu0
    %v3305 = vld [vmem:[%s3] sm:$0xff]
    %v3306 = vld [vmem:[%s3 + $0x8] sm:$0xff]
    %v3307 = vld [vmem:[%s3 + $0x10] sm:$0xff]
    %v3308 = vld [vmem:[%s3 + $0x18] sm:$0xf]
    %v3309 = vld [vmem:[%s3 + $0x20] sm:$0xf]
    %v3310 = vld [vmem:[%s3 + $0x28] sm:$0xf]
    %vm3311 = vcmask 97280
    %v3313 = vsel %vm3311, %v3284, 0
    %v3316 = vsel %vm3311, %v3290, 0
    %v3319 = vsel %vm3311, %v3296, 0
    %v3322 = vsel %vm3311, %v3302, 0
    %vm3324 = vcmask 1043456
    %v3326 = vsel %vm3324, %v3308, 0
    %v3329 = vsel %vm3324, %v3309, 0
    %v3332 = vsel %vm3324, %v3310, 0
    %v3334 = vand.u32 %v3306, 4294901760
    %3335 = vmatprep.subr.mxu0 %v3334
    %v3336 = vand.u32 %v3305, 4294901760
    %3337 = vmatpush1.msra.mxu0 %v3336
    %v3338 = vand.u32 %v3329, 4294901760
    %3339 = vmatprep.subr.mxu0 %v3338
    %v3340 = vand.u32 %v3326, 4294901760
    %3341 = vmatpush1.msra.mxu0 %v3340
    %3342 = vmatprep.subr.mxu0 0.0
    %3343 = vmatpush1.msra.mxu0 0.0
    %3344 = vmatprep.subr.mxu0 0.0
    %3345 = vmatpush1.msra.mxu0 0.0
    %3346 = vmatprep.subr.mxu0 0.0
    %3347 = vmatpush1.msra.mxu0 0.0
    %3348 = vmatprep.subr.mxu0 0.0
    %3349 = vmatpush1.msra.mxu0 0.0
    %3350 = vmatprep.subr.mxu0 0.0
    %3351 = vmatpush1.msra.mxu0 0.0
    %3352 = vmatprep.subr.mxu0 0.0
    %3353 = vmatpush1.msra.mxu0 0.0
    %3354 = vmatprep.subr.mxu0 0.0
    %3355 = vmatpush1.msra.mxu0 0.0
    %3356 = vmatprep.subr.mxu0 0.0
    %3357 = vmatpush1.msra.mxu0 0.0
    %3358 = vmatprep.subr.mxu0 0.0
    %3359 = vmatpush1.msra.mxu0 0.0
    %3360 = vmatprep.subr.mxu0 0.0
    %3361 = vmatpush1.msra.mxu0 0.0
    %3362 = vmatprep.subr.mxu0 0.0
    %3363 = vmatpush1.msra.mxu0 0.0
    %3364 = vmatprep.subr.mxu0 0.0
    %3365 = vmatpush1.msra.mxu0 0.0
    %3366 = vmatprep.subr.mxu0 0.0
    %3367 = vmatpush1.msra.mxu0 0.0
    %3368 = vmatprep.subr.mxu0 0.0
    %3369 = vmatpush1.msra.mxu0 0.0
    %3370 = vmatprep.subr.mxu0 0.0
    %3371 = vmatpush1.msra.mxu0 0.0
    %3372 = vmatprep.subr.mxu0 0.0
    %3373 = vmatpush1.msra.mxu0 0.0
    %3374 = vmatprep.subr.mxu0 0.0
    %3375 = vmatpush1.msra.mxu0 0.0
    %3376 = vmatprep.subr.mxu0 0.0
    %3377 = vmatpush1.msra.mxu0 0.0
    %3378 = vmatprep.subr.mxu0 0.0
    %3379 = vmatpush1.msra.mxu0 0.0
    %3380 = vmatprep.subr.mxu0 0.0
    %3381 = vmatpush1.msra.mxu0 0.0
    %3382 = vmatprep.subr.mxu0 0.0
    %3383 = vmatpush1.msra.mxu0 0.0
    %3384 = vmatprep.subr.mxu0 0.0
    %3385 = vmatpush1.msra.mxu0 0.0
    %3386 = vmatprep.subr.mxu0 0.0
    %3387 = vmatpush1.msra.mxu0 0.0
    %3388 = vmatprep.subr.mxu0 0.0
    %3389 = vmatpush1.msra.mxu0 0.0
    %3390 = vmatprep.subr.mxu0 0.0
    %3391 = vmatpush1.msra.mxu0 0.0
    %3392 = vmatprep.subr.mxu0 0.0
    %3393 = vmatpush1.msra.mxu0 0.0
    %3394 = vmatprep.subr.mxu0 0.0
    %3395 = vmatpush1.msra.mxu0 0.0
    %3396 = vmatprep.subr.mxu0 0.0
    %3397 = vmatpush1.msra.mxu0 0.0
    %3398 = vmatprep.subr.mxu0 0.0
    %3399 = vmatpush1.msra.mxu0 0.0
    %3400 = vmatprep.subr.mxu0 0.0
    %3401 = vmatpush1.msra.mxu0 0.0
    %3402 = vmatprep.mubr.f32.mxu0 0.0
    %v3403 = vand.u32 %v3313, 4294901760
    %v3404 = vsub.f32 %v3313, %v3403
    %v3405 = vand.u32 %v3404, 4294901760
    %v3406 = vsub.f32 %v3404, %v3405
    %v3407 = vand.u32 %v3406, 4294901760
    %3408 = vmatmul.mubr.f32.gmra.mrb[0].mxu0 %v3407
    %v3409 = vpop.f32.mrb[0].mxu0
    %v3410 = vadd.f32 0.0, %v3409
    %v3411 = vpop.f32.mrb[0].mxu0
    %v3412 = vadd.f32 0.0, %v3411
    %3413 = vmatprep.mubr.f32.mxu0 0.0
    %v3414 = vand.u32 %v3316, 4294901760
    %v3415 = vsub.f32 %v3316, %v3414
    %v3416 = vand.u32 %v3415, 4294901760
    %v3417 = vsub.f32 %v3415, %v3416
    %v3418 = vand.u32 %v3417, 4294901760
    %3419 = vmatmul.mubr.f32.gmra.mrb[0].mxu0 %v3418
    %v3420 = vpop.f32.mrb[0].mxu0
    %v3421 = vadd.f32 0.0, %v3420
    %v3422 = vpop.f32.mrb[0].mxu0
    %v3423 = vadd.f32 0.0, %v3422
    %3424 = vmatprep.mubr.f32.mxu0 0.0
    %v3425 = vand.u32 %v3319, 4294901760
    %v3426 = vsub.f32 %v3319, %v3425
    %v3427 = vand.u32 %v3426, 4294901760
    %v3428 = vsub.f32 %v3426, %v3427
    %v3429 = vand.u32 %v3428, 4294901760
    %3430 = vmatmul.mubr.f32.gmra.mrb[0].mxu0 %v3429
    %v3431 = vpop.f32.mrb[0].mxu0
    %v3432 = vadd.f32 0.0, %v3431
    %v3433 = vpop.f32.mrb[0].mxu0
    %v3434 = vadd.f32 0.0, %v3433
    %3435 = vmatprep.mubr.f32.mxu0 0.0
    %v3436 = vand.u32 %v3322, 4294901760
    %v3437 = vsub.f32 %v3322, %v3436
    %v3438 = vand.u32 %v3437, 4294901760
    %v3439 = vsub.f32 %v3437, %v3438
    %v3440 = vand.u32 %v3439, 4294901760
    %3441 = vmatmul.mubr.f32.gmra.mrb[0].mxu0 %v3440
    %v3442 = vpop.f32.mrb[0].mxu0
    %v3443 = vadd.f32 0.0, %v3442
    %v3444 = vpop.f32.mrb[0].mxu0
    %v3445 = vadd.f32 0.0, %v3444
    %3446 = vdwg.mxu0
    %v3447 = vand.u32 %v3306, 4294901760
    %v3448 = vsub.f32 %v3306, %v3447
    %v3449 = vand.u32 %v3448, 4294901760
    %v3450 = vsub.f32 %v3448, %v3449
    %v3451 = vand.u32 %v3450, 4294901760
    %3452 = vmatprep.subr.mxu0 %v3451
    %v3453 = vand.u32 %v3305, 4294901760
    %v3454 = vsub.f32 %v3305, %v3453
    %v3455 = vand.u32 %v3454, 4294901760
    %v3456 = vsub.f32 %v3454, %v3455
    %v3457 = vand.u32 %v3456, 4294901760
    %3458 = vmatpush1.msra.mxu0 %v3457
    %v3459 = vand.u32 %v3329, 4294901760
    %v3460 = vsub.f32 %v3329, %v3459
    %v3461 = vand.u32 %v3460, 4294901760
    %v3462 = vsub.f32 %v3460, %v3461
    %v3463 = vand.u32 %v3462, 4294901760
    %3464 = vmatprep.subr.mxu0 %v3463
    %v3465 = vand.u32 %v3326, 4294901760
    %v3466 = vsub.f32 %v3326, %v3465
    %v3467 = vand.u32 %v3466, 4294901760
    %v3468 = vsub.f32 %v3466, %v3467
    %v3469 = vand.u32 %v3468, 4294901760
    %3470 = vmatpush1.msra.mxu0 %v3469
    %3471 = vmatprep.subr.mxu0 0.0
    %3472 = vmatpush1.msra.mxu0 0.0
    %3473 = vmatprep.subr.mxu0 0.0
    %3474 = vmatpush1.msra.mxu0 0.0
    %3475 = vmatprep.subr.mxu0 0.0
    %3476 = vmatpush1.msra.mxu0 0.0
    %3477 = vmatprep.subr.mxu0 0.0
    %3478 = vmatpush1.msra.mxu0 0.0
    %3479 = vmatprep.subr.mxu0 0.0
    %3480 = vmatpush1.msra.mxu0 0.0
    %3481 = vmatprep.subr.mxu0 0.0
    %3482 = vmatpush1.msra.mxu0 0.0
    %3483 = vmatprep.subr.mxu0 0.0
    %3484 = vmatpush1.msra.mxu0 0.0
    %3485 = vmatprep.subr.mxu0 0.0
    %3486 = vmatpush1.msra.mxu0 0.0
    %3487 = vmatprep.subr.mxu0 0.0
    %3488 = vmatpush1.msra.mxu0 0.0
    %3489 = vmatprep.subr.mxu0 0.0
    %3490 = vmatpush1.msra.mxu0 0.0
    %3491 = vmatprep.subr.mxu0 0.0
    %3492 = vmatpush1.msra.mxu0 0.0
    %3493 = vmatprep.subr.mxu0 0.0
    %3494 = vmatpush1.msra.mxu0 0.0
    %3495 = vmatprep.subr.mxu0 0.0
    %3496 = vmatpush1.msra.mxu0 0.0
    %3497 = vmatprep.subr.mxu0 0.0
    %3498 = vmatpush1.msra.mxu0 0.0
    %3499 = vmatprep.subr.mxu0 0.0
    %3500 = vmatpush1.msra.mxu0 0.0
    %3501 = vmatprep.subr.mxu0 0.0
    %3502 = vmatpush1.msra.mxu0 0.0
    %3503 = vmatprep.subr.mxu0 0.0
    %3504 = vmatpush1.msra.mxu0 0.0
    %3505 = vmatprep.subr.mxu0 0.0
    %3506 = vmatpush1.msra.mxu0 0.0
    %3507 = vmatprep.subr.mxu0 0.0
    %3508 = vmatpush1.msra.mxu0 0.0
    %3509 = vmatprep.subr.mxu0 0.0
    %3510 = vmatpush1.msra.mxu0 0.0
    %3511 = vmatprep.subr.mxu0 0.0
    %3512 = vmatpush1.msra.mxu0 0.0
    %3513 = vmatprep.subr.mxu0 0.0
    %3514 = vmatpush1.msra.mxu0 0.0
    %3515 = vmatprep.subr.mxu0 0.0
    %3516 = vmatpush1.msra.mxu0 0.0
    %3517 = vmatprep.subr.mxu0 0.0
    %3518 = vmatpush1.msra.mxu0 0.0
    %3519 = vmatprep.subr.mxu0 0.0
    %3520 = vmatpush1.msra.mxu0 0.0
    %3521 = vmatprep.subr.mxu0 0.0
    %3522 = vmatpush1.msra.mxu0 0.0
    %3523 = vmatprep.subr.mxu0 0.0
    %3524 = vmatpush1.msra.mxu0 0.0
    %3525 = vmatprep.subr.mxu0 0.0
    %3526 = vmatpush1.msra.mxu0 0.0
    %3527 = vmatprep.subr.mxu0 0.0
    %3528 = vmatpush1.msra.mxu0 0.0
    %3529 = vmatprep.subr.mxu0 0.0
    %3530 = vmatpush1.msra.mxu0 0.0
    %3531 = vmatprep.mubr.f32.mxu0 0.0
    %v3532 = vand.u32 %v3313, 4294901760
    %3533 = vmatmul.mubr.f32.gmra.mrb[0].mxu0 %v3532
    %v3534 = vpop.f32.mrb[0].mxu0
    %v3535 = vadd.f32 %v3410, %v3534
    %v3536 = vpop.f32.mrb[0].mxu0
    %v3537 = vadd.f32 %v3412, %v3536
    %3538 = vmatprep.mubr.f32.mxu0 0.0
    %v3539 = vand.u32 %v3316, 4294901760
    %3540 = vmatmul.mubr.f32.gmra.mrb[0].mxu0 %v3539
    %v3541 = vpop.f32.mrb[0].mxu0
    %v3542 = vadd.f32 %v3421, %v3541
    %v3543 = vpop.f32.mrb[0].mxu0
    %v3544 = vadd.f32 %v3423, %v3543
    %3545 = vmatprep.mubr.f32.mxu0 0.0
    %v3546 = vand.u32 %v3319, 4294901760
    %3547 = vmatmul.mubr.f32.gmra.mrb[0].mxu0 %v3546
    %v3548 = vpop.f32.mrb[0].mxu0
    %v3549 = vadd.f32 %v3432, %v3548
    %v3550 = vpop.f32.mrb[0].mxu0
    %v3551 = vadd.f32 %v3434, %v3550
    %3552 = vmatprep.mubr.f32.mxu0 0.0
    %v3553 = vand.u32 %v3322, 4294901760
    %3554 = vmatmul.mubr.f32.gmra.mrb[0].mxu0 %v3553
    %v3555 = vpop.f32.mrb[0].mxu0
    %v3556 = vadd.f32 %v3443, %v3555
    %v3557 = vpop.f32.mrb[0].mxu0
    %v3558 = vadd.f32 %v3445, %v3557
    %3559 = vdwg.mxu0
    %v3560 = vand.u32 %v3306, 4294901760
    %v3561 = vsub.f32 %v3306, %v3560
    %3562 = vmatprep.subr.mxu0 %v3561
    %v3563 = vand.u32 %v3305, 4294901760
    %v3564 = vsub.f32 %v3305, %v3563
    %3565 = vmatpush1.msra.mxu0 %v3564
    %v3566 = vand.u32 %v3329, 4294901760
    %v3567 = vsub.f32 %v3329, %v3566
    %3568 = vmatprep.subr.mxu0 %v3567
    %v3569 = vand.u32 %v3326, 4294901760
    %v3570 = vsub.f32 %v3326, %v3569
    %3571 = vmatpush1.msra.mxu0 %v3570
    %3572 = vmatprep.subr.mxu0 0.0
    %3573 = vmatpush1.msra.mxu0 0.0
    %3574 = vmatprep.subr.mxu0 0.0
    %3575 = vmatpush1.msra.mxu0 0.0
    %3576 = vmatprep.subr.mxu0 0.0
    %3577 = vmatpush1.msra.mxu0 0.0
    %3578 = vmatprep.subr.mxu0 0.0
    %3579 = vmatpush1.msra.mxu0 0.0
    %3580 = vmatprep.subr.mxu0 0.0
    %3581 = vmatpush1.msra.mxu0 0.0
    %3582 = vmatprep.subr.mxu0 0.0
    %3583 = vmatpush1.msra.mxu0 0.0
    %3584 = vmatprep.subr.mxu0 0.0
    %3585 = vmatpush1.msra.mxu0 0.0
    %3586 = vmatprep.subr.mxu0 0.0
    %3587 = vmatpush1.msra.mxu0 0.0
    %3588 = vmatprep.subr.mxu0 0.0
    %3589 = vmatpush1.msra.mxu0 0.0
    %3590 = vmatprep.subr.mxu0 0.0
    %3591 = vmatpush1.msra.mxu0 0.0
    %3592 = vmatprep.subr.mxu0 0.0
    %3593 = vmatpush1.msra.mxu0 0.0
    %3594 = vmatprep.subr.mxu0 0.0
    %3595 = vmatpush1.msra.mxu0 0.0
    %3596 = vmatprep.subr.mxu0 0.0
    %3597 = vmatpush1.msra.mxu0 0.0
    %3598 = vmatprep.subr.mxu0 0.0
    %3599 = vmatpush1.msra.mxu0 0.0
    %3600 = vmatprep.subr.mxu0 0.0
    %3601 = vmatpush1.msra.mxu0 0.0
    %3602 = vmatprep.subr.mxu0 0.0
    %3603 = vmatpush1.msra.mxu0 0.0
    %3604 = vmatprep.subr.mxu0 0.0
    %3605 = vmatpush1.msra.mxu0 0.0
    %3606 = vmatprep.subr.mxu0 0.0
    %3607 = vmatpush1.msra.mxu0 0.0
    %3608 = vmatprep.subr.mxu0 0.0
    %3609 = vmatpush1.msra.mxu0 0.0
    %3610 = vmatprep.subr.mxu0 0.0
    %3611 = vmatpush1.msra.mxu0 0.0
    %3612 = vmatprep.subr.mxu0 0.0
    %3613 = vmatpush1.msra.mxu0 0.0
    %3614 = vmatprep.subr.mxu0 0.0
    %3615 = vmatpush1.msra.mxu0 0.0
    %3616 = vmatprep.subr.mxu0 0.0
    %3617 = vmatpush1.msra.mxu0 0.0
    %3618 = vmatprep.subr.mxu0 0.0
    %3619 = vmatpush1.msra.mxu0 0.0
    %3620 = vmatprep.subr.mxu0 0.0
    %3621 = vmatpush1.msra.mxu0 0.0
    %3622 = vmatprep.subr.mxu0 0.0
    %3623 = vmatpush1.msra.mxu0 0.0
    %3624 = vmatprep.subr.mxu0 0.0
    %3625 = vmatpush1.msra.mxu0 0.0
    %3626 = vmatprep.subr.mxu0 0.0
    %3627 = vmatpush1.msra.mxu0 0.0
    %3628 = vmatprep.subr.mxu0 0.0
    %3629 = vmatpush1.msra.mxu0 0.0
    %3630 = vmatprep.subr.mxu0 0.0
    %3631 = vmatpush1.msra.mxu0 0.0
    %3632 = vmatprep.mubr.f32.mxu0 0.0
    %v3633 = vand.u32 %v3313, 4294901760
    %v3634 = vsub.f32 %v3313, %v3633
    %3635 = vmatmul.mubr.f32.gmra.mrb[0].mxu0 %v3634
    %v3636 = vpop.f32.mrb[0].mxu0
    %v3637 = vadd.f32 %v3535, %v3636
    %v3638 = vpop.f32.mrb[0].mxu0
    %v3639 = vadd.f32 %v3537, %v3638
    %3640 = vmatprep.mubr.f32.mxu0 0.0
    %v3641 = vand.u32 %v3316, 4294901760
    %v3642 = vsub.f32 %v3316, %v3641
    %3643 = vmatmul.mubr.f32.gmra.mrb[0].mxu0 %v3642
    %v3644 = vpop.f32.mrb[0].mxu0
    %v3645 = vadd.f32 %v3542, %v3644
    %v3646 = vpop.f32.mrb[0].mxu0
    %v3647 = vadd.f32 %v3544, %v3646
    %3648 = vmatprep.mubr.f32.mxu0 0.0
    %v3649 = vand.u32 %v3319, 4294901760
    %v3650 = vsub.f32 %v3319, %v3649
    %3651 = vmatmul.mubr.f32.gmra.mrb[0].mxu0 %v3650
    %v3652 = vpop.f32.mrb[0].mxu0
    %v3653 = vadd.f32 %v3549, %v3652
    %v3654 = vpop.f32.mrb[0].mxu0
    %v3655 = vadd.f32 %v3551, %v3654
    %3656 = vmatprep.mubr.f32.mxu0 0.0
    %v3657 = vand.u32 %v3322, 4294901760
    %v3658 = vsub.f32 %v3322, %v3657
    %3659 = vmatmul.mubr.f32.gmra.mrb[0].mxu0 %v3658
    %v3660 = vpop.f32.mrb[0].mxu0
    %v3661 = vadd.f32 %v3556, %v3660
    %v3662 = vpop.f32.mrb[0].mxu0
    %v3663 = vadd.f32 %v3558, %v3662
    %3664 = vdwg.mxu0
    %v3665 = vand.u32 %v3306, 4294901760
    %3666 = vmatprep.subr.mxu0 %v3665
    %v3667 = vand.u32 %v3305, 4294901760
    %3668 = vmatpush1.msra.mxu0 %v3667
    %v3669 = vand.u32 %v3329, 4294901760
    %3670 = vmatprep.subr.mxu0 %v3669
    %v3671 = vand.u32 %v3326, 4294901760
    %3672 = vmatpush1.msra.mxu0 %v3671
    %3673 = vmatprep.subr.mxu0 0.0
    %3674 = vmatpush1.msra.mxu0 0.0
    %3675 = vmatprep.subr.mxu0 0.0
    %3676 = vmatpush1.msra.mxu0 0.0
    %3677 = vmatprep.subr.mxu0 0.0
    %3678 = vmatpush1.msra.mxu0 0.0
    %3679 = vmatprep.subr.mxu0 0.0
    %3680 = vmatpush1.msra.mxu0 0.0
    %3681 = vmatprep.subr.mxu0 0.0
    %3682 = vmatpush1.msra.mxu0 0.0
    %3683 = vmatprep.subr.mxu0 0.0
    %3684 = vmatpush1.msra.mxu0 0.0
    %3685 = vmatprep.subr.mxu0 0.0
    %3686 = vmatpush1.msra.mxu0 0.0
    %3687 = vmatprep.subr.mxu0 0.0
    %3688 = vmatpush1.msra.mxu0 0.0
    %3689 = vmatprep.subr.mxu0 0.0
    %3690 = vmatpush1.msra.mxu0 0.0
    %3691 = vmatprep.subr.mxu0 0.0
    %3692 = vmatpush1.msra.mxu0 0.0
    %3693 = vmatprep.subr.mxu0 0.0
    %3694 = vmatpush1.msra.mxu0 0.0
    %3695 = vmatprep.subr.mxu0 0.0
    %3696 = vmatpush1.msra.mxu0 0.0
    %3697 = vmatprep.subr.mxu0 0.0
    %3698 = vmatpush1.msra.mxu0 0.0
    %3699 = vmatprep.subr.mxu0 0.0
    %3700 = vmatpush1.msra.mxu0 0.0
    %3701 = vmatprep.subr.mxu0 0.0
    %3702 = vmatpush1.msra.mxu0 0.0
    %3703 = vmatprep.subr.mxu0 0.0
    %3704 = vmatpush1.msra.mxu0 0.0
    %3705 = vmatprep.subr.mxu0 0.0
    %3706 = vmatpush1.msra.mxu0 0.0
    %3707 = vmatprep.subr.mxu0 0.0
    %3708 = vmatpush1.msra.mxu0 0.0
    %3709 = vmatprep.subr.mxu0 0.0
    %3710 = vmatpush1.msra.mxu0 0.0
    %3711 = vmatprep.subr.mxu0 0.0
    %3712 = vmatpush1.msra.mxu0 0.0
    %3713 = vmatprep.subr.mxu0 0.0
    %3714 = vmatpush1.msra.mxu0 0.0
    %3715 = vmatprep.subr.mxu0 0.0
    %3716 = vmatpush1.msra.mxu0 0.0
    %3717 = vmatprep.subr.mxu0 0.0
    %3718 = vmatpush1.msra.mxu0 0.0
    %3719 = vmatprep.subr.mxu0 0.0
    %3720 = vmatpush1.msra.mxu0 0.0
    %3721 = vmatprep.subr.mxu0 0.0
    %3722 = vmatpush1.msra.mxu0 0.0
    %3723 = vmatprep.subr.mxu0 0.0
    %3724 = vmatpush1.msra.mxu0 0.0
    %3725 = vmatprep.subr.mxu0 0.0
    %3726 = vmatpush1.msra.mxu0 0.0
    %3727 = vmatprep.subr.mxu0 0.0
    %3728 = vmatpush1.msra.mxu0 0.0
    %3729 = vmatprep.subr.mxu0 0.0
    %3730 = vmatpush1.msra.mxu0 0.0
    %3731 = vmatprep.subr.mxu0 0.0
    %3732 = vmatpush1.msra.mxu0 0.0
    %3733 = vmatprep.mubr.f32.mxu0 0.0
    %v3734 = vand.u32 %v3313, 4294901760
    %v3735 = vsub.f32 %v3313, %v3734
    %v3736 = vand.u32 %v3735, 4294901760
    %3737 = vmatmul.mubr.f32.gmra.mrb[0].mxu0 %v3736
    %v3738 = vpop.f32.mrb[0].mxu0
    %v3739 = vadd.f32 %v3637, %v3738
    %v3740 = vpop.f32.mrb[0].mxu0
    %v3741 = vadd.f32 %v3639, %v3740
    %3742 = vmatprep.mubr.f32.mxu0 0.0
    %v3743 = vand.u32 %v3316, 4294901760
    %v3744 = vsub.f32 %v3316, %v3743
    %v3745 = vand.u32 %v3744, 4294901760
    %3746 = vmatmul.mubr.f32.gmra.mrb[0].mxu0 %v3745
    %v3747 = vpop.f32.mrb[0].mxu0
    %v3748 = vadd.f32 %v3645, %v3747
    %v3749 = vpop.f32.mrb[0].mxu0
    %v3750 = vadd.f32 %v3647, %v3749
    %3751 = vmatprep.mubr.f32.mxu0 0.0
    %v3752 = vand.u32 %v3319, 4294901760
    %v3753 = vsub.f32 %v3319, %v3752
    %v3754 = vand.u32 %v3753, 4294901760
    %3755 = vmatmul.mubr.f32.gmra.mrb[0].mxu0 %v3754
    %v3756 = vpop.f32.mrb[0].mxu0
    %v3757 = vadd.f32 %v3653, %v3756
    %v3758 = vpop.f32.mrb[0].mxu0
    %v3759 = vadd.f32 %v3655, %v3758
    %3760 = vmatprep.mubr.f32.mxu0 0.0
    %v3761 = vand.u32 %v3322, 4294901760
    %v3762 = vsub.f32 %v3322, %v3761
    %v3763 = vand.u32 %v3762, 4294901760
    %3764 = vmatmul.mubr.f32.gmra.mrb[0].mxu0 %v3763
    %v3765 = vpop.f32.mrb[0].mxu0
    %v3766 = vadd.f32 %v3661, %v3765
    %v3767 = vpop.f32.mrb[0].mxu0
    %v3768 = vadd.f32 %v3663, %v3767
    %3769 = vdwg.mxu0
    %v3770 = vand.u32 %v3306, 4294901760
    %v3771 = vsub.f32 %v3306, %v3770
    %v3772 = vand.u32 %v3771, 4294901760
    %3773 = vmatprep.subr.mxu0 %v3772
    %v3774 = vand.u32 %v3305, 4294901760
    %v3775 = vsub.f32 %v3305, %v3774
    %v3776 = vand.u32 %v3775, 4294901760
    %3777 = vmatpush1.msra.mxu0 %v3776
    %v3778 = vand.u32 %v3329, 4294901760
    %v3779 = vsub.f32 %v3329, %v3778
    %v3780 = vand.u32 %v3779, 4294901760
    %3781 = vmatprep.subr.mxu0 %v3780
    %v3782 = vand.u32 %v3326, 4294901760
    %v3783 = vsub.f32 %v3326, %v3782
    %v3784 = vand.u32 %v3783, 4294901760
    %3785 = vmatpush1.msra.mxu0 %v3784
    %3786 = vmatprep.subr.mxu0 0.0
    %3787 = vmatpush1.msra.mxu0 0.0
    %3788 = vmatprep.subr.mxu0 0.0
    %3789 = vmatpush1.msra.mxu0 0.0
    %3790 = vmatprep.subr.mxu0 0.0
    %3791 = vmatpush1.msra.mxu0 0.0
    %3792 = vmatprep.subr.mxu0 0.0
    %3793 = vmatpush1.msra.mxu0 0.0
    %3794 = vmatprep.subr.mxu0 0.0
    %3795 = vmatpush1.msra.mxu0 0.0
    %3796 = vmatprep.subr.mxu0 0.0
    %3797 = vmatpush1.msra.mxu0 0.0
    %3798 = vmatprep.subr.mxu0 0.0
    %3799 = vmatpush1.msra.mxu0 0.0
    %3800 = vmatprep.subr.mxu0 0.0
    %3801 = vmatpush1.msra.mxu0 0.0
    %3802 = vmatprep.subr.mxu0 0.0
    %3803 = vmatpush1.msra.mxu0 0.0
    %3804 = vmatprep.subr.mxu0 0.0
    %3805 = vmatpush1.msra.mxu0 0.0
    %3806 = vmatprep.subr.mxu0 0.0
    %3807 = vmatpush1.msra.mxu0 0.0
    %3808 = vmatprep.subr.mxu0 0.0
    %3809 = vmatpush1.msra.mxu0 0.0
    %3810 = vmatprep.subr.mxu0 0.0
    %3811 = vmatpush1.msra.mxu0 0.0
    %3812 = vmatprep.subr.mxu0 0.0
    %3813 = vmatpush1.msra.mxu0 0.0
    %3814 = vmatprep.subr.mxu0 0.0
    %3815 = vmatpush1.msra.mxu0 0.0
    %3816 = vmatprep.subr.mxu0 0.0
    %3817 = vmatpush1.msra.mxu0 0.0
    %3818 = vmatprep.subr.mxu0 0.0
    %3819 = vmatpush1.msra.mxu0 0.0
    %3820 = vmatprep.subr.mxu0 0.0
    %3821 = vmatpush1.msra.mxu0 0.0
    %3822 = vmatprep.subr.mxu0 0.0
    %3823 = vmatpush1.msra.mxu0 0.0
    %3824 = vmatprep.subr.mxu0 0.0
    %3825 = vmatpush1.msra.mxu0 0.0
    %3826 = vmatprep.subr.mxu0 0.0
    %3827 = vmatpush1.msra.mxu0 0.0
    %3828 = vmatprep.subr.mxu0 0.0
    %3829 = vmatpush1.msra.mxu0 0.0
    %3830 = vmatprep.subr.mxu0 0.0
    %3831 = vmatpush1.msra.mxu0 0.0
    %3832 = vmatprep.subr.mxu0 0.0
    %3833 = vmatpush1.msra.mxu0 0.0
    %3834 = vmatprep.subr.mxu0 0.0
    %3835 = vmatpush1.msra.mxu0 0.0
    %3836 = vmatprep.subr.mxu0 0.0
    %3837 = vmatpush1.msra.mxu0 0.0
    %3838 = vmatprep.subr.mxu0 0.0
    %3839 = vmatpush1.msra.mxu0 0.0
    %3840 = vmatprep.subr.mxu0 0.0
    %3841 = vmatpush1.msra.mxu0 0.0
    %3842 = vmatprep.subr.mxu0 0.0
    %3843 = vmatpush1.msra.mxu0 0.0
    %3844 = vmatprep.subr.mxu0 0.0
    %3845 = vmatpush1.msra.mxu0 0.0
    %3846 = vmatprep.mubr.f32.mxu0 0.0
    %v3847 = vand.u32 %v3313, 4294901760
    %3848 = vmatmul.mubr.f32.gmra.mrb[0].mxu0 %v3847
    %v3849 = vpop.f32.mrb[0].mxu0
    %v3850 = vadd.f32 %v3739, %v3849
    %v3851 = vpop.f32.mrb[0].mxu0
    %v3852 = vadd.f32 %v3741, %v3851
    %3853 = vmatprep.mubr.f32.mxu0 0.0
    %v3854 = vand.u32 %v3316, 4294901760
    %3855 = vmatmul.mubr.f32.gmra.mrb[0].mxu0 %v3854
    %v3856 = vpop.f32.mrb[0].mxu0
    %v3857 = vadd.f32 %v3748, %v3856
    %v3858 = vpop.f32.mrb[0].mxu0
    %v3859 = vadd.f32 %v3750, %v3858
    %3860 = vmatprep.mubr.f32.mxu0 0.0
    %v3861 = vand.u32 %v3319, 4294901760
    %3862 = vmatmul.mubr.f32.gmra.mrb[0].mxu0 %v3861
    %v3863 = vpop.f32.mrb[0].mxu0
    %v3864 = vadd.f32 %v3757, %v3863
    %v3865 = vpop.f32.mrb[0].mxu0
    %v3866 = vadd.f32 %v3759, %v3865
    %3867 = vmatprep.mubr.f32.mxu0 0.0
    %v3868 = vand.u32 %v3322, 4294901760
    %3869 = vmatmul.mubr.f32.gmra.mrb[0].mxu0 %v3868
    %v3870 = vpop.f32.mrb[0].mxu0
    %v3871 = vadd.f32 %v3766, %v3870
    %v3872 = vpop.f32.mrb[0].mxu0
    %v3873 = vadd.f32 %v3768, %v3872
    %3874 = vdwg.mxu0
    %v3875 = vand.u32 %v3306, 4294901760
    %3876 = vmatprep.subr.mxu0 %v3875
    %v3877 = vand.u32 %v3305, 4294901760
    %3878 = vmatpush1.msra.mxu0 %v3877
    %v3879 = vand.u32 %v3329, 4294901760
    %3880 = vmatprep.subr.mxu0 %v3879
    %v3881 = vand.u32 %v3326, 4294901760
    %3882 = vmatpush1.msra.mxu0 %v3881
    %3883 = vmatprep.subr.mxu0 0.0
    %3884 = vmatpush1.msra.mxu0 0.0
    %3885 = vmatprep.subr.mxu0 0.0
    %3886 = vmatpush1.msra.mxu0 0.0
    %3887 = vmatprep.subr.mxu0 0.0
    %3888 = vmatpush1.msra.mxu0 0.0
    %3889 = vmatprep.subr.mxu0 0.0
    %3890 = vmatpush1.msra.mxu0 0.0
    %3891 = vmatprep.subr.mxu0 0.0
    %3892 = vmatpush1.msra.mxu0 0.0
    %3893 = vmatprep.subr.mxu0 0.0
    %3894 = vmatpush1.msra.mxu0 0.0
    %3895 = vmatprep.subr.mxu0 0.0
    %3896 = vmatpush1.msra.mxu0 0.0
    %3897 = vmatprep.subr.mxu0 0.0
    %3898 = vmatpush1.msra.mxu0 0.0
    %3899 = vmatprep.subr.mxu0 0.0
    %3900 = vmatpush1.msra.mxu0 0.0
    %3901 = vmatprep.subr.mxu0 0.0
    %3902 = vmatpush1.msra.mxu0 0.0
    %3903 = vmatprep.subr.mxu0 0.0
    %3904 = vmatpush1.msra.mxu0 0.0
    %3905 = vmatprep.subr.mxu0 0.0
    %3906 = vmatpush1.msra.mxu0 0.0
    %3907 = vmatprep.subr.mxu0 0.0
    %3908 = vmatpush1.msra.mxu0 0.0
    %3909 = vmatprep.subr.mxu0 0.0
    %3910 = vmatpush1.msra.mxu0 0.0
    %3911 = vmatprep.subr.mxu0 0.0
    %3912 = vmatpush1.msra.mxu0 0.0
    %3913 = vmatprep.subr.mxu0 0.0
    %3914 = vmatpush1.msra.mxu0 0.0
    %3915 = vmatprep.subr.mxu0 0.0
    %3916 = vmatpush1.msra.mxu0 0.0
    %3917 = vmatprep.subr.mxu0 0.0
    %3918 = vmatpush1.msra.mxu0 0.0
    %3919 = vmatprep.subr.mxu0 0.0
    %3920 = vmatpush1.msra.mxu0 0.0
    %3921 = vmatprep.subr.mxu0 0.0
    %3922 = vmatpush1.msra.mxu0 0.0
    %3923 = vmatprep.subr.mxu0 0.0
    %3924 = vmatpush1.msra.mxu0 0.0
    %3925 = vmatprep.subr.mxu0 0.0
    %3926 = vmatpush1.msra.mxu0 0.0
    %3927 = vmatprep.subr.mxu0 0.0
    %3928 = vmatpush1.msra.mxu0 0.0
    %3929 = vmatprep.subr.mxu0 0.0
    %3930 = vmatpush1.msra.mxu0 0.0
    %3931 = vmatprep.subr.mxu0 0.0
    %3932 = vmatpush1.msra.mxu0 0.0
    %3933 = vmatprep.subr.mxu0 0.0
    %3934 = vmatpush1.msra.mxu0 0.0
    %3935 = vmatprep.subr.mxu0 0.0
    %3936 = vmatpush1.msra.mxu0 0.0
    %3937 = vmatprep.subr.mxu0 0.0
    %3938 = vmatpush1.msra.mxu0 0.0
    %3939 = vmatprep.subr.mxu0 0.0
    %3940 = vmatpush1.msra.mxu0 0.0
    %3941 = vmatprep.subr.mxu0 0.0
    %3942 = vmatpush1.msra.mxu0 0.0
    %3943 = vmatprep.mubr.f32.mxu0 0.0
    %v3944 = vand.u32 %v3313, 4294901760
    %3945 = vmatmul.mubr.f32.gmra.mrb[0].mxu0 %v3944
    %v3946 = vpop.f32.mrb[0].mxu0
    %v3947 = vadd.f32 %v3850, %v3946
    %v3948 = vpop.f32.mrb[0].mxu0
    %v3949 = vadd.f32 %v3852, %v3948
    %3950 = vmatprep.mubr.f32.mxu0 0.0
    %v3951 = vand.u32 %v3316, 4294901760
    %3952 = vmatmul.mubr.f32.gmra.mrb[0].mxu0 %v3951
    %v3953 = vpop.f32.mrb[0].mxu0
    %v3954 = vadd.f32 %v3857, %v3953
    %v3955 = vpop.f32.mrb[0].mxu0
    %v3956 = vadd.f32 %v3859, %v3955
    %3957 = vmatprep.mubr.f32.mxu0 0.0
    %v3958 = vand.u32 %v3319, 4294901760
    %3959 = vmatmul.mubr.f32.gmra.mrb[0].mxu0 %v3958
    %v3960 = vpop.f32.mrb[0].mxu0
    %v3961 = vadd.f32 %v3864, %v3960
    %v3962 = vpop.f32.mrb[0].mxu0
    %v3963 = vadd.f32 %v3866, %v3962
    %3964 = vmatprep.mubr.f32.mxu0 0.0
    %v3965 = vand.u32 %v3322, 4294901760
    %3966 = vmatmul.mubr.f32.gmra.mrb[0].mxu0 %v3965
    %v3967 = vpop.f32.mrb[0].mxu0
    %v3968 = vadd.f32 %v3871, %v3967
    %v3969 = vpop.f32.mrb[0].mxu0
    %v3970 = vadd.f32 %v3873, %v3969
    %3971 = vdwg.mxu0
    %3972 = vmatprep.subr.mxu0 0.0
    %v3973 = vand.u32 %v3307, 4294901760
    %3974 = vmatpush1.msra.mxu0 %v3973
    %3975 = vmatprep.subr.mxu0 0.0
    %v3976 = vand.u32 %v3332, 4294901760
    %3977 = vmatpush1.msra.mxu0 %v3976
    %3978 = vmatprep.subr.mxu0 0.0
    %3979 = vmatpush1.msra.mxu0 0.0
    %3980 = vmatprep.subr.mxu0 0.0
    %3981 = vmatpush1.msra.mxu0 0.0
    %3982 = vmatprep.subr.mxu0 0.0
    %3983 = vmatpush1.msra.mxu0 0.0
    %3984 = vmatprep.subr.mxu0 0.0
    %3985 = vmatpush1.msra.mxu0 0.0
    %3986 = vmatprep.subr.mxu0 0.0
    %3987 = vmatpush1.msra.mxu0 0.0
    %3988 = vmatprep.subr.mxu0 0.0
    %3989 = vmatpush1.msra.mxu0 0.0
    %3990 = vmatprep.subr.mxu0 0.0
    %3991 = vmatpush1.msra.mxu0 0.0
    %3992 = vmatprep.subr.mxu0 0.0
    %3993 = vmatpush1.msra.mxu0 0.0
    %3994 = vmatprep.subr.mxu0 0.0
    %3995 = vmatpush1.msra.mxu0 0.0
    %3996 = vmatprep.subr.mxu0 0.0
    %3997 = vmatpush1.msra.mxu0 0.0
    %3998 = vmatprep.subr.mxu0 0.0
    %3999 = vmatpush1.msra.mxu0 0.0
    %4000 = vmatprep.subr.mxu0 0.0
    %4001 = vmatpush1.msra.mxu0 0.0
    %4002 = vmatprep.subr.mxu0 0.0
    %4003 = vmatpush1.msra.mxu0 0.0
    %4004 = vmatprep.subr.mxu0 0.0
    %4005 = vmatpush1.msra.mxu0 0.0
    %4006 = vmatprep.subr.mxu0 0.0
    %4007 = vmatpush1.msra.mxu0 0.0
    %4008 = vmatprep.subr.mxu0 0.0
    %4009 = vmatpush1.msra.mxu0 0.0
    %4010 = vmatprep.subr.mxu0 0.0
    %4011 = vmatpush1.msra.mxu0 0.0
    %4012 = vmatprep.subr.mxu0 0.0
    %4013 = vmatpush1.msra.mxu0 0.0
    %4014 = vmatprep.subr.mxu0 0.0
    %4015 = vmatpush1.msra.mxu0 0.0
    %4016 = vmatprep.subr.mxu0 0.0
    %4017 = vmatpush1.msra.mxu0 0.0
    %4018 = vmatprep.subr.mxu0 0.0
    %4019 = vmatpush1.msra.mxu0 0.0
    %4020 = vmatprep.subr.mxu0 0.0
    %4021 = vmatpush1.msra.mxu0 0.0
    %4022 = vmatprep.subr.mxu0 0.0
    %4023 = vmatpush1.msra.mxu0 0.0
    %4024 = vmatprep.subr.mxu0 0.0
    %4025 = vmatpush1.msra.mxu0 0.0
    %4026 = vmatprep.subr.mxu0 0.0
    %4027 = vmatpush1.msra.mxu0 0.0
    %4028 = vmatprep.subr.mxu0 0.0
    %4029 = vmatpush1.msra.mxu0 0.0
    %4030 = vmatprep.subr.mxu0 0.0
    %4031 = vmatpush1.msra.mxu0 0.0
    %4032 = vmatprep.subr.mxu0 0.0
    %4033 = vmatpush1.msra.mxu0 0.0
    %4034 = vmatprep.subr.mxu0 0.0
    %4035 = vmatpush1.msra.mxu0 0.0
    %4036 = vmatprep.subr.mxu0 0.0
    %4037 = vmatpush1.msra.mxu0 0.0
    %4038 = vmatprep.mubr.f32.mxu0 0.0
    %v4039 = vand.u32 %v3313, 4294901760
    %v4040 = vsub.f32 %v3313, %v4039
    %v4041 = vand.u32 %v4040, 4294901760
    %v4042 = vsub.f32 %v4040, %v4041
    %v4043 = vand.u32 %v4042, 4294901760
    %4044 = vmatmul.mubr.f32.gmra.mrb[0].mxu0 %v4043
    %v4045 = vpop.f32.mrb[0].mxu0
    %v4046 = vadd.f32 0.0, %v4045
    %v4047 = vpop.f32.mrb[0].mxu0
    %4048 = vmatprep.mubr.f32.mxu0 0.0
    %v4049 = vand.u32 %v3316, 4294901760
    %v4050 = vsub.f32 %v3316, %v4049
    %v4051 = vand.u32 %v4050, 4294901760
    %v4052 = vsub.f32 %v4050, %v4051
    %v4053 = vand.u32 %v4052, 4294901760
    %4054 = vmatmul.mubr.f32.gmra.mrb[0].mxu0 %v4053
    %v4055 = vpop.f32.mrb[0].mxu0
    %v4056 = vadd.f32 0.0, %v4055
    %v4057 = vpop.f32.mrb[0].mxu0
    %4058 = vmatprep.mubr.f32.mxu0 0.0
    %v4059 = vand.u32 %v3319, 4294901760
    %v4060 = vsub.f32 %v3319, %v4059
    %v4061 = vand.u32 %v4060, 4294901760
    %v4062 = vsub.f32 %v4060, %v4061
    %v4063 = vand.u32 %v4062, 4294901760
    %4064 = vmatmul.mubr.f32.gmra.mrb[0].mxu0 %v4063
    %v4065 = vpop.f32.mrb[0].mxu0
    %v4066 = vadd.f32 0.0, %v4065
    %v4067 = vpop.f32.mrb[0].mxu0
    %4068 = vmatprep.mubr.f32.mxu0 0.0
    %v4069 = vand.u32 %v3322, 4294901760
    %v4070 = vsub.f32 %v3322, %v4069
    %v4071 = vand.u32 %v4070, 4294901760
    %v4072 = vsub.f32 %v4070, %v4071
    %v4073 = vand.u32 %v4072, 4294901760
    %4074 = vmatmul.mubr.f32.gmra.mrb[0].mxu0 %v4073
    %v4075 = vpop.f32.mrb[0].mxu0
    %v4076 = vadd.f32 0.0, %v4075
    %v4077 = vpop.f32.mrb[0].mxu0
    %4078 = vdwg.mxu0
    %4079 = vmatprep.subr.mxu0 0.0
    %v4080 = vand.u32 %v3307, 4294901760
    %v4081 = vsub.f32 %v3307, %v4080
    %v4082 = vand.u32 %v4081, 4294901760
    %v4083 = vsub.f32 %v4081, %v4082
    %v4084 = vand.u32 %v4083, 4294901760
    %4085 = vmatpush1.msra.mxu0 %v4084
    %4086 = vmatprep.subr.mxu0 0.0
    %v4087 = vand.u32 %v3332, 4294901760
    %v4088 = vsub.f32 %v3332, %v4087
    %v4089 = vand.u32 %v4088, 4294901760
    %v4090 = vsub.f32 %v4088, %v4089
    %v4091 = vand.u32 %v4090, 4294901760
    %4092 = vmatpush1.msra.mxu0 %v4091
    %4093 = vmatprep.subr.mxu0 0.0
    %4094 = vmatpush1.msra.mxu0 0.0
    %4095 = vmatprep.subr.mxu0 0.0
    %4096 = vmatpush1.msra.mxu0 0.0
    %4097 = vmatprep.subr.mxu0 0.0
    %4098 = vmatpush1.msra.mxu0 0.0
    %4099 = vmatprep.subr.mxu0 0.0
    %4100 = vmatpush1.msra.mxu0 0.0
    %4101 = vmatprep.subr.mxu0 0.0
    %4102 = vmatpush1.msra.mxu0 0.0
    %4103 = vmatprep.subr.mxu0 0.0
    %4104 = vmatpush1.msra.mxu0 0.0
    %4105 = vmatprep.subr.mxu0 0.0
    %4106 = vmatpush1.msra.mxu0 0.0
    %4107 = vmatprep.subr.mxu0 0.0
    %4108 = vmatpush1.msra.mxu0 0.0
    %4109 = vmatprep.subr.mxu0 0.0
    %4110 = vmatpush1.msra.mxu0 0.0
    %4111 = vmatprep.subr.mxu0 0.0
    %4112 = vmatpush1.msra.mxu0 0.0
    %4113 = vmatprep.subr.mxu0 0.0
    %4114 = vmatpush1.msra.mxu0 0.0
    %4115 = vmatprep.subr.mxu0 0.0
    %4116 = vmatpush1.msra.mxu0 0.0
    %4117 = vmatprep.subr.mxu0 0.0
    %4118 = vmatpush1.msra.mxu0 0.0
    %4119 = vmatprep.subr.mxu0 0.0
    %4120 = vmatpush1.msra.mxu0 0.0
    %4121 = vmatprep.subr.mxu0 0.0
    %4122 = vmatpush1.msra.mxu0 0.0
    %4123 = vmatprep.subr.mxu0 0.0
    %4124 = vmatpush1.msra.mxu0 0.0
    %4125 = vmatprep.subr.mxu0 0.0
    %4126 = vmatpush1.msra.mxu0 0.0
    %4127 = vmatprep.subr.mxu0 0.0
    %4128 = vmatpush1.msra.mxu0 0.0
    %4129 = vmatprep.subr.mxu0 0.0
    %4130 = vmatpush1.msra.mxu0 0.0
    %4131 = vmatprep.subr.mxu0 0.0
    %4132 = vmatpush1.msra.mxu0 0.0
    %4133 = vmatprep.subr.mxu0 0.0
    %4134 = vmatpush1.msra.mxu0 0.0
    %4135 = vmatprep.subr.mxu0 0.0
    %4136 = vmatpush1.msra.mxu0 0.0
    %4137 = vmatprep.subr.mxu0 0.0
    %4138 = vmatpush1.msra.mxu0 0.0
    %4139 = vmatprep.subr.mxu0 0.0
    %4140 = vmatpush1.msra.mxu0 0.0
    %4141 = vmatprep.subr.mxu0 0.0
    %4142 = vmatpush1.msra.mxu0 0.0
    %4143 = vmatprep.subr.mxu0 0.0
    %4144 = vmatpush1.msra.mxu0 0.0
    %4145 = vmatprep.subr.mxu0 0.0
    %4146 = vmatpush1.msra.mxu0 0.0
    %4147 = vmatprep.subr.mxu0 0.0
    %4148 = vmatpush1.msra.mxu0 0.0
    %4149 = vmatprep.subr.mxu0 0.0
    %4150 = vmatpush1.msra.mxu0 0.0
    %4151 = vmatprep.subr.mxu0 0.0
    %4152 = vmatpush1.msra.mxu0 0.0
    %4153 = vmatprep.mubr.f32.mxu0 0.0
    %v4154 = vand.u32 %v3313, 4294901760
    %4155 = vmatmul.mubr.f32.gmra.mrb[0].mxu0 %v4154
    %v4156 = vpop.f32.mrb[0].mxu0
    %v4157 = vadd.f32 %v4046, %v4156
    %v4158 = vpop.f32.mrb[0].mxu0
    %4159 = vmatprep.mubr.f32.mxu0 0.0
    %v4160 = vand.u32 %v3316, 4294901760
    %4161 = vmatmul.mubr.f32.gmra.mrb[0].mxu0 %v4160
    %v4162 = vpop.f32.mrb[0].mxu0
    %v4163 = vadd.f32 %v4056, %v4162
    %v4164 = vpop.f32.mrb[0].mxu0
    %4165 = vmatprep.mubr.f32.mxu0 0.0
    %v4166 = vand.u32 %v3319, 4294901760
    %4167 = vmatmul.mubr.f32.gmra.mrb[0].mxu0 %v4166
    %v4168 = vpop.f32.mrb[0].mxu0
    %v4169 = vadd.f32 %v4066, %v4168
    %v4170 = vpop.f32.mrb[0].mxu0
    %4171 = vmatprep.mubr.f32.mxu0 0.0
    %v4172 = vand.u32 %v3322, 4294901760
    %4173 = vmatmul.mubr.f32.gmra.mrb[0].mxu0 %v4172
    %v4174 = vpop.f32.mrb[0].mxu0
    %v4175 = vadd.f32 %v4076, %v4174
    %v4176 = vpop.f32.mrb[0].mxu0
    %4177 = vdwg.mxu0
    %4178 = vmatprep.subr.mxu0 0.0
    %v4179 = vand.u32 %v3307, 4294901760
    %v4180 = vsub.f32 %v3307, %v4179
    %4181 = vmatpush1.msra.mxu0 %v4180
    %4182 = vmatprep.subr.mxu0 0.0
    %v4183 = vand.u32 %v3332, 4294901760
    %v4184 = vsub.f32 %v3332, %v4183
    %4185 = vmatpush1.msra.mxu0 %v4184
    %4186 = vmatprep.subr.mxu0 0.0
    %4187 = vmatpush1.msra.mxu0 0.0
    %4188 = vmatprep.subr.mxu0 0.0
    %4189 = vmatpush1.msra.mxu0 0.0
    %4190 = vmatprep.subr.mxu0 0.0
    %4191 = vmatpush1.msra.mxu0 0.0
    %4192 = vmatprep.subr.mxu0 0.0
    %4193 = vmatpush1.msra.mxu0 0.0
    %4194 = vmatprep.subr.mxu0 0.0
    %4195 = vmatpush1.msra.mxu0 0.0
    %4196 = vmatprep.subr.mxu0 0.0
    %4197 = vmatpush1.msra.mxu0 0.0
    %4198 = vmatprep.subr.mxu0 0.0
    %4199 = vmatpush1.msra.mxu0 0.0
    %4200 = vmatprep.subr.mxu0 0.0
    %4201 = vmatpush1.msra.mxu0 0.0
    %4202 = vmatprep.subr.mxu0 0.0
    %4203 = vmatpush1.msra.mxu0 0.0
    %4204 = vmatprep.subr.mxu0 0.0
    %4205 = vmatpush1.msra.mxu0 0.0
    %4206 = vmatprep.subr.mxu0 0.0
    %4207 = vmatpush1.msra.mxu0 0.0
    %4208 = vmatprep.subr.mxu0 0.0
    %4209 = vmatpush1.msra.mxu0 0.0
    %4210 = vmatprep.subr.mxu0 0.0
    %4211 = vmatpush1.msra.mxu0 0.0
    %4212 = vmatprep.subr.mxu0 0.0
    %4213 = vmatpush1.msra.mxu0 0.0
    %4214 = vmatprep.subr.mxu0 0.0
    %4215 = vmatpush1.msra.mxu0 0.0
    %4216 = vmatprep.subr.mxu0 0.0
    %4217 = vmatpush1.msra.mxu0 0.0
    %4218 = vmatprep.subr.mxu0 0.0
    %4219 = vmatpush1.msra.mxu0 0.0
    %4220 = vmatprep.subr.mxu0 0.0
    %4221 = vmatpush1.msra.mxu0 0.0
    %4222 = vmatprep.subr.mxu0 0.0
    %4223 = vmatpush1.msra.mxu0 0.0
    %4224 = vmatprep.subr.mxu0 0.0
    %4225 = vmatpush1.msra.mxu0 0.0
    %4226 = vmatprep.subr.mxu0 0.0
    %4227 = vmatpush1.msra.mxu0 0.0
    %4228 = vmatprep.subr.mxu0 0.0
    %4229 = vmatpush1.msra.mxu0 0.0
    %4230 = vmatprep.subr.mxu0 0.0
    %4231 = vmatpush1.msra.mxu0 0.0
    %4232 = vmatprep.subr.mxu0 0.0
    %4233 = vmatpush1.msra.mxu0 0.0
    %4234 = vmatprep.subr.mxu0 0.0
    %4235 = vmatpush1.msra.mxu0 0.0
    %4236 = vmatprep.subr.mxu0 0.0
    %4237 = vmatpush1.msra.mxu0 0.0
    %4238 = vmatprep.subr.mxu0 0.0
    %4239 = vmatpush1.msra.mxu0 0.0
    %4240 = vmatprep.subr.mxu0 0.0
    %4241 = vmatpush1.msra.mxu0 0.0
    %4242 = vmatprep.subr.mxu0 0.0
    %4243 = vmatpush1.msra.mxu0 0.0
    %4244 = vmatprep.subr.mxu0 0.0
    %4245 = vmatpush1.msra.mxu0 0.0
    %4246 = vmatprep.mubr.f32.mxu0 0.0
    %v4247 = vand.u32 %v3313, 4294901760
    %v4248 = vsub.f32 %v3313, %v4247
    %4249 = vmatmul.mubr.f32.gmra.mrb[0].mxu0 %v4248
    %v4250 = vpop.f32.mrb[0].mxu0
    %v4251 = vadd.f32 %v4157, %v4250
    %v4252 = vpop.f32.mrb[0].mxu0
    %4253 = vmatprep.mubr.f32.mxu0 0.0
    %v4254 = vand.u32 %v3316, 4294901760
    %v4255 = vsub.f32 %v3316, %v4254
    %4256 = vmatmul.mubr.f32.gmra.mrb[0].mxu0 %v4255
    %v4257 = vpop.f32.mrb[0].mxu0
    %v4258 = vadd.f32 %v4163, %v4257
    %v4259 = vpop.f32.mrb[0].mxu0
    %4260 = vmatprep.mubr.f32.mxu0 0.0
    %v4261 = vand.u32 %v3319, 4294901760
    %v4262 = vsub.f32 %v3319, %v4261
    %4263 = vmatmul.mubr.f32.gmra.mrb[0].mxu0 %v4262
    %v4264 = vpop.f32.mrb[0].mxu0
    %v4265 = vadd.f32 %v4169, %v4264
    %v4266 = vpop.f32.mrb[0].mxu0
    %4267 = vmatprep.mubr.f32.mxu0 0.0
    %v4268 = vand.u32 %v3322, 4294901760
    %v4269 = vsub.f32 %v3322, %v4268
    %4270 = vmatmul.mubr.f32.gmra.mrb[0].mxu0 %v4269
    %v4271 = vpop.f32.mrb[0].mxu0
    %v4272 = vadd.f32 %v4175, %v4271
    %v4273 = vpop.f32.mrb[0].mxu0
    %4274 = vdwg.mxu0
    %4275 = vmatprep.subr.mxu0 0.0
    %v4276 = vand.u32 %v3307, 4294901760
    %4277 = vmatpush1.msra.mxu0 %v4276
    %4278 = vmatprep.subr.mxu0 0.0
    %v4279 = vand.u32 %v3332, 4294901760
    %4280 = vmatpush1.msra.mxu0 %v4279
    %4281 = vmatprep.subr.mxu0 0.0
    %4282 = vmatpush1.msra.mxu0 0.0
    %4283 = vmatprep.subr.mxu0 0.0
    %4284 = vmatpush1.msra.mxu0 0.0
    %4285 = vmatprep.subr.mxu0 0.0
    %4286 = vmatpush1.msra.mxu0 0.0
    %4287 = vmatprep.subr.mxu0 0.0
    %4288 = vmatpush1.msra.mxu0 0.0
    %4289 = vmatprep.subr.mxu0 0.0
    %4290 = vmatpush1.msra.mxu0 0.0
    %4291 = vmatprep.subr.mxu0 0.0
    %4292 = vmatpush1.msra.mxu0 0.0
    %4293 = vmatprep.subr.mxu0 0.0
    %4294 = vmatpush1.msra.mxu0 0.0
    %4295 = vmatprep.subr.mxu0 0.0
    %4296 = vmatpush1.msra.mxu0 0.0
    %4297 = vmatprep.subr.mxu0 0.0
    %4298 = vmatpush1.msra.mxu0 0.0
    %4299 = vmatprep.subr.mxu0 0.0
    %4300 = vmatpush1.msra.mxu0 0.0
    %4301 = vmatprep.subr.mxu0 0.0
    %4302 = vmatpush1.msra.mxu0 0.0
    %4303 = vmatprep.subr.mxu0 0.0
    %4304 = vmatpush1.msra.mxu0 0.0
    %4305 = vmatprep.subr.mxu0 0.0
    %4306 = vmatpush1.msra.mxu0 0.0
    %4307 = vmatprep.subr.mxu0 0.0
    %4308 = vmatpush1.msra.mxu0 0.0
    %4309 = vmatprep.subr.mxu0 0.0
    %4310 = vmatpush1.msra.mxu0 0.0
    %4311 = vmatprep.subr.mxu0 0.0
    %4312 = vmatpush1.msra.mxu0 0.0
    %4313 = vmatprep.subr.mxu0 0.0
    %4314 = vmatpush1.msra.mxu0 0.0
    %4315 = vmatprep.subr.mxu0 0.0
    %4316 = vmatpush1.msra.mxu0 0.0
    %4317 = vmatprep.subr.mxu0 0.0
    %4318 = vmatpush1.msra.mxu0 0.0
    %4319 = vmatprep.subr.mxu0 0.0
    %4320 = vmatpush1.msra.mxu0 0.0
    %4321 = vmatprep.subr.mxu0 0.0
    %4322 = vmatpush1.msra.mxu0 0.0
    %4323 = vmatprep.subr.mxu0 0.0
    %4324 = vmatpush1.msra.mxu0 0.0
    %4325 = vmatprep.subr.mxu0 0.0
    %4326 = vmatpush1.msra.mxu0 0.0
    %4327 = vmatprep.subr.mxu0 0.0
    %4328 = vmatpush1.msra.mxu0 0.0
    %4329 = vmatprep.subr.mxu0 0.0
    %4330 = vmatpush1.msra.mxu0 0.0
    %4331 = vmatprep.subr.mxu0 0.0
    %4332 = vmatpush1.msra.mxu0 0.0
    %4333 = vmatprep.subr.mxu0 0.0
    %4334 = vmatpush1.msra.mxu0 0.0
    %4335 = vmatprep.subr.mxu0 0.0
    %4336 = vmatpush1.msra.mxu0 0.0
    %4337 = vmatprep.subr.mxu0 0.0
    %4338 = vmatpush1.msra.mxu0 0.0
    %4339 = vmatprep.subr.mxu0 0.0
    %4340 = vmatpush1.msra.mxu0 0.0
    %4341 = vmatprep.mubr.f32.mxu0 0.0
    %v4342 = vand.u32 %v3313, 4294901760
    %v4343 = vsub.f32 %v3313, %v4342
    %v4344 = vand.u32 %v4343, 4294901760
    %4345 = vmatmul.mubr.f32.gmra.mrb[0].mxu0 %v4344
    %v4346 = vpop.f32.mrb[0].mxu0
    %v4347 = vadd.f32 %v4251, %v4346
    %v4348 = vpop.f32.mrb[0].mxu0
    %4349 = vmatprep.mubr.f32.mxu0 0.0
    %v4350 = vand.u32 %v3316, 4294901760
    %v4351 = vsub.f32 %v3316, %v4350
    %v4352 = vand.u32 %v4351, 4294901760
    %4353 = vmatmul.mubr.f32.gmra.mrb[0].mxu0 %v4352
    %v4354 = vpop.f32.mrb[0].mxu0
    %v4355 = vadd.f32 %v4258, %v4354
    %v4356 = vpop.f32.mrb[0].mxu0
    %4357 = vmatprep.mubr.f32.mxu0 0.0
    %v4358 = vand.u32 %v3319, 4294901760
    %v4359 = vsub.f32 %v3319, %v4358
    %v4360 = vand.u32 %v4359, 4294901760
    %4361 = vmatmul.mubr.f32.gmra.mrb[0].mxu0 %v4360
    %v4362 = vpop.f32.mrb[0].mxu0
    %v4363 = vadd.f32 %v4265, %v4362
    %v4364 = vpop.f32.mrb[0].mxu0
    %4365 = vmatprep.mubr.f32.mxu0 0.0
    %v4366 = vand.u32 %v3322, 4294901760
    %v4367 = vsub.f32 %v3322, %v4366
    %v4368 = vand.u32 %v4367, 4294901760
    %4369 = vmatmul.mubr.f32.gmra.mrb[0].mxu0 %v4368
    %v4370 = vpop.f32.mrb[0].mxu0
    %v4371 = vadd.f32 %v4272, %v4370
    %v4372 = vpop.f32.mrb[0].mxu0
    %4373 = vdwg.mxu0
    %4374 = vmatprep.subr.mxu0 0.0
    %v4375 = vand.u32 %v3307, 4294901760
    %v4376 = vsub.f32 %v3307, %v4375
    %v4377 = vand.u32 %v4376, 4294901760
    %4378 = vmatpush1.msra.mxu0 %v4377
    %4379 = vmatprep.subr.mxu0 0.0
    %v4380 = vand.u32 %v3332, 4294901760
    %v4381 = vsub.f32 %v3332, %v4380
    %v4382 = vand.u32 %v4381, 4294901760
    %4383 = vmatpush1.msra.mxu0 %v4382
    %4384 = vmatprep.subr.mxu0 0.0
    %4385 = vmatpush1.msra.mxu0 0.0
    %4386 = vmatprep.subr.mxu0 0.0
    %4387 = vmatpush1.msra.mxu0 0.0
    %4388 = vmatprep.subr.mxu0 0.0
    %4389 = vmatpush1.msra.mxu0 0.0
    %4390 = vmatprep.subr.mxu0 0.0
    %4391 = vmatpush1.msra.mxu0 0.0
    %4392 = vmatprep.subr.mxu0 0.0
    %4393 = vmatpush1.msra.mxu0 0.0
    %4394 = vmatprep.subr.mxu0 0.0
    %4395 = vmatpush1.msra.mxu0 0.0
    %4396 = vmatprep.subr.mxu0 0.0
    %4397 = vmatpush1.msra.mxu0 0.0
    %4398 = vmatprep.subr.mxu0 0.0
    %4399 = vmatpush1.msra.mxu0 0.0
    %4400 = vmatprep.subr.mxu0 0.0
    %4401 = vmatpush1.msra.mxu0 0.0
    %4402 = vmatprep.subr.mxu0 0.0
    %4403 = vmatpush1.msra.mxu0 0.0
    %4404 = vmatprep.subr.mxu0 0.0
    %4405 = vmatpush1.msra.mxu0 0.0
    %4406 = vmatprep.subr.mxu0 0.0
    %4407 = vmatpush1.msra.mxu0 0.0
    %4408 = vmatprep.subr.mxu0 0.0
    %4409 = vmatpush1.msra.mxu0 0.0
    %4410 = vmatprep.subr.mxu0 0.0
    %4411 = vmatpush1.msra.mxu0 0.0
    %4412 = vmatprep.subr.mxu0 0.0
    %4413 = vmatpush1.msra.mxu0 0.0
    %4414 = vmatprep.subr.mxu0 0.0
    %4415 = vmatpush1.msra.mxu0 0.0
    %4416 = vmatprep.subr.mxu0 0.0
    %4417 = vmatpush1.msra.mxu0 0.0
    %4418 = vmatprep.subr.mxu0 0.0
    %4419 = vmatpush1.msra.mxu0 0.0
    %4420 = vmatprep.subr.mxu0 0.0
    %4421 = vmatpush1.msra.mxu0 0.0
    %4422 = vmatprep.subr.mxu0 0.0
    %4423 = vmatpush1.msra.mxu0 0.0
    %4424 = vmatprep.subr.mxu0 0.0
    %4425 = vmatpush1.msra.mxu0 0.0
    %4426 = vmatprep.subr.mxu0 0.0
    %4427 = vmatpush1.msra.mxu0 0.0
    %4428 = vmatprep.subr.mxu0 0.0
    %4429 = vmatpush1.msra.mxu0 0.0
    %4430 = vmatprep.subr.mxu0 0.0
    %4431 = vmatpush1.msra.mxu0 0.0
    %4432 = vmatprep.subr.mxu0 0.0
    %4433 = vmatpush1.msra.mxu0 0.0
    %4434 = vmatprep.subr.mxu0 0.0
    %4435 = vmatpush1.msra.mxu0 0.0
    %4436 = vmatprep.subr.mxu0 0.0
    %4437 = vmatpush1.msra.mxu0 0.0
    %4438 = vmatprep.subr.mxu0 0.0
    %4439 = vmatpush1.msra.mxu0 0.0
    %4440 = vmatprep.subr.mxu0 0.0
    %4441 = vmatpush1.msra.mxu0 0.0
    %4442 = vmatprep.subr.mxu0 0.0
    %4443 = vmatpush1.msra.mxu0 0.0
    %4444 = vmatprep.mubr.f32.mxu0 0.0
    %v4445 = vand.u32 %v3313, 4294901760
    %4446 = vmatmul.mubr.f32.gmra.mrb[0].mxu0 %v4445
    %v4447 = vpop.f32.mrb[0].mxu0
    %v4448 = vadd.f32 %v4347, %v4447
    %v4449 = vpop.f32.mrb[0].mxu0
    %4450 = vmatprep.mubr.f32.mxu0 0.0
    %v4451 = vand.u32 %v3316, 4294901760
    %4452 = vmatmul.mubr.f32.gmra.mrb[0].mxu0 %v4451
    %v4453 = vpop.f32.mrb[0].mxu0
    %v4454 = vadd.f32 %v4355, %v4453
    %v4455 = vpop.f32.mrb[0].mxu0
    %4456 = vmatprep.mubr.f32.mxu0 0.0
    %v4457 = vand.u32 %v3319, 4294901760
    %4458 = vmatmul.mubr.f32.gmra.mrb[0].mxu0 %v4457
    %v4459 = vpop.f32.mrb[0].mxu0
    %v4460 = vadd.f32 %v4363, %v4459
    %v4461 = vpop.f32.mrb[0].mxu0
    %4462 = vmatprep.mubr.f32.mxu0 0.0
    %v4463 = vand.u32 %v3322, 4294901760
    %4464 = vmatmul.mubr.f32.gmra.mrb[0].mxu0 %v4463
    %v4465 = vpop.f32.mrb[0].mxu0
    %v4466 = vadd.f32 %v4371, %v4465
    %v4467 = vpop.f32.mrb[0].mxu0
    %4468 = vdwg.mxu0
    %4469 = vmatprep.subr.mxu0 0.0
    %v4470 = vand.u32 %v3307, 4294901760
    %4471 = vmatpush1.msra.mxu0 %v4470
    %4472 = vmatprep.subr.mxu0 0.0
    %v4473 = vand.u32 %v3332, 4294901760
    %4474 = vmatpush1.msra.mxu0 %v4473
    %4475 = vmatprep.subr.mxu0 0.0
    %4476 = vmatpush1.msra.mxu0 0.0
    %4477 = vmatprep.subr.mxu0 0.0
    %4478 = vmatpush1.msra.mxu0 0.0
    %4479 = vmatprep.subr.mxu0 0.0
    %4480 = vmatpush1.msra.mxu0 0.0
    %4481 = vmatprep.subr.mxu0 0.0
    %4482 = vmatpush1.msra.mxu0 0.0
    %4483 = vmatprep.subr.mxu0 0.0
    %4484 = vmatpush1.msra.mxu0 0.0
    %4485 = vmatprep.subr.mxu0 0.0
    %4486 = vmatpush1.msra.mxu0 0.0
    %4487 = vmatprep.subr.mxu0 0.0
    %4488 = vmatpush1.msra.mxu0 0.0
    %4489 = vmatprep.subr.mxu0 0.0
    %4490 = vmatpush1.msra.mxu0 0.0
    %4491 = vmatprep.subr.mxu0 0.0
    %4492 = vmatpush1.msra.mxu0 0.0
    %4493 = vmatprep.subr.mxu0 0.0
    %4494 = vmatpush1.msra.mxu0 0.0
    %4495 = vmatprep.subr.mxu0 0.0
    %4496 = vmatpush1.msra.mxu0 0.0
    %4497 = vmatprep.subr.mxu0 0.0
    %4498 = vmatpush1.msra.mxu0 0.0
    %4499 = vmatprep.subr.mxu0 0.0
    %4500 = vmatpush1.msra.mxu0 0.0
    %4501 = vmatprep.subr.mxu0 0.0
    %4502 = vmatpush1.msra.mxu0 0.0
    %4503 = vmatprep.subr.mxu0 0.0
    %4504 = vmatpush1.msra.mxu0 0.0
    %4505 = vmatprep.subr.mxu0 0.0
    %4506 = vmatpush1.msra.mxu0 0.0
    %4507 = vmatprep.subr.mxu0 0.0
    %4508 = vmatpush1.msra.mxu0 0.0
    %4509 = vmatprep.subr.mxu0 0.0
    %4510 = vmatpush1.msra.mxu0 0.0
    %4511 = vmatprep.subr.mxu0 0.0
    %4512 = vmatpush1.msra.mxu0 0.0
    %4513 = vmatprep.subr.mxu0 0.0
    %4514 = vmatpush1.msra.mxu0 0.0
    %4515 = vmatprep.subr.mxu0 0.0
    %4516 = vmatpush1.msra.mxu0 0.0
    %4517 = vmatprep.subr.mxu0 0.0
    %4518 = vmatpush1.msra.mxu0 0.0
    %4519 = vmatprep.subr.mxu0 0.0
    %4520 = vmatpush1.msra.mxu0 0.0
    %4521 = vmatprep.subr.mxu0 0.0
    %4522 = vmatpush1.msra.mxu0 0.0
    %4523 = vmatprep.subr.mxu0 0.0
    %4524 = vmatpush1.msra.mxu0 0.0
    %4525 = vmatprep.subr.mxu0 0.0
    %4526 = vmatpush1.msra.mxu0 0.0
    %4527 = vmatprep.subr.mxu0 0.0
    %4528 = vmatpush1.msra.mxu0 0.0
    %4529 = vmatprep.subr.mxu0 0.0
    %4530 = vmatpush1.msra.mxu0 0.0
    %4531 = vmatprep.subr.mxu0 0.0
    %4532 = vmatpush1.msra.mxu0 0.0
    %4533 = vmatprep.subr.mxu0 0.0
    %4534 = vmatpush1.msra.mxu0 0.0
    %4535 = vmatprep.mubr.f32.mxu0 0.0
    %v4536 = vand.u32 %v3313, 4294901760
    %4537 = vmatmul.mubr.f32.gmra.mrb[0].mxu0 %v4536
    %v4538 = vpop.f32.mrb[0].mxu0
    %v4539 = vadd.f32 %v4448, %v4538
    %v4540 = vpop.f32.mrb[0].mxu0
    %4541 = vmatprep.mubr.f32.mxu0 0.0
    %v4542 = vand.u32 %v3316, 4294901760
    %4543 = vmatmul.mubr.f32.gmra.mrb[0].mxu0 %v4542
    %v4544 = vpop.f32.mrb[0].mxu0
    %v4545 = vadd.f32 %v4454, %v4544
    %v4546 = vpop.f32.mrb[0].mxu0
    %4547 = vmatprep.mubr.f32.mxu0 0.0
    %v4548 = vand.u32 %v3319, 4294901760
    %4549 = vmatmul.mubr.f32.gmra.mrb[0].mxu0 %v4548
    %v4550 = vpop.f32.mrb[0].mxu0
    %v4551 = vadd.f32 %v4460, %v4550
    %v4552 = vpop.f32.mrb[0].mxu0
    %4553 = vmatprep.mubr.f32.mxu0 0.0
    %v4554 = vand.u32 %v3322, 4294901760
    %4555 = vmatmul.mubr.f32.gmra.mrb[0].mxu0 %v4554
    %v4556 = vpop.f32.mrb[0].mxu0
    %v4557 = vadd.f32 %v4466, %v4556
    %v4558 = vpop.f32.mrb[0].mxu0
    %4559 = vdwg.mxu0
    %v4560 = vsub.f32 %v792, %v3947
    %v4561 = vsub.f32 %v794, %v3949
    %v4562 = vsub.f32 %v1436, %v4539
    %v4563 = vsub.f32 %v799, %v3954
    %v4564 = vsub.f32 %v801, %v3956
    %v4565 = vsub.f32 %v1442, %v4545
    %v4566 = vsub.f32 %v806, %v3961
    %v4567 = vsub.f32 %v808, %v3963
    %v4568 = vsub.f32 %v1448, %v4551
    %v4569 = vsub.f32 %v813, %v3968
    %v4570 = vsub.f32 %v815, %v3970
    %v4571 = vsub.f32 %v1454, %v4557
    %v4572 = vmul.f32 %v4560, %v4560
    %v4573 = vmul.f32 %v4561, %v4561
    %v4574 = vmul.f32 %v4562, %v4562
    %v4575 = vmul.f32 %v4563, %v4563
    %v4576 = vmul.f32 %v4564, %v4564
    %v4577 = vmul.f32 %v4565, %v4565
    %v4578 = vmul.f32 %v4566, %v4566
    %v4579 = vmul.f32 %v4567, %v4567
    %v4580 = vmul.f32 %v4568, %v4568
    %v4581 = vmul.f32 %v4569, %v4569
    %v4582 = vmul.f32 %v4570, %v4570
    %v4583 = vmul.f32 %v4571, %v4571
    %4584 = vmatprep.subr.mxu0 0.0
    %v4585 = vand.u32 %v1457, 4294901760
    %4586 = vmatpush1.msra.mxu0 %v4585
    %4587 = vmatprep.subr.mxu0 0.0
    %v4588 = vand.u32 %v1458, 4294901760
    %4589 = vmatpush1.msra.mxu0 %v4588
    %4590 = vmatprep.subr.mxu0 0.0
    %v4591 = vand.u32 %v1459, 4294901760
    %4592 = vmatpush1.msra.mxu0 %v4591
    %4593 = vmatprep.subr.mxu0 0.0
    %v4594 = vand.u32 %v1460, 4294901760
    %4595 = vmatpush1.msra.mxu0 %v4594
    %4596 = vmatprep.subr.mxu0 0.0
    %v4597 = vand.u32 %v1461, 4294901760
    %4598 = vmatpush1.msra.mxu0 %v4597
    %4599 = vmatprep.subr.mxu0 0.0
    %v4600 = vand.u32 %v1462, 4294901760
    %4601 = vmatpush1.msra.mxu0 %v4600
    %4602 = vmatprep.subr.mxu0 0.0
    %v4603 = vand.u32 %v1463, 4294901760
    %4604 = vmatpush1.msra.mxu0 %v4603
    %4605 = vmatprep.subr.mxu0 0.0
    %v4606 = vand.u32 %v1464, 4294901760
    %4607 = vmatpush1.msra.mxu0 %v4606
    %4608 = vmatprep.subr.mxu0 0.0
    %v4609 = vand.u32 %v1465, 4294901760
    %4610 = vmatpush1.msra.mxu0 %v4609
    %4611 = vmatprep.subr.mxu0 0.0
    %v4612 = vand.u32 %v1466, 4294901760
    %4613 = vmatpush1.msra.mxu0 %v4612
    %4614 = vmatprep.subr.mxu0 0.0
    %v4615 = vand.u32 %v1467, 4294901760
    %4616 = vmatpush1.msra.mxu0 %v4615
    %4617 = vmatprep.subr.mxu0 0.0
    %v4618 = vand.u32 %v1468, 4294901760
    %4619 = vmatpush1.msra.mxu0 %v4618
    %4620 = vmatprep.subr.mxu0 0.0
    %v4621 = vand.u32 %v1469, 4294901760
    %4622 = vmatpush1.msra.mxu0 %v4621
    %4623 = vmatprep.subr.mxu0 0.0
    %v4624 = vand.u32 %v1470, 4294901760
    %4625 = vmatpush1.msra.mxu0 %v4624
    %4626 = vmatprep.subr.mxu0 0.0
    %v4627 = vand.u32 %v1471, 4294901760
    %4628 = vmatpush1.msra.mxu0 %v4627
    %4629 = vmatprep.subr.mxu0 0.0
    %v4630 = vand.u32 %v1472, 4294901760
    %4631 = vmatpush1.msra.mxu0 %v4630
    %4632 = vmatprep.subr.mxu0 0.0
    %v4633 = vand.u32 %v1473, 4294901760
    %4634 = vmatpush1.msra.mxu0 %v4633
    %4635 = vmatprep.subr.mxu0 0.0
    %v4636 = vand.u32 %v1474, 4294901760
    %4637 = vmatpush1.msra.mxu0 %v4636
    %4638 = vmatprep.subr.mxu0 0.0
    %v4639 = vand.u32 %v1475, 4294901760
    %4640 = vmatpush1.msra.mxu0 %v4639
    %4641 = vmatprep.subr.mxu0 0.0
    %v4642 = vand.u32 %v1476, 4294901760
    %4643 = vmatpush1.msra.mxu0 %v4642
    %4644 = vmatprep.subr.mxu0 0.0
    %v4645 = vand.u32 %v1477, 4294901760
    %4646 = vmatpush1.msra.mxu0 %v4645
    %4647 = vmatprep.subr.mxu0 0.0
    %v4648 = vand.u32 %v1478, 4294901760
    %4649 = vmatpush1.msra.mxu0 %v4648
    %4650 = vmatprep.subr.mxu0 0.0
    %v4651 = vand.u32 %v1479, 4294901760
    %4652 = vmatpush1.msra.mxu0 %v4651
    %4653 = vmatprep.subr.mxu0 0.0
    %v4654 = vand.u32 %v1480, 4294901760
    %4655 = vmatpush1.msra.mxu0 %v4654
    %4656 = vmatprep.subr.mxu0 0.0
    %v4657 = vand.u32 %v1481, 4294901760
    %4658 = vmatpush1.msra.mxu0 %v4657
    %4659 = vmatprep.subr.mxu0 0.0
    %v4660 = vand.u32 %v1482, 4294901760
    %4661 = vmatpush1.msra.mxu0 %v4660
    %4662 = vmatprep.subr.mxu0 0.0
    %v4663 = vand.u32 %v1483, 4294901760
    %4664 = vmatpush1.msra.mxu0 %v4663
    %4665 = vmatprep.subr.mxu0 0.0
    %v4666 = vand.u32 %v1484, 4294901760
    %4667 = vmatpush1.msra.mxu0 %v4666
    %4668 = vmatprep.subr.mxu0 0.0
    %v4669 = vand.u32 %v1485, 4294901760
    %4670 = vmatpush1.msra.mxu0 %v4669
    %4671 = vmatprep.subr.mxu0 0.0
    %v4672 = vand.u32 %v1486, 4294901760
    %4673 = vmatpush1.msra.mxu0 %v4672
    %4674 = vmatprep.subr.mxu0 0.0
    %v4675 = vand.u32 %v1487, 4294901760
    %4676 = vmatpush1.msra.mxu0 %v4675
    %4677 = vmatprep.subr.mxu0 0.0
    %v4678 = vand.u32 %v1488, 4294901760
    %4679 = vmatpush1.msra.mxu0 %v4678
    %v4680 = vand.u32 %v4573, 4294901760
    %v4681 = vsub.f32 %v4573, %v4680
    %v4682 = vand.u32 %v4681, 4294901760
    %v4683 = vsub.f32 %v4681, %v4682
    %v4684 = vand.u32 %v4683, 4294901760
    %4685 = vmatprep.mubr.f32.mxu0 %v4684
    %v4686 = vand.u32 %v4572, 4294901760
    %v4687 = vsub.f32 %v4572, %v4686
    %v4688 = vand.u32 %v4687, 4294901760
    %v4689 = vsub.f32 %v4687, %v4688
    %v4690 = vand.u32 %v4689, 4294901760
    %4691 = vmatmul.mubr.f32.gmra.mrb[0].mxu0 %v4690
    %v4692 = vpop.f32.mrb[0].mxu0
    %v4693 = vadd.f32 1e-05, %v4692
    %v4694 = vpop.f32.mrb[0].mxu0
    %v4695 = vand.u32 %v4576, 4294901760
    %v4696 = vsub.f32 %v4576, %v4695
    %v4697 = vand.u32 %v4696, 4294901760
    %v4698 = vsub.f32 %v4696, %v4697
    %v4699 = vand.u32 %v4698, 4294901760
    %4700 = vmatprep.mubr.f32.mxu0 %v4699
    %v4701 = vand.u32 %v4575, 4294901760
    %v4702 = vsub.f32 %v4575, %v4701
    %v4703 = vand.u32 %v4702, 4294901760
    %v4704 = vsub.f32 %v4702, %v4703
    %v4705 = vand.u32 %v4704, 4294901760
    %4706 = vmatmul.mubr.f32.gmra.mrb[0].mxu0 %v4705
    %v4707 = vpop.f32.mrb[0].mxu0
    %v4708 = vadd.f32 1e-05, %v4707
    %v4709 = vpop.f32.mrb[0].mxu0
    %v4710 = vand.u32 %v4579, 4294901760
    %v4711 = vsub.f32 %v4579, %v4710
    %v4712 = vand.u32 %v4711, 4294901760
    %v4713 = vsub.f32 %v4711, %v4712
    %v4714 = vand.u32 %v4713, 4294901760
    %4715 = vmatprep.mubr.f32.mxu0 %v4714
    %v4716 = vand.u32 %v4578, 4294901760
    %v4717 = vsub.f32 %v4578, %v4716
    %v4718 = vand.u32 %v4717, 4294901760
    %v4719 = vsub.f32 %v4717, %v4718
    %v4720 = vand.u32 %v4719, 4294901760
    %4721 = vmatmul.mubr.f32.gmra.mrb[0].mxu0 %v4720
    %v4722 = vpop.f32.mrb[0].mxu0
    %v4723 = vadd.f32 1e-05, %v4722
    %v4724 = vpop.f32.mrb[0].mxu0
    %v4725 = vand.u32 %v4582, 4294901760
    %v4726 = vsub.f32 %v4582, %v4725
    %v4727 = vand.u32 %v4726, 4294901760
    %v4728 = vsub.f32 %v4726, %v4727
    %v4729 = vand.u32 %v4728, 4294901760
    %4730 = vmatprep.mubr.f32.mxu0 %v4729
    %v4731 = vand.u32 %v4581, 4294901760
    %v4732 = vsub.f32 %v4581, %v4731
    %v4733 = vand.u32 %v4732, 4294901760
    %v4734 = vsub.f32 %v4732, %v4733
    %v4735 = vand.u32 %v4734, 4294901760
    %4736 = vmatmul.mubr.f32.gmra.mrb[0].mxu0 %v4735
    %v4737 = vpop.f32.mrb[0].mxu0
    %v4738 = vadd.f32 1e-05, %v4737
    %v4739 = vpop.f32.mrb[0].mxu0
    %4740 = vdwg.mxu0
    %4741 = vmatprep.subr.mxu0 0.0
    %v4742 = vand.u32 %v1457, 4294901760
    %v4743 = vsub.f32 %v1457, %v4742
    %v4744 = vand.u32 %v4743, 4294901760
    %v4745 = vsub.f32 %v4743, %v4744
    %v4746 = vand.u32 %v4745, 4294901760
    %4747 = vmatpush1.msra.mxu0 %v4746
    %4748 = vmatprep.subr.mxu0 0.0
    %v4749 = vand.u32 %v1458, 4294901760
    %v4750 = vsub.f32 %v1458, %v4749
    %v4751 = vand.u32 %v4750, 4294901760
    %v4752 = vsub.f32 %v4750, %v4751
    %v4753 = vand.u32 %v4752, 4294901760
    %4754 = vmatpush1.msra.mxu0 %v4753
    %4755 = vmatprep.subr.mxu0 0.0
    %v4756 = vand.u32 %v1459, 4294901760
    %v4757 = vsub.f32 %v1459, %v4756
    %v4758 = vand.u32 %v4757, 4294901760
    %v4759 = vsub.f32 %v4757, %v4758
    %v4760 = vand.u32 %v4759, 4294901760
    %4761 = vmatpush1.msra.mxu0 %v4760
    %4762 = vmatprep.subr.mxu0 0.0
    %v4763 = vand.u32 %v1460, 4294901760
    %v4764 = vsub.f32 %v1460, %v4763
    %v4765 = vand.u32 %v4764, 4294901760
    %v4766 = vsub.f32 %v4764, %v4765
    %v4767 = vand.u32 %v4766, 4294901760
    %4768 = vmatpush1.msra.mxu0 %v4767
    %4769 = vmatprep.subr.mxu0 0.0
    %v4770 = vand.u32 %v1461, 4294901760
    %v4771 = vsub.f32 %v1461, %v4770
    %v4772 = vand.u32 %v4771, 4294901760
    %v4773 = vsub.f32 %v4771, %v4772
    %v4774 = vand.u32 %v4773, 4294901760
    %4775 = vmatpush1.msra.mxu0 %v4774
    %4776 = vmatprep.subr.mxu0 0.0
    %v4777 = vand.u32 %v1462, 4294901760
    %v4778 = vsub.f32 %v1462, %v4777
    %v4779 = vand.u32 %v4778, 4294901760
    %v4780 = vsub.f32 %v4778, %v4779
    %v4781 = vand.u32 %v4780, 4294901760
    %4782 = vmatpush1.msra.mxu0 %v4781
    %4783 = vmatprep.subr.mxu0 0.0
    %v4784 = vand.u32 %v1463, 4294901760
    %v4785 = vsub.f32 %v1463, %v4784
    %v4786 = vand.u32 %v4785, 4294901760
    %v4787 = vsub.f32 %v4785, %v4786
    %v4788 = vand.u32 %v4787, 4294901760
    %4789 = vmatpush1.msra.mxu0 %v4788
    %4790 = vmatprep.subr.mxu0 0.0
    %v4791 = vand.u32 %v1464, 4294901760
    %v4792 = vsub.f32 %v1464, %v4791
    %v4793 = vand.u32 %v4792, 4294901760
    %v4794 = vsub.f32 %v4792, %v4793
    %v4795 = vand.u32 %v4794, 4294901760
    %4796 = vmatpush1.msra.mxu0 %v4795
    %4797 = vmatprep.subr.mxu0 0.0
    %v4798 = vand.u32 %v1465, 4294901760
    %v4799 = vsub.f32 %v1465, %v4798
    %v4800 = vand.u32 %v4799, 4294901760
    %v4801 = vsub.f32 %v4799, %v4800
    %v4802 = vand.u32 %v4801, 4294901760
    %4803 = vmatpush1.msra.mxu0 %v4802
    %4804 = vmatprep.subr.mxu0 0.0
    %v4805 = vand.u32 %v1466, 4294901760
    %v4806 = vsub.f32 %v1466, %v4805
    %v4807 = vand.u32 %v4806, 4294901760
    %v4808 = vsub.f32 %v4806, %v4807
    %v4809 = vand.u32 %v4808, 4294901760
    %4810 = vmatpush1.msra.mxu0 %v4809
    %4811 = vmatprep.subr.mxu0 0.0
    %v4812 = vand.u32 %v1467, 4294901760
    %v4813 = vsub.f32 %v1467, %v4812
    %v4814 = vand.u32 %v4813, 4294901760
    %v4815 = vsub.f32 %v4813, %v4814
    %v4816 = vand.u32 %v4815, 4294901760
    %4817 = vmatpush1.msra.mxu0 %v4816
    %4818 = vmatprep.subr.mxu0 0.0
    %v4819 = vand.u32 %v1468, 4294901760
    %v4820 = vsub.f32 %v1468, %v4819
    %v4821 = vand.u32 %v4820, 4294901760
    %v4822 = vsub.f32 %v4820, %v4821
    %v4823 = vand.u32 %v4822, 4294901760
    %4824 = vmatpush1.msra.mxu0 %v4823
    %4825 = vmatprep.subr.mxu0 0.0
    %v4826 = vand.u32 %v1469, 4294901760
    %v4827 = vsub.f32 %v1469, %v4826
    %v4828 = vand.u32 %v4827, 4294901760
    %v4829 = vsub.f32 %v4827, %v4828
    %v4830 = vand.u32 %v4829, 4294901760
    %4831 = vmatpush1.msra.mxu0 %v4830
    %4832 = vmatprep.subr.mxu0 0.0
    %v4833 = vand.u32 %v1470, 4294901760
    %v4834 = vsub.f32 %v1470, %v4833
    %v4835 = vand.u32 %v4834, 4294901760
    %v4836 = vsub.f32 %v4834, %v4835
    %v4837 = vand.u32 %v4836, 4294901760
    %4838 = vmatpush1.msra.mxu0 %v4837
    %4839 = vmatprep.subr.mxu0 0.0
    %v4840 = vand.u32 %v1471, 4294901760
    %v4841 = vsub.f32 %v1471, %v4840
    %v4842 = vand.u32 %v4841, 4294901760
    %v4843 = vsub.f32 %v4841, %v4842
    %v4844 = vand.u32 %v4843, 4294901760
    %4845 = vmatpush1.msra.mxu0 %v4844
    %4846 = vmatprep.subr.mxu0 0.0
    %v4847 = vand.u32 %v1472, 4294901760
    %v4848 = vsub.f32 %v1472, %v4847
    %v4849 = vand.u32 %v4848, 4294901760
    %v4850 = vsub.f32 %v4848, %v4849
    %v4851 = vand.u32 %v4850, 4294901760
    %4852 = vmatpush1.msra.mxu0 %v4851
    %4853 = vmatprep.subr.mxu0 0.0
    %v4854 = vand.u32 %v1473, 4294901760
    %v4855 = vsub.f32 %v1473, %v4854
    %v4856 = vand.u32 %v4855, 4294901760
    %v4857 = vsub.f32 %v4855, %v4856
    %v4858 = vand.u32 %v4857, 4294901760
    %4859 = vmatpush1.msra.mxu0 %v4858
    %4860 = vmatprep.subr.mxu0 0.0
    %v4861 = vand.u32 %v1474, 4294901760
    %v4862 = vsub.f32 %v1474, %v4861
    %v4863 = vand.u32 %v4862, 4294901760
    %v4864 = vsub.f32 %v4862, %v4863
    %v4865 = vand.u32 %v4864, 4294901760
    %4866 = vmatpush1.msra.mxu0 %v4865
    %4867 = vmatprep.subr.mxu0 0.0
    %v4868 = vand.u32 %v1475, 4294901760
    %v4869 = vsub.f32 %v1475, %v4868
    %v4870 = vand.u32 %v4869, 4294901760
    %v4871 = vsub.f32 %v4869, %v4870
    %v4872 = vand.u32 %v4871, 4294901760
    %4873 = vmatpush1.msra.mxu0 %v4872
    %4874 = vmatprep.subr.mxu0 0.0
    %v4875 = vand.u32 %v1476, 4294901760
    %v4876 = vsub.f32 %v1476, %v4875
    %v4877 = vand.u32 %v4876, 4294901760
    %v4878 = vsub.f32 %v4876, %v4877
    %v4879 = vand.u32 %v4878, 4294901760
    %4880 = vmatpush1.msra.mxu0 %v4879
    %4881 = vmatprep.subr.mxu0 0.0
    %v4882 = vand.u32 %v1477, 4294901760
    %v4883 = vsub.f32 %v1477, %v4882
    %v4884 = vand.u32 %v4883, 4294901760
    %v4885 = vsub.f32 %v4883, %v4884
    %v4886 = vand.u32 %v4885, 4294901760
    %4887 = vmatpush1.msra.mxu0 %v4886
    %4888 = vmatprep.subr.mxu0 0.0
    %v4889 = vand.u32 %v1478, 4294901760
    %v4890 = vsub.f32 %v1478, %v4889
    %v4891 = vand.u32 %v4890, 4294901760
    %v4892 = vsub.f32 %v4890, %v4891
    %v4893 = vand.u32 %v4892, 4294901760
    %4894 = vmatpush1.msra.mxu0 %v4893
    %4895 = vmatprep.subr.mxu0 0.0
    %v4896 = vand.u32 %v1479, 4294901760
    %v4897 = vsub.f32 %v1479, %v4896
    %v4898 = vand.u32 %v4897, 4294901760
    %v4899 = vsub.f32 %v4897, %v4898
    %v4900 = vand.u32 %v4899, 4294901760
    %4901 = vmatpush1.msra.mxu0 %v4900
    %4902 = vmatprep.subr.mxu0 0.0
    %v4903 = vand.u32 %v1480, 4294901760
    %v4904 = vsub.f32 %v1480, %v4903
    %v4905 = vand.u32 %v4904, 4294901760
    %v4906 = vsub.f32 %v4904, %v4905
    %v4907 = vand.u32 %v4906, 4294901760
    %4908 = vmatpush1.msra.mxu0 %v4907
    %4909 = vmatprep.subr.mxu0 0.0
    %v4910 = vand.u32 %v1481, 4294901760
    %v4911 = vsub.f32 %v1481, %v4910
    %v4912 = vand.u32 %v4911, 4294901760
    %v4913 = vsub.f32 %v4911, %v4912
    %v4914 = vand.u32 %v4913, 4294901760
    %4915 = vmatpush1.msra.mxu0 %v4914
    %4916 = vmatprep.subr.mxu0 0.0
    %v4917 = vand.u32 %v1482, 4294901760
    %v4918 = vsub.f32 %v1482, %v4917
    %v4919 = vand.u32 %v4918, 4294901760
    %v4920 = vsub.f32 %v4918, %v4919
    %v4921 = vand.u32 %v4920, 4294901760
    %4922 = vmatpush1.msra.mxu0 %v4921
    %4923 = vmatprep.subr.mxu0 0.0
    %v4924 = vand.u32 %v1483, 4294901760
    %v4925 = vsub.f32 %v1483, %v4924
    %v4926 = vand.u32 %v4925, 4294901760
    %v4927 = vsub.f32 %v4925, %v4926
    %v4928 = vand.u32 %v4927, 4294901760
    %4929 = vmatpush1.msra.mxu0 %v4928
    %4930 = vmatprep.subr.mxu0 0.0
    %v4931 = vand.u32 %v1484, 4294901760
    %v4932 = vsub.f32 %v1484, %v4931
    %v4933 = vand.u32 %v4932, 4294901760
    %v4934 = vsub.f32 %v4932, %v4933
    %v4935 = vand.u32 %v4934, 4294901760
    %4936 = vmatpush1.msra.mxu0 %v4935
    %4937 = vmatprep.subr.mxu0 0.0
    %v4938 = vand.u32 %v1485, 4294901760
    %v4939 = vsub.f32 %v1485, %v4938
    %v4940 = vand.u32 %v4939, 4294901760
    %v4941 = vsub.f32 %v4939, %v4940
    %v4942 = vand.u32 %v4941, 4294901760
    %4943 = vmatpush1.msra.mxu0 %v4942
    %4944 = vmatprep.subr.mxu0 0.0
    %v4945 = vand.u32 %v1486, 4294901760
    %v4946 = vsub.f32 %v1486, %v4945
    %v4947 = vand.u32 %v4946, 4294901760
    %v4948 = vsub.f32 %v4946, %v4947
    %v4949 = vand.u32 %v4948, 4294901760
    %4950 = vmatpush1.msra.mxu0 %v4949
    %4951 = vmatprep.subr.mxu0 0.0
    %v4952 = vand.u32 %v1487, 4294901760
    %v4953 = vsub.f32 %v1487, %v4952
    %v4954 = vand.u32 %v4953, 4294901760
    %v4955 = vsub.f32 %v4953, %v4954
    %v4956 = vand.u32 %v4955, 4294901760
    %4957 = vmatpush1.msra.mxu0 %v4956
    %4958 = vmatprep.subr.mxu0 0.0
    %v4959 = vand.u32 %v1488, 4294901760
    %v4960 = vsub.f32 %v1488, %v4959
    %v4961 = vand.u32 %v4960, 4294901760
    %v4962 = vsub.f32 %v4960, %v4961
    %v4963 = vand.u32 %v4962, 4294901760
    %4964 = vmatpush1.msra.mxu0 %v4963
    %v4965 = vand.u32 %v4573, 4294901760
    %4966 = vmatprep.mubr.f32.mxu0 %v4965
    %v4967 = vand.u32 %v4572, 4294901760
    %4968 = vmatmul.mubr.f32.gmra.mrb[0].mxu0 %v4967
    %v4969 = vpop.f32.mrb[0].mxu0
    %v4970 = vadd.f32 %v4693, %v4969
    %v4971 = vpop.f32.mrb[0].mxu0
    %v4972 = vand.u32 %v4576, 4294901760
    %4973 = vmatprep.mubr.f32.mxu0 %v4972
    %v4974 = vand.u32 %v4575, 4294901760
    %4975 = vmatmul.mubr.f32.gmra.mrb[0].mxu0 %v4974
    %v4976 = vpop.f32.mrb[0].mxu0
    %v4977 = vadd.f32 %v4708, %v4976
    %v4978 = vpop.f32.mrb[0].mxu0
    %v4979 = vand.u32 %v4579, 4294901760
    %4980 = vmatprep.mubr.f32.mxu0 %v4979
    %v4981 = vand.u32 %v4578, 4294901760
    %4982 = vmatmul.mubr.f32.gmra.mrb[0].mxu0 %v4981
    %v4983 = vpop.f32.mrb[0].mxu0
    %v4984 = vadd.f32 %v4723, %v4983
    %v4985 = vpop.f32.mrb[0].mxu0
    %v4986 = vand.u32 %v4582, 4294901760
    %4987 = vmatprep.mubr.f32.mxu0 %v4986
    %v4988 = vand.u32 %v4581, 4294901760
    %4989 = vmatmul.mubr.f32.gmra.mrb[0].mxu0 %v4988
    %v4990 = vpop.f32.mrb[0].mxu0
    %v4991 = vadd.f32 %v4738, %v4990
    %v4992 = vpop.f32.mrb[0].mxu0
    %4993 = vdwg.mxu0
    %4994 = vmatprep.subr.mxu0 0.0
    %v4995 = vand.u32 %v1457, 4294901760
    %v4996 = vsub.f32 %v1457, %v4995
    %4997 = vmatpush1.msra.mxu0 %v4996
    %4998 = vmatprep.subr.mxu0 0.0
    %v4999 = vand.u32 %v1458, 4294901760
    %v5000 = vsub.f32 %v1458, %v4999
    %5001 = vmatpush1.msra.mxu0 %v5000
    %5002 = vmatprep.subr.mxu0 0.0
    %v5003 = vand.u32 %v1459, 4294901760
    %v5004 = vsub.f32 %v1459, %v5003
    %5005 = vmatpush1.msra.mxu0 %v5004
    %5006 = vmatprep.subr.mxu0 0.0
    %v5007 = vand.u32 %v1460, 4294901760
    %v5008 = vsub.f32 %v1460, %v5007
    %5009 = vmatpush1.msra.mxu0 %v5008
    %5010 = vmatprep.subr.mxu0 0.0
    %v5011 = vand.u32 %v1461, 4294901760
    %v5012 = vsub.f32 %v1461, %v5011
    %5013 = vmatpush1.msra.mxu0 %v5012
    %5014 = vmatprep.subr.mxu0 0.0
    %v5015 = vand.u32 %v1462, 4294901760
    %v5016 = vsub.f32 %v1462, %v5015
    %5017 = vmatpush1.msra.mxu0 %v5016
    %5018 = vmatprep.subr.mxu0 0.0
    %v5019 = vand.u32 %v1463, 4294901760
    %v5020 = vsub.f32 %v1463, %v5019
    %5021 = vmatpush1.msra.mxu0 %v5020
    %5022 = vmatprep.subr.mxu0 0.0
    %v5023 = vand.u32 %v1464, 4294901760
    %v5024 = vsub.f32 %v1464, %v5023
    %5025 = vmatpush1.msra.mxu0 %v5024
    %5026 = vmatprep.subr.mxu0 0.0
    %v5027 = vand.u32 %v1465, 4294901760
    %v5028 = vsub.f32 %v1465, %v5027
    %5029 = vmatpush1.msra.mxu0 %v5028
    %5030 = vmatprep.subr.mxu0 0.0
    %v5031 = vand.u32 %v1466, 4294901760
    %v5032 = vsub.f32 %v1466, %v5031
    %5033 = vmatpush1.msra.mxu0 %v5032
    %5034 = vmatprep.subr.mxu0 0.0
    %v5035 = vand.u32 %v1467, 4294901760
    %v5036 = vsub.f32 %v1467, %v5035
    %5037 = vmatpush1.msra.mxu0 %v5036
    %5038 = vmatprep.subr.mxu0 0.0
    %v5039 = vand.u32 %v1468, 4294901760
    %v5040 = vsub.f32 %v1468, %v5039
    %5041 = vmatpush1.msra.mxu0 %v5040
    %5042 = vmatprep.subr.mxu0 0.0
    %v5043 = vand.u32 %v1469, 4294901760
    %v5044 = vsub.f32 %v1469, %v5043
    %5045 = vmatpush1.msra.mxu0 %v5044
    %5046 = vmatprep.subr.mxu0 0.0
    %v5047 = vand.u32 %v1470, 4294901760
    %v5048 = vsub.f32 %v1470, %v5047
    %5049 = vmatpush1.msra.mxu0 %v5048
    %5050 = vmatprep.subr.mxu0 0.0
    %v5051 = vand.u32 %v1471, 4294901760
    %v5052 = vsub.f32 %v1471, %v5051
    %5053 = vmatpush1.msra.mxu0 %v5052
    %5054 = vmatprep.subr.mxu0 0.0
    %v5055 = vand.u32 %v1472, 4294901760
    %v5056 = vsub.f32 %v1472, %v5055
    %5057 = vmatpush1.msra.mxu0 %v5056
    %5058 = vmatprep.subr.mxu0 0.0
    %v5059 = vand.u32 %v1473, 4294901760
    %v5060 = vsub.f32 %v1473, %v5059
    %5061 = vmatpush1.msra.mxu0 %v5060
    %5062 = vmatprep.subr.mxu0 0.0
    %v5063 = vand.u32 %v1474, 4294901760
    %v5064 = vsub.f32 %v1474, %v5063
    %5065 = vmatpush1.msra.mxu0 %v5064
    %5066 = vmatprep.subr.mxu0 0.0
    %v5067 = vand.u32 %v1475, 4294901760
    %v5068 = vsub.f32 %v1475, %v5067
    %5069 = vmatpush1.msra.mxu0 %v5068
    %5070 = vmatprep.subr.mxu0 0.0
    %v5071 = vand.u32 %v1476, 4294901760
    %v5072 = vsub.f32 %v1476, %v5071
    %5073 = vmatpush1.msra.mxu0 %v5072
    %5074 = vmatprep.subr.mxu0 0.0
    %v5075 = vand.u32 %v1477, 4294901760
    %v5076 = vsub.f32 %v1477, %v5075
    %5077 = vmatpush1.msra.mxu0 %v5076
    %5078 = vmatprep.subr.mxu0 0.0
    %v5079 = vand.u32 %v1478, 4294901760
    %v5080 = vsub.f32 %v1478, %v5079
    %5081 = vmatpush1.msra.mxu0 %v5080
    %5082 = vmatprep.subr.mxu0 0.0
    %v5083 = vand.u32 %v1479, 4294901760
    %v5084 = vsub.f32 %v1479, %v5083
    %5085 = vmatpush1.msra.mxu0 %v5084
    %5086 = vmatprep.subr.mxu0 0.0
    %v5087 = vand.u32 %v1480, 4294901760
    %v5088 = vsub.f32 %v1480, %v5087
    %5089 = vmatpush1.msra.mxu0 %v5088
    %5090 = vmatprep.subr.mxu0 0.0
    %v5091 = vand.u32 %v1481, 4294901760
    %v5092 = vsub.f32 %v1481, %v5091
    %5093 = vmatpush1.msra.mxu0 %v5092
    %5094 = vmatprep.subr.mxu0 0.0
    %v5095 = vand.u32 %v1482, 4294901760
    %v5096 = vsub.f32 %v1482, %v5095
    %5097 = vmatpush1.msra.mxu0 %v5096
    %5098 = vmatprep.subr.mxu0 0.0
    %v5099 = vand.u32 %v1483, 4294901760
    %v5100 = vsub.f32 %v1483, %v5099
    %5101 = vmatpush1.msra.mxu0 %v5100
    %5102 = vmatprep.subr.mxu0 0.0
    %v5103 = vand.u32 %v1484, 4294901760
    %v5104 = vsub.f32 %v1484, %v5103
    %5105 = vmatpush1.msra.mxu0 %v5104
    %5106 = vmatprep.subr.mxu0 0.0
    %v5107 = vand.u32 %v1485, 4294901760
    %v5108 = vsub.f32 %v1485, %v5107
    %5109 = vmatpush1.msra.mxu0 %v5108
    %5110 = vmatprep.subr.mxu0 0.0
    %v5111 = vand.u32 %v1486, 4294901760
    %v5112 = vsub.f32 %v1486, %v5111
    %5113 = vmatpush1.msra.mxu0 %v5112
    %5114 = vmatprep.subr.mxu0 0.0
    %v5115 = vand.u32 %v1487, 4294901760
    %v5116 = vsub.f32 %v1487, %v5115
    %5117 = vmatpush1.msra.mxu0 %v5116
    %5118 = vmatprep.subr.mxu0 0.0
    %v5119 = vand.u32 %v1488, 4294901760
    %v5120 = vsub.f32 %v1488, %v5119
    %5121 = vmatpush1.msra.mxu0 %v5120
    %v5122 = vand.u32 %v4573, 4294901760
    %v5123 = vsub.f32 %v4573, %v5122
    %5124 = vmatprep.mubr.f32.mxu0 %v5123
    %v5125 = vand.u32 %v4572, 4294901760
    %v5126 = vsub.f32 %v4572, %v5125
    %5127 = vmatmul.mubr.f32.gmra.mrb[0].mxu0 %v5126
    %v5128 = vpop.f32.mrb[0].mxu0
    %v5129 = vadd.f32 %v4970, %v5128
    %v5130 = vpop.f32.mrb[0].mxu0
    %v5131 = vand.u32 %v4576, 4294901760
    %v5132 = vsub.f32 %v4576, %v5131
    %5133 = vmatprep.mubr.f32.mxu0 %v5132
    %v5134 = vand.u32 %v4575, 4294901760
    %v5135 = vsub.f32 %v4575, %v5134
    %5136 = vmatmul.mubr.f32.gmra.mrb[0].mxu0 %v5135
    %v5137 = vpop.f32.mrb[0].mxu0
    %v5138 = vadd.f32 %v4977, %v5137
    %v5139 = vpop.f32.mrb[0].mxu0
    %v5140 = vand.u32 %v4579, 4294901760
    %v5141 = vsub.f32 %v4579, %v5140
    %5142 = vmatprep.mubr.f32.mxu0 %v5141
    %v5143 = vand.u32 %v4578, 4294901760
    %v5144 = vsub.f32 %v4578, %v5143
    %5145 = vmatmul.mubr.f32.gmra.mrb[0].mxu0 %v5144
    %v5146 = vpop.f32.mrb[0].mxu0
    %v5147 = vadd.f32 %v4984, %v5146
    %v5148 = vpop.f32.mrb[0].mxu0
    %v5149 = vand.u32 %v4582, 4294901760
    %v5150 = vsub.f32 %v4582, %v5149
    %5151 = vmatprep.mubr.f32.mxu0 %v5150
    %v5152 = vand.u32 %v4581, 4294901760
    %v5153 = vsub.f32 %v4581, %v5152
    %5154 = vmatmul.mubr.f32.gmra.mrb[0].mxu0 %v5153
    %v5155 = vpop.f32.mrb[0].mxu0
    %v5156 = vadd.f32 %v4991, %v5155
    %v5157 = vpop.f32.mrb[0].mxu0
    %5158 = vdwg.mxu0
    %5159 = vmatprep.subr.mxu0 0.0
    %v5160 = vand.u32 %v1457, 4294901760
    %5161 = vmatpush1.msra.mxu0 %v5160
    %5162 = vmatprep.subr.mxu0 0.0
    %v5163 = vand.u32 %v1458, 4294901760
    %5164 = vmatpush1.msra.mxu0 %v5163
    %5165 = vmatprep.subr.mxu0 0.0
    %v5166 = vand.u32 %v1459, 4294901760
    %5167 = vmatpush1.msra.mxu0 %v5166
    %5168 = vmatprep.subr.mxu0 0.0
    %v5169 = vand.u32 %v1460, 4294901760
    %5170 = vmatpush1.msra.mxu0 %v5169
    %5171 = vmatprep.subr.mxu0 0.0
    %v5172 = vand.u32 %v1461, 4294901760
    %5173 = vmatpush1.msra.mxu0 %v5172
    %5174 = vmatprep.subr.mxu0 0.0
    %v5175 = vand.u32 %v1462, 4294901760
    %5176 = vmatpush1.msra.mxu0 %v5175
    %5177 = vmatprep.subr.mxu0 0.0
    %v5178 = vand.u32 %v1463, 4294901760
    %5179 = vmatpush1.msra.mxu0 %v5178
    %5180 = vmatprep.subr.mxu0 0.0
    %v5181 = vand.u32 %v1464, 4294901760
    %5182 = vmatpush1.msra.mxu0 %v5181
    %5183 = vmatprep.subr.mxu0 0.0
    %v5184 = vand.u32 %v1465, 4294901760
    %5185 = vmatpush1.msra.mxu0 %v5184
    %5186 = vmatprep.subr.mxu0 0.0
    %v5187 = vand.u32 %v1466, 4294901760
    %5188 = vmatpush1.msra.mxu0 %v5187
    %5189 = vmatprep.subr.mxu0 0.0
    %v5190 = vand.u32 %v1467, 4294901760
    %5191 = vmatpush1.msra.mxu0 %v5190
    %5192 = vmatprep.subr.mxu0 0.0
    %v5193 = vand.u32 %v1468, 4294901760
    %5194 = vmatpush1.msra.mxu0 %v5193
    %5195 = vmatprep.subr.mxu0 0.0
    %v5196 = vand.u32 %v1469, 4294901760
    %5197 = vmatpush1.msra.mxu0 %v5196
    %5198 = vmatprep.subr.mxu0 0.0
    %v5199 = vand.u32 %v1470, 4294901760
    %5200 = vmatpush1.msra.mxu0 %v5199
    %5201 = vmatprep.subr.mxu0 0.0
    %v5202 = vand.u32 %v1471, 4294901760
    %5203 = vmatpush1.msra.mxu0 %v5202
    %5204 = vmatprep.subr.mxu0 0.0
    %v5205 = vand.u32 %v1472, 4294901760
    %5206 = vmatpush1.msra.mxu0 %v5205
    %5207 = vmatprep.subr.mxu0 0.0
    %v5208 = vand.u32 %v1473, 4294901760
    %5209 = vmatpush1.msra.mxu0 %v5208
    %5210 = vmatprep.subr.mxu0 0.0
    %v5211 = vand.u32 %v1474, 4294901760
    %5212 = vmatpush1.msra.mxu0 %v5211
    %5213 = vmatprep.subr.mxu0 0.0
    %v5214 = vand.u32 %v1475, 4294901760
    %5215 = vmatpush1.msra.mxu0 %v5214
    %5216 = vmatprep.subr.mxu0 0.0
    %v5217 = vand.u32 %v1476, 4294901760
    %5218 = vmatpush1.msra.mxu0 %v5217
    %5219 = vmatprep.subr.mxu0 0.0
    %v5220 = vand.u32 %v1477, 4294901760
    %5221 = vmatpush1.msra.mxu0 %v5220
    %5222 = vmatprep.subr.mxu0 0.0
    %v5223 = vand.u32 %v1478, 4294901760
    %5224 = vmatpush1.msra.mxu0 %v5223
    %5225 = vmatprep.subr.mxu0 0.0
    %v5226 = vand.u32 %v1479, 4294901760
    %5227 = vmatpush1.msra.mxu0 %v5226
    %5228 = vmatprep.subr.mxu0 0.0
    %v5229 = vand.u32 %v1480, 4294901760
    %5230 = vmatpush1.msra.mxu0 %v5229
    %5231 = vmatprep.subr.mxu0 0.0
    %v5232 = vand.u32 %v1481, 4294901760
    %5233 = vmatpush1.msra.mxu0 %v5232
    %5234 = vmatprep.subr.mxu0 0.0
    %v5235 = vand.u32 %v1482, 4294901760
    %5236 = vmatpush1.msra.mxu0 %v5235
    %5237 = vmatprep.subr.mxu0 0.0
    %v5238 = vand.u32 %v1483, 4294901760
    %5239 = vmatpush1.msra.mxu0 %v5238
    %5240 = vmatprep.subr.mxu0 0.0
    %v5241 = vand.u32 %v1484, 4294901760
    %5242 = vmatpush1.msra.mxu0 %v5241
    %5243 = vmatprep.subr.mxu0 0.0
    %v5244 = vand.u32 %v1485, 4294901760
    %5245 = vmatpush1.msra.mxu0 %v5244
    %5246 = vmatprep.subr.mxu0 0.0
    %v5247 = vand.u32 %v1486, 4294901760
    %5248 = vmatpush1.msra.mxu0 %v5247
    %5249 = vmatprep.subr.mxu0 0.0
    %v5250 = vand.u32 %v1487, 4294901760
    %5251 = vmatpush1.msra.mxu0 %v5250
    %5252 = vmatprep.subr.mxu0 0.0
    %v5253 = vand.u32 %v1488, 4294901760
    %5254 = vmatpush1.msra.mxu0 %v5253
    %v5255 = vand.u32 %v4573, 4294901760
    %v5256 = vsub.f32 %v4573, %v5255
    %v5257 = vand.u32 %v5256, 4294901760
    %5258 = vmatprep.mubr.f32.mxu0 %v5257
    %v5259 = vand.u32 %v4572, 4294901760
    %v5260 = vsub.f32 %v4572, %v5259
    %v5261 = vand.u32 %v5260, 4294901760
    %5262 = vmatmul.mubr.f32.gmra.mrb[0].mxu0 %v5261
    %v5263 = vpop.f32.mrb[0].mxu0
    %v5264 = vadd.f32 %v5129, %v5263
    %v5265 = vpop.f32.mrb[0].mxu0
    %v5266 = vand.u32 %v4576, 4294901760
    %v5267 = vsub.f32 %v4576, %v5266
    %v5268 = vand.u32 %v5267, 4294901760
    %5269 = vmatprep.mubr.f32.mxu0 %v5268
    %v5270 = vand.u32 %v4575, 4294901760
    %v5271 = vsub.f32 %v4575, %v5270
    %v5272 = vand.u32 %v5271, 4294901760
    %5273 = vmatmul.mubr.f32.gmra.mrb[0].mxu0 %v5272
    %v5274 = vpop.f32.mrb[0].mxu0
    %v5275 = vadd.f32 %v5138, %v5274
    %v5276 = vpop.f32.mrb[0].mxu0
    %v5277 = vand.u32 %v4579, 4294901760
    %v5278 = vsub.f32 %v4579, %v5277
    %v5279 = vand.u32 %v5278, 4294901760
    %5280 = vmatprep.mubr.f32.mxu0 %v5279
    %v5281 = vand.u32 %v4578, 4294901760
    %v5282 = vsub.f32 %v4578, %v5281
    %v5283 = vand.u32 %v5282, 4294901760
    %5284 = vmatmul.mubr.f32.gmra.mrb[0].mxu0 %v5283
    %v5285 = vpop.f32.mrb[0].mxu0
    %v5286 = vadd.f32 %v5147, %v5285
    %v5287 = vpop.f32.mrb[0].mxu0
    %v5288 = vand.u32 %v4582, 4294901760
    %v5289 = vsub.f32 %v4582, %v5288
    %v5290 = vand.u32 %v5289, 4294901760
    %5291 = vmatprep.mubr.f32.mxu0 %v5290
    %v5292 = vand.u32 %v4581, 4294901760
    %v5293 = vsub.f32 %v4581, %v5292
    %v5294 = vand.u32 %v5293, 4294901760
    %5295 = vmatmul.mubr.f32.gmra.mrb[0].mxu0 %v5294
    %v5296 = vpop.f32.mrb[0].mxu0
    %v5297 = vadd.f32 %v5156, %v5296
    %v5298 = vpop.f32.mrb[0].mxu0
    %5299 = vdwg.mxu0
    %5300 = vmatprep.subr.mxu0 0.0
    %v5301 = vand.u32 %v1457, 4294901760
    %v5302 = vsub.f32 %v1457, %v5301
    %v5303 = vand.u32 %v5302, 4294901760
    %5304 = vmatpush1.msra.mxu0 %v5303
    %5305 = vmatprep.subr.mxu0 0.0
    %v5306 = vand.u32 %v1458, 4294901760
    %v5307 = vsub.f32 %v1458, %v5306
    %v5308 = vand.u32 %v5307, 4294901760
    %5309 = vmatpush1.msra.mxu0 %v5308
    %5310 = vmatprep.subr.mxu0 0.0
    %v5311 = vand.u32 %v1459, 4294901760
    %v5312 = vsub.f32 %v1459, %v5311
    %v5313 = vand.u32 %v5312, 4294901760
    %5314 = vmatpush1.msra.mxu0 %v5313
    %5315 = vmatprep.subr.mxu0 0.0
    %v5316 = vand.u32 %v1460, 4294901760
    %v5317 = vsub.f32 %v1460, %v5316
    %v5318 = vand.u32 %v5317, 4294901760
    %5319 = vmatpush1.msra.mxu0 %v5318
    %5320 = vmatprep.subr.mxu0 0.0
    %v5321 = vand.u32 %v1461, 4294901760
    %v5322 = vsub.f32 %v1461, %v5321
    %v5323 = vand.u32 %v5322, 4294901760
    %5324 = vmatpush1.msra.mxu0 %v5323
    %5325 = vmatprep.subr.mxu0 0.0
    %v5326 = vand.u32 %v1462, 4294901760
    %v5327 = vsub.f32 %v1462, %v5326
    %v5328 = vand.u32 %v5327, 4294901760
    %5329 = vmatpush1.msra.mxu0 %v5328
    %5330 = vmatprep.subr.mxu0 0.0
    %v5331 = vand.u32 %v1463, 4294901760
    %v5332 = vsub.f32 %v1463, %v5331
    %v5333 = vand.u32 %v5332, 4294901760
    %5334 = vmatpush1.msra.mxu0 %v5333
    %5335 = vmatprep.subr.mxu0 0.0
    %v5336 = vand.u32 %v1464, 4294901760
    %v5337 = vsub.f32 %v1464, %v5336
    %v5338 = vand.u32 %v5337, 4294901760
    %5339 = vmatpush1.msra.mxu0 %v5338
    %5340 = vmatprep.subr.mxu0 0.0
    %v5341 = vand.u32 %v1465, 4294901760
    %v5342 = vsub.f32 %v1465, %v5341
    %v5343 = vand.u32 %v5342, 4294901760
    %5344 = vmatpush1.msra.mxu0 %v5343
    %5345 = vmatprep.subr.mxu0 0.0
    %v5346 = vand.u32 %v1466, 4294901760
    %v5347 = vsub.f32 %v1466, %v5346
    %v5348 = vand.u32 %v5347, 4294901760
    %5349 = vmatpush1.msra.mxu0 %v5348
    %5350 = vmatprep.subr.mxu0 0.0
    %v5351 = vand.u32 %v1467, 4294901760
    %v5352 = vsub.f32 %v1467, %v5351
    %v5353 = vand.u32 %v5352, 4294901760
    %5354 = vmatpush1.msra.mxu0 %v5353
    %5355 = vmatprep.subr.mxu0 0.0
    %v5356 = vand.u32 %v1468, 4294901760
    %v5357 = vsub.f32 %v1468, %v5356
    %v5358 = vand.u32 %v5357, 4294901760
    %5359 = vmatpush1.msra.mxu0 %v5358
    %5360 = vmatprep.subr.mxu0 0.0
    %v5361 = vand.u32 %v1469, 4294901760
    %v5362 = vsub.f32 %v1469, %v5361
    %v5363 = vand.u32 %v5362, 4294901760
    %5364 = vmatpush1.msra.mxu0 %v5363
    %5365 = vmatprep.subr.mxu0 0.0
    %v5366 = vand.u32 %v1470, 4294901760
    %v5367 = vsub.f32 %v1470, %v5366
    %v5368 = vand.u32 %v5367, 4294901760
    %5369 = vmatpush1.msra.mxu0 %v5368
    %5370 = vmatprep.subr.mxu0 0.0
    %v5371 = vand.u32 %v1471, 4294901760
    %v5372 = vsub.f32 %v1471, %v5371
    %v5373 = vand.u32 %v5372, 4294901760
    %5374 = vmatpush1.msra.mxu0 %v5373
    %5375 = vmatprep.subr.mxu0 0.0
    %v5376 = vand.u32 %v1472, 4294901760
    %v5377 = vsub.f32 %v1472, %v5376
    %v5378 = vand.u32 %v5377, 4294901760
    %5379 = vmatpush1.msra.mxu0 %v5378
    %5380 = vmatprep.subr.mxu0 0.0
    %v5381 = vand.u32 %v1473, 4294901760
    %v5382 = vsub.f32 %v1473, %v5381
    %v5383 = vand.u32 %v5382, 4294901760
    %5384 = vmatpush1.msra.mxu0 %v5383
    %5385 = vmatprep.subr.mxu0 0.0
    %v5386 = vand.u32 %v1474, 4294901760
    %v5387 = vsub.f32 %v1474, %v5386
    %v5388 = vand.u32 %v5387, 4294901760
    %5389 = vmatpush1.msra.mxu0 %v5388
    %5390 = vmatprep.subr.mxu0 0.0
    %v5391 = vand.u32 %v1475, 4294901760
    %v5392 = vsub.f32 %v1475, %v5391
    %v5393 = vand.u32 %v5392, 4294901760
    %5394 = vmatpush1.msra.mxu0 %v5393
    %5395 = vmatprep.subr.mxu0 0.0
    %v5396 = vand.u32 %v1476, 4294901760
    %v5397 = vsub.f32 %v1476, %v5396
    %v5398 = vand.u32 %v5397, 4294901760
    %5399 = vmatpush1.msra.mxu0 %v5398
    %5400 = vmatprep.subr.mxu0 0.0
    %v5401 = vand.u32 %v1477, 4294901760
    %v5402 = vsub.f32 %v1477, %v5401
    %v5403 = vand.u32 %v5402, 4294901760
    %5404 = vmatpush1.msra.mxu0 %v5403
    %5405 = vmatprep.subr.mxu0 0.0
    %v5406 = vand.u32 %v1478, 4294901760
    %v5407 = vsub.f32 %v1478, %v5406
    %v5408 = vand.u32 %v5407, 4294901760
    %5409 = vmatpush1.msra.mxu0 %v5408
    %5410 = vmatprep.subr.mxu0 0.0
    %v5411 = vand.u32 %v1479, 4294901760
    %v5412 = vsub.f32 %v1479, %v5411
    %v5413 = vand.u32 %v5412, 4294901760
    %5414 = vmatpush1.msra.mxu0 %v5413
    %5415 = vmatprep.subr.mxu0 0.0
    %v5416 = vand.u32 %v1480, 4294901760
    %v5417 = vsub.f32 %v1480, %v5416
    %v5418 = vand.u32 %v5417, 4294901760
    %5419 = vmatpush1.msra.mxu0 %v5418
    %5420 = vmatprep.subr.mxu0 0.0
    %v5421 = vand.u32 %v1481, 4294901760
    %v5422 = vsub.f32 %v1481, %v5421
    %v5423 = vand.u32 %v5422, 4294901760
    %5424 = vmatpush1.msra.mxu0 %v5423
    %5425 = vmatprep.subr.mxu0 0.0
    %v5426 = vand.u32 %v1482, 4294901760
    %v5427 = vsub.f32 %v1482, %v5426
    %v5428 = vand.u32 %v5427, 4294901760
    %5429 = vmatpush1.msra.mxu0 %v5428
    %5430 = vmatprep.subr.mxu0 0.0
    %v5431 = vand.u32 %v1483, 4294901760
    %v5432 = vsub.f32 %v1483, %v5431
    %v5433 = vand.u32 %v5432, 4294901760
    %5434 = vmatpush1.msra.mxu0 %v5433
    %5435 = vmatprep.subr.mxu0 0.0
    %v5436 = vand.u32 %v1484, 4294901760
    %v5437 = vsub.f32 %v1484, %v5436
    %v5438 = vand.u32 %v5437, 4294901760
    %5439 = vmatpush1.msra.mxu0 %v5438
    %5440 = vmatprep.subr.mxu0 0.0
    %v5441 = vand.u32 %v1485, 4294901760
    %v5442 = vsub.f32 %v1485, %v5441
    %v5443 = vand.u32 %v5442, 4294901760
    %5444 = vmatpush1.msra.mxu0 %v5443
    %5445 = vmatprep.subr.mxu0 0.0
    %v5446 = vand.u32 %v1486, 4294901760
    %v5447 = vsub.f32 %v1486, %v5446
    %v5448 = vand.u32 %v5447, 4294901760
    %5449 = vmatpush1.msra.mxu0 %v5448
    %5450 = vmatprep.subr.mxu0 0.0
    %v5451 = vand.u32 %v1487, 4294901760
    %v5452 = vsub.f32 %v1487, %v5451
    %v5453 = vand.u32 %v5452, 4294901760
    %5454 = vmatpush1.msra.mxu0 %v5453
    %5455 = vmatprep.subr.mxu0 0.0
    %v5456 = vand.u32 %v1488, 4294901760
    %v5457 = vsub.f32 %v1488, %v5456
    %v5458 = vand.u32 %v5457, 4294901760
    %5459 = vmatpush1.msra.mxu0 %v5458
    %v5460 = vand.u32 %v4573, 4294901760
    %5461 = vmatprep.mubr.f32.mxu0 %v5460
    %v5462 = vand.u32 %v4572, 4294901760
    %5463 = vmatmul.mubr.f32.gmra.mrb[0].mxu0 %v5462
    %v5464 = vpop.f32.mrb[0].mxu0
    %v5465 = vadd.f32 %v5264, %v5464
    %v5466 = vpop.f32.mrb[0].mxu0
    %v5467 = vand.u32 %v4576, 4294901760
    %5468 = vmatprep.mubr.f32.mxu0 %v5467
    %v5469 = vand.u32 %v4575, 4294901760
    %5470 = vmatmul.mubr.f32.gmra.mrb[0].mxu0 %v5469
    %v5471 = vpop.f32.mrb[0].mxu0
    %v5472 = vadd.f32 %v5275, %v5471
    %v5473 = vpop.f32.mrb[0].mxu0
    %v5474 = vand.u32 %v4579, 4294901760
    %5475 = vmatprep.mubr.f32.mxu0 %v5474
    %v5476 = vand.u32 %v4578, 4294901760
    %5477 = vmatmul.mubr.f32.gmra.mrb[0].mxu0 %v5476
    %v5478 = vpop.f32.mrb[0].mxu0
    %v5479 = vadd.f32 %v5286, %v5478
    %v5480 = vpop.f32.mrb[0].mxu0
    %v5481 = vand.u32 %v4582, 4294901760
    %5482 = vmatprep.mubr.f32.mxu0 %v5481
    %v5483 = vand.u32 %v4581, 4294901760
    %5484 = vmatmul.mubr.f32.gmra.mrb[0].mxu0 %v5483
    %v5485 = vpop.f32.mrb[0].mxu0
    %v5486 = vadd.f32 %v5297, %v5485
    %v5487 = vpop.f32.mrb[0].mxu0
    %5488 = vdwg.mxu0
    %5489 = vmatprep.subr.mxu0 0.0
    %v5490 = vand.u32 %v1457, 4294901760
    %5491 = vmatpush1.msra.mxu0 %v5490
    %5492 = vmatprep.subr.mxu0 0.0
    %v5493 = vand.u32 %v1458, 4294901760
    %5494 = vmatpush1.msra.mxu0 %v5493
    %5495 = vmatprep.subr.mxu0 0.0
    %v5496 = vand.u32 %v1459, 4294901760
    %5497 = vmatpush1.msra.mxu0 %v5496
    %5498 = vmatprep.subr.mxu0 0.0
    %v5499 = vand.u32 %v1460, 4294901760
    %5500 = vmatpush1.msra.mxu0 %v5499
    %5501 = vmatprep.subr.mxu0 0.0
    %v5502 = vand.u32 %v1461, 4294901760
    %5503 = vmatpush1.msra.mxu0 %v5502
    %5504 = vmatprep.subr.mxu0 0.0
    %v5505 = vand.u32 %v1462, 4294901760
    %5506 = vmatpush1.msra.mxu0 %v5505
    %5507 = vmatprep.subr.mxu0 0.0
    %v5508 = vand.u32 %v1463, 4294901760
    %5509 = vmatpush1.msra.mxu0 %v5508
    %5510 = vmatprep.subr.mxu0 0.0
    %v5511 = vand.u32 %v1464, 4294901760
    %5512 = vmatpush1.msra.mxu0 %v5511
    %5513 = vmatprep.subr.mxu0 0.0
    %v5514 = vand.u32 %v1465, 4294901760
    %5515 = vmatpush1.msra.mxu0 %v5514
    %5516 = vmatprep.subr.mxu0 0.0
    %v5517 = vand.u32 %v1466, 4294901760
    %5518 = vmatpush1.msra.mxu0 %v5517
    %5519 = vmatprep.subr.mxu0 0.0
    %v5520 = vand.u32 %v1467, 4294901760
    %5521 = vmatpush1.msra.mxu0 %v5520
    %5522 = vmatprep.subr.mxu0 0.0
    %v5523 = vand.u32 %v1468, 4294901760
    %5524 = vmatpush1.msra.mxu0 %v5523
    %5525 = vmatprep.subr.mxu0 0.0
    %v5526 = vand.u32 %v1469, 4294901760
    %5527 = vmatpush1.msra.mxu0 %v5526
    %5528 = vmatprep.subr.mxu0 0.0
    %v5529 = vand.u32 %v1470, 4294901760
    %5530 = vmatpush1.msra.mxu0 %v5529
    %5531 = vmatprep.subr.mxu0 0.0
    %v5532 = vand.u32 %v1471, 4294901760
    %5533 = vmatpush1.msra.mxu0 %v5532
    %5534 = vmatprep.subr.mxu0 0.0
    %v5535 = vand.u32 %v1472, 4294901760
    %5536 = vmatpush1.msra.mxu0 %v5535
    %5537 = vmatprep.subr.mxu0 0.0
    %v5538 = vand.u32 %v1473, 4294901760
    %5539 = vmatpush1.msra.mxu0 %v5538
    %5540 = vmatprep.subr.mxu0 0.0
    %v5541 = vand.u32 %v1474, 4294901760
    %5542 = vmatpush1.msra.mxu0 %v5541
    %5543 = vmatprep.subr.mxu0 0.0
    %v5544 = vand.u32 %v1475, 4294901760
    %5545 = vmatpush1.msra.mxu0 %v5544
    %5546 = vmatprep.subr.mxu0 0.0
    %v5547 = vand.u32 %v1476, 4294901760
    %5548 = vmatpush1.msra.mxu0 %v5547
    %5549 = vmatprep.subr.mxu0 0.0
    %v5550 = vand.u32 %v1477, 4294901760
    %5551 = vmatpush1.msra.mxu0 %v5550
    %5552 = vmatprep.subr.mxu0 0.0
    %v5553 = vand.u32 %v1478, 4294901760
    %5554 = vmatpush1.msra.mxu0 %v5553
    %5555 = vmatprep.subr.mxu0 0.0
    %v5556 = vand.u32 %v1479, 4294901760
    %5557 = vmatpush1.msra.mxu0 %v5556
    %5558 = vmatprep.subr.mxu0 0.0
    %v5559 = vand.u32 %v1480, 4294901760
    %5560 = vmatpush1.msra.mxu0 %v5559
    %5561 = vmatprep.subr.mxu0 0.0
    %v5562 = vand.u32 %v1481, 4294901760
    %5563 = vmatpush1.msra.mxu0 %v5562
    %5564 = vmatprep.subr.mxu0 0.0
    %v5565 = vand.u32 %v1482, 4294901760
    %5566 = vmatpush1.msra.mxu0 %v5565
    %5567 = vmatprep.subr.mxu0 0.0
    %v5568 = vand.u32 %v1483, 4294901760
    %5569 = vmatpush1.msra.mxu0 %v5568
    %5570 = vmatprep.subr.mxu0 0.0
    %v5571 = vand.u32 %v1484, 4294901760
    %5572 = vmatpush1.msra.mxu0 %v5571
    %5573 = vmatprep.subr.mxu0 0.0
    %v5574 = vand.u32 %v1485, 4294901760
    %5575 = vmatpush1.msra.mxu0 %v5574
    %5576 = vmatprep.subr.mxu0 0.0
    %v5577 = vand.u32 %v1486, 4294901760
    %5578 = vmatpush1.msra.mxu0 %v5577
    %5579 = vmatprep.subr.mxu0 0.0
    %v5580 = vand.u32 %v1487, 4294901760
    %5581 = vmatpush1.msra.mxu0 %v5580
    %5582 = vmatprep.subr.mxu0 0.0
    %v5583 = vand.u32 %v1488, 4294901760
    %5584 = vmatpush1.msra.mxu0 %v5583
    %v5585 = vand.u32 %v4573, 4294901760
    %5586 = vmatprep.mubr.f32.mxu0 %v5585
    %v5587 = vand.u32 %v4572, 4294901760
    %5588 = vmatmul.mubr.f32.gmra.mrb[0].mxu0 %v5587
    %v5589 = vpop.f32.mrb[0].mxu0
    %v5590 = vadd.f32 %v5465, %v5589
    %v5591 = vpop.f32.mrb[0].mxu0
    %v5592 = vand.u32 %v4576, 4294901760
    %5593 = vmatprep.mubr.f32.mxu0 %v5592
    %v5594 = vand.u32 %v4575, 4294901760
    %5595 = vmatmul.mubr.f32.gmra.mrb[0].mxu0 %v5594
    %v5596 = vpop.f32.mrb[0].mxu0
    %v5597 = vadd.f32 %v5472, %v5596
    %v5598 = vpop.f32.mrb[0].mxu0
    %v5599 = vand.u32 %v4579, 4294901760
    %5600 = vmatprep.mubr.f32.mxu0 %v5599
    %v5601 = vand.u32 %v4578, 4294901760
    %5602 = vmatmul.mubr.f32.gmra.mrb[0].mxu0 %v5601
    %v5603 = vpop.f32.mrb[0].mxu0
    %v5604 = vadd.f32 %v5479, %v5603
    %v5605 = vpop.f32.mrb[0].mxu0
    %v5606 = vand.u32 %v4582, 4294901760
    %5607 = vmatprep.mubr.f32.mxu0 %v5606
    %v5608 = vand.u32 %v4581, 4294901760
    %5609 = vmatmul.mubr.f32.gmra.mrb[0].mxu0 %v5608
    %v5610 = vpop.f32.mrb[0].mxu0
    %v5611 = vadd.f32 %v5486, %v5610
    %v5612 = vpop.f32.mrb[0].mxu0
    %5613 = vdwg.mxu0
    %5614 = vmatprep.subr.mxu0 0.0
    %v5615 = vand.u32 %v1489, 4294901760
    %5616 = vmatpush1.msra.mxu0 %v5615
    %5617 = vmatprep.subr.mxu0 0.0
    %v5618 = vand.u32 %v1490, 4294901760
    %5619 = vmatpush1.msra.mxu0 %v5618
    %5620 = vmatprep.subr.mxu0 0.0
    %v5621 = vand.u32 %v1491, 4294901760
    %5622 = vmatpush1.msra.mxu0 %v5621
    %5623 = vmatprep.subr.mxu0 0.0
    %v5624 = vand.u32 %v1492, 4294901760
    %5625 = vmatpush1.msra.mxu0 %v5624
    %5626 = vmatprep.subr.mxu0 0.0
    %v5627 = vand.u32 %v1493, 4294901760
    %5628 = vmatpush1.msra.mxu0 %v5627
    %5629 = vmatprep.subr.mxu0 0.0
    %v5630 = vand.u32 %v1494, 4294901760
    %5631 = vmatpush1.msra.mxu0 %v5630
    %5632 = vmatprep.subr.mxu0 0.0
    %v5633 = vand.u32 %v1495, 4294901760
    %5634 = vmatpush1.msra.mxu0 %v5633
    %5635 = vmatprep.subr.mxu0 0.0
    %v5636 = vand.u32 %v1496, 4294901760
    %5637 = vmatpush1.msra.mxu0 %v5636
    %5638 = vmatprep.subr.mxu0 0.0
    %v5639 = vand.u32 %v1497, 4294901760
    %5640 = vmatpush1.msra.mxu0 %v5639
    %5641 = vmatprep.subr.mxu0 0.0
    %v5642 = vand.u32 %v1498, 4294901760
    %5643 = vmatpush1.msra.mxu0 %v5642
    %5644 = vmatprep.subr.mxu0 0.0
    %v5645 = vand.u32 %v1499, 4294901760
    %5646 = vmatpush1.msra.mxu0 %v5645
    %5647 = vmatprep.subr.mxu0 0.0
    %v5648 = vand.u32 %v1500, 4294901760
    %5649 = vmatpush1.msra.mxu0 %v5648
    %5650 = vmatprep.subr.mxu0 0.0
    %v5651 = vand.u32 %v1501, 4294901760
    %5652 = vmatpush1.msra.mxu0 %v5651
    %5653 = vmatprep.subr.mxu0 0.0
    %v5654 = vand.u32 %v1502, 4294901760
    %5655 = vmatpush1.msra.mxu0 %v5654
    %5656 = vmatprep.subr.mxu0 0.0
    %v5657 = vand.u32 %v1503, 4294901760
    %5658 = vmatpush1.msra.mxu0 %v5657
    %5659 = vmatprep.subr.mxu0 0.0
    %v5660 = vand.u32 %v1504, 4294901760
    %5661 = vmatpush1.msra.mxu0 %v5660
    %5662 = vmatprep.subr.mxu0 0.0
    %5663 = vmatpush1.msra.mxu0 0.0
    %5664 = vmatprep.subr.mxu0 0.0
    %5665 = vmatpush1.msra.mxu0 0.0
    %5666 = vmatprep.subr.mxu0 0.0
    %5667 = vmatpush1.msra.mxu0 0.0
    %5668 = vmatprep.subr.mxu0 0.0
    %5669 = vmatpush1.msra.mxu0 0.0
    %5670 = vmatprep.subr.mxu0 0.0
    %5671 = vmatpush1.msra.mxu0 0.0
    %5672 = vmatprep.subr.mxu0 0.0
    %5673 = vmatpush1.msra.mxu0 0.0
    %5674 = vmatprep.subr.mxu0 0.0
    %5675 = vmatpush1.msra.mxu0 0.0
    %5676 = vmatprep.subr.mxu0 0.0
    %5677 = vmatpush1.msra.mxu0 0.0
    %5678 = vmatprep.subr.mxu0 0.0
    %5679 = vmatpush1.msra.mxu0 0.0
    %5680 = vmatprep.subr.mxu0 0.0
    %5681 = vmatpush1.msra.mxu0 0.0
    %5682 = vmatprep.subr.mxu0 0.0
    %5683 = vmatpush1.msra.mxu0 0.0
    %5684 = vmatprep.subr.mxu0 0.0
    %5685 = vmatpush1.msra.mxu0 0.0
    %5686 = vmatprep.subr.mxu0 0.0
    %5687 = vmatpush1.msra.mxu0 0.0
    %5688 = vmatprep.subr.mxu0 0.0
    %5689 = vmatpush1.msra.mxu0 0.0
    %5690 = vmatprep.subr.mxu0 0.0
    %5691 = vmatpush1.msra.mxu0 0.0
    %5692 = vmatprep.subr.mxu0 0.0
    %5693 = vmatpush1.msra.mxu0 0.0
    %5694 = vmatprep.mubr.f32.mxu0 0.0
    %v5695 = vand.u32 %v4574, 4294901760
    %v5696 = vsub.f32 %v4574, %v5695
    %v5697 = vand.u32 %v5696, 4294901760
    %v5698 = vsub.f32 %v5696, %v5697
    %v5699 = vand.u32 %v5698, 4294901760
    %5700 = vmatmul.mubr.f32.gmra.mrb[0].mxu0 %v5699
    %v5701 = vpop.f32.mrb[0].mxu0
    %v5702 = vadd.f32 %v5590, %v5701
    %v5703 = vpop.f32.mrb[0].mxu0
    %5704 = vmatprep.mubr.f32.mxu0 0.0
    %v5705 = vand.u32 %v4577, 4294901760
    %v5706 = vsub.f32 %v4577, %v5705
    %v5707 = vand.u32 %v5706, 4294901760
    %v5708 = vsub.f32 %v5706, %v5707
    %v5709 = vand.u32 %v5708, 4294901760
    %5710 = vmatmul.mubr.f32.gmra.mrb[0].mxu0 %v5709
    %v5711 = vpop.f32.mrb[0].mxu0
    %v5712 = vadd.f32 %v5597, %v5711
    %v5713 = vpop.f32.mrb[0].mxu0
    %5714 = vmatprep.mubr.f32.mxu0 0.0
    %v5715 = vand.u32 %v4580, 4294901760
    %v5716 = vsub.f32 %v4580, %v5715
    %v5717 = vand.u32 %v5716, 4294901760
    %v5718 = vsub.f32 %v5716, %v5717
    %v5719 = vand.u32 %v5718, 4294901760
    %5720 = vmatmul.mubr.f32.gmra.mrb[0].mxu0 %v5719
    %v5721 = vpop.f32.mrb[0].mxu0
    %v5722 = vadd.f32 %v5604, %v5721
    %v5723 = vpop.f32.mrb[0].mxu0
    %5724 = vmatprep.mubr.f32.mxu0 0.0
    %v5725 = vand.u32 %v4583, 4294901760
    %v5726 = vsub.f32 %v4583, %v5725
    %v5727 = vand.u32 %v5726, 4294901760
    %v5728 = vsub.f32 %v5726, %v5727
    %v5729 = vand.u32 %v5728, 4294901760
    %5730 = vmatmul.mubr.f32.gmra.mrb[0].mxu0 %v5729
    %v5731 = vpop.f32.mrb[0].mxu0
    %v5732 = vadd.f32 %v5611, %v5731
    %v5733 = vpop.f32.mrb[0].mxu0
    %5734 = vdwg.mxu0
    %5735 = vmatprep.subr.mxu0 0.0
    %v5736 = vand.u32 %v1489, 4294901760
    %v5737 = vsub.f32 %v1489, %v5736
    %v5738 = vand.u32 %v5737, 4294901760
    %v5739 = vsub.f32 %v5737, %v5738
    %v5740 = vand.u32 %v5739, 4294901760
    %5741 = vmatpush1.msra.mxu0 %v5740
    %5742 = vmatprep.subr.mxu0 0.0
    %v5743 = vand.u32 %v1490, 4294901760
    %v5744 = vsub.f32 %v1490, %v5743
    %v5745 = vand.u32 %v5744, 4294901760
    %v5746 = vsub.f32 %v5744, %v5745
    %v5747 = vand.u32 %v5746, 4294901760
    %5748 = vmatpush1.msra.mxu0 %v5747
    %5749 = vmatprep.subr.mxu0 0.0
    %v5750 = vand.u32 %v1491, 4294901760
    %v5751 = vsub.f32 %v1491, %v5750
    %v5752 = vand.u32 %v5751, 4294901760
    %v5753 = vsub.f32 %v5751, %v5752
    %v5754 = vand.u32 %v5753, 4294901760
    %5755 = vmatpush1.msra.mxu0 %v5754
    %5756 = vmatprep.subr.mxu0 0.0
    %v5757 = vand.u32 %v1492, 4294901760
    %v5758 = vsub.f32 %v1492, %v5757
    %v5759 = vand.u32 %v5758, 4294901760
    %v5760 = vsub.f32 %v5758, %v5759
    %v5761 = vand.u32 %v5760, 4294901760
    %5762 = vmatpush1.msra.mxu0 %v5761
    %5763 = vmatprep.subr.mxu0 0.0
    %v5764 = vand.u32 %v1493, 4294901760
    %v5765 = vsub.f32 %v1493, %v5764
    %v5766 = vand.u32 %v5765, 4294901760
    %v5767 = vsub.f32 %v5765, %v5766
    %v5768 = vand.u32 %v5767, 4294901760
    %5769 = vmatpush1.msra.mxu0 %v5768
    %5770 = vmatprep.subr.mxu0 0.0
    %v5771 = vand.u32 %v1494, 4294901760
    %v5772 = vsub.f32 %v1494, %v5771
    %v5773 = vand.u32 %v5772, 4294901760
    %v5774 = vsub.f32 %v5772, %v5773
    %v5775 = vand.u32 %v5774, 4294901760
    %5776 = vmatpush1.msra.mxu0 %v5775
    %5777 = vmatprep.subr.mxu0 0.0
    %v5778 = vand.u32 %v1495, 4294901760
    %v5779 = vsub.f32 %v1495, %v5778
    %v5780 = vand.u32 %v5779, 4294901760
    %v5781 = vsub.f32 %v5779, %v5780
    %v5782 = vand.u32 %v5781, 4294901760
    %5783 = vmatpush1.msra.mxu0 %v5782
    %5784 = vmatprep.subr.mxu0 0.0
    %v5785 = vand.u32 %v1496, 4294901760
    %v5786 = vsub.f32 %v1496, %v5785
    %v5787 = vand.u32 %v5786, 4294901760
    %v5788 = vsub.f32 %v5786, %v5787
    %v5789 = vand.u32 %v5788, 4294901760
    %5790 = vmatpush1.msra.mxu0 %v5789
    %5791 = vmatprep.subr.mxu0 0.0
    %v5792 = vand.u32 %v1497, 4294901760
    %v5793 = vsub.f32 %v1497, %v5792
    %v5794 = vand.u32 %v5793, 4294901760
    %v5795 = vsub.f32 %v5793, %v5794
    %v5796 = vand.u32 %v5795, 4294901760
    %5797 = vmatpush1.msra.mxu0 %v5796
    %5798 = vmatprep.subr.mxu0 0.0
    %v5799 = vand.u32 %v1498, 4294901760
    %v5800 = vsub.f32 %v1498, %v5799
    %v5801 = vand.u32 %v5800, 4294901760
    %v5802 = vsub.f32 %v5800, %v5801
    %v5803 = vand.u32 %v5802, 4294901760
    %5804 = vmatpush1.msra.mxu0 %v5803
    %5805 = vmatprep.subr.mxu0 0.0
    %v5806 = vand.u32 %v1499, 4294901760
    %v5807 = vsub.f32 %v1499, %v5806
    %v5808 = vand.u32 %v5807, 4294901760
    %v5809 = vsub.f32 %v5807, %v5808
    %v5810 = vand.u32 %v5809, 4294901760
    %5811 = vmatpush1.msra.mxu0 %v5810
    %5812 = vmatprep.subr.mxu0 0.0
    %v5813 = vand.u32 %v1500, 4294901760
    %v5814 = vsub.f32 %v1500, %v5813
    %v5815 = vand.u32 %v5814, 4294901760
    %v5816 = vsub.f32 %v5814, %v5815
    %v5817 = vand.u32 %v5816, 4294901760
    %5818 = vmatpush1.msra.mxu0 %v5817
    %5819 = vmatprep.subr.mxu0 0.0
    %v5820 = vand.u32 %v1501, 4294901760
    %v5821 = vsub.f32 %v1501, %v5820
    %v5822 = vand.u32 %v5821, 4294901760
    %v5823 = vsub.f32 %v5821, %v5822
    %v5824 = vand.u32 %v5823, 4294901760
    %5825 = vmatpush1.msra.mxu0 %v5824
    %5826 = vmatprep.subr.mxu0 0.0
    %v5827 = vand.u32 %v1502, 4294901760
    %v5828 = vsub.f32 %v1502, %v5827
    %v5829 = vand.u32 %v5828, 4294901760
    %v5830 = vsub.f32 %v5828, %v5829
    %v5831 = vand.u32 %v5830, 4294901760
    %5832 = vmatpush1.msra.mxu0 %v5831
    %5833 = vmatprep.subr.mxu0 0.0
    %v5834 = vand.u32 %v1503, 4294901760
    %v5835 = vsub.f32 %v1503, %v5834
    %v5836 = vand.u32 %v5835, 4294901760
    %v5837 = vsub.f32 %v5835, %v5836
    %v5838 = vand.u32 %v5837, 4294901760
    %5839 = vmatpush1.msra.mxu0 %v5838
    %5840 = vmatprep.subr.mxu0 0.0
    %v5841 = vand.u32 %v1504, 4294901760
    %v5842 = vsub.f32 %v1504, %v5841
    %v5843 = vand.u32 %v5842, 4294901760
    %v5844 = vsub.f32 %v5842, %v5843
    %v5845 = vand.u32 %v5844, 4294901760
    %5846 = vmatpush1.msra.mxu0 %v5845
    %5847 = vmatprep.subr.mxu0 0.0
    %5848 = vmatpush1.msra.mxu0 0.0
    %5849 = vmatprep.subr.mxu0 0.0
    %5850 = vmatpush1.msra.mxu0 0.0
    %5851 = vmatprep.subr.mxu0 0.0
    %5852 = vmatpush1.msra.mxu0 0.0
    %5853 = vmatprep.subr.mxu0 0.0
    %5854 = vmatpush1.msra.mxu0 0.0
    %5855 = vmatprep.subr.mxu0 0.0
    %5856 = vmatpush1.msra.mxu0 0.0
    %5857 = vmatprep.subr.mxu0 0.0
    %5858 = vmatpush1.msra.mxu0 0.0
    %5859 = vmatprep.subr.mxu0 0.0
    %5860 = vmatpush1.msra.mxu0 0.0
    %5861 = vmatprep.subr.mxu0 0.0
    %5862 = vmatpush1.msra.mxu0 0.0
    %5863 = vmatprep.subr.mxu0 0.0
    %5864 = vmatpush1.msra.mxu0 0.0
    %5865 = vmatprep.subr.mxu0 0.0
    %5866 = vmatpush1.msra.mxu0 0.0
    %5867 = vmatprep.subr.mxu0 0.0
    %5868 = vmatpush1.msra.mxu0 0.0
    %5869 = vmatprep.subr.mxu0 0.0
    %5870 = vmatpush1.msra.mxu0 0.0
    %5871 = vmatprep.subr.mxu0 0.0
    %5872 = vmatpush1.msra.mxu0 0.0
    %5873 = vmatprep.subr.mxu0 0.0
    %5874 = vmatpush1.msra.mxu0 0.0
    %5875 = vmatprep.subr.mxu0 0.0
    %5876 = vmatpush1.msra.mxu0 0.0
    %5877 = vmatprep.subr.mxu0 0.0
    %5878 = vmatpush1.msra.mxu0 0.0
    %5879 = vmatprep.mubr.f32.mxu0 0.0
    %v5880 = vand.u32 %v4574, 4294901760
    %5881 = vmatmul.mubr.f32.gmra.mrb[0].mxu0 %v5880
    %v5882 = vpop.f32.mrb[0].mxu0
    %v5883 = vadd.f32 %v5702, %v5882
    %v5884 = vpop.f32.mrb[0].mxu0
    %5885 = vmatprep.mubr.f32.mxu0 0.0
    %v5886 = vand.u32 %v4577, 4294901760
    %5887 = vmatmul.mubr.f32.gmra.mrb[0].mxu0 %v5886
    %v5888 = vpop.f32.mrb[0].mxu0
    %v5889 = vadd.f32 %v5712, %v5888
    %v5890 = vpop.f32.mrb[0].mxu0
    %5891 = vmatprep.mubr.f32.mxu0 0.0
    %v5892 = vand.u32 %v4580, 4294901760
    %5893 = vmatmul.mubr.f32.gmra.mrb[0].mxu0 %v5892
    %v5894 = vpop.f32.mrb[0].mxu0
    %v5895 = vadd.f32 %v5722, %v5894
    %v5896 = vpop.f32.mrb[0].mxu0
    %5897 = vmatprep.mubr.f32.mxu0 0.0
    %v5898 = vand.u32 %v4583, 4294901760
    %5899 = vmatmul.mubr.f32.gmra.mrb[0].mxu0 %v5898
    %v5900 = vpop.f32.mrb[0].mxu0
    %v5901 = vadd.f32 %v5732, %v5900
    %v5902 = vpop.f32.mrb[0].mxu0
    %5903 = vdwg.mxu0
    %5904 = vmatprep.subr.mxu0 0.0
    %v5905 = vand.u32 %v1489, 4294901760
    %v5906 = vsub.f32 %v1489, %v5905
    %5907 = vmatpush1.msra.mxu0 %v5906
    %5908 = vmatprep.subr.mxu0 0.0
    %v5909 = vand.u32 %v1490, 4294901760
    %v5910 = vsub.f32 %v1490, %v5909
    %5911 = vmatpush1.msra.mxu0 %v5910
    %5912 = vmatprep.subr.mxu0 0.0
    %v5913 = vand.u32 %v1491, 4294901760
    %v5914 = vsub.f32 %v1491, %v5913
    %5915 = vmatpush1.msra.mxu0 %v5914
    %5916 = vmatprep.subr.mxu0 0.0
    %v5917 = vand.u32 %v1492, 4294901760
    %v5918 = vsub.f32 %v1492, %v5917
    %5919 = vmatpush1.msra.mxu0 %v5918
    %5920 = vmatprep.subr.mxu0 0.0
    %v5921 = vand.u32 %v1493, 4294901760
    %v5922 = vsub.f32 %v1493, %v5921
    %5923 = vmatpush1.msra.mxu0 %v5922
    %5924 = vmatprep.subr.mxu0 0.0
    %v5925 = vand.u32 %v1494, 4294901760
    %v5926 = vsub.f32 %v1494, %v5925
    %5927 = vmatpush1.msra.mxu0 %v5926
    %5928 = vmatprep.subr.mxu0 0.0
    %v5929 = vand.u32 %v1495, 4294901760
    %v5930 = vsub.f32 %v1495, %v5929
    %5931 = vmatpush1.msra.mxu0 %v5930
    %5932 = vmatprep.subr.mxu0 0.0
    %v5933 = vand.u32 %v1496, 4294901760
    %v5934 = vsub.f32 %v1496, %v5933
    %5935 = vmatpush1.msra.mxu0 %v5934
    %5936 = vmatprep.subr.mxu0 0.0
    %v5937 = vand.u32 %v1497, 4294901760
    %v5938 = vsub.f32 %v1497, %v5937
    %5939 = vmatpush1.msra.mxu0 %v5938
    %5940 = vmatprep.subr.mxu0 0.0
    %v5941 = vand.u32 %v1498, 4294901760
    %v5942 = vsub.f32 %v1498, %v5941
    %5943 = vmatpush1.msra.mxu0 %v5942
    %5944 = vmatprep.subr.mxu0 0.0
    %v5945 = vand.u32 %v1499, 4294901760
    %v5946 = vsub.f32 %v1499, %v5945
    %5947 = vmatpush1.msra.mxu0 %v5946
    %5948 = vmatprep.subr.mxu0 0.0
    %v5949 = vand.u32 %v1500, 4294901760
    %v5950 = vsub.f32 %v1500, %v5949
    %5951 = vmatpush1.msra.mxu0 %v5950
    %5952 = vmatprep.subr.mxu0 0.0
    %v5953 = vand.u32 %v1501, 4294901760
    %v5954 = vsub.f32 %v1501, %v5953
    %5955 = vmatpush1.msra.mxu0 %v5954
    %5956 = vmatprep.subr.mxu0 0.0
    %v5957 = vand.u32 %v1502, 4294901760
    %v5958 = vsub.f32 %v1502, %v5957
    %5959 = vmatpush1.msra.mxu0 %v5958
    %5960 = vmatprep.subr.mxu0 0.0
    %v5961 = vand.u32 %v1503, 4294901760
    %v5962 = vsub.f32 %v1503, %v5961
    %5963 = vmatpush1.msra.mxu0 %v5962
    %5964 = vmatprep.subr.mxu0 0.0
    %v5965 = vand.u32 %v1504, 4294901760
    %v5966 = vsub.f32 %v1504, %v5965
    %5967 = vmatpush1.msra.mxu0 %v5966
    %5968 = vmatprep.subr.mxu0 0.0
    %5969 = vmatpush1.msra.mxu0 0.0
    %5970 = vmatprep.subr.mxu0 0.0
    %5971 = vmatpush1.msra.mxu0 0.0
    %5972 = vmatprep.subr.mxu0 0.0
    %5973 = vmatpush1.msra.mxu0 0.0
    %5974 = vmatprep.subr.mxu0 0.0
    %5975 = vmatpush1.msra.mxu0 0.0
    %5976 = vmatprep.subr.mxu0 0.0
    %5977 = vmatpush1.msra.mxu0 0.0
    %5978 = vmatprep.subr.mxu0 0.0
    %5979 = vmatpush1.msra.mxu0 0.0
    %5980 = vmatprep.subr.mxu0 0.0
    %5981 = vmatpush1.msra.mxu0 0.0
    %5982 = vmatprep.subr.mxu0 0.0
    %5983 = vmatpush1.msra.mxu0 0.0
    %5984 = vmatprep.subr.mxu0 0.0
    %5985 = vmatpush1.msra.mxu0 0.0
    %5986 = vmatprep.subr.mxu0 0.0
    %5987 = vmatpush1.msra.mxu0 0.0
    %5988 = vmatprep.subr.mxu0 0.0
    %5989 = vmatpush1.msra.mxu0 0.0
    %5990 = vmatprep.subr.mxu0 0.0
    %5991 = vmatpush1.msra.mxu0 0.0
    %5992 = vmatprep.subr.mxu0 0.0
    %5993 = vmatpush1.msra.mxu0 0.0
    %5994 = vmatprep.subr.mxu0 0.0
    %5995 = vmatpush1.msra.mxu0 0.0
    %5996 = vmatprep.subr.mxu0 0.0
    %5997 = vmatpush1.msra.mxu0 0.0
    %5998 = vmatprep.subr.mxu0 0.0
    %5999 = vmatpush1.msra.mxu0 0.0
    %6000 = vmatprep.mubr.f32.mxu0 0.0
    %v6001 = vand.u32 %v4574, 4294901760
    %v6002 = vsub.f32 %v4574, %v6001
    %6003 = vmatmul.mubr.f32.gmra.mrb[0].mxu0 %v6002
    %v6004 = vpop.f32.mrb[0].mxu0
    %v6005 = vadd.f32 %v5883, %v6004
    %v6006 = vpop.f32.mrb[0].mxu0
    %6007 = vmatprep.mubr.f32.mxu0 0.0
    %v6008 = vand.u32 %v4577, 4294901760
    %v6009 = vsub.f32 %v4577, %v6008
    %6010 = vmatmul.mubr.f32.gmra.mrb[0].mxu0 %v6009
    %v6011 = vpop.f32.mrb[0].mxu0
    %v6012 = vadd.f32 %v5889, %v6011
    %v6013 = vpop.f32.mrb[0].mxu0
    %6014 = vmatprep.mubr.f32.mxu0 0.0
    %v6015 = vand.u32 %v4580, 4294901760
    %v6016 = vsub.f32 %v4580, %v6015
    %6017 = vmatmul.mubr.f32.gmra.mrb[0].mxu0 %v6016
    %v6018 = vpop.f32.mrb[0].mxu0
    %v6019 = vadd.f32 %v5895, %v6018
    %v6020 = vpop.f32.mrb[0].mxu0
    %6021 = vmatprep.mubr.f32.mxu0 0.0
    %v6022 = vand.u32 %v4583, 4294901760
    %v6023 = vsub.f32 %v4583, %v6022
    %6024 = vmatmul.mubr.f32.gmra.mrb[0].mxu0 %v6023
    %v6025 = vpop.f32.mrb[0].mxu0
    %v6026 = vadd.f32 %v5901, %v6025
    %v6027 = vpop.f32.mrb[0].mxu0
    %6028 = vdwg.mxu0
    %6029 = vmatprep.subr.mxu0 0.0
    %v6030 = vand.u32 %v1489, 4294901760
    %6031 = vmatpush1.msra.mxu0 %v6030
    %6032 = vmatprep.subr.mxu0 0.0
    %v6033 = vand.u32 %v1490, 4294901760
    %6034 = vmatpush1.msra.mxu0 %v6033
    %6035 = vmatprep.subr.mxu0 0.0
    %v6036 = vand.u32 %v1491, 4294901760
    %6037 = vmatpush1.msra.mxu0 %v6036
    %6038 = vmatprep.subr.mxu0 0.0
    %v6039 = vand.u32 %v1492, 4294901760
    %6040 = vmatpush1.msra.mxu0 %v6039
    %6041 = vmatprep.subr.mxu0 0.0
    %v6042 = vand.u32 %v1493, 4294901760
    %6043 = vmatpush1.msra.mxu0 %v6042
    %6044 = vmatprep.subr.mxu0 0.0
    %v6045 = vand.u32 %v1494, 4294901760
    %6046 = vmatpush1.msra.mxu0 %v6045
    %6047 = vmatprep.subr.mxu0 0.0
    %v6048 = vand.u32 %v1495, 4294901760
    %6049 = vmatpush1.msra.mxu0 %v6048
    %6050 = vmatprep.subr.mxu0 0.0
    %v6051 = vand.u32 %v1496, 4294901760
    %6052 = vmatpush1.msra.mxu0 %v6051
    %6053 = vmatprep.subr.mxu0 0.0
    %v6054 = vand.u32 %v1497, 4294901760
    %6055 = vmatpush1.msra.mxu0 %v6054
    %6056 = vmatprep.subr.mxu0 0.0
    %v6057 = vand.u32 %v1498, 4294901760
    %6058 = vmatpush1.msra.mxu0 %v6057
    %6059 = vmatprep.subr.mxu0 0.0
    %v6060 = vand.u32 %v1499, 4294901760
    %6061 = vmatpush1.msra.mxu0 %v6060
    %6062 = vmatprep.subr.mxu0 0.0
    %v6063 = vand.u32 %v1500, 4294901760
    %6064 = vmatpush1.msra.mxu0 %v6063
    %6065 = vmatprep.subr.mxu0 0.0
    %v6066 = vand.u32 %v1501, 4294901760
    %6067 = vmatpush1.msra.mxu0 %v6066
    %6068 = vmatprep.subr.mxu0 0.0
    %v6069 = vand.u32 %v1502, 4294901760
    %6070 = vmatpush1.msra.mxu0 %v6069
    %6071 = vmatprep.subr.mxu0 0.0
    %v6072 = vand.u32 %v1503, 4294901760
    %6073 = vmatpush1.msra.mxu0 %v6072
    %6074 = vmatprep.subr.mxu0 0.0
    %v6075 = vand.u32 %v1504, 4294901760
    %6076 = vmatpush1.msra.mxu0 %v6075
    %6077 = vmatprep.subr.mxu0 0.0
    %6078 = vmatpush1.msra.mxu0 0.0
    %6079 = vmatprep.subr.mxu0 0.0
    %6080 = vmatpush1.msra.mxu0 0.0
    %6081 = vmatprep.subr.mxu0 0.0
    %6082 = vmatpush1.msra.mxu0 0.0
    %6083 = vmatprep.subr.mxu0 0.0
    %6084 = vmatpush1.msra.mxu0 0.0
    %6085 = vmatprep.subr.mxu0 0.0
    %6086 = vmatpush1.msra.mxu0 0.0
    %6087 = vmatprep.subr.mxu0 0.0
    %6088 = vmatpush1.msra.mxu0 0.0
    %6089 = vmatprep.subr.mxu0 0.0
    %6090 = vmatpush1.msra.mxu0 0.0
    %6091 = vmatprep.subr.mxu0 0.0
    %6092 = vmatpush1.msra.mxu0 0.0
    %6093 = vmatprep.subr.mxu0 0.0
    %6094 = vmatpush1.msra.mxu0 0.0
    %6095 = vmatprep.subr.mxu0 0.0
    %6096 = vmatpush1.msra.mxu0 0.0
    %6097 = vmatprep.subr.mxu0 0.0
    %6098 = vmatpush1.msra.mxu0 0.0
    %6099 = vmatprep.subr.mxu0 0.0
    %6100 = vmatpush1.msra.mxu0 0.0
    %6101 = vmatprep.subr.mxu0 0.0
    %6102 = vmatpush1.msra.mxu0 0.0
    %6103 = vmatprep.subr.mxu0 0.0
    %6104 = vmatpush1.msra.mxu0 0.0
    %6105 = vmatprep.subr.mxu0 0.0
    %6106 = vmatpush1.msra.mxu0 0.0
    %6107 = vmatprep.subr.mxu0 0.0
    %6108 = vmatpush1.msra.mxu0 0.0
    %6109 = vmatprep.mubr.f32.mxu0 0.0
    %v6110 = vand.u32 %v4574, 4294901760
    %v6111 = vsub.f32 %v4574, %v6110
    %v6112 = vand.u32 %v6111, 4294901760
    %6113 = vmatmul.mubr.f32.gmra.mrb[0].mxu0 %v6112
    %v6114 = vpop.f32.mrb[0].mxu0
    %v6115 = vadd.f32 %v6005, %v6114
    %v6116 = vpop.f32.mrb[0].mxu0
    %6117 = vmatprep.mubr.f32.mxu0 0.0
    %v6118 = vand.u32 %v4577, 4294901760
    %v6119 = vsub.f32 %v4577, %v6118
    %v6120 = vand.u32 %v6119, 4294901760
    %6121 = vmatmul.mubr.f32.gmra.mrb[0].mxu0 %v6120
    %v6122 = vpop.f32.mrb[0].mxu0
    %v6123 = vadd.f32 %v6012, %v6122
    %v6124 = vpop.f32.mrb[0].mxu0
    %6125 = vmatprep.mubr.f32.mxu0 0.0
    %v6126 = vand.u32 %v4580, 4294901760
    %v6127 = vsub.f32 %v4580, %v6126
    %v6128 = vand.u32 %v6127, 4294901760
    %6129 = vmatmul.mubr.f32.gmra.mrb[0].mxu0 %v6128
    %v6130 = vpop.f32.mrb[0].mxu0
    %v6131 = vadd.f32 %v6019, %v6130
    %v6132 = vpop.f32.mrb[0].mxu0
    %6133 = vmatprep.mubr.f32.mxu0 0.0
    %v6134 = vand.u32 %v4583, 4294901760
    %v6135 = vsub.f32 %v4583, %v6134
    %v6136 = vand.u32 %v6135, 4294901760
    %6137 = vmatmul.mubr.f32.gmra.mrb[0].mxu0 %v6136
    %v6138 = vpop.f32.mrb[0].mxu0
    %v6139 = vadd.f32 %v6026, %v6138
    %v6140 = vpop.f32.mrb[0].mxu0
    %6141 = vdwg.mxu0
    %6142 = vmatprep.subr.mxu0 0.0
    %v6143 = vand.u32 %v1489, 4294901760
    %v6144 = vsub.f32 %v1489, %v6143
    %v6145 = vand.u32 %v6144, 4294901760
    %6146 = vmatpush1.msra.mxu0 %v6145
    %6147 = vmatprep.subr.mxu0 0.0
    %v6148 = vand.u32 %v1490, 4294901760
    %v6149 = vsub.f32 %v1490, %v6148
    %v6150 = vand.u32 %v6149, 4294901760
    %6151 = vmatpush1.msra.mxu0 %v6150
    %6152 = vmatprep.subr.mxu0 0.0
    %v6153 = vand.u32 %v1491, 4294901760
    %v6154 = vsub.f32 %v1491, %v6153
    %v6155 = vand.u32 %v6154, 4294901760
    %6156 = vmatpush1.msra.mxu0 %v6155
    %6157 = vmatprep.subr.mxu0 0.0
    %v6158 = vand.u32 %v1492, 4294901760
    %v6159 = vsub.f32 %v1492, %v6158
    %v6160 = vand.u32 %v6159, 4294901760
    %6161 = vmatpush1.msra.mxu0 %v6160
    %6162 = vmatprep.subr.mxu0 0.0
    %v6163 = vand.u32 %v1493, 4294901760
    %v6164 = vsub.f32 %v1493, %v6163
    %v6165 = vand.u32 %v6164, 4294901760
    %6166 = vmatpush1.msra.mxu0 %v6165
    %6167 = vmatprep.subr.mxu0 0.0
    %v6168 = vand.u32 %v1494, 4294901760
    %v6169 = vsub.f32 %v1494, %v6168
    %v6170 = vand.u32 %v6169, 4294901760
    %6171 = vmatpush1.msra.mxu0 %v6170
    %6172 = vmatprep.subr.mxu0 0.0
    %v6173 = vand.u32 %v1495, 4294901760
    %v6174 = vsub.f32 %v1495, %v6173
    %v6175 = vand.u32 %v6174, 4294901760
    %6176 = vmatpush1.msra.mxu0 %v6175
    %6177 = vmatprep.subr.mxu0 0.0
    %v6178 = vand.u32 %v1496, 4294901760
    %v6179 = vsub.f32 %v1496, %v6178
    %v6180 = vand.u32 %v6179, 4294901760
    %6181 = vmatpush1.msra.mxu0 %v6180
    %6182 = vmatprep.subr.mxu0 0.0
    %v6183 = vand.u32 %v1497, 4294901760
    %v6184 = vsub.f32 %v1497, %v6183
    %v6185 = vand.u32 %v6184, 4294901760
    %6186 = vmatpush1.msra.mxu0 %v6185
    %6187 = vmatprep.subr.mxu0 0.0
    %v6188 = vand.u32 %v1498, 4294901760
    %v6189 = vsub.f32 %v1498, %v6188
    %v6190 = vand.u32 %v6189, 4294901760
    %6191 = vmatpush1.msra.mxu0 %v6190
    %6192 = vmatprep.subr.mxu0 0.0
    %v6193 = vand.u32 %v1499, 4294901760
    %v6194 = vsub.f32 %v1499, %v6193
    %v6195 = vand.u32 %v6194, 4294901760
    %6196 = vmatpush1.msra.mxu0 %v6195
    %6197 = vmatprep.subr.mxu0 0.0
    %v6198 = vand.u32 %v1500, 4294901760
    %v6199 = vsub.f32 %v1500, %v6198
    %v6200 = vand.u32 %v6199, 4294901760
    %6201 = vmatpush1.msra.mxu0 %v6200
    %6202 = vmatprep.subr.mxu0 0.0
    %v6203 = vand.u32 %v1501, 4294901760
    %v6204 = vsub.f32 %v1501, %v6203
    %v6205 = vand.u32 %v6204, 4294901760
    %6206 = vmatpush1.msra.mxu0 %v6205
    %6207 = vmatprep.subr.mxu0 0.0
    %v6208 = vand.u32 %v1502, 4294901760
    %v6209 = vsub.f32 %v1502, %v6208
    %v6210 = vand.u32 %v6209, 4294901760
    %6211 = vmatpush1.msra.mxu0 %v6210
    %6212 = vmatprep.subr.mxu0 0.0
    %v6213 = vand.u32 %v1503, 4294901760
    %v6214 = vsub.f32 %v1503, %v6213
    %v6215 = vand.u32 %v6214, 4294901760
    %6216 = vmatpush1.msra.mxu0 %v6215
    %6217 = vmatprep.subr.mxu0 0.0
    %v6218 = vand.u32 %v1504, 4294901760
    %v6219 = vsub.f32 %v1504, %v6218
    %v6220 = vand.u32 %v6219, 4294901760
    %6221 = vmatpush1.msra.mxu0 %v6220
    %6222 = vmatprep.subr.mxu0 0.0
    %6223 = vmatpush1.msra.mxu0 0.0
    %6224 = vmatprep.subr.mxu0 0.0
    %6225 = vmatpush1.msra.mxu0 0.0
    %6226 = vmatprep.subr.mxu0 0.0
    %6227 = vmatpush1.msra.mxu0 0.0
    %6228 = vmatprep.subr.mxu0 0.0
    %6229 = vmatpush1.msra.mxu0 0.0
    %6230 = vmatprep.subr.mxu0 0.0
    %6231 = vmatpush1.msra.mxu0 0.0
    %6232 = vmatprep.subr.mxu0 0.0
    %6233 = vmatpush1.msra.mxu0 0.0
    %6234 = vmatprep.subr.mxu0 0.0
    %6235 = vmatpush1.msra.mxu0 0.0
    %6236 = vmatprep.subr.mxu0 0.0
    %6237 = vmatpush1.msra.mxu0 0.0
    %6238 = vmatprep.subr.mxu0 0.0
    %6239 = vmatpush1.msra.mxu0 0.0
    %6240 = vmatprep.subr.mxu0 0.0
    %6241 = vmatpush1.msra.mxu0 0.0
    %6242 = vmatprep.subr.mxu0 0.0
    %6243 = vmatpush1.msra.mxu0 0.0
    %6244 = vmatprep.subr.mxu0 0.0
    %6245 = vmatpush1.msra.mxu0 0.0
    %6246 = vmatprep.subr.mxu0 0.0
    %6247 = vmatpush1.msra.mxu0 0.0
    %6248 = vmatprep.subr.mxu0 0.0
    %6249 = vmatpush1.msra.mxu0 0.0
    %6250 = vmatprep.subr.mxu0 0.0
    %6251 = vmatpush1.msra.mxu0 0.0
    %6252 = vmatprep.subr.mxu0 0.0
    %6253 = vmatpush1.msra.mxu0 0.0
    %6254 = vmatprep.mubr.f32.mxu0 0.0
    %v6255 = vand.u32 %v4574, 4294901760
    %6256 = vmatmul.mubr.f32.gmra.mrb[0].mxu0 %v6255
    %v6257 = vpop.f32.mrb[0].mxu0
    %v6258 = vadd.f32 %v6115, %v6257
    %v6259 = vpop.f32.mrb[0].mxu0
    %6260 = vmatprep.mubr.f32.mxu0 0.0
    %v6261 = vand.u32 %v4577, 4294901760
    %6262 = vmatmul.mubr.f32.gmra.mrb[0].mxu0 %v6261
    %v6263 = vpop.f32.mrb[0].mxu0
    %v6264 = vadd.f32 %v6123, %v6263
    %v6265 = vpop.f32.mrb[0].mxu0
    %6266 = vmatprep.mubr.f32.mxu0 0.0
    %v6267 = vand.u32 %v4580, 4294901760
    %6268 = vmatmul.mubr.f32.gmra.mrb[0].mxu0 %v6267
    %v6269 = vpop.f32.mrb[0].mxu0
    %v6270 = vadd.f32 %v6131, %v6269
    %v6271 = vpop.f32.mrb[0].mxu0
    %6272 = vmatprep.mubr.f32.mxu0 0.0
    %v6273 = vand.u32 %v4583, 4294901760
    %6274 = vmatmul.mubr.f32.gmra.mrb[0].mxu0 %v6273
    %v6275 = vpop.f32.mrb[0].mxu0
    %v6276 = vadd.f32 %v6139, %v6275
    %v6277 = vpop.f32.mrb[0].mxu0
    %6278 = vdwg.mxu0
    %6279 = vmatprep.subr.mxu0 0.0
    %v6280 = vand.u32 %v1489, 4294901760
    %6281 = vmatpush1.msra.mxu0 %v6280
    %6282 = vmatprep.subr.mxu0 0.0
    %v6283 = vand.u32 %v1490, 4294901760
    %6284 = vmatpush1.msra.mxu0 %v6283
    %6285 = vmatprep.subr.mxu0 0.0
    %v6286 = vand.u32 %v1491, 4294901760
    %6287 = vmatpush1.msra.mxu0 %v6286
    %6288 = vmatprep.subr.mxu0 0.0
    %v6289 = vand.u32 %v1492, 4294901760
    %6290 = vmatpush1.msra.mxu0 %v6289
    %6291 = vmatprep.subr.mxu0 0.0
    %v6292 = vand.u32 %v1493, 4294901760
    %6293 = vmatpush1.msra.mxu0 %v6292
    %6294 = vmatprep.subr.mxu0 0.0
    %v6295 = vand.u32 %v1494, 4294901760
    %6296 = vmatpush1.msra.mxu0 %v6295
    %6297 = vmatprep.subr.mxu0 0.0
    %v6298 = vand.u32 %v1495, 4294901760
    %6299 = vmatpush1.msra.mxu0 %v6298
    %6300 = vmatprep.subr.mxu0 0.0
    %v6301 = vand.u32 %v1496, 4294901760
    %6302 = vmatpush1.msra.mxu0 %v6301
    %6303 = vmatprep.subr.mxu0 0.0
    %v6304 = vand.u32 %v1497, 4294901760
    %6305 = vmatpush1.msra.mxu0 %v6304
    %6306 = vmatprep.subr.mxu0 0.0
    %v6307 = vand.u32 %v1498, 4294901760
    %6308 = vmatpush1.msra.mxu0 %v6307
    %6309 = vmatprep.subr.mxu0 0.0
    %v6310 = vand.u32 %v1499, 4294901760
    %6311 = vmatpush1.msra.mxu0 %v6310
    %6312 = vmatprep.subr.mxu0 0.0
    %v6313 = vand.u32 %v1500, 4294901760
    %6314 = vmatpush1.msra.mxu0 %v6313
    %6315 = vmatprep.subr.mxu0 0.0
    %v6316 = vand.u32 %v1501, 4294901760
    %6317 = vmatpush1.msra.mxu0 %v6316
    %6318 = vmatprep.subr.mxu0 0.0
    %v6319 = vand.u32 %v1502, 4294901760
    %6320 = vmatpush1.msra.mxu0 %v6319
    %6321 = vmatprep.subr.mxu0 0.0
    %v6322 = vand.u32 %v1503, 4294901760
    %6323 = vmatpush1.msra.mxu0 %v6322
    %6324 = vmatprep.subr.mxu0 0.0
    %v6325 = vand.u32 %v1504, 4294901760
    %6326 = vmatpush1.msra.mxu0 %v6325
    %6327 = vmatprep.subr.mxu0 0.0
    %6328 = vmatpush1.msra.mxu0 0.0
    %6329 = vmatprep.subr.mxu0 0.0
    %6330 = vmatpush1.msra.mxu0 0.0
    %6331 = vmatprep.subr.mxu0 0.0
    %6332 = vmatpush1.msra.mxu0 0.0
    %6333 = vmatprep.subr.mxu0 0.0
    %6334 = vmatpush1.msra.mxu0 0.0
    %6335 = vmatprep.subr.mxu0 0.0
    %6336 = vmatpush1.msra.mxu0 0.0
    %6337 = vmatprep.subr.mxu0 0.0
    %6338 = vmatpush1.msra.mxu0 0.0
    %6339 = vmatprep.subr.mxu0 0.0
    %6340 = vmatpush1.msra.mxu0 0.0
    %6341 = vmatprep.subr.mxu0 0.0
    %6342 = vmatpush1.msra.mxu0 0.0
    %6343 = vmatprep.subr.mxu0 0.0
    %6344 = vmatpush1.msra.mxu0 0.0
    %6345 = vmatprep.subr.mxu0 0.0
    %6346 = vmatpush1.msra.mxu0 0.0
    %6347 = vmatprep.subr.mxu0 0.0
    %6348 = vmatpush1.msra.mxu0 0.0
    %6349 = vmatprep.subr.mxu0 0.0
    %6350 = vmatpush1.msra.mxu0 0.0
    %6351 = vmatprep.subr.mxu0 0.0
    %6352 = vmatpush1.msra.mxu0 0.0
    %6353 = vmatprep.subr.mxu0 0.0
    %6354 = vmatpush1.msra.mxu0 0.0
    %6355 = vmatprep.subr.mxu0 0.0
    %6356 = vmatpush1.msra.mxu0 0.0
    %6357 = vmatprep.subr.mxu0 0.0
    %6358 = vmatpush1.msra.mxu0 0.0
    %6359 = vmatprep.mubr.f32.mxu0 0.0
    %v6360 = vand.u32 %v4574, 4294901760
    %6361 = vmatmul.mubr.f32.gmra.mrb[0].mxu0 %v6360
    %v6362 = vpop.f32.mrb[0].mxu0
    %v6363 = vadd.f32 %v6258, %v6362
    %v6364 = vpop.f32.mrb[0].mxu0
    %6365 = vmatprep.mubr.f32.mxu0 0.0
    %v6366 = vand.u32 %v4577, 4294901760
    %6367 = vmatmul.mubr.f32.gmra.mrb[0].mxu0 %v6366
    %v6368 = vpop.f32.mrb[0].mxu0
    %v6369 = vadd.f32 %v6264, %v6368
    %v6370 = vpop.f32.mrb[0].mxu0
    %6371 = vmatprep.mubr.f32.mxu0 0.0
    %v6372 = vand.u32 %v4580, 4294901760
    %6373 = vmatmul.mubr.f32.gmra.mrb[0].mxu0 %v6372
    %v6374 = vpop.f32.mrb[0].mxu0
    %v6375 = vadd.f32 %v6270, %v6374
    %v6376 = vpop.f32.mrb[0].mxu0
    %6377 = vmatprep.mubr.f32.mxu0 0.0
    %v6378 = vand.u32 %v4583, 4294901760
    %6379 = vmatmul.mubr.f32.gmra.mrb[0].mxu0 %v6378
    %v6380 = vpop.f32.mrb[0].mxu0
    %v6381 = vadd.f32 %v6276, %v6380
    %v6382 = vpop.f32.mrb[0].mxu0
    %6383 = vdwg.mxu0
    %v6384 = vrsqrt.pop %v6363
    %v6385 = vrsqrt.pop %v6369
    %v6386 = vrsqrt.pop %v6375
    %v6387 = vrsqrt.pop %v6381
    %s6388 = scalar_lea.vmem %s3, 48
    %v6389 = vld [vmem:[%s6388] sm:$0xff]
    %v6390 = vld [vmem:[%s6388 + $0x8] sm:$0xff]
    %v6391 = vld [vmem:[%s6388 + $0x10] sm:$0xff]
    %v6392 = vld [vmem:[%s6388 + $0x18] sm:$0xf]
    %v6393 = vld [vmem:[%s6388 + $0x20] sm:$0xf]
    %v6394 = vld [vmem:[%s6388 + $0x28] sm:$0xf]
    %v6396 = vsel %vm3311, %v6384, 0
    %v6399 = vsel %vm3311, %v6385, 0
    %v6402 = vsel %vm3311, %v6386, 0
    %v6405 = vsel %vm3311, %v6387, 0
    %v6408 = vsel %vm3324, %v6392, 0
    %v6411 = vsel %vm3324, %v6393, 0
    %v6414 = vsel %vm3324, %v6394, 0
    %v6416 = vand.u32 %v6390, 4294901760
    %6417 = vmatprep.subr.mxu0 %v6416
    %v6418 = vand.u32 %v6389, 4294901760
    %6419 = vmatpush1.msra.mxu0 %v6418
    %v6420 = vand.u32 %v6411, 4294901760
    %6421 = vmatprep.subr.mxu0 %v6420
    %v6422 = vand.u32 %v6408, 4294901760
    %6423 = vmatpush1.msra.mxu0 %v6422
    %6424 = vmatprep.subr.mxu0 0.0
    %6425 = vmatpush1.msra.mxu0 0.0
    %6426 = vmatprep.subr.mxu0 0.0
    %6427 = vmatpush1.msra.mxu0 0.0
    %6428 = vmatprep.subr.mxu0 0.0
    %6429 = vmatpush1.msra.mxu0 0.0
    %6430 = vmatprep.subr.mxu0 0.0
    %6431 = vmatpush1.msra.mxu0 0.0
    %6432 = vmatprep.subr.mxu0 0.0
    %6433 = vmatpush1.msra.mxu0 0.0
    %6434 = vmatprep.subr.mxu0 0.0
    %6435 = vmatpush1.msra.mxu0 0.0
    %6436 = vmatprep.subr.mxu0 0.0
    %6437 = vmatpush1.msra.mxu0 0.0
    %6438 = vmatprep.subr.mxu0 0.0
    %6439 = vmatpush1.msra.mxu0 0.0
    %6440 = vmatprep.subr.mxu0 0.0
    %6441 = vmatpush1.msra.mxu0 0.0
    %6442 = vmatprep.subr.mxu0 0.0
    %6443 = vmatpush1.msra.mxu0 0.0
    %6444 = vmatprep.subr.mxu0 0.0
    %6445 = vmatpush1.msra.mxu0 0.0
    %6446 = vmatprep.subr.mxu0 0.0
    %6447 = vmatpush1.msra.mxu0 0.0
    %6448 = vmatprep.subr.mxu0 0.0
    %6449 = vmatpush1.msra.mxu0 0.0
    %6450 = vmatprep.subr.mxu0 0.0
    %6451 = vmatpush1.msra.mxu0 0.0
    %6452 = vmatprep.subr.mxu0 0.0
    %6453 = vmatpush1.msra.mxu0 0.0
    %6454 = vmatprep.subr.mxu0 0.0
    %6455 = vmatpush1.msra.mxu0 0.0
    %6456 = vmatprep.subr.mxu0 0.0
    %6457 = vmatpush1.msra.mxu0 0.0
    %6458 = vmatprep.subr.mxu0 0.0
    %6459 = vmatpush1.msra.mxu0 0.0
    %6460 = vmatprep.subr.mxu0 0.0
    %6461 = vmatpush1.msra.mxu0 0.0
    %6462 = vmatprep.subr.mxu0 0.0
    %6463 = vmatpush1.msra.mxu0 0.0
    %6464 = vmatprep.subr.mxu0 0.0
    %6465 = vmatpush1.msra.mxu0 0.0
    %6466 = vmatprep.subr.mxu0 0.0
    %6467 = vmatpush1.msra.mxu0 0.0
    %6468 = vmatprep.subr.mxu0 0.0
    %6469 = vmatpush1.msra.mxu0 0.0
    %6470 = vmatprep.subr.mxu0 0.0
    %6471 = vmatpush1.msra.mxu0 0.0
    %6472 = vmatprep.subr.mxu0 0.0
    %6473 = vmatpush1.msra.mxu0 0.0
    %6474 = vmatprep.subr.mxu0 0.0
    %6475 = vmatpush1.msra.mxu0 0.0
    %6476 = vmatprep.subr.mxu0 0.0
    %6477 = vmatpush1.msra.mxu0 0.0
    %6478 = vmatprep.subr.mxu0 0.0
    %6479 = vmatpush1.msra.mxu0 0.0
    %6480 = vmatprep.subr.mxu0 0.0
    %6481 = vmatpush1.msra.mxu0 0.0
    %6482 = vmatprep.subr.mxu0 0.0
    %6483 = vmatpush1.msra.mxu0 0.0
    %6484 = vmatprep.mubr.f32.mxu0 0.0
    %v6485 = vand.u32 %v6396, 4294901760
    %v6486 = vsub.f32 %v6396, %v6485
    %v6487 = vand.u32 %v6486, 4294901760
    %v6488 = vsub.f32 %v6486, %v6487
    %v6489 = vand.u32 %v6488, 4294901760
    %6490 = vmatmul.mubr.f32.gmra.mrb[0].mxu0 %v6489
    %v6491 = vpop.f32.mrb[0].mxu0
    %v6492 = vadd.f32 0.0, %v6491
    %v6493 = vpop.f32.mrb[0].mxu0
    %v6494 = vadd.f32 0.0, %v6493
    %6495 = vmatprep.mubr.f32.mxu0 0.0
    %v6496 = vand.u32 %v6399, 4294901760
    %v6497 = vsub.f32 %v6399, %v6496
    %v6498 = vand.u32 %v6497, 4294901760
    %v6499 = vsub.f32 %v6497, %v6498
    %v6500 = vand.u32 %v6499, 4294901760
    %6501 = vmatmul.mubr.f32.gmra.mrb[0].mxu0 %v6500
    %v6502 = vpop.f32.mrb[0].mxu0
    %v6503 = vadd.f32 0.0, %v6502
    %v6504 = vpop.f32.mrb[0].mxu0
    %v6505 = vadd.f32 0.0, %v6504
    %6506 = vmatprep.mubr.f32.mxu0 0.0
    %v6507 = vand.u32 %v6402, 4294901760
    %v6508 = vsub.f32 %v6402, %v6507
    %v6509 = vand.u32 %v6508, 4294901760
    %v6510 = vsub.f32 %v6508, %v6509
    %v6511 = vand.u32 %v6510, 4294901760
    %6512 = vmatmul.mubr.f32.gmra.mrb[0].mxu0 %v6511
    %v6513 = vpop.f32.mrb[0].mxu0
    %v6514 = vadd.f32 0.0, %v6513
    %v6515 = vpop.f32.mrb[0].mxu0
    %v6516 = vadd.f32 0.0, %v6515
    %6517 = vmatprep.mubr.f32.mxu0 0.0
    %v6518 = vand.u32 %v6405, 4294901760
    %v6519 = vsub.f32 %v6405, %v6518
    %v6520 = vand.u32 %v6519, 4294901760
    %v6521 = vsub.f32 %v6519, %v6520
    %v6522 = vand.u32 %v6521, 4294901760
    %6523 = vmatmul.mubr.f32.gmra.mrb[0].mxu0 %v6522
    %v6524 = vpop.f32.mrb[0].mxu0
    %v6525 = vadd.f32 0.0, %v6524
    %v6526 = vpop.f32.mrb[0].mxu0
    %v6527 = vadd.f32 0.0, %v6526
    %6528 = vdwg.mxu0
    %v6529 = vand.u32 %v6390, 4294901760
    %v6530 = vsub.f32 %v6390, %v6529
    %v6531 = vand.u32 %v6530, 4294901760
    %v6532 = vsub.f32 %v6530, %v6531
    %v6533 = vand.u32 %v6532, 4294901760
    %6534 = vmatprep.subr.mxu0 %v6533
    %v6535 = vand.u32 %v6389, 4294901760
    %v6536 = vsub.f32 %v6389, %v6535
    %v6537 = vand.u32 %v6536, 4294901760
    %v6538 = vsub.f32 %v6536, %v6537
    %v6539 = vand.u32 %v6538, 4294901760
    %6540 = vmatpush1.msra.mxu0 %v6539
    %v6541 = vand.u32 %v6411, 4294901760
    %v6542 = vsub.f32 %v6411, %v6541
    %v6543 = vand.u32 %v6542, 4294901760
    %v6544 = vsub.f32 %v6542, %v6543
    %v6545 = vand.u32 %v6544, 4294901760
    %6546 = vmatprep.subr.mxu0 %v6545
    %v6547 = vand.u32 %v6408, 4294901760
    %v6548 = vsub.f32 %v6408, %v6547
    %v6549 = vand.u32 %v6548, 4294901760
    %v6550 = vsub.f32 %v6548, %v6549
    %v6551 = vand.u32 %v6550, 4294901760
    %6552 = vmatpush1.msra.mxu0 %v6551
    %6553 = vmatprep.subr.mxu0 0.0
    %6554 = vmatpush1.msra.mxu0 0.0
    %6555 = vmatprep.subr.mxu0 0.0
    %6556 = vmatpush1.msra.mxu0 0.0
    %6557 = vmatprep.subr.mxu0 0.0
    %6558 = vmatpush1.msra.mxu0 0.0
    %6559 = vmatprep.subr.mxu0 0.0
    %6560 = vmatpush1.msra.mxu0 0.0
    %6561 = vmatprep.subr.mxu0 0.0
    %6562 = vmatpush1.msra.mxu0 0.0
    %6563 = vmatprep.subr.mxu0 0.0
    %6564 = vmatpush1.msra.mxu0 0.0
    %6565 = vmatprep.subr.mxu0 0.0
    %6566 = vmatpush1.msra.mxu0 0.0
    %6567 = vmatprep.subr.mxu0 0.0
    %6568 = vmatpush1.msra.mxu0 0.0
    %6569 = vmatprep.subr.mxu0 0.0
    %6570 = vmatpush1.msra.mxu0 0.0
    %6571 = vmatprep.subr.mxu0 0.0
    %6572 = vmatpush1.msra.mxu0 0.0
    %6573 = vmatprep.subr.mxu0 0.0
    %6574 = vmatpush1.msra.mxu0 0.0
    %6575 = vmatprep.subr.mxu0 0.0
    %6576 = vmatpush1.msra.mxu0 0.0
    %6577 = vmatprep.subr.mxu0 0.0
    %6578 = vmatpush1.msra.mxu0 0.0
    %6579 = vmatprep.subr.mxu0 0.0
    %6580 = vmatpush1.msra.mxu0 0.0
    %6581 = vmatprep.subr.mxu0 0.0
    %6582 = vmatpush1.msra.mxu0 0.0
    %6583 = vmatprep.subr.mxu0 0.0
    %6584 = vmatpush1.msra.mxu0 0.0
    %6585 = vmatprep.subr.mxu0 0.0
    %6586 = vmatpush1.msra.mxu0 0.0
    %6587 = vmatprep.subr.mxu0 0.0
    %6588 = vmatpush1.msra.mxu0 0.0
    %6589 = vmatprep.subr.mxu0 0.0
    %6590 = vmatpush1.msra.mxu0 0.0
    %6591 = vmatprep.subr.mxu0 0.0
    %6592 = vmatpush1.msra.mxu0 0.0
    %6593 = vmatprep.subr.mxu0 0.0
    %6594 = vmatpush1.msra.mxu0 0.0
    %6595 = vmatprep.subr.mxu0 0.0
    %6596 = vmatpush1.msra.mxu0 0.0
    %6597 = vmatprep.subr.mxu0 0.0
    %6598 = vmatpush1.msra.mxu0 0.0
    %6599 = vmatprep.subr.mxu0 0.0
    %6600 = vmatpush1.msra.mxu0 0.0
    %6601 = vmatprep.subr.mxu0 0.0
    %6602 = vmatpush1.msra.mxu0 0.0
    %6603 = vmatprep.subr.mxu0 0.0
    %6604 = vmatpush1.msra.mxu0 0.0
    %6605 = vmatprep.subr.mxu0 0.0
    %6606 = vmatpush1.msra.mxu0 0.0
    %6607 = vmatprep.subr.mxu0 0.0
    %6608 = vmatpush1.msra.mxu0 0.0
    %6609 = vmatprep.subr.mxu0 0.0
    %6610 = vmatpush1.msra.mxu0 0.0
    %6611 = vmatprep.subr.mxu0 0.0
    %6612 = vmatpush1.msra.mxu0 0.0
    %6613 = vmatprep.mubr.f32.mxu0 0.0
    %v6614 = vand.u32 %v6396, 4294901760
    %6615 = vmatmul.mubr.f32.gmra.mrb[0].mxu0 %v6614
    %v6616 = vpop.f32.mrb[0].mxu0
    %v6617 = vadd.f32 %v6492, %v6616
    %v6618 = vpop.f32.mrb[0].mxu0
    %v6619 = vadd.f32 %v6494, %v6618
    %6620 = vmatprep.mubr.f32.mxu0 0.0
    %v6621 = vand.u32 %v6399, 4294901760
    %6622 = vmatmul.mubr.f32.gmra.mrb[0].mxu0 %v6621
    %v6623 = vpop.f32.mrb[0].mxu0
    %v6624 = vadd.f32 %v6503, %v6623
    %v6625 = vpop.f32.mrb[0].mxu0
    %v6626 = vadd.f32 %v6505, %v6625
    %6627 = vmatprep.mubr.f32.mxu0 0.0
    %v6628 = vand.u32 %v6402, 4294901760
    %6629 = vmatmul.mubr.f32.gmra.mrb[0].mxu0 %v6628
    %v6630 = vpop.f32.mrb[0].mxu0
    %v6631 = vadd.f32 %v6514, %v6630
    %v6632 = vpop.f32.mrb[0].mxu0
    %v6633 = vadd.f32 %v6516, %v6632
    %6634 = vmatprep.mubr.f32.mxu0 0.0
    %v6635 = vand.u32 %v6405, 4294901760
    %6636 = vmatmul.mubr.f32.gmra.mrb[0].mxu0 %v6635
    %v6637 = vpop.f32.mrb[0].mxu0
    %v6638 = vadd.f32 %v6525, %v6637
    %v6639 = vpop.f32.mrb[0].mxu0
    %v6640 = vadd.f32 %v6527, %v6639
    %6641 = vdwg.mxu0
    %v6642 = vand.u32 %v6390, 4294901760
    %v6643 = vsub.f32 %v6390, %v6642
    %6644 = vmatprep.subr.mxu0 %v6643
    %v6645 = vand.u32 %v6389, 4294901760
    %v6646 = vsub.f32 %v6389, %v6645
    %6647 = vmatpush1.msra.mxu0 %v6646
    %v6648 = vand.u32 %v6411, 4294901760
    %v6649 = vsub.f32 %v6411, %v6648
    %6650 = vmatprep.subr.mxu0 %v6649
    %v6651 = vand.u32 %v6408, 4294901760
    %v6652 = vsub.f32 %v6408, %v6651
    %6653 = vmatpush1.msra.mxu0 %v6652
    %6654 = vmatprep.subr.mxu0 0.0
    %6655 = vmatpush1.msra.mxu0 0.0
    %6656 = vmatprep.subr.mxu0 0.0
    %6657 = vmatpush1.msra.mxu0 0.0
    %6658 = vmatprep.subr.mxu0 0.0
    %6659 = vmatpush1.msra.mxu0 0.0
    %6660 = vmatprep.subr.mxu0 0.0
    %6661 = vmatpush1.msra.mxu0 0.0
    %6662 = vmatprep.subr.mxu0 0.0
    %6663 = vmatpush1.msra.mxu0 0.0
    %6664 = vmatprep.subr.mxu0 0.0
    %6665 = vmatpush1.msra.mxu0 0.0
    %6666 = vmatprep.subr.mxu0 0.0
    %6667 = vmatpush1.msra.mxu0 0.0
    %6668 = vmatprep.subr.mxu0 0.0
    %6669 = vmatpush1.msra.mxu0 0.0
    %6670 = vmatprep.subr.mxu0 0.0
    %6671 = vmatpush1.msra.mxu0 0.0
    %6672 = vmatprep.subr.mxu0 0.0
    %6673 = vmatpush1.msra.mxu0 0.0
    %6674 = vmatprep.subr.mxu0 0.0
    %6675 = vmatpush1.msra.mxu0 0.0
    %6676 = vmatprep.subr.mxu0 0.0
    %6677 = vmatpush1.msra.mxu0 0.0
    %6678 = vmatprep.subr.mxu0 0.0
    %6679 = vmatpush1.msra.mxu0 0.0
    %6680 = vmatprep.subr.mxu0 0.0
    %6681 = vmatpush1.msra.mxu0 0.0
    %6682 = vmatprep.subr.mxu0 0.0
    %6683 = vmatpush1.msra.mxu0 0.0
    %6684 = vmatprep.subr.mxu0 0.0
    %6685 = vmatpush1.msra.mxu0 0.0
    %6686 = vmatprep.subr.mxu0 0.0
    %6687 = vmatpush1.msra.mxu0 0.0
    %6688 = vmatprep.subr.mxu0 0.0
    %6689 = vmatpush1.msra.mxu0 0.0
    %6690 = vmatprep.subr.mxu0 0.0
    %6691 = vmatpush1.msra.mxu0 0.0
    %6692 = vmatprep.subr.mxu0 0.0
    %6693 = vmatpush1.msra.mxu0 0.0
    %6694 = vmatprep.subr.mxu0 0.0
    %6695 = vmatpush1.msra.mxu0 0.0
    %6696 = vmatprep.subr.mxu0 0.0
    %6697 = vmatpush1.msra.mxu0 0.0
    %6698 = vmatprep.subr.mxu0 0.0
    %6699 = vmatpush1.msra.mxu0 0.0
    %6700 = vmatprep.subr.mxu0 0.0
    %6701 = vmatpush1.msra.mxu0 0.0
    %6702 = vmatprep.subr.mxu0 0.0
    %6703 = vmatpush1.msra.mxu0 0.0
    %6704 = vmatprep.subr.mxu0 0.0
    %6705 = vmatpush1.msra.mxu0 0.0
    %6706 = vmatprep.subr.mxu0 0.0
    %6707 = vmatpush1.msra.mxu0 0.0
    %6708 = vmatprep.subr.mxu0 0.0
    %6709 = vmatpush1.msra.mxu0 0.0
    %6710 = vmatprep.subr.mxu0 0.0
    %6711 = vmatpush1.msra.mxu0 0.0
    %6712 = vmatprep.subr.mxu0 0.0
    %6713 = vmatpush1.msra.mxu0 0.0
    %6714 = vmatprep.mubr.f32.mxu0 0.0
    %v6715 = vand.u32 %v6396, 4294901760
    %v6716 = vsub.f32 %v6396, %v6715
    %6717 = vmatmul.mubr.f32.gmra.mrb[0].mxu0 %v6716
    %v6718 = vpop.f32.mrb[0].mxu0
    %v6719 = vadd.f32 %v6617, %v6718
    %v6720 = vpop.f32.mrb[0].mxu0
    %v6721 = vadd.f32 %v6619, %v6720
    %6722 = vmatprep.mubr.f32.mxu0 0.0
    %v6723 = vand.u32 %v6399, 4294901760
    %v6724 = vsub.f32 %v6399, %v6723
    %6725 = vmatmul.mubr.f32.gmra.mrb[0].mxu0 %v6724
    %v6726 = vpop.f32.mrb[0].mxu0
    %v6727 = vadd.f32 %v6624, %v6726
    %v6728 = vpop.f32.mrb[0].mxu0
    %v6729 = vadd.f32 %v6626, %v6728
    %6730 = vmatprep.mubr.f32.mxu0 0.0
    %v6731 = vand.u32 %v6402, 4294901760
    %v6732 = vsub.f32 %v6402, %v6731
    %6733 = vmatmul.mubr.f32.gmra.mrb[0].mxu0 %v6732
    %v6734 = vpop.f32.mrb[0].mxu0
    %v6735 = vadd.f32 %v6631, %v6734
    %v6736 = vpop.f32.mrb[0].mxu0
    %v6737 = vadd.f32 %v6633, %v6736
    %6738 = vmatprep.mubr.f32.mxu0 0.0
    %v6739 = vand.u32 %v6405, 4294901760
    %v6740 = vsub.f32 %v6405, %v6739
    %6741 = vmatmul.mubr.f32.gmra.mrb[0].mxu0 %v6740
    %v6742 = vpop.f32.mrb[0].mxu0
    %v6743 = vadd.f32 %v6638, %v6742
    %v6744 = vpop.f32.mrb[0].mxu0
    %v6745 = vadd.f32 %v6640, %v6744
    %6746 = vdwg.mxu0
    %v6747 = vand.u32 %v6390, 4294901760
    %6748 = vmatprep.subr.mxu0 %v6747
    %v6749 = vand.u32 %v6389, 4294901760
    %6750 = vmatpush1.msra.mxu0 %v6749
    %v6751 = vand.u32 %v6411, 4294901760
    %6752 = vmatprep.subr.mxu0 %v6751
    %v6753 = vand.u32 %v6408, 4294901760
    %6754 = vmatpush1.msra.mxu0 %v6753
    %6755 = vmatprep.subr.mxu0 0.0
    %6756 = vmatpush1.msra.mxu0 0.0
    %6757 = vmatprep.subr.mxu0 0.0
    %6758 = vmatpush1.msra.mxu0 0.0
    %6759 = vmatprep.subr.mxu0 0.0
    %6760 = vmatpush1.msra.mxu0 0.0
    %6761 = vmatprep.subr.mxu0 0.0
    %6762 = vmatpush1.msra.mxu0 0.0
    %6763 = vmatprep.subr.mxu0 0.0
    %6764 = vmatpush1.msra.mxu0 0.0
    %6765 = vmatprep.subr.mxu0 0.0
    %6766 = vmatpush1.msra.mxu0 0.0
    %6767 = vmatprep.subr.mxu0 0.0
    %6768 = vmatpush1.msra.mxu0 0.0
    %6769 = vmatprep.subr.mxu0 0.0
    %6770 = vmatpush1.msra.mxu0 0.0
    %6771 = vmatprep.subr.mxu0 0.0
    %6772 = vmatpush1.msra.mxu0 0.0
    %6773 = vmatprep.subr.mxu0 0.0
    %6774 = vmatpush1.msra.mxu0 0.0
    %6775 = vmatprep.subr.mxu0 0.0
    %6776 = vmatpush1.msra.mxu0 0.0
    %6777 = vmatprep.subr.mxu0 0.0
    %6778 = vmatpush1.msra.mxu0 0.0
    %6779 = vmatprep.subr.mxu0 0.0
    %6780 = vmatpush1.msra.mxu0 0.0
    %6781 = vmatprep.subr.mxu0 0.0
    %6782 = vmatpush1.msra.mxu0 0.0
    %6783 = vmatprep.subr.mxu0 0.0
    %6784 = vmatpush1.msra.mxu0 0.0
    %6785 = vmatprep.subr.mxu0 0.0
    %6786 = vmatpush1.msra.mxu0 0.0
    %6787 = vmatprep.subr.mxu0 0.0
    %6788 = vmatpush1.msra.mxu0 0.0
    %6789 = vmatprep.subr.mxu0 0.0
    %6790 = vmatpush1.msra.mxu0 0.0
    %6791 = vmatprep.subr.mxu0 0.0
    %6792 = vmatpush1.msra.mxu0 0.0
    %6793 = vmatprep.subr.mxu0 0.0
    %6794 = vmatpush1.msra.mxu0 0.0
    %6795 = vmatprep.subr.mxu0 0.0
    %6796 = vmatpush1.msra.mxu0 0.0
    %6797 = vmatprep.subr.mxu0 0.0
    %6798 = vmatpush1.msra.mxu0 0.0
    %6799 = vmatprep.subr.mxu0 0.0
    %6800 = vmatpush1.msra.mxu0 0.0
    %6801 = vmatprep.subr.mxu0 0.0
    %6802 = vmatpush1.msra.mxu0 0.0
    %6803 = vmatprep.subr.mxu0 0.0
    %6804 = vmatpush1.msra.mxu0 0.0
    %6805 = vmatprep.subr.mxu0 0.0
    %6806 = vmatpush1.msra.mxu0 0.0
    %6807 = vmatprep.subr.mxu0 0.0
    %6808 = vmatpush1.msra.mxu0 0.0
    %6809 = vmatprep.subr.mxu0 0.0
    %6810 = vmatpush1.msra.mxu0 0.0
    %6811 = vmatprep.subr.mxu0 0.0
    %6812 = vmatpush1.msra.mxu0 0.0
    %6813 = vmatprep.subr.mxu0 0.0
    %6814 = vmatpush1.msra.mxu0 0.0
    %6815 = vmatprep.mubr.f32.mxu0 0.0
    %v6816 = vand.u32 %v6396, 4294901760
    %v6817 = vsub.f32 %v6396, %v6816
    %v6818 = vand.u32 %v6817, 4294901760
    %6819 = vmatmul.mubr.f32.gmra.mrb[0].mxu0 %v6818
    %v6820 = vpop.f32.mrb[0].mxu0
    %v6821 = vadd.f32 %v6719, %v6820
    %v6822 = vpop.f32.mrb[0].mxu0
    %v6823 = vadd.f32 %v6721, %v6822
    %6824 = vmatprep.mubr.f32.mxu0 0.0
    %v6825 = vand.u32 %v6399, 4294901760
    %v6826 = vsub.f32 %v6399, %v6825
    %v6827 = vand.u32 %v6826, 4294901760
    %6828 = vmatmul.mubr.f32.gmra.mrb[0].mxu0 %v6827
    %v6829 = vpop.f32.mrb[0].mxu0
    %v6830 = vadd.f32 %v6727, %v6829
    %v6831 = vpop.f32.mrb[0].mxu0
    %v6832 = vadd.f32 %v6729, %v6831
    %6833 = vmatprep.mubr.f32.mxu0 0.0
    %v6834 = vand.u32 %v6402, 4294901760
    %v6835 = vsub.f32 %v6402, %v6834
    %v6836 = vand.u32 %v6835, 4294901760
    %6837 = vmatmul.mubr.f32.gmra.mrb[0].mxu0 %v6836
    %v6838 = vpop.f32.mrb[0].mxu0
    %v6839 = vadd.f32 %v6735, %v6838
    %v6840 = vpop.f32.mrb[0].mxu0
    %v6841 = vadd.f32 %v6737, %v6840
    %6842 = vmatprep.mubr.f32.mxu0 0.0
    %v6843 = vand.u32 %v6405, 4294901760
    %v6844 = vsub.f32 %v6405, %v6843
    %v6845 = vand.u32 %v6844, 4294901760
    %6846 = vmatmul.mubr.f32.gmra.mrb[0].mxu0 %v6845
    %v6847 = vpop.f32.mrb[0].mxu0
    %v6848 = vadd.f32 %v6743, %v6847
    %v6849 = vpop.f32.mrb[0].mxu0
    %v6850 = vadd.f32 %v6745, %v6849
    %6851 = vdwg.mxu0
    %v6852 = vand.u32 %v6390, 4294901760
    %v6853 = vsub.f32 %v6390, %v6852
    %v6854 = vand.u32 %v6853, 4294901760
    %6855 = vmatprep.subr.mxu0 %v6854
    %v6856 = vand.u32 %v6389, 4294901760
    %v6857 = vsub.f32 %v6389, %v6856
    %v6858 = vand.u32 %v6857, 4294901760
    %6859 = vmatpush1.msra.mxu0 %v6858
    %v6860 = vand.u32 %v6411, 4294901760
    %v6861 = vsub.f32 %v6411, %v6860
    %v6862 = vand.u32 %v6861, 4294901760
    %6863 = vmatprep.subr.mxu0 %v6862
    %v6864 = vand.u32 %v6408, 4294901760
    %v6865 = vsub.f32 %v6408, %v6864
    %v6866 = vand.u32 %v6865, 4294901760
    %6867 = vmatpush1.msra.mxu0 %v6866
    %6868 = vmatprep.subr.mxu0 0.0
    %6869 = vmatpush1.msra.mxu0 0.0
    %6870 = vmatprep.subr.mxu0 0.0
    %6871 = vmatpush1.msra.mxu0 0.0
    %6872 = vmatprep.subr.mxu0 0.0
    %6873 = vmatpush1.msra.mxu0 0.0
    %6874 = vmatprep.subr.mxu0 0.0
    %6875 = vmatpush1.msra.mxu0 0.0
    %6876 = vmatprep.subr.mxu0 0.0
    %6877 = vmatpush1.msra.mxu0 0.0
    %6878 = vmatprep.subr.mxu0 0.0
    %6879 = vmatpush1.msra.mxu0 0.0
    %6880 = vmatprep.subr.mxu0 0.0
    %6881 = vmatpush1.msra.mxu0 0.0
    %6882 = vmatprep.subr.mxu0 0.0
    %6883 = vmatpush1.msra.mxu0 0.0
    %6884 = vmatprep.subr.mxu0 0.0
    %6885 = vmatpush1.msra.mxu0 0.0
    %6886 = vmatprep.subr.mxu0 0.0
    %6887 = vmatpush1.msra.mxu0 0.0
    %6888 = vmatprep.subr.mxu0 0.0
    %6889 = vmatpush1.msra.mxu0 0.0
    %6890 = vmatprep.subr.mxu0 0.0
    %6891 = vmatpush1.msra.mxu0 0.0
    %6892 = vmatprep.subr.mxu0 0.0
    %6893 = vmatpush1.msra.mxu0 0.0
    %6894 = vmatprep.subr.mxu0 0.0
    %6895 = vmatpush1.msra.mxu0 0.0
    %6896 = vmatprep.subr.mxu0 0.0
    %6897 = vmatpush1.msra.mxu0 0.0
    %6898 = vmatprep.subr.mxu0 0.0
    %6899 = vmatpush1.msra.mxu0 0.0
    %6900 = vmatprep.subr.mxu0 0.0
    %6901 = vmatpush1.msra.mxu0 0.0
    %6902 = vmatprep.subr.mxu0 0.0
    %6903 = vmatpush1.msra.mxu0 0.0
    %6904 = vmatprep.subr.mxu0 0.0
    %6905 = vmatpush1.msra.mxu0 0.0
    %6906 = vmatprep.subr.mxu0 0.0
    %6907 = vmatpush1.msra.mxu0 0.0
    %6908 = vmatprep.subr.mxu0 0.0
    %6909 = vmatpush1.msra.mxu0 0.0
    %6910 = vmatprep.subr.mxu0 0.0
    %6911 = vmatpush1.msra.mxu0 0.0
    %6912 = vmatprep.subr.mxu0 0.0
    %6913 = vmatpush1.msra.mxu0 0.0
    %6914 = vmatprep.subr.mxu0 0.0
    %6915 = vmatpush1.msra.mxu0 0.0
    %6916 = vmatprep.subr.mxu0 0.0
    %6917 = vmatpush1.msra.mxu0 0.0
    %6918 = vmatprep.subr.mxu0 0.0
    %6919 = vmatpush1.msra.mxu0 0.0
    %6920 = vmatprep.subr.mxu0 0.0
    %6921 = vmatpush1.msra.mxu0 0.0
    %6922 = vmatprep.subr.mxu0 0.0
    %6923 = vmatpush1.msra.mxu0 0.0
    %6924 = vmatprep.subr.mxu0 0.0
    %6925 = vmatpush1.msra.mxu0 0.0
    %6926 = vmatprep.subr.mxu0 0.0
    %6927 = vmatpush1.msra.mxu0 0.0
    %6928 = vmatprep.mubr.f32.mxu0 0.0
    %v6929 = vand.u32 %v6396, 4294901760
    %6930 = vmatmul.mubr.f32.gmra.mrb[0].mxu0 %v6929
    %v6931 = vpop.f32.mrb[0].mxu0
    %v6932 = vadd.f32 %v6821, %v6931
    %v6933 = vpop.f32.mrb[0].mxu0
    %v6934 = vadd.f32 %v6823, %v6933
    %6935 = vmatprep.mubr.f32.mxu0 0.0
    %v6936 = vand.u32 %v6399, 4294901760
    %6937 = vmatmul.mubr.f32.gmra.mrb[0].mxu0 %v6936
    %v6938 = vpop.f32.mrb[0].mxu0
    %v6939 = vadd.f32 %v6830, %v6938
    %v6940 = vpop.f32.mrb[0].mxu0
    %v6941 = vadd.f32 %v6832, %v6940
    %6942 = vmatprep.mubr.f32.mxu0 0.0
    %v6943 = vand.u32 %v6402, 4294901760
    %6944 = vmatmul.mubr.f32.gmra.mrb[0].mxu0 %v6943
    %v6945 = vpop.f32.mrb[0].mxu0
    %v6946 = vadd.f32 %v6839, %v6945
    %v6947 = vpop.f32.mrb[0].mxu0
    %v6948 = vadd.f32 %v6841, %v6947
    %6949 = vmatprep.mubr.f32.mxu0 0.0
    %v6950 = vand.u32 %v6405, 4294901760
    %6951 = vmatmul.mubr.f32.gmra.mrb[0].mxu0 %v6950
    %v6952 = vpop.f32.mrb[0].mxu0
    %v6953 = vadd.f32 %v6848, %v6952
    %v6954 = vpop.f32.mrb[0].mxu0
    %v6955 = vadd.f32 %v6850, %v6954
    %6956 = vdwg.mxu0
    %v6957 = vand.u32 %v6390, 4294901760
    %6958 = vmatprep.subr.mxu0 %v6957
    %v6959 = vand.u32 %v6389, 4294901760
    %6960 = vmatpush1.msra.mxu0 %v6959
    %v6961 = vand.u32 %v6411, 4294901760
    %6962 = vmatprep.subr.mxu0 %v6961
    %v6963 = vand.u32 %v6408, 4294901760
    %6964 = vmatpush1.msra.mxu0 %v6963
    %6965 = vmatprep.subr.mxu0 0.0
    %6966 = vmatpush1.msra.mxu0 0.0
    %6967 = vmatprep.subr.mxu0 0.0
    %6968 = vmatpush1.msra.mxu0 0.0
    %6969 = vmatprep.subr.mxu0 0.0
    %6970 = vmatpush1.msra.mxu0 0.0
    %6971 = vmatprep.subr.mxu0 0.0
    %6972 = vmatpush1.msra.mxu0 0.0
    %6973 = vmatprep.subr.mxu0 0.0
    %6974 = vmatpush1.msra.mxu0 0.0
    %6975 = vmatprep.subr.mxu0 0.0
    %6976 = vmatpush1.msra.mxu0 0.0
    %6977 = vmatprep.subr.mxu0 0.0
    %6978 = vmatpush1.msra.mxu0 0.0
    %6979 = vmatprep.subr.mxu0 0.0
    %6980 = vmatpush1.msra.mxu0 0.0
    %6981 = vmatprep.subr.mxu0 0.0
    %6982 = vmatpush1.msra.mxu0 0.0
    %6983 = vmatprep.subr.mxu0 0.0
    %6984 = vmatpush1.msra.mxu0 0.0
    %6985 = vmatprep.subr.mxu0 0.0
    %6986 = vmatpush1.msra.mxu0 0.0
    %6987 = vmatprep.subr.mxu0 0.0
    %6988 = vmatpush1.msra.mxu0 0.0
    %6989 = vmatprep.subr.mxu0 0.0
    %6990 = vmatpush1.msra.mxu0 0.0
    %6991 = vmatprep.subr.mxu0 0.0
    %6992 = vmatpush1.msra.mxu0 0.0
    %6993 = vmatprep.subr.mxu0 0.0
    %6994 = vmatpush1.msra.mxu0 0.0
    %6995 = vmatprep.subr.mxu0 0.0
    %6996 = vmatpush1.msra.mxu0 0.0
    %6997 = vmatprep.subr.mxu0 0.0
    %6998 = vmatpush1.msra.mxu0 0.0
    %6999 = vmatprep.subr.mxu0 0.0
    %7000 = vmatpush1.msra.mxu0 0.0
    %7001 = vmatprep.subr.mxu0 0.0
    %7002 = vmatpush1.msra.mxu0 0.0
    %7003 = vmatprep.subr.mxu0 0.0
    %7004 = vmatpush1.msra.mxu0 0.0
    %7005 = vmatprep.subr.mxu0 0.0
    %7006 = vmatpush1.msra.mxu0 0.0
    %7007 = vmatprep.subr.mxu0 0.0
    %7008 = vmatpush1.msra.mxu0 0.0
    %7009 = vmatprep.subr.mxu0 0.0
    %7010 = vmatpush1.msra.mxu0 0.0
    %7011 = vmatprep.subr.mxu0 0.0
    %7012 = vmatpush1.msra.mxu0 0.0
    %7013 = vmatprep.subr.mxu0 0.0
    %7014 = vmatpush1.msra.mxu0 0.0
    %7015 = vmatprep.subr.mxu0 0.0
    %7016 = vmatpush1.msra.mxu0 0.0
    %7017 = vmatprep.subr.mxu0 0.0
    %7018 = vmatpush1.msra.mxu0 0.0
    %7019 = vmatprep.subr.mxu0 0.0
    %7020 = vmatpush1.msra.mxu0 0.0
    %7021 = vmatprep.subr.mxu0 0.0
    %7022 = vmatpush1.msra.mxu0 0.0
    %7023 = vmatprep.subr.mxu0 0.0
    %7024 = vmatpush1.msra.mxu0 0.0
    %7025 = vmatprep.mubr.f32.mxu0 0.0
    %v7026 = vand.u32 %v6396, 4294901760
    %7027 = vmatmul.mubr.f32.gmra.mrb[0].mxu0 %v7026
    %v7028 = vpop.f32.mrb[0].mxu0
    %v7029 = vadd.f32 %v6932, %v7028
    %v7030 = vpop.f32.mrb[0].mxu0
    %v7031 = vadd.f32 %v6934, %v7030
    %7032 = vmatprep.mubr.f32.mxu0 0.0
    %v7033 = vand.u32 %v6399, 4294901760
    %7034 = vmatmul.mubr.f32.gmra.mrb[0].mxu0 %v7033
    %v7035 = vpop.f32.mrb[0].mxu0
    %v7036 = vadd.f32 %v6939, %v7035
    %v7037 = vpop.f32.mrb[0].mxu0
    %v7038 = vadd.f32 %v6941, %v7037
    %7039 = vmatprep.mubr.f32.mxu0 0.0
    %v7040 = vand.u32 %v6402, 4294901760
    %7041 = vmatmul.mubr.f32.gmra.mrb[0].mxu0 %v7040
    %v7042 = vpop.f32.mrb[0].mxu0
    %v7043 = vadd.f32 %v6946, %v7042
    %v7044 = vpop.f32.mrb[0].mxu0
    %v7045 = vadd.f32 %v6948, %v7044
    %7046 = vmatprep.mubr.f32.mxu0 0.0
    %v7047 = vand.u32 %v6405, 4294901760
    %7048 = vmatmul.mubr.f32.gmra.mrb[0].mxu0 %v7047
    %v7049 = vpop.f32.mrb[0].mxu0
    %v7050 = vadd.f32 %v6953, %v7049
    %v7051 = vpop.f32.mrb[0].mxu0
    %v7052 = vadd.f32 %v6955, %v7051
    %7053 = vdwg.mxu0
    %7054 = vmatprep.subr.mxu0 0.0
    %v7055 = vand.u32 %v6391, 4294901760
    %7056 = vmatpush1.msra.mxu0 %v7055
    %7057 = vmatprep.subr.mxu0 0.0
    %v7058 = vand.u32 %v6414, 4294901760
    %7059 = vmatpush1.msra.mxu0 %v7058
    %7060 = vmatprep.subr.mxu0 0.0
    %7061 = vmatpush1.msra.mxu0 0.0
    %7062 = vmatprep.subr.mxu0 0.0
    %7063 = vmatpush1.msra.mxu0 0.0
    %7064 = vmatprep.subr.mxu0 0.0
    %7065 = vmatpush1.msra.mxu0 0.0
    %7066 = vmatprep.subr.mxu0 0.0
    %7067 = vmatpush1.msra.mxu0 0.0
    %7068 = vmatprep.subr.mxu0 0.0
    %7069 = vmatpush1.msra.mxu0 0.0
    %7070 = vmatprep.subr.mxu0 0.0
    %7071 = vmatpush1.msra.mxu0 0.0
    %7072 = vmatprep.subr.mxu0 0.0
    %7073 = vmatpush1.msra.mxu0 0.0
    %7074 = vmatprep.subr.mxu0 0.0
    %7075 = vmatpush1.msra.mxu0 0.0
    %7076 = vmatprep.subr.mxu0 0.0
    %7077 = vmatpush1.msra.mxu0 0.0
    %7078 = vmatprep.subr.mxu0 0.0
    %7079 = vmatpush1.msra.mxu0 0.0
    %7080 = vmatprep.subr.mxu0 0.0
    %7081 = vmatpush1.msra.mxu0 0.0
    %7082 = vmatprep.subr.mxu0 0.0
    %7083 = vmatpush1.msra.mxu0 0.0
    %7084 = vmatprep.subr.mxu0 0.0
    %7085 = vmatpush1.msra.mxu0 0.0
    %7086 = vmatprep.subr.mxu0 0.0
    %7087 = vmatpush1.msra.mxu0 0.0
    %7088 = vmatprep.subr.mxu0 0.0
    %7089 = vmatpush1.msra.mxu0 0.0
    %7090 = vmatprep.subr.mxu0 0.0
    %7091 = vmatpush1.msra.mxu0 0.0
    %7092 = vmatprep.subr.mxu0 0.0
    %7093 = vmatpush1.msra.mxu0 0.0
    %7094 = vmatprep.subr.mxu0 0.0
    %7095 = vmatpush1.msra.mxu0 0.0
    %7096 = vmatprep.subr.mxu0 0.0
    %7097 = vmatpush1.msra.mxu0 0.0
    %7098 = vmatprep.subr.mxu0 0.0
    %7099 = vmatpush1.msra.mxu0 0.0
    %7100 = vmatprep.subr.mxu0 0.0
    %7101 = vmatpush1.msra.mxu0 0.0
    %7102 = vmatprep.subr.mxu0 0.0
    %7103 = vmatpush1.msra.mxu0 0.0
    %7104 = vmatprep.subr.mxu0 0.0
    %7105 = vmatpush1.msra.mxu0 0.0
    %7106 = vmatprep.subr.mxu0 0.0
    %7107 = vmatpush1.msra.mxu0 0.0
    %7108 = vmatprep.subr.mxu0 0.0
    %7109 = vmatpush1.msra.mxu0 0.0
    %7110 = vmatprep.subr.mxu0 0.0
    %7111 = vmatpush1.msra.mxu0 0.0
    %7112 = vmatprep.subr.mxu0 0.0
    %7113 = vmatpush1.msra.mxu0 0.0
    %7114 = vmatprep.subr.mxu0 0.0
    %7115 = vmatpush1.msra.mxu0 0.0
    %7116 = vmatprep.subr.mxu0 0.0
    %7117 = vmatpush1.msra.mxu0 0.0
    %7118 = vmatprep.subr.mxu0 0.0
    %7119 = vmatpush1.msra.mxu0 0.0
    %7120 = vmatprep.mubr.f32.mxu0 0.0
    %v7121 = vand.u32 %v6396, 4294901760
    %v7122 = vsub.f32 %v6396, %v7121
    %v7123 = vand.u32 %v7122, 4294901760
    %v7124 = vsub.f32 %v7122, %v7123
    %v7125 = vand.u32 %v7124, 4294901760
    %7126 = vmatmul.mubr.f32.gmra.mrb[0].mxu0 %v7125
    %v7127 = vpop.f32.mrb[0].mxu0
    %v7128 = vadd.f32 0.0, %v7127
    %v7129 = vpop.f32.mrb[0].mxu0
    %7130 = vmatprep.mubr.f32.mxu0 0.0
    %v7131 = vand.u32 %v6399, 4294901760
    %v7132 = vsub.f32 %v6399, %v7131
    %v7133 = vand.u32 %v7132, 4294901760
    %v7134 = vsub.f32 %v7132, %v7133
    %v7135 = vand.u32 %v7134, 4294901760
    %7136 = vmatmul.mubr.f32.gmra.mrb[0].mxu0 %v7135
    %v7137 = vpop.f32.mrb[0].mxu0
    %v7138 = vadd.f32 0.0, %v7137
    %v7139 = vpop.f32.mrb[0].mxu0
    %7140 = vmatprep.mubr.f32.mxu0 0.0
    %v7141 = vand.u32 %v6402, 4294901760
    %v7142 = vsub.f32 %v6402, %v7141
    %v7143 = vand.u32 %v7142, 4294901760
    %v7144 = vsub.f32 %v7142, %v7143
    %v7145 = vand.u32 %v7144, 4294901760
    %7146 = vmatmul.mubr.f32.gmra.mrb[0].mxu0 %v7145
    %v7147 = vpop.f32.mrb[0].mxu0
    %v7148 = vadd.f32 0.0, %v7147
    %v7149 = vpop.f32.mrb[0].mxu0
    %7150 = vmatprep.mubr.f32.mxu0 0.0
    %v7151 = vand.u32 %v6405, 4294901760
    %v7152 = vsub.f32 %v6405, %v7151
    %v7153 = vand.u32 %v7152, 4294901760
    %v7154 = vsub.f32 %v7152, %v7153
    %v7155 = vand.u32 %v7154, 4294901760
    %7156 = vmatmul.mubr.f32.gmra.mrb[0].mxu0 %v7155
    %v7157 = vpop.f32.mrb[0].mxu0
    %v7158 = vadd.f32 0.0, %v7157
    %v7159 = vpop.f32.mrb[0].mxu0
    %7160 = vdwg.mxu0
    %7161 = vmatprep.subr.mxu0 0.0
    %v7162 = vand.u32 %v6391, 4294901760
    %v7163 = vsub.f32 %v6391, %v7162
    %v7164 = vand.u32 %v7163, 4294901760
    %v7165 = vsub.f32 %v7163, %v7164
    %v7166 = vand.u32 %v7165, 4294901760
    %7167 = vmatpush1.msra.mxu0 %v7166
    %7168 = vmatprep.subr.mxu0 0.0
    %v7169 = vand.u32 %v6414, 4294901760
    %v7170 = vsub.f32 %v6414, %v7169
    %v7171 = vand.u32 %v7170, 4294901760
    %v7172 = vsub.f32 %v7170, %v7171
    %v7173 = vand.u32 %v7172, 4294901760
    %7174 = vmatpush1.msra.mxu0 %v7173
    %7175 = vmatprep.subr.mxu0 0.0
    %7176 = vmatpush1.msra.mxu0 0.0
    %7177 = vmatprep.subr.mxu0 0.0
    %7178 = vmatpush1.msra.mxu0 0.0
    %7179 = vmatprep.subr.mxu0 0.0
    %7180 = vmatpush1.msra.mxu0 0.0
    %7181 = vmatprep.subr.mxu0 0.0
    %7182 = vmatpush1.msra.mxu0 0.0
    %7183 = vmatprep.subr.mxu0 0.0
    %7184 = vmatpush1.msra.mxu0 0.0
    %7185 = vmatprep.subr.mxu0 0.0
    %7186 = vmatpush1.msra.mxu0 0.0
    %7187 = vmatprep.subr.mxu0 0.0
    %7188 = vmatpush1.msra.mxu0 0.0
    %7189 = vmatprep.subr.mxu0 0.0
    %7190 = vmatpush1.msra.mxu0 0.0
    %7191 = vmatprep.subr.mxu0 0.0
    %7192 = vmatpush1.msra.mxu0 0.0
    %7193 = vmatprep.subr.mxu0 0.0
    %7194 = vmatpush1.msra.mxu0 0.0
    %7195 = vmatprep.subr.mxu0 0.0
    %7196 = vmatpush1.msra.mxu0 0.0
    %7197 = vmatprep.subr.mxu0 0.0
    %7198 = vmatpush1.msra.mxu0 0.0
    %7199 = vmatprep.subr.mxu0 0.0
    %7200 = vmatpush1.msra.mxu0 0.0
    %7201 = vmatprep.subr.mxu0 0.0
    %7202 = vmatpush1.msra.mxu0 0.0
    %7203 = vmatprep.subr.mxu0 0.0
    %7204 = vmatpush1.msra.mxu0 0.0
    %7205 = vmatprep.subr.mxu0 0.0
    %7206 = vmatpush1.msra.mxu0 0.0
    %7207 = vmatprep.subr.mxu0 0.0
    %7208 = vmatpush1.msra.mxu0 0.0
    %7209 = vmatprep.subr.mxu0 0.0
    %7210 = vmatpush1.msra.mxu0 0.0
    %7211 = vmatprep.subr.mxu0 0.0
    %7212 = vmatpush1.msra.mxu0 0.0
    %7213 = vmatprep.subr.mxu0 0.0
    %7214 = vmatpush1.msra.mxu0 0.0
    %7215 = vmatprep.subr.mxu0 0.0
    %7216 = vmatpush1.msra.mxu0 0.0
    %7217 = vmatprep.subr.mxu0 0.0
    %7218 = vmatpush1.msra.mxu0 0.0
    %7219 = vmatprep.subr.mxu0 0.0
    %7220 = vmatpush1.msra.mxu0 0.0
    %7221 = vmatprep.subr.mxu0 0.0
    %7222 = vmatpush1.msra.mxu0 0.0
    %7223 = vmatprep.subr.mxu0 0.0
    %7224 = vmatpush1.msra.mxu0 0.0
    %7225 = vmatprep.subr.mxu0 0.0
    %7226 = vmatpush1.msra.mxu0 0.0
    %7227 = vmatprep.subr.mxu0 0.0
    %7228 = vmatpush1.msra.mxu0 0.0
    %7229 = vmatprep.subr.mxu0 0.0
    %7230 = vmatpush1.msra.mxu0 0.0
    %7231 = vmatprep.subr.mxu0 0.0
    %7232 = vmatpush1.msra.mxu0 0.0
    %7233 = vmatprep.subr.mxu0 0.0
    %7234 = vmatpush1.msra.mxu0 0.0
    %7235 = vmatprep.mubr.f32.mxu0 0.0
    %v7236 = vand.u32 %v6396, 4294901760
    %7237 = vmatmul.mubr.f32.gmra.mrb[0].mxu0 %v7236
    %v7238 = vpop.f32.mrb[0].mxu0
    %v7239 = vadd.f32 %v7128, %v7238
    %v7240 = vpop.f32.mrb[0].mxu0
    %7241 = vmatprep.mubr.f32.mxu0 0.0
    %v7242 = vand.u32 %v6399, 4294901760
    %7243 = vmatmul.mubr.f32.gmra.mrb[0].mxu0 %v7242
    %v7244 = vpop.f32.mrb[0].mxu0
    %v7245 = vadd.f32 %v7138, %v7244
    %v7246 = vpop.f32.mrb[0].mxu0
    %7247 = vmatprep.mubr.f32.mxu0 0.0
    %v7248 = vand.u32 %v6402, 4294901760
    %7249 = vmatmul.mubr.f32.gmra.mrb[0].mxu0 %v7248
    %v7250 = vpop.f32.mrb[0].mxu0
    %v7251 = vadd.f32 %v7148, %v7250
    %v7252 = vpop.f32.mrb[0].mxu0
    %7253 = vmatprep.mubr.f32.mxu0 0.0
    %v7254 = vand.u32 %v6405, 4294901760
    %7255 = vmatmul.mubr.f32.gmra.mrb[0].mxu0 %v7254
    %v7256 = vpop.f32.mrb[0].mxu0
    %v7257 = vadd.f32 %v7158, %v7256
    %v7258 = vpop.f32.mrb[0].mxu0
    %7259 = vdwg.mxu0
    %7260 = vmatprep.subr.mxu0 0.0
    %v7261 = vand.u32 %v6391, 4294901760
    %v7262 = vsub.f32 %v6391, %v7261
    %7263 = vmatpush1.msra.mxu0 %v7262
    %7264 = vmatprep.subr.mxu0 0.0
    %v7265 = vand.u32 %v6414, 4294901760
    %v7266 = vsub.f32 %v6414, %v7265
    %7267 = vmatpush1.msra.mxu0 %v7266
    %7268 = vmatprep.subr.mxu0 0.0
    %7269 = vmatpush1.msra.mxu0 0.0
    %7270 = vmatprep.subr.mxu0 0.0
    %7271 = vmatpush1.msra.mxu0 0.0
    %7272 = vmatprep.subr.mxu0 0.0
    %7273 = vmatpush1.msra.mxu0 0.0
    %7274 = vmatprep.subr.mxu0 0.0
    %7275 = vmatpush1.msra.mxu0 0.0
    %7276 = vmatprep.subr.mxu0 0.0
    %7277 = vmatpush1.msra.mxu0 0.0
    %7278 = vmatprep.subr.mxu0 0.0
    %7279 = vmatpush1.msra.mxu0 0.0
    %7280 = vmatprep.subr.mxu0 0.0
    %7281 = vmatpush1.msra.mxu0 0.0
    %7282 = vmatprep.subr.mxu0 0.0
    %7283 = vmatpush1.msra.mxu0 0.0
    %7284 = vmatprep.subr.mxu0 0.0
    %7285 = vmatpush1.msra.mxu0 0.0
    %7286 = vmatprep.subr.mxu0 0.0
    %7287 = vmatpush1.msra.mxu0 0.0
    %7288 = vmatprep.subr.mxu0 0.0
    %7289 = vmatpush1.msra.mxu0 0.0
    %7290 = vmatprep.subr.mxu0 0.0
    %7291 = vmatpush1.msra.mxu0 0.0
    %7292 = vmatprep.subr.mxu0 0.0
    %7293 = vmatpush1.msra.mxu0 0.0
    %7294 = vmatprep.subr.mxu0 0.0
    %7295 = vmatpush1.msra.mxu0 0.0
    %7296 = vmatprep.subr.mxu0 0.0
    %7297 = vmatpush1.msra.mxu0 0.0
    %7298 = vmatprep.subr.mxu0 0.0
    %7299 = vmatpush1.msra.mxu0 0.0
    %7300 = vmatprep.subr.mxu0 0.0
    %7301 = vmatpush1.msra.mxu0 0.0
    %7302 = vmatprep.subr.mxu0 0.0
    %7303 = vmatpush1.msra.mxu0 0.0
    %7304 = vmatprep.subr.mxu0 0.0
    %7305 = vmatpush1.msra.mxu0 0.0
    %7306 = vmatprep.subr.mxu0 0.0
    %7307 = vmatpush1.msra.mxu0 0.0
    %7308 = vmatprep.subr.mxu0 0.0
    %7309 = vmatpush1.msra.mxu0 0.0
    %7310 = vmatprep.subr.mxu0 0.0
    %7311 = vmatpush1.msra.mxu0 0.0
    %7312 = vmatprep.subr.mxu0 0.0
    %7313 = vmatpush1.msra.mxu0 0.0
    %7314 = vmatprep.subr.mxu0 0.0
    %7315 = vmatpush1.msra.mxu0 0.0
    %7316 = vmatprep.subr.mxu0 0.0
    %7317 = vmatpush1.msra.mxu0 0.0
    %7318 = vmatprep.subr.mxu0 0.0
    %7319 = vmatpush1.msra.mxu0 0.0
    %7320 = vmatprep.subr.mxu0 0.0
    %7321 = vmatpush1.msra.mxu0 0.0
    %7322 = vmatprep.subr.mxu0 0.0
    %7323 = vmatpush1.msra.mxu0 0.0
    %7324 = vmatprep.subr.mxu0 0.0
    %7325 = vmatpush1.msra.mxu0 0.0
    %7326 = vmatprep.subr.mxu0 0.0
    %7327 = vmatpush1.msra.mxu0 0.0
    %7328 = vmatprep.mubr.f32.mxu0 0.0
    %v7329 = vand.u32 %v6396, 4294901760
    %v7330 = vsub.f32 %v6396, %v7329
    %7331 = vmatmul.mubr.f32.gmra.mrb[0].mxu0 %v7330
    %v7332 = vpop.f32.mrb[0].mxu0
    %v7333 = vadd.f32 %v7239, %v7332
    %v7334 = vpop.f32.mrb[0].mxu0
    %7335 = vmatprep.mubr.f32.mxu0 0.0
    %v7336 = vand.u32 %v6399, 4294901760
    %v7337 = vsub.f32 %v6399, %v7336
    %7338 = vmatmul.mubr.f32.gmra.mrb[0].mxu0 %v7337
    %v7339 = vpop.f32.mrb[0].mxu0
    %v7340 = vadd.f32 %v7245, %v7339
    %v7341 = vpop.f32.mrb[0].mxu0
    %7342 = vmatprep.mubr.f32.mxu0 0.0
    %v7343 = vand.u32 %v6402, 4294901760
    %v7344 = vsub.f32 %v6402, %v7343
    %7345 = vmatmul.mubr.f32.gmra.mrb[0].mxu0 %v7344
    %v7346 = vpop.f32.mrb[0].mxu0
    %v7347 = vadd.f32 %v7251, %v7346
    %v7348 = vpop.f32.mrb[0].mxu0
    %7349 = vmatprep.mubr.f32.mxu0 0.0
    %v7350 = vand.u32 %v6405, 4294901760
    %v7351 = vsub.f32 %v6405, %v7350
    %7352 = vmatmul.mubr.f32.gmra.mrb[0].mxu0 %v7351
    %v7353 = vpop.f32.mrb[0].mxu0
    %v7354 = vadd.f32 %v7257, %v7353
    %v7355 = vpop.f32.mrb[0].mxu0
    %7356 = vdwg.mxu0
    %7357 = vmatprep.subr.mxu0 0.0
    %v7358 = vand.u32 %v6391, 4294901760
    %7359 = vmatpush1.msra.mxu0 %v7358
    %7360 = vmatprep.subr.mxu0 0.0
    %v7361 = vand.u32 %v6414, 4294901760
    %7362 = vmatpush1.msra.mxu0 %v7361
    %7363 = vmatprep.subr.mxu0 0.0
    %7364 = vmatpush1.msra.mxu0 0.0
    %7365 = vmatprep.subr.mxu0 0.0
    %7366 = vmatpush1.msra.mxu0 0.0
    %7367 = vmatprep.subr.mxu0 0.0
    %7368 = vmatpush1.msra.mxu0 0.0
    %7369 = vmatprep.subr.mxu0 0.0
    %7370 = vmatpush1.msra.mxu0 0.0
    %7371 = vmatprep.subr.mxu0 0.0
    %7372 = vmatpush1.msra.mxu0 0.0
    %7373 = vmatprep.subr.mxu0 0.0
    %7374 = vmatpush1.msra.mxu0 0.0
    %7375 = vmatprep.subr.mxu0 0.0
    %7376 = vmatpush1.msra.mxu0 0.0
    %7377 = vmatprep.subr.mxu0 0.0
    %7378 = vmatpush1.msra.mxu0 0.0
    %7379 = vmatprep.subr.mxu0 0.0
    %7380 = vmatpush1.msra.mxu0 0.0
    %7381 = vmatprep.subr.mxu0 0.0
    %7382 = vmatpush1.msra.mxu0 0.0
    %7383 = vmatprep.subr.mxu0 0.0
    %7384 = vmatpush1.msra.mxu0 0.0
    %7385 = vmatprep.subr.mxu0 0.0
    %7386 = vmatpush1.msra.mxu0 0.0
    %7387 = vmatprep.subr.mxu0 0.0
    %7388 = vmatpush1.msra.mxu0 0.0
    %7389 = vmatprep.subr.mxu0 0.0
    %7390 = vmatpush1.msra.mxu0 0.0
    %7391 = vmatprep.subr.mxu0 0.0
    %7392 = vmatpush1.msra.mxu0 0.0
    %7393 = vmatprep.subr.mxu0 0.0
    %7394 = vmatpush1.msra.mxu0 0.0
    %7395 = vmatprep.subr.mxu0 0.0
    %7396 = vmatpush1.msra.mxu0 0.0
    %7397 = vmatprep.subr.mxu0 0.0
    %7398 = vmatpush1.msra.mxu0 0.0
    %7399 = vmatprep.subr.mxu0 0.0
    %7400 = vmatpush1.msra.mxu0 0.0
    %7401 = vmatprep.subr.mxu0 0.0
    %7402 = vmatpush1.msra.mxu0 0.0
    %7403 = vmatprep.subr.mxu0 0.0
    %7404 = vmatpush1.msra.mxu0 0.0
    %7405 = vmatprep.subr.mxu0 0.0
    %7406 = vmatpush1.msra.mxu0 0.0
    %7407 = vmatprep.subr.mxu0 0.0
    %7408 = vmatpush1.msra.mxu0 0.0
    %7409 = vmatprep.subr.mxu0 0.0
    %7410 = vmatpush1.msra.mxu0 0.0
    %7411 = vmatprep.subr.mxu0 0.0
    %7412 = vmatpush1.msra.mxu0 0.0
    %7413 = vmatprep.subr.mxu0 0.0
    %7414 = vmatpush1.msra.mxu0 0.0
    %7415 = vmatprep.subr.mxu0 0.0
    %7416 = vmatpush1.msra.mxu0 0.0
    %7417 = vmatprep.subr.mxu0 0.0
    %7418 = vmatpush1.msra.mxu0 0.0
    %7419 = vmatprep.subr.mxu0 0.0
    %7420 = vmatpush1.msra.mxu0 0.0
    %7421 = vmatprep.subr.mxu0 0.0
    %7422 = vmatpush1.msra.mxu0 0.0
    %7423 = vmatprep.mubr.f32.mxu0 0.0
    %v7424 = vand.u32 %v6396, 4294901760
    %v7425 = vsub.f32 %v6396, %v7424
    %v7426 = vand.u32 %v7425, 4294901760
    %7427 = vmatmul.mubr.f32.gmra.mrb[0].mxu0 %v7426
    %v7428 = vpop.f32.mrb[0].mxu0
    %v7429 = vadd.f32 %v7333, %v7428
    %v7430 = vpop.f32.mrb[0].mxu0
    %7431 = vmatprep.mubr.f32.mxu0 0.0
    %v7432 = vand.u32 %v6399, 4294901760
    %v7433 = vsub.f32 %v6399, %v7432
    %v7434 = vand.u32 %v7433, 4294901760
    %7435 = vmatmul.mubr.f32.gmra.mrb[0].mxu0 %v7434
    %v7436 = vpop.f32.mrb[0].mxu0
    %v7437 = vadd.f32 %v7340, %v7436
    %v7438 = vpop.f32.mrb[0].mxu0
    %7439 = vmatprep.mubr.f32.mxu0 0.0
    %v7440 = vand.u32 %v6402, 4294901760
    %v7441 = vsub.f32 %v6402, %v7440
    %v7442 = vand.u32 %v7441, 4294901760
    %7443 = vmatmul.mubr.f32.gmra.mrb[0].mxu0 %v7442
    %v7444 = vpop.f32.mrb[0].mxu0
    %v7445 = vadd.f32 %v7347, %v7444
    %v7446 = vpop.f32.mrb[0].mxu0
    %7447 = vmatprep.mubr.f32.mxu0 0.0
    %v7448 = vand.u32 %v6405, 4294901760
    %v7449 = vsub.f32 %v6405, %v7448
    %v7450 = vand.u32 %v7449, 4294901760
    %7451 = vmatmul.mubr.f32.gmra.mrb[0].mxu0 %v7450
    %v7452 = vpop.f32.mrb[0].mxu0
    %v7453 = vadd.f32 %v7354, %v7452
    %v7454 = vpop.f32.mrb[0].mxu0
    %7455 = vdwg.mxu0
    %7456 = vmatprep.subr.mxu0 0.0
    %v7457 = vand.u32 %v6391, 4294901760
    %v7458 = vsub.f32 %v6391, %v7457
    %v7459 = vand.u32 %v7458, 4294901760
    %7460 = vmatpush1.msra.mxu0 %v7459
    %7461 = vmatprep.subr.mxu0 0.0
    %v7462 = vand.u32 %v6414, 4294901760
    %v7463 = vsub.f32 %v6414, %v7462
    %v7464 = vand.u32 %v7463, 4294901760
    %7465 = vmatpush1.msra.mxu0 %v7464
    %7466 = vmatprep.subr.mxu0 0.0
    %7467 = vmatpush1.msra.mxu0 0.0
    %7468 = vmatprep.subr.mxu0 0.0
    %7469 = vmatpush1.msra.mxu0 0.0
    %7470 = vmatprep.subr.mxu0 0.0
    %7471 = vmatpush1.msra.mxu0 0.0
    %7472 = vmatprep.subr.mxu0 0.0
    %7473 = vmatpush1.msra.mxu0 0.0
    %7474 = vmatprep.subr.mxu0 0.0
    %7475 = vmatpush1.msra.mxu0 0.0
    %7476 = vmatprep.subr.mxu0 0.0
    %7477 = vmatpush1.msra.mxu0 0.0
    %7478 = vmatprep.subr.mxu0 0.0
    %7479 = vmatpush1.msra.mxu0 0.0
    %7480 = vmatprep.subr.mxu0 0.0
    %7481 = vmatpush1.msra.mxu0 0.0
    %7482 = vmatprep.subr.mxu0 0.0
    %7483 = vmatpush1.msra.mxu0 0.0
    %7484 = vmatprep.subr.mxu0 0.0
    %7485 = vmatpush1.msra.mxu0 0.0
    %7486 = vmatprep.subr.mxu0 0.0
    %7487 = vmatpush1.msra.mxu0 0.0
    %7488 = vmatprep.subr.mxu0 0.0
    %7489 = vmatpush1.msra.mxu0 0.0
    %7490 = vmatprep.subr.mxu0 0.0
    %7491 = vmatpush1.msra.mxu0 0.0
    %7492 = vmatprep.subr.mxu0 0.0
    %7493 = vmatpush1.msra.mxu0 0.0
    %7494 = vmatprep.subr.mxu0 0.0
    %7495 = vmatpush1.msra.mxu0 0.0
    %7496 = vmatprep.subr.mxu0 0.0
    %7497 = vmatpush1.msra.mxu0 0.0
    %7498 = vmatprep.subr.mxu0 0.0
    %7499 = vmatpush1.msra.mxu0 0.0
    %7500 = vmatprep.subr.mxu0 0.0
    %7501 = vmatpush1.msra.mxu0 0.0
    %7502 = vmatprep.subr.mxu0 0.0
    %7503 = vmatpush1.msra.mxu0 0.0
    %7504 = vmatprep.subr.mxu0 0.0
    %7505 = vmatpush1.msra.mxu0 0.0
    %7506 = vmatprep.subr.mxu0 0.0
    %7507 = vmatpush1.msra.mxu0 0.0
    %7508 = vmatprep.subr.mxu0 0.0
    %7509 = vmatpush1.msra.mxu0 0.0
    %7510 = vmatprep.subr.mxu0 0.0
    %7511 = vmatpush1.msra.mxu0 0.0
    %7512 = vmatprep.subr.mxu0 0.0
    %7513 = vmatpush1.msra.mxu0 0.0
    %7514 = vmatprep.subr.mxu0 0.0
    %7515 = vmatpush1.msra.mxu0 0.0
    %7516 = vmatprep.subr.mxu0 0.0
    %7517 = vmatpush1.msra.mxu0 0.0
    %7518 = vmatprep.subr.mxu0 0.0
    %7519 = vmatpush1.msra.mxu0 0.0
    %7520 = vmatprep.subr.mxu0 0.0
    %7521 = vmatpush1.msra.mxu0 0.0
    %7522 = vmatprep.subr.mxu0 0.0
    %7523 = vmatpush1.msra.mxu0 0.0
    %7524 = vmatprep.subr.mxu0 0.0
    %7525 = vmatpush1.msra.mxu0 0.0
    %7526 = vmatprep.mubr.f32.mxu0 0.0
    %v7527 = vand.u32 %v6396, 4294901760
    %7528 = vmatmul.mubr.f32.gmra.mrb[0].mxu0 %v7527
    %v7529 = vpop.f32.mrb[0].mxu0
    %v7530 = vadd.f32 %v7429, %v7529
    %v7531 = vpop.f32.mrb[0].mxu0
    %7532 = vmatprep.mubr.f32.mxu0 0.0
    %v7533 = vand.u32 %v6399, 4294901760
    %7534 = vmatmul.mubr.f32.gmra.mrb[0].mxu0 %v7533
    %v7535 = vpop.f32.mrb[0].mxu0
    %v7536 = vadd.f32 %v7437, %v7535
    %v7537 = vpop.f32.mrb[0].mxu0
    %7538 = vmatprep.mubr.f32.mxu0 0.0
    %v7539 = vand.u32 %v6402, 4294901760
    %7540 = vmatmul.mubr.f32.gmra.mrb[0].mxu0 %v7539
    %v7541 = vpop.f32.mrb[0].mxu0
    %v7542 = vadd.f32 %v7445, %v7541
    %v7543 = vpop.f32.mrb[0].mxu0
    %7544 = vmatprep.mubr.f32.mxu0 0.0
    %v7545 = vand.u32 %v6405, 4294901760
    %7546 = vmatmul.mubr.f32.gmra.mrb[0].mxu0 %v7545
    %v7547 = vpop.f32.mrb[0].mxu0
    %v7548 = vadd.f32 %v7453, %v7547
    %v7549 = vpop.f32.mrb[0].mxu0
    %7550 = vdwg.mxu0
    %7551 = vmatprep.subr.mxu0 0.0
    %v7552 = vand.u32 %v6391, 4294901760
    %7553 = vmatpush1.msra.mxu0 %v7552
    %7554 = vmatprep.subr.mxu0 0.0
    %v7555 = vand.u32 %v6414, 4294901760
    %7556 = vmatpush1.msra.mxu0 %v7555
    %7557 = vmatprep.subr.mxu0 0.0
    %7558 = vmatpush1.msra.mxu0 0.0
    %7559 = vmatprep.subr.mxu0 0.0
    %7560 = vmatpush1.msra.mxu0 0.0
    %7561 = vmatprep.subr.mxu0 0.0
    %7562 = vmatpush1.msra.mxu0 0.0
    %7563 = vmatprep.subr.mxu0 0.0
    %7564 = vmatpush1.msra.mxu0 0.0
    %7565 = vmatprep.subr.mxu0 0.0
    %7566 = vmatpush1.msra.mxu0 0.0
    %7567 = vmatprep.subr.mxu0 0.0
    %7568 = vmatpush1.msra.mxu0 0.0
    %7569 = vmatprep.subr.mxu0 0.0
    %7570 = vmatpush1.msra.mxu0 0.0
    %7571 = vmatprep.subr.mxu0 0.0
    %7572 = vmatpush1.msra.mxu0 0.0
    %7573 = vmatprep.subr.mxu0 0.0
    %7574 = vmatpush1.msra.mxu0 0.0
    %7575 = vmatprep.subr.mxu0 0.0
    %7576 = vmatpush1.msra.mxu0 0.0
    %7577 = vmatprep.subr.mxu0 0.0
    %7578 = vmatpush1.msra.mxu0 0.0
    %7579 = vmatprep.subr.mxu0 0.0
    %7580 = vmatpush1.msra.mxu0 0.0
    %7581 = vmatprep.subr.mxu0 0.0
    %7582 = vmatpush1.msra.mxu0 0.0
    %7583 = vmatprep.subr.mxu0 0.0
    %7584 = vmatpush1.msra.mxu0 0.0
    %7585 = vmatprep.subr.mxu0 0.0
    %7586 = vmatpush1.msra.mxu0 0.0
    %7587 = vmatprep.subr.mxu0 0.0
    %7588 = vmatpush1.msra.mxu0 0.0
    %7589 = vmatprep.subr.mxu0 0.0
    %7590 = vmatpush1.msra.mxu0 0.0
    %7591 = vmatprep.subr.mxu0 0.0
    %7592 = vmatpush1.msra.mxu0 0.0
    %7593 = vmatprep.subr.mxu0 0.0
    %7594 = vmatpush1.msra.mxu0 0.0
    %7595 = vmatprep.subr.mxu0 0.0
    %7596 = vmatpush1.msra.mxu0 0.0
    %7597 = vmatprep.subr.mxu0 0.0
    %7598 = vmatpush1.msra.mxu0 0.0
    %7599 = vmatprep.subr.mxu0 0.0
    %7600 = vmatpush1.msra.mxu0 0.0
    %7601 = vmatprep.subr.mxu0 0.0
    %7602 = vmatpush1.msra.mxu0 0.0
    %7603 = vmatprep.subr.mxu0 0.0
    %7604 = vmatpush1.msra.mxu0 0.0
    %7605 = vmatprep.subr.mxu0 0.0
    %7606 = vmatpush1.msra.mxu0 0.0
    %7607 = vmatprep.subr.mxu0 0.0
    %7608 = vmatpush1.msra.mxu0 0.0
    %7609 = vmatprep.subr.mxu0 0.0
    %7610 = vmatpush1.msra.mxu0 0.0
    %7611 = vmatprep.subr.mxu0 0.0
    %7612 = vmatpush1.msra.mxu0 0.0
    %7613 = vmatprep.subr.mxu0 0.0
    %7614 = vmatpush1.msra.mxu0 0.0
    %7615 = vmatprep.subr.mxu0 0.0
    %7616 = vmatpush1.msra.mxu0 0.0
    %7617 = vmatprep.mubr.f32.mxu0 0.0
    %v7618 = vand.u32 %v6396, 4294901760
    %7619 = vmatmul.mubr.f32.gmra.mrb[0].mxu0 %v7618
    %v7620 = vpop.f32.mrb[0].mxu0
    %v7621 = vadd.f32 %v7530, %v7620
    %v7622 = vpop.f32.mrb[0].mxu0
    %7623 = vmatprep.mubr.f32.mxu0 0.0
    %v7624 = vand.u32 %v6399, 4294901760
    %7625 = vmatmul.mubr.f32.gmra.mrb[0].mxu0 %v7624
    %v7626 = vpop.f32.mrb[0].mxu0
    %v7627 = vadd.f32 %v7536, %v7626
    %v7628 = vpop.f32.mrb[0].mxu0
    %7629 = vmatprep.mubr.f32.mxu0 0.0
    %v7630 = vand.u32 %v6402, 4294901760
    %7631 = vmatmul.mubr.f32.gmra.mrb[0].mxu0 %v7630
    %v7632 = vpop.f32.mrb[0].mxu0
    %v7633 = vadd.f32 %v7542, %v7632
    %v7634 = vpop.f32.mrb[0].mxu0
    %7635 = vmatprep.mubr.f32.mxu0 0.0
    %v7636 = vand.u32 %v6405, 4294901760
    %7637 = vmatmul.mubr.f32.gmra.mrb[0].mxu0 %v7636
    %v7638 = vpop.f32.mrb[0].mxu0
    %v7639 = vadd.f32 %v7548, %v7638
    %v7640 = vpop.f32.mrb[0].mxu0
    %7641 = vdwg.mxu0
    %v7642 = vmul.f32 %v4560, %v7029
    %v7643 = vmul.f32 %v4561, %v7031
    %v7644 = vmul.f32 %v4562, %v7621
    %v7645 = vmul.f32 %v4563, %v7036
    %v7646 = vmul.f32 %v4564, %v7038
    %v7647 = vmul.f32 %v4565, %v7627
    %v7648 = vmul.f32 %v4566, %v7043
    %v7649 = vmul.f32 %v4567, %v7045
    %v7650 = vmul.f32 %v4568, %v7633
    %v7651 = vmul.f32 %v4569, %v7050
    %v7652 = vmul.f32 %v4570, %v7052
    %v7653 = vmul.f32 %v4571, %v7639
    %v7655 = vlaneseq
    %v7656 = vshrl.u32 %v7655, 7
    %v7657 = vsub.s32 0, %v7656
    %v7658 = vrot.slane %v27, %v7657
    %v7659 = vlaneseq
    %v7660 = vshrl.u32 %v7659, 7
    %v7661 = vsub.s32 1, %v7660
    %v7662 = vrot.slane %v27, %v7661
    %v7663 = vlaneseq
    %v7664 = vshrl.u32 %v7663, 7
    %v7665 = vsub.s32 2, %v7664
    %v7666 = vrot.slane %v27, %v7665
    %v7670 = vadd.f32 %v7642, %v7658
    %v7671 = vadd.f32 %v7643, %v7662
    %v7672 = vadd.f32 %v7644, %v7666
    %v7673 = vadd.f32 %v7645, %v7658
    %v7674 = vadd.f32 %v7646, %v7662
    %v7675 = vadd.f32 %v7647, %v7666
    %v7676 = vadd.f32 %v7648, %v7658
    %v7677 = vadd.f32 %v7649, %v7662
    %v7678 = vadd.f32 %v7650, %v7666
    %v7679 = vadd.f32 %v7651, %v7658
    %v7680 = vadd.f32 %v7652, %v7662
    %v7681 = vadd.f32 %v7653, %v7666
    %7682 = vst [vmem:[#allocation2] sm:$0xff] %v7670
    %7683 = vst [vmem:[#allocation2 + $0x8] sm:$0xff] %v7671
    %7684 = vst [vmem:[#allocation2 + $0x10] sm:$0xff] %v7672
    %7685 = vst [vmem:[#allocation2 + $0x18] sm:$0xff] %v7673
    %7686 = vst [vmem:[#allocation2 + $0x20] sm:$0xff] %v7674
    %7687 = vst [vmem:[#allocation2 + $0x28] sm:$0xff] %v7675
    %7688 = vst [vmem:[#allocation2 + $0x30] sm:$0xff] %v7676
    %7689 = vst [vmem:[#allocation2 + $0x38] sm:$0xff] %v7677
    %7690 = vst [vmem:[#allocation2 + $0x40] sm:$0xff] %v7678
    %7691 = vst [vmem:[#allocation2 + $0x48] sm:$0xff] %v7679
    %7692 = vst [vmem:[#allocation2 + $0x50] sm:$0xff] %v7680
    %7693 = vst [vmem:[#allocation2 + $0x58] sm:$0xff] %v7681
    // Predicated region
    $region22: #{tpu_custom_call.1} parent=1 // pred_check
      _
    $region23: #{tpu_custom_call.1} parent=1 // pred_check_branch
      %7695 = sbr.rel (0) target = $region25
    $region24: #{tpu_custom_call.1} parent=1 // pred_region
      %s7697 = ssub.s32 1536, 1536
      %7698 = vsyncadd [#allocation3], %s7697
      %s7699 = sshll.u32 [#allocation2], 4
      %s7700 = int_to_ptr.vmem [resolvable:$true] %s7699
      %7705 = dma.vmem_to_hbm [thread:$0]  %s7700, 1536, %s5, [#allocation3], 384, 384, 24
    $region25: #{tpu_custom_call.1} parent=1 // pred_fallthru
      _
    // Predicated region
    $region26: #{tpu_custom_call.1} parent=1 // pred_check
      _
    $region27: #{tpu_custom_call.1} parent=1 // pred_check_branch
      %7707 = sbr.rel (0) target = $region29
    $region28: #{tpu_custom_call.1} parent=1 // pred_region
      %7708 = dma.done [#allocation3], 1536
    $region29: #{tpu_custom_call.1} parent=1 // pred_fallthru
      _
    %7709 = vsyncpa [#allocation3], 1

</llo_original>
